<compile_context>
chip_gen: v7x
topology: tpu7x:2x2x1
jax: 0.10.0
libtpu: 0.0.40
codegen_flags: <defaults>
</compile_context>

<pallas_src>
import jax
import jax.numpy as jnp
from jax import lax
from jax.experimental import pallas as pl
from jax.experimental.pallas import tpu as pltpu

POOL_K = 5
POOL_S = 2
BN_EPS = 1e-5
C_MID = 128      # conv1 output channels
C_FEAT = 768     # conv2 output channels / classifier input
ALIGN = 16       # batch-tile granularity (bf16 sublane packing)


def _aux_head_kernel(x_ref,    # (H, W, TN, C)  bf16 input tile
                     w1_ref,   # (C, 128)       bf16: conv1 w * (bn1 scale / 25)
                     b1_ref,   # (1, 4*128)     f32 : bn1 shift, tiled per position
                     w2_ref,   # (512, 768)     bf16: conv2 w * bn2 scale
                     b2_ref,   # (1, 768)       f32 : bn2 shift
                     wc_ref,   # (768, CPAD)    bf16: classifier weight (lane padded)
                     bc_ref,   # (1, CPAD)      f32 : classifier bias   (lane padded)
                     out_ref):  # (TN, CPAD)    f32
    H, W, TN, C = x_ref.shape
    PH = (H - POOL_K) // POOL_S + 1
    PW = (W - POOL_K) // POOL_S + 1

    # ReLU in f32; pooling sums stay in f32 (VPU work is trivial vs the DMA).
    y = jnp.maximum(x_ref[...].astype(jnp.float32), 0.0)        # (H, W, TN, C)

    # AvgPool2d(5, stride=2, pad=0) with column-sum reuse.  All slices index
    # the leading H/W axes -> pure tile offsets over (TN, C) vreg tiles.
    csum = []                                   # per output column: (H, TN, C)
    for pw in range(PW):
        acc = y[:, pw * POOL_S]
        for kw in range(1, POOL_K):
            acc = acc + y[:, pw * POOL_S + kw]
        csum.append(acc)

    # Finish the pool vertically and run conv1 (1x1) per pooled position as a
    # (TN, C) @ (C, 128) matmul; BN1 scale and the 1/25 are folded into w1.
    w1 = w1_ref[...]
    h1 = []                                     # PH*PW entries of (TN, 128) f32
    for ph in range(PH):
        for pw in range(PW):
            acc = csum[pw][ph * POOL_S]
            for kh in range(1, POOL_K):
                acc = acc + csum[pw][ph * POOL_S + kh]
            h1.append(jnp.dot(acc.astype(w1.dtype), w1,
                              preferred_element_type=jnp.float32))

    # BN1 shift + ReLU applied once on the lane-concatenated (TN, 512) block.
    feat = jnp.concatenate(h1, axis=1)
    feat = jnp.maximum(feat + b1_ref[...], 0.0)

    # Conv2d(128->768, k=2, VALID): pooled grid == kernel extent, so a single
    # matmul on the lane-concatenated block (BN2 scale folded into w2).
    h2 = jnp.dot(feat.astype(w2_ref.dtype), w2_ref[...],
                 preferred_element_type=jnp.float32)
    h2 = jnp.maximum(h2 + b2_ref[...], 0.0)                      # (TN, 768)

    # Linear classifier; CPAD is a multiple of 128 -> unmasked full-lane store.
    out_ref[...] = (jnp.dot(h2.astype(wc_ref.dtype), wc_ref[...],
                            preferred_element_type=jnp.float32)
                    + bc_ref[...])


def _vmem_capacity_bytes():
    try:
        return int(pltpu.get_tpu_info().vmem_capacity_bytes)
    except Exception:
        return 64 * 1024 * 1024      # v7x per-TensorCore: smallest of v5e/v6e/v7x


def _choose_batch_tile(N, H, W, C, cpad, batch_tile):
    """Derive the batch tile from an explicit per-generation VMEM budget."""
    vmem_cap = _vmem_capacity_bytes()
    budget = int(vmem_cap * 0.6)                  # headroom for compiler temps
    c_lanes = pl.cdiv(C, 128) * 128               # physical lane padding of x
    feat_in = 4 * C_MID                           # PH*PW*C_MID

    # Grid-invariant weights/biases (requested single-buffered; budget 2x in
    # case the fallback path double-buffers them anyway).
    w_bytes = 2 * (c_lanes * C_MID + feat_in * C_FEAT + C_FEAT * cpad)   # bf16
    w_bytes += 4 * (feat_in + C_FEAT + cpad)                             # f32 biases

    # Per-batch-row bytes of one grid step.
    per_row = (2 * 2 * H * W * c_lanes            # x window (bf16, 2 buffers)
               + 4 * H * W * c_lanes              # f32 ReLU copy of the window
               + 4 * 3 * H * c_lanes              # column sums + loop temp
               + 4 * (2 * feat_in + C_FEAT)       # pooled/feat/h2 activations
               + 2 * 4 * cpad)                    # output rows (f32, 2 buffers)

    tn = int((budget - 2 * w_bytes) // per_row)
    tn = max(ALIGN, min(tn // ALIGN * ALIGN, 1024))
    if batch_tile is not None:
        tn = max(ALIGN, min(tn, batch_tile // ALIGN * ALIGN))

    # Keep >= 2 grid steps so the "parallel" batch axis can shard across both
    # v7x TensorCores, and rebalance the tile so batch padding stays small.
    steps = max(2, pl.cdiv(N, tn))
    tn = min(tn, max(ALIGN, pl.cdiv(pl.cdiv(N, steps), ALIGN) * ALIGN))
    n_pad = max(2, pl.cdiv(N, tn)) * tn

    vmem_limit = int(min(vmem_cap, 128 * 1024 * 1024) * 0.75)
    return tn, n_pad, vmem_limit


def aux_head_forward(x_nchw, params, *, batch_tile=None):
    """x_nchw: (N, C, H, W) float; params: raw torch-shaped weights."""
    (w1, g1, be1, m1, v1, w2, g2, be2, m2, v2, wc, bc) = params
    N, C, H, W = x_nchw.shape
    num_classes = wc.shape[0]
    assert w1.shape[0] == C_MID and w1.shape[1] == C

    PH = (H - POOL_K) // POOL_S + 1
    PW = (W - POOL_K) // POOL_S + 1
    assert PH == 2 and PW == 2, (
        "AuxiliaryHeadImageNet needs an 8x8 spatial input so the flatten "
        "yields exactly 768 features for the Linear(768, num_classes)")
    feat_in = PH * PW * C_MID                                         # 512

    # ---- parameter folding (one-time glue, not hot path) ----
    inv_area = 1.0 / float(POOL_K * POOL_K)
    a1 = g1 / jnp.sqrt(v1 + BN_EPS)
    w1_mat = (w1.reshape(C_MID, C).T
              * (a1 * inv_area)[None, :]).astype(jnp.bfloat16)        # (C, 128)
    b1v = jnp.tile((be1 - m1 * a1).astype(jnp.float32).reshape(1, C_MID),
                   (1, PH * PW))                                      # (1, 512)

    a2 = g2 / jnp.sqrt(v2 + BN_EPS)
    # (O=768, I=128, KH, KW) -> (KH, KW, I, O) -> (KH*KW*I, O); BN2 scale folded.
    w2_mat = (jnp.transpose(w2, (2, 3, 1, 0)).reshape(feat_in, C_FEAT)
              * a2[None, :]).astype(jnp.bfloat16)                     # (512, 768)
    b2v = (be2 - m2 * a2).astype(jnp.float32).reshape(1, C_FEAT)

    # Classifier padded to a full 128-lane multiple -> unmasked output stores.
    cpad = pl.cdiv(num_classes, 128) * 128
    wc_p = jnp.zeros((C_FEAT, cpad), jnp.bfloat16
                     ).at[:, :num_classes].set(wc.T.astype(jnp.bfloat16))
    bc_p = jnp.zeros((1, cpad), jnp.float32).at[0, :num_classes].set(bc)

    # ---- x layout: spatial dims lead, batch on sublanes, channels on lanes;
    # cast to bf16 in the same pass (halves the HBM stream the kernel reads).
    # TODO(synk): accept (H, W, N, C) / bf16 directly from the producer to
    # avoid this extra HBM round trip for large activations.
    x_hwnc = jnp.transpose(x_nchw, (2, 3, 0, 1)).astype(jnp.bfloat16)

    tn, n_pad, vmem_limit = _choose_batch_tile(N, H, W, C, cpad, batch_tile)
    if n_pad != N:
        x_hwnc = jnp.pad(x_hwnc, ((0, 0), (0, 0), (0, n_pad - N), (0, 0)))

    def build(weight_pipeline_mode):
        def wspec(shape):
            if weight_pipeline_mode is None:
                return pl.BlockSpec(shape, lambda i: (0, 0))
            return pl.BlockSpec(shape, lambda i: (0, 0),
                                pipeline_mode=weight_pipeline_mode)
        return pl.pallas_call(
            _aux_head_kernel,
            out_shape=jax.ShapeDtypeStruct((n_pad, cpad), jnp.float32),
            grid=(n_pad // tn,),
            in_specs=[
                pl.BlockSpec((H, W, tn, C), lambda i: (0, 0, i, 0)),
                wspec((C, C_MID)),
                wspec((1, feat_in)),
                wspec((feat_in, C_FEAT)),
                wspec((1, C_FEAT)),
                wspec((C_FEAT, cpad)),
                wspec((1, cpad)),
            ],
            out_specs=pl.BlockSpec((tn, cpad), lambda i: (i, 0)),
            compiler_params=pltpu.CompilerParams(
                dimension_semantics=("parallel",),
                vmem_limit_bytes=vmem_limit),
        )

    args = (x_hwnc, w1_mat, b1v, w2_mat, b2v, wc_p, bc_p)
    try:
        # Grid-invariant weights: request single buffering (saves ~1 MiB VMEM).
        out = jax.block_until_ready(build(pl.Buffered(1))(*args))
    except Exception:
        # TODO(synk): drop this fallback once Buffered(1) on grid-invariant
        # operands is supported everywhere; double-buffering the (bf16)
        # weights only costs ~1 MiB of extra VMEM.
        out = jax.block_until_ready(build(None)(*args))

    return out[:N, :num_classes]


def reference_forward(x, params):
    """Pure-JAX f32 reference mirroring the PyTorch module (eval-mode BN)."""
    (w1, g1, be1, m1, v1, w2, g2, be2, m2, v2, wc, bc) = params
    y = jnp.maximum(x, 0.0)
    y = lax.reduce_window(y, 0.0, lax.add, (1, 1, POOL_K, POOL_K),
                          (1, 1, POOL_S, POOL_S), 'VALID') / float(POOL_K * POOL_K)
    y = lax.conv_general_dilated(y, w1, (1, 1), 'VALID',
                                 dimension_numbers=('NCHW', 'OIHW', 'NCHW'),
                                 precision=lax.Precision.HIGHEST)
    y = (y - m1[None, :, None, None]) * (g1 / jnp.sqrt(v1 + BN_EPS))[None, :, None, None] \
        + be1[None, :, None, None]
    y = jnp.maximum(y, 0.0)
    y = lax.conv_general_dilated(y, w2, (1, 1), 'VALID',
                                 dimension_numbers=('NCHW', 'OIHW', 'NCHW'),
                                 precision=lax.Precision.HIGHEST)
    y = (y - m2[None, :, None, None]) * (g2 / jnp.sqrt(v2 + BN_EPS))[None, :, None, None] \
        + be2[None, :, None, None]
    y = jnp.maximum(y, 0.0)
    y = y.reshape(y.shape[0], -1)                                     # (N, 768)
    return jnp.dot(y, wc.T, precision=lax.Precision.HIGHEST) + bc


if __name__ == "__main__":
    key = jax.random.PRNGKey(0)
    ks = jax.random.split(key, 13)

    # Small shapes: N=2, C=8, spatial 8x8 (pool -> 2x2, conv2 2x2 -> 1x1, flatten=768).
    N, C, H, W = 2, 8, 8, 8
    num_classes = 10

    x = jax.random.normal(ks[0], (N, C, H, W), jnp.float32)

    # Deterministic synthetic parameters (shapes follow the module's __init__).
    w1 = jax.random.normal(ks[1], (128, C, 1, 1), jnp.float32) * 0.1
    g1 = 0.5 + jax.random.uniform(ks[2], (128,), jnp.float32)
    be1 = jax.random.normal(ks[3], (128,), jnp.float32) * 0.1
    m1 = jax.random.normal(ks[4], (128,), jnp.float32) * 0.1
    v1 = 0.5 + jax.random.uniform(ks[5], (128,), jnp.float32)
    w2 = jax.random.normal(ks[6], (768, 128, 2, 2), jnp.float32) * 0.05
    g2 = 0.5 + jax.random.uniform(ks[7], (768,), jnp.float32)
    be2 = jax.random.normal(ks[8], (768,), jnp.float32) * 0.1
    m2 = jax.random.normal(ks[9], (768,), jnp.float32) * 0.1
    v2 = 0.5 + jax.random.uniform(ks[10], (768,), jnp.float32)
    wc = jax.random.normal(ks[11], (num_classes, 768), jnp.float32) * 0.03
    bc = jax.random.normal(ks[12], (num_classes,), jnp.float32) * 0.01
    params = (w1, g1, be1, m1, v1, w2, g2, be2, m2, v2, wc, bc)

    out = aux_head_forward(x, params)
    out = jax.block_until_ready(out)

    ref = reference_forward(x, params)
    assert out.shape == (N, num_classes), out.shape
    max_err = float(jnp.max(jnp.abs(out - ref)))
    # bf16 matmul operands with f32 accumulation -> compare at bf16 tolerance.
    assert jnp.allclose(out, ref, atol=2e-2, rtol=2e-2), f"max abs diff {max_err}"

    print("KERNEL_OK")
</pallas_src>

<mosaic_0001>
module attributes {stable_mosaic.version = 11 : i64} {
  func.func @_aux_head_kernel(%arg0: i32, %arg1: memref<8x8x16x8xbf16, #tpu.memory_space<vmem>>, %arg2: memref<8x128xbf16, #tpu.memory_space<vmem>>, %arg3: memref<1x512xf32, #tpu.memory_space<vmem>>, %arg4: memref<512x768xbf16, #tpu.memory_space<vmem>>, %arg5: memref<1x768xf32, #tpu.memory_space<vmem>>, %arg6: memref<768x128xbf16, #tpu.memory_space<vmem>>, %arg7: memref<1x128xf32, #tpu.memory_space<vmem>>, %arg8: memref<16x128xf32, #tpu.memory_space<vmem>>) attributes {dimension_semantics = [#tpu.dimension_semantics<parallel>], iteration_bounds = array<i64: 2>, scalar_prefetch = 0 : i64, scratch_operands = 0 : i64, tpu.core_type = #tpu.core_type<tc>, window_params = [{transform_indices = @transform_0, window_bounds = array<i64: 8, 8, 16, 8>}, {pipeline_mode = #tpu.pipeline_mode<synchronous>, transform_indices = @transform_1, window_bounds = array<i64: 8, 128>}, {pipeline_mode = #tpu.pipeline_mode<synchronous>, transform_indices = @transform_2, window_bounds = array<i64: 1, 512>}, {pipeline_mode = #tpu.pipeline_mode<synchronous>, transform_indices = @transform_3, window_bounds = array<i64: 512, 768>}, {pipeline_mode = #tpu.pipeline_mode<synchronous>, transform_indices = @transform_4, window_bounds = array<i64: 1, 768>}, {pipeline_mode = #tpu.pipeline_mode<synchronous>, transform_indices = @transform_5, window_bounds = array<i64: 768, 128>}, {pipeline_mode = #tpu.pipeline_mode<synchronous>, transform_indices = @transform_6, window_bounds = array<i64: 1, 128>}, {transform_indices = @transform_7, window_bounds = array<i64: 16, 128>}]} {
    %c0 = arith.constant 0 : index
    %c0_0 = arith.constant 0 : index
    %c0_1 = arith.constant 0 : index
    %c0_2 = arith.constant 0 : index
    %0 = vector.load %arg1[%c0, %c0_0, %c0_1, %c0_2] : memref<8x8x16x8xbf16, #tpu.memory_space<vmem>>, vector<8x8x16x8xbf16>
    %1 = arith.extf %0 : vector<8x8x16x8xbf16> to vector<8x8x16x8xf32>
    %cst = arith.constant 0.000000e+00 : f32
    %2 = vector.broadcast %cst : f32 to vector<8x8x16x8xf32>
    %3 = arith.maximumf %1, %2 : vector<8x8x16x8xf32>
    %4 = vector.extract_strided_slice %3 {offsets = [0, 0, 0, 0], sizes = [8, 1, 16, 8], strides = [1, 1, 1, 1]} : vector<8x8x16x8xf32> to vector<8x1x16x8xf32>
    %5 = vector.shape_cast %4 : vector<8x1x16x8xf32> to vector<8x16x8xf32>
    %6 = vector.extract_strided_slice %3 {offsets = [0, 1, 0, 0], sizes = [8, 1, 16, 8], strides = [1, 1, 1, 1]} : vector<8x8x16x8xf32> to vector<8x1x16x8xf32>
    %7 = vector.shape_cast %6 : vector<8x1x16x8xf32> to vector<8x16x8xf32>
    %8 = arith.addf %5, %7 : vector<8x16x8xf32>
    %9 = vector.extract_strided_slice %3 {offsets = [0, 2, 0, 0], sizes = [8, 1, 16, 8], strides = [1, 1, 1, 1]} : vector<8x8x16x8xf32> to vector<8x1x16x8xf32>
    %10 = vector.shape_cast %9 : vector<8x1x16x8xf32> to vector<8x16x8xf32>
    %11 = arith.addf %8, %10 : vector<8x16x8xf32>
    %12 = vector.extract_strided_slice %3 {offsets = [0, 3, 0, 0], sizes = [8, 1, 16, 8], strides = [1, 1, 1, 1]} : vector<8x8x16x8xf32> to vector<8x1x16x8xf32>
    %13 = vector.shape_cast %12 : vector<8x1x16x8xf32> to vector<8x16x8xf32>
    %14 = arith.addf %11, %13 : vector<8x16x8xf32>
    %15 = vector.extract_strided_slice %3 {offsets = [0, 4, 0, 0], sizes = [8, 1, 16, 8], strides = [1, 1, 1, 1]} : vector<8x8x16x8xf32> to vector<8x1x16x8xf32>
    %16 = vector.shape_cast %15 : vector<8x1x16x8xf32> to vector<8x16x8xf32>
    %17 = arith.addf %14, %16 : vector<8x16x8xf32>
    %18 = vector.extract_strided_slice %3 {offsets = [0, 2, 0, 0], sizes = [8, 1, 16, 8], strides = [1, 1, 1, 1]} : vector<8x8x16x8xf32> to vector<8x1x16x8xf32>
    %19 = vector.shape_cast %18 : vector<8x1x16x8xf32> to vector<8x16x8xf32>
    %20 = vector.extract_strided_slice %3 {offsets = [0, 3, 0, 0], sizes = [8, 1, 16, 8], strides = [1, 1, 1, 1]} : vector<8x8x16x8xf32> to vector<8x1x16x8xf32>
    %21 = vector.shape_cast %20 : vector<8x1x16x8xf32> to vector<8x16x8xf32>
    %22 = arith.addf %19, %21 : vector<8x16x8xf32>
    %23 = vector.extract_strided_slice %3 {offsets = [0, 4, 0, 0], sizes = [8, 1, 16, 8], strides = [1, 1, 1, 1]} : vector<8x8x16x8xf32> to vector<8x1x16x8xf32>
    %24 = vector.shape_cast %23 : vector<8x1x16x8xf32> to vector<8x16x8xf32>
    %25 = arith.addf %22, %24 : vector<8x16x8xf32>
    %26 = vector.extract_strided_slice %3 {offsets = [0, 5, 0, 0], sizes = [8, 1, 16, 8], strides = [1, 1, 1, 1]} : vector<8x8x16x8xf32> to vector<8x1x16x8xf32>
    %27 = vector.shape_cast %26 : vector<8x1x16x8xf32> to vector<8x16x8xf32>
    %28 = arith.addf %25, %27 : vector<8x16x8xf32>
    %29 = vector.extract_strided_slice %3 {offsets = [0, 6, 0, 0], sizes = [8, 1, 16, 8], strides = [1, 1, 1, 1]} : vector<8x8x16x8xf32> to vector<8x1x16x8xf32>
    %30 = vector.shape_cast %29 : vector<8x1x16x8xf32> to vector<8x16x8xf32>
    %31 = arith.addf %28, %30 : vector<8x16x8xf32>
    %c0_3 = arith.constant 0 : index
    %c0_4 = arith.constant 0 : index
    %32 = vector.load %arg2[%c0_3, %c0_4] : memref<8x128xbf16, #tpu.memory_space<vmem>>, vector<8x128xbf16>
    %33 = vector.extract_strided_slice %17 {offsets = [0, 0, 0], sizes = [1, 16, 8], strides = [1, 1, 1]} : vector<8x16x8xf32> to vector<1x16x8xf32>
    %34 = vector.shape_cast %33 : vector<1x16x8xf32> to vector<16x8xf32>
    %35 = vector.extract_strided_slice %17 {offsets = [1, 0, 0], sizes = [1, 16, 8], strides = [1, 1, 1]} : vector<8x16x8xf32> to vector<1x16x8xf32>
    %36 = vector.shape_cast %35 : vector<1x16x8xf32> to vector<16x8xf32>
    %37 = arith.addf %34, %36 : vector<16x8xf32>
    %38 = vector.extract_strided_slice %17 {offsets = [2, 0, 0], sizes = [1, 16, 8], strides = [1, 1, 1]} : vector<8x16x8xf32> to vector<1x16x8xf32>
    %39 = vector.shape_cast %38 : vector<1x16x8xf32> to vector<16x8xf32>
    %40 = arith.addf %37, %39 : vector<16x8xf32>
    %41 = vector.extract_strided_slice %17 {offsets = [3, 0, 0], sizes = [1, 16, 8], strides = [1, 1, 1]} : vector<8x16x8xf32> to vector<1x16x8xf32>
    %42 = vector.shape_cast %41 : vector<1x16x8xf32> to vector<16x8xf32>
    %43 = arith.addf %40, %42 : vector<16x8xf32>
    %44 = vector.extract_strided_slice %17 {offsets = [4, 0, 0], sizes = [1, 16, 8], strides = [1, 1, 1]} : vector<8x16x8xf32> to vector<1x16x8xf32>
    %45 = vector.shape_cast %44 : vector<1x16x8xf32> to vector<16x8xf32>
    %46 = arith.addf %43, %45 : vector<16x8xf32>
    %47 = arith.truncf %46 : vector<16x8xf32> to vector<16x8xbf16>
    %cst_5 = arith.constant dense<0.000000e+00> : vector<16x128xf32>
    %48 = tpu.matmul %47, %32, %cst_5 {dimension_numbers = #tpu.dot_dimension_numbers<[1], [0], [0], [1], [0, 0, 1, 1], [], []>} : vector<16x8xbf16>, vector<8x128xbf16>, vector<16x128xf32> -> vector<16x128xf32>
    %49 = vector.extract_strided_slice %31 {offsets = [0, 0, 0], sizes = [1, 16, 8], strides = [1, 1, 1]} : vector<8x16x8xf32> to vector<1x16x8xf32>
    %50 = vector.shape_cast %49 : vector<1x16x8xf32> to vector<16x8xf32>
    %51 = vector.extract_strided_slice %31 {offsets = [1, 0, 0], sizes = [1, 16, 8], strides = [1, 1, 1]} : vector<8x16x8xf32> to vector<1x16x8xf32>
    %52 = vector.shape_cast %51 : vector<1x16x8xf32> to vector<16x8xf32>
    %53 = arith.addf %50, %52 : vector<16x8xf32>
    %54 = vector.extract_strided_slice %31 {offsets = [2, 0, 0], sizes = [1, 16, 8], strides = [1, 1, 1]} : vector<8x16x8xf32> to vector<1x16x8xf32>
    %55 = vector.shape_cast %54 : vector<1x16x8xf32> to vector<16x8xf32>
    %56 = arith.addf %53, %55 : vector<16x8xf32>
    %57 = vector.extract_strided_slice %31 {offsets = [3, 0, 0], sizes = [1, 16, 8], strides = [1, 1, 1]} : vector<8x16x8xf32> to vector<1x16x8xf32>
    %58 = vector.shape_cast %57 : vector<1x16x8xf32> to vector<16x8xf32>
    %59 = arith.addf %56, %58 : vector<16x8xf32>
    %60 = vector.extract_strided_slice %31 {offsets = [4, 0, 0], sizes = [1, 16, 8], strides = [1, 1, 1]} : vector<8x16x8xf32> to vector<1x16x8xf32>
    %61 = vector.shape_cast %60 : vector<1x16x8xf32> to vector<16x8xf32>
    %62 = arith.addf %59, %61 : vector<16x8xf32>
    %63 = arith.truncf %62 : vector<16x8xf32> to vector<16x8xbf16>
    %cst_6 = arith.constant dense<0.000000e+00> : vector<16x128xf32>
    %64 = tpu.matmul %63, %32, %cst_6 {dimension_numbers = #tpu.dot_dimension_numbers<[1], [0], [0], [1], [0, 0, 1, 1], [], []>} : vector<16x8xbf16>, vector<8x128xbf16>, vector<16x128xf32> -> vector<16x128xf32>
    %65 = vector.extract_strided_slice %17 {offsets = [2, 0, 0], sizes = [1, 16, 8], strides = [1, 1, 1]} : vector<8x16x8xf32> to vector<1x16x8xf32>
    %66 = vector.shape_cast %65 : vector<1x16x8xf32> to vector<16x8xf32>
    %67 = vector.extract_strided_slice %17 {offsets = [3, 0, 0], sizes = [1, 16, 8], strides = [1, 1, 1]} : vector<8x16x8xf32> to vector<1x16x8xf32>
    %68 = vector.shape_cast %67 : vector<1x16x8xf32> to vector<16x8xf32>
    %69 = arith.addf %66, %68 : vector<16x8xf32>
    %70 = vector.extract_strided_slice %17 {offsets = [4, 0, 0], sizes = [1, 16, 8], strides = [1, 1, 1]} : vector<8x16x8xf32> to vector<1x16x8xf32>
    %71 = vector.shape_cast %70 : vector<1x16x8xf32> to vector<16x8xf32>
    %72 = arith.addf %69, %71 : vector<16x8xf32>
    %73 = vector.extract_strided_slice %17 {offsets = [5, 0, 0], sizes = [1, 16, 8], strides = [1, 1, 1]} : vector<8x16x8xf32> to vector<1x16x8xf32>
    %74 = vector.shape_cast %73 : vector<1x16x8xf32> to vector<16x8xf32>
    %75 = arith.addf %72, %74 : vector<16x8xf32>
    %76 = vector.extract_strided_slice %17 {offsets = [6, 0, 0], sizes = [1, 16, 8], strides = [1, 1, 1]} : vector<8x16x8xf32> to vector<1x16x8xf32>
    %77 = vector.shape_cast %76 : vector<1x16x8xf32> to vector<16x8xf32>
    %78 = arith.addf %75, %77 : vector<16x8xf32>
    %79 = arith.truncf %78 : vector<16x8xf32> to vector<16x8xbf16>
    %cst_7 = arith.constant dense<0.000000e+00> : vector<16x128xf32>
    %80 = tpu.matmul %79, %32, %cst_7 {dimension_numbers = #tpu.dot_dimension_numbers<[1], [0], [0], [1], [0, 0, 1, 1], [], []>} : vector<16x8xbf16>, vector<8x128xbf16>, vector<16x128xf32> -> vector<16x128xf32>
    %81 = vector.extract_strided_slice %31 {offsets = [2, 0, 0], sizes = [1, 16, 8], strides = [1, 1, 1]} : vector<8x16x8xf32> to vector<1x16x8xf32>
    %82 = vector.shape_cast %81 : vector<1x16x8xf32> to vector<16x8xf32>
    %83 = vector.extract_strided_slice %31 {offsets = [3, 0, 0], sizes = [1, 16, 8], strides = [1, 1, 1]} : vector<8x16x8xf32> to vector<1x16x8xf32>
    %84 = vector.shape_cast %83 : vector<1x16x8xf32> to vector<16x8xf32>
    %85 = arith.addf %82, %84 : vector<16x8xf32>
    %86 = vector.extract_strided_slice %31 {offsets = [4, 0, 0], sizes = [1, 16, 8], strides = [1, 1, 1]} : vector<8x16x8xf32> to vector<1x16x8xf32>
    %87 = vector.shape_cast %86 : vector<1x16x8xf32> to vector<16x8xf32>
    %88 = arith.addf %85, %87 : vector<16x8xf32>
    %89 = vector.extract_strided_slice %31 {offsets = [5, 0, 0], sizes = [1, 16, 8], strides = [1, 1, 1]} : vector<8x16x8xf32> to vector<1x16x8xf32>
    %90 = vector.shape_cast %89 : vector<1x16x8xf32> to vector<16x8xf32>
    %91 = arith.addf %88, %90 : vector<16x8xf32>
    %92 = vector.extract_strided_slice %31 {offsets = [6, 0, 0], sizes = [1, 16, 8], strides = [1, 1, 1]} : vector<8x16x8xf32> to vector<1x16x8xf32>
    %93 = vector.shape_cast %92 : vector<1x16x8xf32> to vector<16x8xf32>
    %94 = arith.addf %91, %93 : vector<16x8xf32>
    %95 = arith.truncf %94 : vector<16x8xf32> to vector<16x8xbf16>
    %cst_8 = arith.constant dense<0.000000e+00> : vector<16x128xf32>
    %96 = tpu.matmul %95, %32, %cst_8 {dimension_numbers = #tpu.dot_dimension_numbers<[1], [0], [0], [1], [0, 0, 1, 1], [], []>} : vector<16x8xbf16>, vector<8x128xbf16>, vector<16x128xf32> -> vector<16x128xf32>
    %97 = tpu.concatenate %48, %64, %80, %96 in 1 : vector<16x128xf32>, vector<16x128xf32>, vector<16x128xf32>, vector<16x128xf32> -> vector<16x512xf32>
    %c0_9 = arith.constant 0 : index
    %c0_10 = arith.constant 0 : index
    %98 = vector.load %arg3[%c0_9, %c0_10] : memref<1x512xf32, #tpu.memory_space<vmem>>, vector<1x512xf32>
    %99 = vector.broadcast %98 : vector<1x512xf32> to vector<16x512xf32>
    %100 = arith.addf %97, %99 : vector<16x512xf32>
    %cst_11 = arith.constant 0.000000e+00 : f32
    %101 = vector.broadcast %cst_11 : f32 to vector<16x512xf32>
    %102 = arith.maximumf %100, %101 : vector<16x512xf32>
    %103 = arith.truncf %102 : vector<16x512xf32> to vector<16x512xbf16>
    %c0_12 = arith.constant 0 : index
    %c0_13 = arith.constant 0 : index
    %104 = vector.load %arg4[%c0_12, %c0_13] : memref<512x768xbf16, #tpu.memory_space<vmem>>, vector<512x768xbf16>
    %cst_14 = arith.constant dense<0.000000e+00> : vector<16x768xf32>
    %105 = tpu.matmul %103, %104, %cst_14 {dimension_numbers = #tpu.dot_dimension_numbers<[1], [0], [0], [1], [0, 0, 1, 1], [], []>} : vector<16x512xbf16>, vector<512x768xbf16>, vector<16x768xf32> -> vector<16x768xf32>
    %c0_15 = arith.constant 0 : index
    %c0_16 = arith.constant 0 : index
    %106 = vector.load %arg5[%c0_15, %c0_16] : memref<1x768xf32, #tpu.memory_space<vmem>>, vector<1x768xf32>
    %107 = vector.broadcast %106 : vector<1x768xf32> to vector<16x768xf32>
    %108 = arith.addf %105, %107 : vector<16x768xf32>
    %cst_17 = arith.constant 0.000000e+00 : f32
    %109 = vector.broadcast %cst_17 : f32 to vector<16x768xf32>
    %110 = arith.maximumf %108, %109 : vector<16x768xf32>
    %111 = arith.truncf %110 : vector<16x768xf32> to vector<16x768xbf16>
    %c0_18 = arith.constant 0 : index
    %c0_19 = arith.constant 0 : index
    %112 = vector.load %arg6[%c0_18, %c0_19] : memref<768x128xbf16, #tpu.memory_space<vmem>>, vector<768x128xbf16>
    %cst_20 = arith.constant dense<0.000000e+00> : vector<16x128xf32>
    %113 = tpu.matmul %111, %112, %cst_20 {dimension_numbers = #tpu.dot_dimension_numbers<[1], [0], [0], [1], [0, 0, 1, 1], [], []>} : vector<16x768xbf16>, vector<768x128xbf16>, vector<16x128xf32> -> vector<16x128xf32>
    %c0_21 = arith.constant 0 : index
    %c0_22 = arith.constant 0 : index
    %114 = vector.load %arg7[%c0_21, %c0_22] : memref<1x128xf32, #tpu.memory_space<vmem>>, vector<1x128xf32>
    %115 = vector.broadcast %114 : vector<1x128xf32> to vector<16x128xf32>
    %116 = arith.addf %113, %115 : vector<16x128xf32>
    %c0_23 = arith.constant 0 : index
    %c0_24 = arith.constant 0 : index
    %117 = vector.load %arg8[%c0_23, %c0_24] : memref<16x128xf32, #tpu.memory_space<vmem>>, vector<16x128xf32>
    tpu.vector_store %arg8[%c0_23, %c0_24], %116 {strides = array<i32>} : memref<16x128xf32, #tpu.memory_space<vmem>>, vector<16x128xf32>,
    return
  }
  func.func @transform_0(%arg0: i32) -> (i32, i32, i32, i32) {
    %c0_i32 = arith.constant 0 : i32
    %c0_i32_0 = arith.constant 0 : i32
    %c0_i32_1 = arith.constant 0 : i32
    %c0_i32_2 = arith.constant 0 : i32
    return %c0_i32, %c0_i32_0, %arg0, %c0_i32_1 : i32, i32, i32, i32
  }
  func.func @transform_1(%arg0: i32) -> (i32, i32) {
    %c0_i32 = arith.constant 0 : i32
    %c0_i32_0 = arith.constant 0 : i32
    %c0_i32_1 = arith.constant 0 : i32
    return %c0_i32, %c0_i32_0 : i32, i32
  }
  func.func @transform_2(%arg0: i32) -> (i32, i32) {
    %c0_i32 = arith.constant 0 : i32
    %c0_i32_0 = arith.constant 0 : i32
    %c0_i32_1 = arith.constant 0 : i32
    return %c0_i32, %c0_i32_0 : i32, i32
  }
  func.func @transform_3(%arg0: i32) -> (i32, i32) {
    %c0_i32 = arith.constant 0 : i32
    %c0_i32_0 = arith.constant 0 : i32
    %c0_i32_1 = arith.constant 0 : i32
    return %c0_i32, %c0_i32_0 : i32, i32
  }
  func.func @transform_4(%arg0: i32) -> (i32, i32) {
    %c0_i32 = arith.constant 0 : i32
    %c0_i32_0 = arith.constant 0 : i32
    %c0_i32_1 = arith.constant 0 : i32
    return %c0_i32, %c0_i32_0 : i32, i32
  }
  func.func @transform_5(%arg0: i32) -> (i32, i32) {
    %c0_i32 = arith.constant 0 : i32
    %c0_i32_0 = arith.constant 0 : i32
    %c0_i32_1 = arith.constant 0 : i32
    return %c0_i32, %c0_i32_0 : i32, i32
  }
  func.func @transform_6(%arg0: i32) -> (i32, i32) {
    %c0_i32 = arith.constant 0 : i32
    %c0_i32_0 = arith.constant 0 : i32
    %c0_i32_1 = arith.constant 0 : i32
    return %c0_i32, %c0_i32_0 : i32, i32
  }
  func.func @transform_7(%arg0: i32) -> (i32, i32) {
    %c0_i32 = arith.constant 0 : i32
    %c0_i32_0 = arith.constant 0 : i32
    return %arg0, %c0_i32 : i32, i32
  }
}

module attributes {stable_mosaic.version = 11 : i64} {
  func.func @_aux_head_kernel(%arg0: i32, %arg1: memref<8x8x16x8xbf16, #tpu.memory_space<vmem>>, %arg2: memref<8x128xbf16, #tpu.memory_space<vmem>>, %arg3: memref<1x512xf32, #tpu.memory_space<vmem>>, %arg4: memref<512x768xbf16, #tpu.memory_space<vmem>>, %arg5: memref<1x768xf32, #tpu.memory_space<vmem>>, %arg6: memref<768x128xbf16, #tpu.memory_space<vmem>>, %arg7: memref<1x128xf32, #tpu.memory_space<vmem>>, %arg8: memref<16x128xf32, #tpu.memory_space<vmem>>) attributes {dimension_semantics = [#tpu.dimension_semantics<parallel>], iteration_bounds = array<i64: 2>, scalar_prefetch = 0 : i64, scratch_operands = 0 : i64, tpu.core_type = #tpu.core_type<tc>, window_params = [{transform_indices = @transform_0, window_bounds = array<i64: 8, 8, 16, 8>}, {pipeline_mode = #tpu.pipeline_mode<synchronous>, transform_indices = @transform_1, window_bounds = array<i64: 8, 128>}, {pipeline_mode = #tpu.pipeline_mode<synchronous>, transform_indices = @transform_2, window_bounds = array<i64: 1, 512>}, {pipeline_mode = #tpu.pipeline_mode<synchronous>, transform_indices = @transform_3, window_bounds = array<i64: 512, 768>}, {pipeline_mode = #tpu.pipeline_mode<synchronous>, transform_indices = @transform_4, window_bounds = array<i64: 1, 768>}, {pipeline_mode = #tpu.pipeline_mode<synchronous>, transform_indices = @transform_5, window_bounds = array<i64: 768, 128>}, {pipeline_mode = #tpu.pipeline_mode<synchronous>, transform_indices = @transform_6, window_bounds = array<i64: 1, 128>}, {transform_indices = @transform_7, window_bounds = array<i64: 16, 128>}]} {
    %c0 = arith.constant 0 : index
    %c0_0 = arith.constant 0 : index
    %c0_1 = arith.constant 0 : index
    %c0_2 = arith.constant 0 : index
    %0 = vector.load %arg1[%c0, %c0_0, %c0_1, %c0_2] : memref<8x8x16x8xbf16, #tpu.memory_space<vmem>>, vector<8x8x16x8xbf16>
    %1 = arith.extf %0 : vector<8x8x16x8xbf16> to vector<8x8x16x8xf32>
    %cst = arith.constant 0.000000e+00 : f32
    %2 = vector.broadcast %cst : f32 to vector<8x8x16x8xf32>
    %3 = arith.maximumf %1, %2 : vector<8x8x16x8xf32>
    %4 = vector.extract_strided_slice %3 {offsets = [0, 0, 0, 0], sizes = [8, 1, 16, 8], strides = [1, 1, 1, 1]} : vector<8x8x16x8xf32> to vector<8x1x16x8xf32>
    %5 = vector.shape_cast %4 : vector<8x1x16x8xf32> to vector<8x16x8xf32>
    %6 = vector.extract_strided_slice %3 {offsets = [0, 1, 0, 0], sizes = [8, 1, 16, 8], strides = [1, 1, 1, 1]} : vector<8x8x16x8xf32> to vector<8x1x16x8xf32>
    %7 = vector.shape_cast %6 : vector<8x1x16x8xf32> to vector<8x16x8xf32>
    %8 = arith.addf %5, %7 : vector<8x16x8xf32>
    %9 = vector.extract_strided_slice %3 {offsets = [0, 2, 0, 0], sizes = [8, 1, 16, 8], strides = [1, 1, 1, 1]} : vector<8x8x16x8xf32> to vector<8x1x16x8xf32>
    %10 = vector.shape_cast %9 : vector<8x1x16x8xf32> to vector<8x16x8xf32>
    %11 = arith.addf %8, %10 : vector<8x16x8xf32>
    %12 = vector.extract_strided_slice %3 {offsets = [0, 3, 0, 0], sizes = [8, 1, 16, 8], strides = [1, 1, 1, 1]} : vector<8x8x16x8xf32> to vector<8x1x16x8xf32>
    %13 = vector.shape_cast %12 : vector<8x1x16x8xf32> to vector<8x16x8xf32>
    %14 = arith.addf %11, %13 : vector<8x16x8xf32>
    %15 = vector.extract_strided_slice %3 {offsets = [0, 4, 0, 0], sizes = [8, 1, 16, 8], strides = [1, 1, 1, 1]} : vector<8x8x16x8xf32> to vector<8x1x16x8xf32>
    %16 = vector.shape_cast %15 : vector<8x1x16x8xf32> to vector<8x16x8xf32>
    %17 = arith.addf %14, %16 : vector<8x16x8xf32>
    %18 = vector.extract_strided_slice %3 {offsets = [0, 2, 0, 0], sizes = [8, 1, 16, 8], strides = [1, 1, 1, 1]} : vector<8x8x16x8xf32> to vector<8x1x16x8xf32>
    %19 = vector.shape_cast %18 : vector<8x1x16x8xf32> to vector<8x16x8xf32>
    %20 = vector.extract_strided_slice %3 {offsets = [0, 3, 0, 0], sizes = [8, 1, 16, 8], strides = [1, 1, 1, 1]} : vector<8x8x16x8xf32> to vector<8x1x16x8xf32>
    %21 = vector.shape_cast %20 : vector<8x1x16x8xf32> to vector<8x16x8xf32>
    %22 = arith.addf %19, %21 : vector<8x16x8xf32>
    %23 = vector.extract_strided_slice %3 {offsets = [0, 4, 0, 0], sizes = [8, 1, 16, 8], strides = [1, 1, 1, 1]} : vector<8x8x16x8xf32> to vector<8x1x16x8xf32>
    %24 = vector.shape_cast %23 : vector<8x1x16x8xf32> to vector<8x16x8xf32>
    %25 = arith.addf %22, %24 : vector<8x16x8xf32>
    %26 = vector.extract_strided_slice %3 {offsets = [0, 5, 0, 0], sizes = [8, 1, 16, 8], strides = [1, 1, 1, 1]} : vector<8x8x16x8xf32> to vector<8x1x16x8xf32>
    %27 = vector.shape_cast %26 : vector<8x1x16x8xf32> to vector<8x16x8xf32>
    %28 = arith.addf %25, %27 : vector<8x16x8xf32>
    %29 = vector.extract_strided_slice %3 {offsets = [0, 6, 0, 0], sizes = [8, 1, 16, 8], strides = [1, 1, 1, 1]} : vector<8x8x16x8xf32> to vector<8x1x16x8xf32>
    %30 = vector.shape_cast %29 : vector<8x1x16x8xf32> to vector<8x16x8xf32>
    %31 = arith.addf %28, %30 : vector<8x16x8xf32>
    %c0_3 = arith.constant 0 : index
    %c0_4 = arith.constant 0 : index
    %32 = vector.load %arg2[%c0_3, %c0_4] : memref<8x128xbf16, #tpu.memory_space<vmem>>, vector<8x128xbf16>
    %33 = vector.extract_strided_slice %17 {offsets = [0, 0, 0], sizes = [1, 16, 8], strides = [1, 1, 1]} : vector<8x16x8xf32> to vector<1x16x8xf32>
    %34 = vector.shape_cast %33 : vector<1x16x8xf32> to vector<16x8xf32>
    %35 = vector.extract_strided_slice %17 {offsets = [1, 0, 0], sizes = [1, 16, 8], strides = [1, 1, 1]} : vector<8x16x8xf32> to vector<1x16x8xf32>
    %36 = vector.shape_cast %35 : vector<1x16x8xf32> to vector<16x8xf32>
    %37 = arith.addf %34, %36 : vector<16x8xf32>
    %38 = vector.extract_strided_slice %17 {offsets = [2, 0, 0], sizes = [1, 16, 8], strides = [1, 1, 1]} : vector<8x16x8xf32> to vector<1x16x8xf32>
    %39 = vector.shape_cast %38 : vector<1x16x8xf32> to vector<16x8xf32>
    %40 = arith.addf %37, %39 : vector<16x8xf32>
    %41 = vector.extract_strided_slice %17 {offsets = [3, 0, 0], sizes = [1, 16, 8], strides = [1, 1, 1]} : vector<8x16x8xf32> to vector<1x16x8xf32>
    %42 = vector.shape_cast %41 : vector<1x16x8xf32> to vector<16x8xf32>
    %43 = arith.addf %40, %42 : vector<16x8xf32>
    %44 = vector.extract_strided_slice %17 {offsets = [4, 0, 0], sizes = [1, 16, 8], strides = [1, 1, 1]} : vector<8x16x8xf32> to vector<1x16x8xf32>
    %45 = vector.shape_cast %44 : vector<1x16x8xf32> to vector<16x8xf32>
    %46 = arith.addf %43, %45 : vector<16x8xf32>
    %47 = arith.truncf %46 : vector<16x8xf32> to vector<16x8xbf16>
    %cst_5 = arith.constant dense<0.000000e+00> : vector<16x128xf32>
    %48 = tpu.matmul %47, %32, %cst_5 {dimension_numbers = #tpu.dot_dimension_numbers<[1], [0], [0], [1], [0, 0, 1, 1], [], []>} : vector<16x8xbf16>, vector<8x128xbf16>, vector<16x128xf32> -> vector<16x128xf32>
    %49 = vector.extract_strided_slice %31 {offsets = [0, 0, 0], sizes = [1, 16, 8], strides = [1, 1, 1]} : vector<8x16x8xf32> to vector<1x16x8xf32>
    %50 = vector.shape_cast %49 : vector<1x16x8xf32> to vector<16x8xf32>
    %51 = vector.extract_strided_slice %31 {offsets = [1, 0, 0], sizes = [1, 16, 8], strides = [1, 1, 1]} : vector<8x16x8xf32> to vector<1x16x8xf32>
    %52 = vector.shape_cast %51 : vector<1x16x8xf32> to vector<16x8xf32>
    %53 = arith.addf %50, %52 : vector<16x8xf32>
    %54 = vector.extract_strided_slice %31 {offsets = [2, 0, 0], sizes = [1, 16, 8], strides = [1, 1, 1]} : vector<8x16x8xf32> to vector<1x16x8xf32>
    %55 = vector.shape_cast %54 : vector<1x16x8xf32> to vector<16x8xf32>
    %56 = arith.addf %53, %55 : vector<16x8xf32>
    %57 = vector.extract_strided_slice %31 {offsets = [3, 0, 0], sizes = [1, 16, 8], strides = [1, 1, 1]} : vector<8x16x8xf32> to vector<1x16x8xf32>
    %58 = vector.shape_cast %57 : vector<1x16x8xf32> to vector<16x8xf32>
    %59 = arith.addf %56, %58 : vector<16x8xf32>
    %60 = vector.extract_strided_slice %31 {offsets = [4, 0, 0], sizes = [1, 16, 8], strides = [1, 1, 1]} : vector<8x16x8xf32> to vector<1x16x8xf32>
    %61 = vector.shape_cast %60 : vector<1x16x8xf32> to vector<16x8xf32>
    %62 = arith.addf %59, %61 : vector<16x8xf32>
    %63 = arith.truncf %62 : vector<16x8xf32> to vector<16x8xbf16>
    %cst_6 = arith.constant dense<0.000000e+00> : vector<16x128xf32>
    %64 = tpu.matmul %63, %32, %cst_6 {dimension_numbers = #tpu.dot_dimension_numbers<[1], [0], [0], [1], [0, 0, 1, 1], [], []>} : vector<16x8xbf16>, vector<8x128xbf16>, vector<16x128xf32> -> vector<16x128xf32>
    %65 = vector.extract_strided_slice %17 {offsets = [2, 0, 0], sizes = [1, 16, 8], strides = [1, 1, 1]} : vector<8x16x8xf32> to vector<1x16x8xf32>
    %66 = vector.shape_cast %65 : vector<1x16x8xf32> to vector<16x8xf32>
    %67 = vector.extract_strided_slice %17 {offsets = [3, 0, 0], sizes = [1, 16, 8], strides = [1, 1, 1]} : vector<8x16x8xf32> to vector<1x16x8xf32>
    %68 = vector.shape_cast %67 : vector<1x16x8xf32> to vector<16x8xf32>
    %69 = arith.addf %66, %68 : vector<16x8xf32>
    %70 = vector.extract_strided_slice %17 {offsets = [4, 0, 0], sizes = [1, 16, 8], strides = [1, 1, 1]} : vector<8x16x8xf32> to vector<1x16x8xf32>
    %71 = vector.shape_cast %70 : vector<1x16x8xf32> to vector<16x8xf32>
    %72 = arith.addf %69, %71 : vector<16x8xf32>
    %73 = vector.extract_strided_slice %17 {offsets = [5, 0, 0], sizes = [1, 16, 8], strides = [1, 1, 1]} : vector<8x16x8xf32> to vector<1x16x8xf32>
    %74 = vector.shape_cast %73 : vector<1x16x8xf32> to vector<16x8xf32>
    %75 = arith.addf %72, %74 : vector<16x8xf32>
    %76 = vector.extract_strided_slice %17 {offsets = [6, 0, 0], sizes = [1, 16, 8], strides = [1, 1, 1]} : vector<8x16x8xf32> to vector<1x16x8xf32>
    %77 = vector.shape_cast %76 : vector<1x16x8xf32> to vector<16x8xf32>
    %78 = arith.addf %75, %77 : vector<16x8xf32>
    %79 = arith.truncf %78 : vector<16x8xf32> to vector<16x8xbf16>
    %cst_7 = arith.constant dense<0.000000e+00> : vector<16x128xf32>
    %80 = tpu.matmul %79, %32, %cst_7 {dimension_numbers = #tpu.dot_dimension_numbers<[1], [0], [0], [1], [0, 0, 1, 1], [], []>} : vector<16x8xbf16>, vector<8x128xbf16>, vector<16x128xf32> -> vector<16x128xf32>
    %81 = vector.extract_strided_slice %31 {offsets = [2, 0, 0], sizes = [1, 16, 8], strides = [1, 1, 1]} : vector<8x16x8xf32> to vector<1x16x8xf32>
    %82 = vector.shape_cast %81 : vector<1x16x8xf32> to vector<16x8xf32>
    %83 = vector.extract_strided_slice %31 {offsets = [3, 0, 0], sizes = [1, 16, 8], strides = [1, 1, 1]} : vector<8x16x8xf32> to vector<1x16x8xf32>
    %84 = vector.shape_cast %83 : vector<1x16x8xf32> to vector<16x8xf32>
    %85 = arith.addf %82, %84 : vector<16x8xf32>
    %86 = vector.extract_strided_slice %31 {offsets = [4, 0, 0], sizes = [1, 16, 8], strides = [1, 1, 1]} : vector<8x16x8xf32> to vector<1x16x8xf32>
    %87 = vector.shape_cast %86 : vector<1x16x8xf32> to vector<16x8xf32>
    %88 = arith.addf %85, %87 : vector<16x8xf32>
    %89 = vector.extract_strided_slice %31 {offsets = [5, 0, 0], sizes = [1, 16, 8], strides = [1, 1, 1]} : vector<8x16x8xf32> to vector<1x16x8xf32>
    %90 = vector.shape_cast %89 : vector<1x16x8xf32> to vector<16x8xf32>
    %91 = arith.addf %88, %90 : vector<16x8xf32>
    %92 = vector.extract_strided_slice %31 {offsets = [6, 0, 0], sizes = [1, 16, 8], strides = [1, 1, 1]} : vector<8x16x8xf32> to vector<1x16x8xf32>
    %93 = vector.shape_cast %92 : vector<1x16x8xf32> to vector<16x8xf32>
    %94 = arith.addf %91, %93 : vector<16x8xf32>
    %95 = arith.truncf %94 : vector<16x8xf32> to vector<16x8xbf16>
    %cst_8 = arith.constant dense<0.000000e+00> : vector<16x128xf32>
    %96 = tpu.matmul %95, %32, %cst_8 {dimension_numbers = #tpu.dot_dimension_numbers<[1], [0], [0], [1], [0, 0, 1, 1], [], []>} : vector<16x8xbf16>, vector<8x128xbf16>, vector<16x128xf32> -> vector<16x128xf32>
    %97 = tpu.concatenate %48, %64, %80, %96 in 1 : vector<16x128xf32>, vector<16x128xf32>, vector<16x128xf32>, vector<16x128xf32> -> vector<16x512xf32>
    %c0_9 = arith.constant 0 : index
    %c0_10 = arith.constant 0 : index
    %98 = vector.load %arg3[%c0_9, %c0_10] : memref<1x512xf32, #tpu.memory_space<vmem>>, vector<1x512xf32>
    %99 = vector.broadcast %98 : vector<1x512xf32> to vector<16x512xf32>
    %100 = arith.addf %97, %99 : vector<16x512xf32>
    %cst_11 = arith.constant 0.000000e+00 : f32
    %101 = vector.broadcast %cst_11 : f32 to vector<16x512xf32>
    %102 = arith.maximumf %100, %101 : vector<16x512xf32>
    %103 = arith.truncf %102 : vector<16x512xf32> to vector<16x512xbf16>
    %c0_12 = arith.constant 0 : index
    %c0_13 = arith.constant 0 : index
    %104 = vector.load %arg4[%c0_12, %c0_13] : memref<512x768xbf16, #tpu.memory_space<vmem>>, vector<512x768xbf16>
    %cst_14 = arith.constant dense<0.000000e+00> : vector<16x768xf32>
    %105 = tpu.matmul %103, %104, %cst_14 {dimension_numbers = #tpu.dot_dimension_numbers<[1], [0], [0], [1], [0, 0, 1, 1], [], []>} : vector<16x512xbf16>, vector<512x768xbf16>, vector<16x768xf32> -> vector<16x768xf32>
    %c0_15 = arith.constant 0 : index
    %c0_16 = arith.constant 0 : index
    %106 = vector.load %arg5[%c0_15, %c0_16] : memref<1x768xf32, #tpu.memory_space<vmem>>, vector<1x768xf32>
    %107 = vector.broadcast %106 : vector<1x768xf32> to vector<16x768xf32>
    %108 = arith.addf %105, %107 : vector<16x768xf32>
    %cst_17 = arith.constant 0.000000e+00 : f32
    %109 = vector.broadcast %cst_17 : f32 to vector<16x768xf32>
    %110 = arith.maximumf %108, %109 : vector<16x768xf32>
    %111 = arith.truncf %110 : vector<16x768xf32> to vector<16x768xbf16>
    %c0_18 = arith.constant 0 : index
    %c0_19 = arith.constant 0 : index
    %112 = vector.load %arg6[%c0_18, %c0_19] : memref<768x128xbf16, #tpu.memory_space<vmem>>, vector<768x128xbf16>
    %cst_20 = arith.constant dense<0.000000e+00> : vector<16x128xf32>
    %113 = tpu.matmul %111, %112, %cst_20 {dimension_numbers = #tpu.dot_dimension_numbers<[1], [0], [0], [1], [0, 0, 1, 1], [], []>} : vector<16x768xbf16>, vector<768x128xbf16>, vector<16x128xf32> -> vector<16x128xf32>
    %c0_21 = arith.constant 0 : index
    %c0_22 = arith.constant 0 : index
    %114 = vector.load %arg7[%c0_21, %c0_22] : memref<1x128xf32, #tpu.memory_space<vmem>>, vector<1x128xf32>
    %115 = vector.broadcast %114 : vector<1x128xf32> to vector<16x128xf32>
    %116 = arith.addf %113, %115 : vector<16x128xf32>
    %c0_23 = arith.constant 0 : index
    %c0_24 = arith.constant 0 : index
    %117 = vector.load %arg8[%c0_23, %c0_24] : memref<16x128xf32, #tpu.memory_space<vmem>>, vector<16x128xf32>
    tpu.vector_store %arg8[%c0_23, %c0_24], %116 {strides = array<i32>} : memref<16x128xf32, #tpu.memory_space<vmem>>, vector<16x128xf32>,
    return
  }
  func.func @transform_0(%arg0: i32) -> (i32, i32, i32, i32) {
    %c0_i32 = arith.constant 0 : i32
    %c0_i32_0 = arith.constant 0 : i32
    %c0_i32_1 = arith.constant 0 : i32
    %c0_i32_2 = arith.constant 0 : i32
    return %c0_i32, %c0_i32_0, %arg0, %c0_i32_1 : i32, i32, i32, i32
  }
  func.func @transform_1(%arg0: i32) -> (i32, i32) {
    %c0_i32 = arith.constant 0 : i32
    %c0_i32_0 = arith.constant 0 : i32
    %c0_i32_1 = arith.constant 0 : i32
    return %c0_i32, %c0_i32_0 : i32, i32
  }
  func.func @transform_2(%arg0: i32) -> (i32, i32) {
    %c0_i32 = arith.constant 0 : i32
    %c0_i32_0 = arith.constant 0 : i32
    %c0_i32_1 = arith.constant 0 : i32
    return %c0_i32, %c0_i32_0 : i32, i32
  }
  func.func @transform_3(%arg0: i32) -> (i32, i32) {
    %c0_i32 = arith.constant 0 : i32
    %c0_i32_0 = arith.constant 0 : i32
    %c0_i32_1 = arith.constant 0 : i32
    return %c0_i32, %c0_i32_0 : i32, i32
  }
  func.func @transform_4(%arg0: i32) -> (i32, i32) {
    %c0_i32 = arith.constant 0 : i32
    %c0_i32_0 = arith.constant 0 : i32
    %c0_i32_1 = arith.constant 0 : i32
    return %c0_i32, %c0_i32_0 : i32, i32
  }
  func.func @transform_5(%arg0: i32) -> (i32, i32) {
    %c0_i32 = arith.constant 0 : i32
    %c0_i32_0 = arith.constant 0 : i32
    %c0_i32_1 = arith.constant 0 : i32
    return %c0_i32, %c0_i32_0 : i32, i32
  }
  func.func @transform_6(%arg0: i32) -> (i32, i32) {
    %c0_i32 = arith.constant 0 : i32
    %c0_i32_0 = arith.constant 0 : i32
    %c0_i32_1 = arith.constant 0 : i32
    return %c0_i32, %c0_i32_0 : i32, i32
  }
  func.func @transform_7(%arg0: i32) -> (i32, i32) {
    %c0_i32 = arith.constant 0 : i32
    %c0_i32_0 = arith.constant 0 : i32
    return %arg0, %c0_i32 : i32, i32
  }
}

</mosaic_0001>

<llo_original>
// kernel: tpu_custom_call.1
$region0: #{tpu_custom_call.1}
  #allocation0 [shape = 'u32[]', space=smem, size = 0x4, offset = 0x4, fixed_abs, tag = 'smem constant byte address 0x4 - core index']
  #allocation1 [shape = 'u32[144,128]{1,0:T(1,128)}', space=vmem, size = 0x12000, scoped, tag = 'internal scratch']
  %s0 = inlined_call_operand.vmem [shape: bf16[8,8,32,8], index: 0, kind: input, shape index: {}]
  %s1 = inlined_call_operand.vmem [shape: bf16[8,128], index: 1, kind: input, shape index: {}]
  %s2 = inlined_call_operand.vmem [shape: f32[1,512], index: 2, kind: input, shape index: {}]
  %s3 = inlined_call_operand.hbm [shape: bf16[512,768], index: 3, kind: input, shape index: {}]
  %s4 = inlined_call_operand.vmem [shape: f32[1,768], index: 4, kind: input, shape index: {}]
  %s5 = inlined_call_operand.vmem [shape: bf16[768,128], index: 5, kind: input, shape index: {}]
  %s6 = inlined_call_operand.vmem [shape: f32[1,128], index: 6, kind: input, shape index: {}]
  %s7 = inlined_call_operand.hbm [shape: f32[32,128], index: 7, kind: output, shape index: {}]
  %s8 = sld [smem:[#allocation0]]
  $region106: #{tpu_custom_call.1} parent=0
    _
  %s10 = ssub.s32 1, %s8
  %s11 = scalar_select 0, %s10, %s8
  $region1: #{tpu_custom_call.1} parent=0
    #allocation2 [shape = 'u8[524288]{0}', space=vmem, size = 0x80000, scoped, tag = 'input window, operand 0']
    #allocation3 [shape = 'u8[786432]{0}', space=vmem, size = 0xc0000, scoped, tag = 'input window, operand 3, single buffered']
    #allocation4 [shape = 's32[2]{0}', space=sflag, size = 0x8, scoped, tag = 'scoped memory for tpu_custom_call.1']
    #allocation5 [shape = 's32[2]{0}', space=sflag, size = 0x8, scoped, tag = 'scoped memory for tpu_custom_call.1']
    #allocation6 [shape = 'u8[16384]{0}', space=vmem, size = 0x4000, scoped, tag = 'output window, operand 0']
    %12 = vsyncpa [#allocation4], 0
    %13 = vsyncpa [#allocation5], 0
    %s14 = scalar_lea.sflag [#allocation5], 1
    %15 = vsyncpa %s14, 0
    loop: start=0, step=1, limit=4
    $region2: #{tpu_custom_call.1} parent=1 // loop_pre_header
      _
    $region3: #{tpu_custom_call.1} parent=1 // loop_header
      %s17 = sphi 0, %s21
      %p18 = scmp.ge.s32.totalorder %s17, 4
      %s27 = sphi 0, %s29
      %s30 = sphi 0, %s27
      %s31 = sphi 0, %s30
      %s47 = sphi 0, %s31
      %s51 = sphi 0, %s51
      %s53 = sphi 0, %s51
      %s54 = sphi 0, %s53
      %s68 = sphi 0, %s54
      %s72 = sphi 0, %s72
      %s74 = sphi 0, %s72
      %s75 = sphi 0, %s74
      %s89 = sphi 0, %s75
      %s93 = sphi 0, %s93
      %s95 = sphi 0, %s93
      %s96 = sphi 0, %s95
      %s110 = sphi 0, %s96
      %s114 = sphi 0, %s114
      %s116 = sphi 0, %s114
      %s117 = sphi 0, %s116
      %s131 = sphi 0, %s117
      %s135 = sphi 0, %s135
      %s137 = sphi 0, %s135
      %s138 = sphi 0, %s137
      %s152 = sphi 0, %s138
      %s156 = sphi 0, %s156
      %s158 = sphi 0, %s156
      %s159 = sphi 0, %s158
      %s173 = sphi 0, %s159
      %s179 = sphi 0, %s181
      %s182 = sphi 0, %s179
      %s183 = sphi 0, %s182
      %s199 = sphi 0, %s183
    $region4: #{tpu_custom_call.1} parent=1 // loop_header_branch
      %20 = sbr.rel (%p18) target = $region8
    $region5: #{tpu_custom_call.1} parent=1 // loop_body
      %s22 = ssub.s32 %s17, 1
      %s23 = ssub.s32 %s17, 2
      %s24 = sadd.s32 %s17, 1
      %s25 = ssub.s32 %s17, %s24
      %p26 = scmp.eq.s32.totalorder %s25, 0
      %s28 = sadd.s32 %s27, 1
      %s29 = scalar_select %p26, %s27, %s28
      %p32 = pneg %p26
      %p33 = scmp.eq.s32.totalorder %s17, 1
      %p34 = por %p32, %p33
      %p35 = scmp.ne.s32.totalorder %s27, %s30
      %p36 = scmp.eq.s32.totalorder %s17, 0
      %p37 = por %p35, %p36
      %p38 = scmp.ne.s32.totalorder %s27, %s30
      %p39 = scmp.eq.s32.totalorder %s22, 1
      %p40 = por %p38, %p39
      %p41 = scmp.ne.s32.totalorder %s30, %s31
      %p42 = scmp.eq.s32.totalorder %s22, 0
      %p43 = por %p41, %p42
      %p44 = scmp.ne.s32.totalorder %s30, %s31
      %p45 = scmp.eq.s32.totalorder %s23, 1
      %p46 = por %p44, %p45
      %p48 = scmp.ne.s32.totalorder %s31, %s47
      %p49 = scmp.eq.s32.totalorder %s23, 0
      %p50 = por %p48, %p49
      %s52 = sadd.s32 %s51, 1
      %p55 = scmp.eq.s32.totalorder %s17, 1
      %p56 = scmp.ne.s32.totalorder %s51, %s53
      %p57 = scmp.eq.s32.totalorder %s17, 0
      %p58 = por %p56, %p57
      %p59 = scmp.ne.s32.totalorder %s51, %s53
      %p60 = scmp.eq.s32.totalorder %s22, 1
      %p61 = por %p59, %p60
      %p62 = scmp.ne.s32.totalorder %s53, %s54
      %p63 = scmp.eq.s32.totalorder %s22, 0
      %p64 = por %p62, %p63
      %p65 = scmp.ne.s32.totalorder %s53, %s54
      %p66 = scmp.eq.s32.totalorder %s23, 1
      %p67 = por %p65, %p66
      %p69 = scmp.ne.s32.totalorder %s54, %s68
      %p70 = scmp.eq.s32.totalorder %s23, 0
      %p71 = por %p69, %p70
      %s73 = sadd.s32 %s72, 1
      %p76 = scmp.eq.s32.totalorder %s17, 1
      %p77 = scmp.ne.s32.totalorder %s72, %s74
      %p78 = scmp.eq.s32.totalorder %s17, 0
      %p79 = por %p77, %p78
      %p80 = scmp.ne.s32.totalorder %s72, %s74
      %p81 = scmp.eq.s32.totalorder %s22, 1
      %p82 = por %p80, %p81
      %p83 = scmp.ne.s32.totalorder %s74, %s75
      %p84 = scmp.eq.s32.totalorder %s22, 0
      %p85 = por %p83, %p84
      %p86 = scmp.ne.s32.totalorder %s74, %s75
      %p87 = scmp.eq.s32.totalorder %s23, 1
      %p88 = por %p86, %p87
      %p90 = scmp.ne.s32.totalorder %s75, %s89
      %p91 = scmp.eq.s32.totalorder %s23, 0
      %p92 = por %p90, %p91
      %s94 = sadd.s32 %s93, 1
      %p97 = scmp.eq.s32.totalorder %s17, 1
      %p98 = scmp.ne.s32.totalorder %s93, %s95
      %p99 = scmp.eq.s32.totalorder %s17, 0
      %p100 = por %p98, %p99
      %p101 = scmp.ne.s32.totalorder %s93, %s95
      %p102 = scmp.eq.s32.totalorder %s22, 1
      %p103 = por %p101, %p102
      %p104 = scmp.ne.s32.totalorder %s95, %s96
      %p105 = scmp.eq.s32.totalorder %s22, 0
      %p106 = por %p104, %p105
      %p107 = scmp.ne.s32.totalorder %s95, %s96
      %p108 = scmp.eq.s32.totalorder %s23, 1
      %p109 = por %p107, %p108
      %p111 = scmp.ne.s32.totalorder %s96, %s110
      %p112 = scmp.eq.s32.totalorder %s23, 0
      %p113 = por %p111, %p112
      %s115 = sadd.s32 %s114, 1
      %p118 = scmp.eq.s32.totalorder %s17, 1
      %p119 = scmp.ne.s32.totalorder %s114, %s116
      %p120 = scmp.eq.s32.totalorder %s17, 0
      %p121 = por %p119, %p120
      %p122 = scmp.ne.s32.totalorder %s114, %s116
      %p123 = scmp.eq.s32.totalorder %s22, 1
      %p124 = por %p122, %p123
      %p125 = scmp.ne.s32.totalorder %s116, %s117
      %p126 = scmp.eq.s32.totalorder %s22, 0
      %p127 = por %p125, %p126
      %p128 = scmp.ne.s32.totalorder %s116, %s117
      %p129 = scmp.eq.s32.totalorder %s23, 1
      %p130 = por %p128, %p129
      %p132 = scmp.ne.s32.totalorder %s117, %s131
      %p133 = scmp.eq.s32.totalorder %s23, 0
      %p134 = por %p132, %p133
      %s136 = sadd.s32 %s135, 1
      %p139 = scmp.eq.s32.totalorder %s17, 1
      %p140 = scmp.ne.s32.totalorder %s135, %s137
      %p141 = scmp.eq.s32.totalorder %s17, 0
      %p142 = por %p140, %p141
      %p143 = scmp.ne.s32.totalorder %s135, %s137
      %p144 = scmp.eq.s32.totalorder %s22, 1
      %p145 = por %p143, %p144
      %p146 = scmp.ne.s32.totalorder %s137, %s138
      %p147 = scmp.eq.s32.totalorder %s22, 0
      %p148 = por %p146, %p147
      %p149 = scmp.ne.s32.totalorder %s137, %s138
      %p150 = scmp.eq.s32.totalorder %s23, 1
      %p151 = por %p149, %p150
      %p153 = scmp.ne.s32.totalorder %s138, %s152
      %p154 = scmp.eq.s32.totalorder %s23, 0
      %p155 = por %p153, %p154
      %s157 = sadd.s32 %s156, 1
      %p160 = scmp.eq.s32.totalorder %s17, 1
      %p161 = scmp.ne.s32.totalorder %s156, %s158
      %p162 = scmp.eq.s32.totalorder %s17, 0
      %p163 = por %p161, %p162
      %p164 = scmp.ne.s32.totalorder %s156, %s158
      %p165 = scmp.eq.s32.totalorder %s22, 1
      %p166 = por %p164, %p165
      %p167 = scmp.ne.s32.totalorder %s158, %s159
      %p168 = scmp.eq.s32.totalorder %s22, 0
      %p169 = por %p167, %p168
      %p170 = scmp.ne.s32.totalorder %s158, %s159
      %p171 = scmp.eq.s32.totalorder %s23, 1
      %p172 = por %p170, %p171
      %p174 = scmp.ne.s32.totalorder %s159, %s173
      %p175 = scmp.eq.s32.totalorder %s23, 0
      %p176 = por %p174, %p175
      %s177 = ssub.s32 %s17, %s24
      %p178 = scmp.eq.s32.totalorder %s177, 0
      %s180 = sadd.s32 %s179, 1
      %s181 = scalar_select %p178, %s179, %s180
      %p184 = pneg %p178
      %p185 = scmp.eq.s32.totalorder %s17, 1
      %p186 = por %p184, %p185
      %p187 = scmp.ne.s32.totalorder %s179, %s182
      %p188 = scmp.eq.s32.totalorder %s17, 0
      %p189 = por %p187, %p188
      %p190 = scmp.ne.s32.totalorder %s179, %s182
      %p191 = scmp.eq.s32.totalorder %s22, 1
      %p192 = por %p190, %p191
      %p193 = scmp.ne.s32.totalorder %s182, %s183
      %p194 = scmp.eq.s32.totalorder %s22, 0
      %p195 = por %p193, %p194
      %p196 = scmp.ne.s32.totalorder %s182, %s183
      %p197 = scmp.eq.s32.totalorder %s23, 1
      %p198 = por %p196, %p197
      %p200 = scmp.ne.s32.totalorder %s183, %s199
      %p201 = scmp.eq.s32.totalorder %s23, 0
      %p202 = por %p200, %p201
      %p203 = scmp.le.s32.totalorder 1, %s17
      %p204 = scmp.lt.s32.totalorder %s17, 3
      %p205 = pnand %p203, %p204
      %p206 = pneg %p205
      // Predicated region
      $region9: #{tpu_custom_call.1} parent=5 // pred_check
        _
      $region10: #{tpu_custom_call.1} parent=5 // pred_check_branch
        %208 = sbr.rel (%p205) target = $region12
      $region11: #{tpu_custom_call.1} parent=5 // pred_region
        %s209 = ssub.s32 %s17, 1
        // Predicated region
        $region13: #{tpu_custom_call.1} parent=11 // pred_check
          %p210 = pneg %p64
        $region14: #{tpu_custom_call.1} parent=11 // pred_check_branch
          %212 = sbr.rel (%p210) target = $region16
        $region15: #{tpu_custom_call.1} parent=11 // pred_region
          _
        $region16: #{tpu_custom_call.1} parent=11 // pred_fallthru
          _
        // Predicated region
        $region17: #{tpu_custom_call.1} parent=11 // pred_check
          %p213 = pneg %p85
        $region18: #{tpu_custom_call.1} parent=11 // pred_check_branch
          %215 = sbr.rel (%p213) target = $region20
        $region19: #{tpu_custom_call.1} parent=11 // pred_region
          _
        $region20: #{tpu_custom_call.1} parent=11 // pred_fallthru
          _
        // Predicated region
        $region21: #{tpu_custom_call.1} parent=11 // pred_check
          %p216 = pneg %p106
        $region22: #{tpu_custom_call.1} parent=11 // pred_check_branch
          %218 = sbr.rel (%p216) target = $region24
        $region23: #{tpu_custom_call.1} parent=11 // pred_region
          %s220 = ssub.s32 24576, 24576
          %221 = vsyncadd [#allocation4], %s220
          %s222 = sshll.u32 [#allocation3], 4
          %s223 = int_to_ptr.vmem [resolvable:$true] %s222
          %228 = dma.hbm_to_vmem [thread:$0]  %s3, 24576, %s223, [#allocation4], 384, 384, 24
        $region24: #{tpu_custom_call.1} parent=11 // pred_fallthru
          _
        // Predicated region
        $region25: #{tpu_custom_call.1} parent=11 // pred_check
          %p229 = pneg %p127
        $region26: #{tpu_custom_call.1} parent=11 // pred_check_branch
          %231 = sbr.rel (%p229) target = $region28
        $region27: #{tpu_custom_call.1} parent=11 // pred_region
          _
        $region28: #{tpu_custom_call.1} parent=11 // pred_fallthru
          _
        // Predicated region
        $region29: #{tpu_custom_call.1} parent=11 // pred_check
          %p232 = pneg %p148
        $region30: #{tpu_custom_call.1} parent=11 // pred_check_branch
          %234 = sbr.rel (%p232) target = $region32
        $region31: #{tpu_custom_call.1} parent=11 // pred_region
          _
        $region32: #{tpu_custom_call.1} parent=11 // pred_fallthru
          _
        // Predicated region
        $region33: #{tpu_custom_call.1} parent=11 // pred_check
          %p235 = pneg %p169
        $region34: #{tpu_custom_call.1} parent=11 // pred_check_branch
          %237 = sbr.rel (%p235) target = $region36
        $region35: #{tpu_custom_call.1} parent=11 // pred_region
          _
        $region36: #{tpu_custom_call.1} parent=11 // pred_fallthru
          _
      $region12: #{tpu_custom_call.1} parent=5 // pred_fallthru
        _
      %p238 = scmp.lt.s32.totalorder %s17, 2
      // Predicated region
      $region37: #{tpu_custom_call.1} parent=5 // pred_check
        %p239 = pneg %p238
      $region38: #{tpu_custom_call.1} parent=5 // pred_check_branch
        %241 = sbr.rel (%p239) target = $region40
      $region39: #{tpu_custom_call.1} parent=5 // pred_region
        // Predicated region
        $region41: #{tpu_custom_call.1} parent=39 // pred_check
          %p242 = pneg %p37
        $region42: #{tpu_custom_call.1} parent=39 // pred_check_branch
          %244 = sbr.rel (%p242) target = $region44
        $region43: #{tpu_custom_call.1} parent=39 // pred_region
          %s245 = sand.u32 %s27, 1
          %s246 = sand.u32 %s27, 1
          %s247 = smul.addr %s246, 512
          %s248 = scalar_lea.vmem [#allocation2], %s247
          %s249 = smul.u32 2, %s17
          %s250 = smul.addr %s249, 4
          %s251 = scalar_lea.vmem %s0, %s250
          // Predicated region
          $region45: #{tpu_custom_call.1} parent=43 // pred_check
            _
          $region46: #{tpu_custom_call.1} parent=43 // pred_check_branch
            %253 = sbr.rel (0) target = $region48
          $region47: #{tpu_custom_call.1} parent=43 // pred_region
            // Predicated region
            $region49: #{tpu_custom_call.1} parent=47 // pred_check
              _
            $region50: #{tpu_custom_call.1} parent=47 // pred_check_branch
              %255 = sbr.rel target = $region52
            $region51: #{tpu_custom_call.1} parent=47 // pred_region
              // Predicated region
              $region64: #{tpu_custom_call.1} parent=51 // pred_check
                _
              $region65: #{tpu_custom_call.1} parent=51 // pred_check_branch
                %524 = sbr.rel (0) target = $region67
              $region66: #{tpu_custom_call.1} parent=51 // pred_region
                loop: start=0, step=1, limit=1
                $region68: #{tpu_custom_call.1} parent=66 // loop_pre_header
                  _
                $region69: #{tpu_custom_call.1} parent=66 // loop_header
                  %s526 = sphi 0, %s530
                  %p527 = scmp.ge.s32.totalorder %s526, 1
                  %s531 = sphi %s251, %s251
                  %s532 = sphi %s248, %s248
                $region70: #{tpu_custom_call.1} parent=66 // loop_header_branch
                  %529 = sbr.rel (%p527) target = $region74
                $region71: #{tpu_custom_call.1} parent=66 // loop_body
                  _
                $region72: #{tpu_custom_call.1} parent=66 // loop_footer
                  %s530 = sadd.s32 1, %s526
                $region73: #{tpu_custom_call.1} parent=66 // loop_footer_branch
                  %525 = sbr.rel target = $region69
                $region74: #{tpu_custom_call.1} parent=66 // loop_exit
                  _
                loop: start=0, step=1, limit=1
                $region75: #{tpu_custom_call.1} parent=66 // loop_pre_header
                  _
                $region76: #{tpu_custom_call.1} parent=66 // loop_header
                  %s535 = sphi 0, %s539
                  %p536 = scmp.ge.s32.totalorder %s535, 1
                  %s540 = sphi %s251, %s251
                  %s541 = sphi %s248, %s248
                $region77: #{tpu_custom_call.1} parent=66 // loop_header_branch
                  %538 = sbr.rel (%p536) target = $region81
                $region78: #{tpu_custom_call.1} parent=66 // loop_body
                  %v542 = vld [vmem:[%s540] sm:$0xf]
                  %543 = vst [vmem:[%s541] sm:$0xf] %v542
                  %v544 = vld [vmem:[%s540 + $0x4] sm:$0xf]
                  %545 = vst [vmem:[%s541 + $0x4] sm:$0xf] %v544
                  %v546 = vld [vmem:[%s540 + $0x10] sm:$0xf]
                  %547 = vst [vmem:[%s541 + $0x8] sm:$0xf] %v546
                  %v548 = vld [vmem:[%s540 + $0x14] sm:$0xf]
                  %549 = vst [vmem:[%s541 + $0xc] sm:$0xf] %v548
                  %v550 = vld [vmem:[%s540 + $0x20] sm:$0xf]
                  %551 = vst [vmem:[%s541 + $0x10] sm:$0xf] %v550
                  %v552 = vld [vmem:[%s540 + $0x24] sm:$0xf]
                  %553 = vst [vmem:[%s541 + $0x14] sm:$0xf] %v552
                  %v554 = vld [vmem:[%s540 + $0x30] sm:$0xf]
                  %555 = vst [vmem:[%s541 + $0x18] sm:$0xf] %v554
                  %v556 = vld [vmem:[%s540 + $0x34] sm:$0xf]
                  %557 = vst [vmem:[%s541 + $0x1c] sm:$0xf] %v556
                  %v558 = vld [vmem:[%s540 + $0x40] sm:$0xf]
                  %559 = vst [vmem:[%s541 + $0x20] sm:$0xf] %v558
                  %v560 = vld [vmem:[%s540 + $0x44] sm:$0xf]
                  %561 = vst [vmem:[%s541 + $0x24] sm:$0xf] %v560
                  %v562 = vld [vmem:[%s540 + $0x50] sm:$0xf]
                  %563 = vst [vmem:[%s541 + $0x28] sm:$0xf] %v562
                  %v564 = vld [vmem:[%s540 + $0x54] sm:$0xf]
                  %565 = vst [vmem:[%s541 + $0x2c] sm:$0xf] %v564
                  %v566 = vld [vmem:[%s540 + $0x60] sm:$0xf]
                  %567 = vst [vmem:[%s541 + $0x30] sm:$0xf] %v566
                  %v568 = vld [vmem:[%s540 + $0x64] sm:$0xf]
                  %569 = vst [vmem:[%s541 + $0x34] sm:$0xf] %v568
                  %v570 = vld [vmem:[%s540 + $0x70] sm:$0xf]
                  %571 = vst [vmem:[%s541 + $0x38] sm:$0xf] %v570
                  %v572 = vld [vmem:[%s540 + $0x74] sm:$0xf]
                  %573 = vst [vmem:[%s541 + $0x3c] sm:$0xf] %v572
                  %v574 = vld [vmem:[%s540 + $0x80] sm:$0xf]
                  %575 = vst [vmem:[%s541 + $0x40] sm:$0xf] %v574
                  %v576 = vld [vmem:[%s540 + $0x84] sm:$0xf]
                  %577 = vst [vmem:[%s541 + $0x44] sm:$0xf] %v576
                  %v578 = vld [vmem:[%s540 + $0x90] sm:$0xf]
                  %579 = vst [vmem:[%s541 + $0x48] sm:$0xf] %v578
                  %v580 = vld [vmem:[%s540 + $0x94] sm:$0xf]
                  %581 = vst [vmem:[%s541 + $0x4c] sm:$0xf] %v580
                  %v582 = vld [vmem:[%s540 + $0xa0] sm:$0xf]
                  %583 = vst [vmem:[%s541 + $0x50] sm:$0xf] %v582
                  %v584 = vld [vmem:[%s540 + $0xa4] sm:$0xf]
                  %585 = vst [vmem:[%s541 + $0x54] sm:$0xf] %v584
                  %v586 = vld [vmem:[%s540 + $0xb0] sm:$0xf]
                  %587 = vst [vmem:[%s541 + $0x58] sm:$0xf] %v586
                  %v588 = vld [vmem:[%s540 + $0xb4] sm:$0xf]
                  %589 = vst [vmem:[%s541 + $0x5c] sm:$0xf] %v588
                  %v590 = vld [vmem:[%s540 + $0xc0] sm:$0xf]
                  %591 = vst [vmem:[%s541 + $0x60] sm:$0xf] %v590
                  %v592 = vld [vmem:[%s540 + $0xc4] sm:$0xf]
                  %593 = vst [vmem:[%s541 + $0x64] sm:$0xf] %v592
                  %v594 = vld [vmem:[%s540 + $0xd0] sm:$0xf]
                  %595 = vst [vmem:[%s541 + $0x68] sm:$0xf] %v594
                  %v596 = vld [vmem:[%s540 + $0xd4] sm:$0xf]
                  %597 = vst [vmem:[%s541 + $0x6c] sm:$0xf] %v596
                  %v598 = vld [vmem:[%s540 + $0xe0] sm:$0xf]
                  %599 = vst [vmem:[%s541 + $0x70] sm:$0xf] %v598
                  %v600 = vld [vmem:[%s540 + $0xe4] sm:$0xf]
                  %601 = vst [vmem:[%s541 + $0x74] sm:$0xf] %v600
                  %v602 = vld [vmem:[%s540 + $0xf0] sm:$0xf]
                  %603 = vst [vmem:[%s541 + $0x78] sm:$0xf] %v602
                  %v604 = vld [vmem:[%s540 + $0xf4] sm:$0xf]
                  %605 = vst [vmem:[%s541 + $0x7c] sm:$0xf] %v604
                  %v606 = vld [vmem:[%s540 + $0x100] sm:$0xf]
                  %607 = vst [vmem:[%s541 + $0x80] sm:$0xf] %v606
                  %v608 = vld [vmem:[%s540 + $0x104] sm:$0xf]
                  %609 = vst [vmem:[%s541 + $0x84] sm:$0xf] %v608
                  %v610 = vld [vmem:[%s540 + $0x110] sm:$0xf]
                  %611 = vst [vmem:[%s541 + $0x88] sm:$0xf] %v610
                  %v612 = vld [vmem:[%s540 + $0x114] sm:$0xf]
                  %613 = vst [vmem:[%s541 + $0x8c] sm:$0xf] %v612
                  %v614 = vld [vmem:[%s540 + $0x120] sm:$0xf]
                  %615 = vst [vmem:[%s541 + $0x90] sm:$0xf] %v614
                  %v616 = vld [vmem:[%s540 + $0x124] sm:$0xf]
                  %617 = vst [vmem:[%s541 + $0x94] sm:$0xf] %v616
                  %v618 = vld [vmem:[%s540 + $0x130] sm:$0xf]
                  %619 = vst [vmem:[%s541 + $0x98] sm:$0xf] %v618
                  %v620 = vld [vmem:[%s540 + $0x134] sm:$0xf]
                  %621 = vst [vmem:[%s541 + $0x9c] sm:$0xf] %v620
                  %v622 = vld [vmem:[%s540 + $0x140] sm:$0xf]
                  %623 = vst [vmem:[%s541 + $0xa0] sm:$0xf] %v622
                  %v624 = vld [vmem:[%s540 + $0x144] sm:$0xf]
                  %625 = vst [vmem:[%s541 + $0xa4] sm:$0xf] %v624
                  %v626 = vld [vmem:[%s540 + $0x150] sm:$0xf]
                  %627 = vst [vmem:[%s541 + $0xa8] sm:$0xf] %v626
                  %v628 = vld [vmem:[%s540 + $0x154] sm:$0xf]
                  %629 = vst [vmem:[%s541 + $0xac] sm:$0xf] %v628
                  %v630 = vld [vmem:[%s540 + $0x160] sm:$0xf]
                  %631 = vst [vmem:[%s541 + $0xb0] sm:$0xf] %v630
                  %v632 = vld [vmem:[%s540 + $0x164] sm:$0xf]
                  %633 = vst [vmem:[%s541 + $0xb4] sm:$0xf] %v632
                  %v634 = vld [vmem:[%s540 + $0x170] sm:$0xf]
                  %635 = vst [vmem:[%s541 + $0xb8] sm:$0xf] %v634
                  %v636 = vld [vmem:[%s540 + $0x174] sm:$0xf]
                  %637 = vst [vmem:[%s541 + $0xbc] sm:$0xf] %v636
                  %v638 = vld [vmem:[%s540 + $0x180] sm:$0xf]
                  %639 = vst [vmem:[%s541 + $0xc0] sm:$0xf] %v638
                  %v640 = vld [vmem:[%s540 + $0x184] sm:$0xf]
                  %641 = vst [vmem:[%s541 + $0xc4] sm:$0xf] %v640
                  %v642 = vld [vmem:[%s540 + $0x190] sm:$0xf]
                  %643 = vst [vmem:[%s541 + $0xc8] sm:$0xf] %v642
                  %v644 = vld [vmem:[%s540 + $0x194] sm:$0xf]
                  %645 = vst [vmem:[%s541 + $0xcc] sm:$0xf] %v644
                  %v646 = vld [vmem:[%s540 + $0x1a0] sm:$0xf]
                  %647 = vst [vmem:[%s541 + $0xd0] sm:$0xf] %v646
                  %v648 = vld [vmem:[%s540 + $0x1a4] sm:$0xf]
                  %649 = vst [vmem:[%s541 + $0xd4] sm:$0xf] %v648
                  %v650 = vld [vmem:[%s540 + $0x1b0] sm:$0xf]
                  %651 = vst [vmem:[%s541 + $0xd8] sm:$0xf] %v650
                  %v652 = vld [vmem:[%s540 + $0x1b4] sm:$0xf]
                  %653 = vst [vmem:[%s541 + $0xdc] sm:$0xf] %v652
                  %v654 = vld [vmem:[%s540 + $0x1c0] sm:$0xf]
                  %655 = vst [vmem:[%s541 + $0xe0] sm:$0xf] %v654
                  %v656 = vld [vmem:[%s540 + $0x1c4] sm:$0xf]
                  %657 = vst [vmem:[%s541 + $0xe4] sm:$0xf] %v656
                  %v658 = vld [vmem:[%s540 + $0x1d0] sm:$0xf]
                  %659 = vst [vmem:[%s541 + $0xe8] sm:$0xf] %v658
                  %v660 = vld [vmem:[%s540 + $0x1d4] sm:$0xf]
                  %661 = vst [vmem:[%s541 + $0xec] sm:$0xf] %v660
                  %v662 = vld [vmem:[%s540 + $0x1e0] sm:$0xf]
                  %663 = vst [vmem:[%s541 + $0xf0] sm:$0xf] %v662
                  %v664 = vld [vmem:[%s540 + $0x1e4] sm:$0xf]
                  %665 = vst [vmem:[%s541 + $0xf4] sm:$0xf] %v664
                  %v666 = vld [vmem:[%s540 + $0x1f0] sm:$0xf]
                  %667 = vst [vmem:[%s541 + $0xf8] sm:$0xf] %v666
                  %v668 = vld [vmem:[%s540 + $0x1f4] sm:$0xf]
                  %669 = vst [vmem:[%s541 + $0xfc] sm:$0xf] %v668
                  %v670 = vld [vmem:[%s540 + $0x200] sm:$0xf]
                  %671 = vst [vmem:[%s541 + $0x100] sm:$0xf] %v670
                  %v672 = vld [vmem:[%s540 + $0x204] sm:$0xf]
                  %673 = vst [vmem:[%s541 + $0x104] sm:$0xf] %v672
                  %v674 = vld [vmem:[%s540 + $0x210] sm:$0xf]
                  %675 = vst [vmem:[%s541 + $0x108] sm:$0xf] %v674
                  %v676 = vld [vmem:[%s540 + $0x214] sm:$0xf]
                  %677 = vst [vmem:[%s541 + $0x10c] sm:$0xf] %v676
                  %v678 = vld [vmem:[%s540 + $0x220] sm:$0xf]
                  %679 = vst [vmem:[%s541 + $0x110] sm:$0xf] %v678
                  %v680 = vld [vmem:[%s540 + $0x224] sm:$0xf]
                  %681 = vst [vmem:[%s541 + $0x114] sm:$0xf] %v680
                  %v682 = vld [vmem:[%s540 + $0x230] sm:$0xf]
                  %683 = vst [vmem:[%s541 + $0x118] sm:$0xf] %v682
                  %v684 = vld [vmem:[%s540 + $0x234] sm:$0xf]
                  %685 = vst [vmem:[%s541 + $0x11c] sm:$0xf] %v684
                  %v686 = vld [vmem:[%s540 + $0x240] sm:$0xf]
                  %687 = vst [vmem:[%s541 + $0x120] sm:$0xf] %v686
                  %v688 = vld [vmem:[%s540 + $0x244] sm:$0xf]
                  %689 = vst [vmem:[%s541 + $0x124] sm:$0xf] %v688
                  %v690 = vld [vmem:[%s540 + $0x250] sm:$0xf]
                  %691 = vst [vmem:[%s541 + $0x128] sm:$0xf] %v690
                  %v692 = vld [vmem:[%s540 + $0x254] sm:$0xf]
                  %693 = vst [vmem:[%s541 + $0x12c] sm:$0xf] %v692
                  %v694 = vld [vmem:[%s540 + $0x260] sm:$0xf]
                  %695 = vst [vmem:[%s541 + $0x130] sm:$0xf] %v694
                  %v696 = vld [vmem:[%s540 + $0x264] sm:$0xf]
                  %697 = vst [vmem:[%s541 + $0x134] sm:$0xf] %v696
                  %v698 = vld [vmem:[%s540 + $0x270] sm:$0xf]
                  %699 = vst [vmem:[%s541 + $0x138] sm:$0xf] %v698
                  %v700 = vld [vmem:[%s540 + $0x274] sm:$0xf]
                  %701 = vst [vmem:[%s541 + $0x13c] sm:$0xf] %v700
                  %v702 = vld [vmem:[%s540 + $0x280] sm:$0xf]
                  %703 = vst [vmem:[%s541 + $0x140] sm:$0xf] %v702
                  %v704 = vld [vmem:[%s540 + $0x284] sm:$0xf]
                  %705 = vst [vmem:[%s541 + $0x144] sm:$0xf] %v704
                  %v706 = vld [vmem:[%s540 + $0x290] sm:$0xf]
                  %707 = vst [vmem:[%s541 + $0x148] sm:$0xf] %v706
                  %v708 = vld [vmem:[%s540 + $0x294] sm:$0xf]
                  %709 = vst [vmem:[%s541 + $0x14c] sm:$0xf] %v708
                  %v710 = vld [vmem:[%s540 + $0x2a0] sm:$0xf]
                  %711 = vst [vmem:[%s541 + $0x150] sm:$0xf] %v710
                  %v712 = vld [vmem:[%s540 + $0x2a4] sm:$0xf]
                  %713 = vst [vmem:[%s541 + $0x154] sm:$0xf] %v712
                  %v714 = vld [vmem:[%s540 + $0x2b0] sm:$0xf]
                  %715 = vst [vmem:[%s541 + $0x158] sm:$0xf] %v714
                  %v716 = vld [vmem:[%s540 + $0x2b4] sm:$0xf]
                  %717 = vst [vmem:[%s541 + $0x15c] sm:$0xf] %v716
                  %v718 = vld [vmem:[%s540 + $0x2c0] sm:$0xf]
                  %719 = vst [vmem:[%s541 + $0x160] sm:$0xf] %v718
                  %v720 = vld [vmem:[%s540 + $0x2c4] sm:$0xf]
                  %721 = vst [vmem:[%s541 + $0x164] sm:$0xf] %v720
                  %v722 = vld [vmem:[%s540 + $0x2d0] sm:$0xf]
                  %723 = vst [vmem:[%s541 + $0x168] sm:$0xf] %v722
                  %v724 = vld [vmem:[%s540 + $0x2d4] sm:$0xf]
                  %725 = vst [vmem:[%s541 + $0x16c] sm:$0xf] %v724
                  %v726 = vld [vmem:[%s540 + $0x2e0] sm:$0xf]
                  %727 = vst [vmem:[%s541 + $0x170] sm:$0xf] %v726
                  %v728 = vld [vmem:[%s540 + $0x2e4] sm:$0xf]
                  %729 = vst [vmem:[%s541 + $0x174] sm:$0xf] %v728
                  %v730 = vld [vmem:[%s540 + $0x2f0] sm:$0xf]
                  %731 = vst [vmem:[%s541 + $0x178] sm:$0xf] %v730
                  %v732 = vld [vmem:[%s540 + $0x2f4] sm:$0xf]
                  %733 = vst [vmem:[%s541 + $0x17c] sm:$0xf] %v732
                  %v734 = vld [vmem:[%s540 + $0x300] sm:$0xf]
                  %735 = vst [vmem:[%s541 + $0x180] sm:$0xf] %v734
                  %v736 = vld [vmem:[%s540 + $0x304] sm:$0xf]
                  %737 = vst [vmem:[%s541 + $0x184] sm:$0xf] %v736
                  %v738 = vld [vmem:[%s540 + $0x310] sm:$0xf]
                  %739 = vst [vmem:[%s541 + $0x188] sm:$0xf] %v738
                  %v740 = vld [vmem:[%s540 + $0x314] sm:$0xf]
                  %741 = vst [vmem:[%s541 + $0x18c] sm:$0xf] %v740
                  %v742 = vld [vmem:[%s540 + $0x320] sm:$0xf]
                  %743 = vst [vmem:[%s541 + $0x190] sm:$0xf] %v742
                  %v744 = vld [vmem:[%s540 + $0x324] sm:$0xf]
                  %745 = vst [vmem:[%s541 + $0x194] sm:$0xf] %v744
                  %v746 = vld [vmem:[%s540 + $0x330] sm:$0xf]
                  %747 = vst [vmem:[%s541 + $0x198] sm:$0xf] %v746
                  %v748 = vld [vmem:[%s540 + $0x334] sm:$0xf]
                  %749 = vst [vmem:[%s541 + $0x19c] sm:$0xf] %v748
                  %v750 = vld [vmem:[%s540 + $0x340] sm:$0xf]
                  %751 = vst [vmem:[%s541 + $0x1a0] sm:$0xf] %v750
                  %v752 = vld [vmem:[%s540 + $0x344] sm:$0xf]
                  %753 = vst [vmem:[%s541 + $0x1a4] sm:$0xf] %v752
                  %v754 = vld [vmem:[%s540 + $0x350] sm:$0xf]
                  %755 = vst [vmem:[%s541 + $0x1a8] sm:$0xf] %v754
                  %v756 = vld [vmem:[%s540 + $0x354] sm:$0xf]
                  %757 = vst [vmem:[%s541 + $0x1ac] sm:$0xf] %v756
                  %v758 = vld [vmem:[%s540 + $0x360] sm:$0xf]
                  %759 = vst [vmem:[%s541 + $0x1b0] sm:$0xf] %v758
                  %v760 = vld [vmem:[%s540 + $0x364] sm:$0xf]
                  %761 = vst [vmem:[%s541 + $0x1b4] sm:$0xf] %v760
                  %v762 = vld [vmem:[%s540 + $0x370] sm:$0xf]
                  %763 = vst [vmem:[%s541 + $0x1b8] sm:$0xf] %v762
                  %v764 = vld [vmem:[%s540 + $0x374] sm:$0xf]
                  %765 = vst [vmem:[%s541 + $0x1bc] sm:$0xf] %v764
                  %v766 = vld [vmem:[%s540 + $0x380] sm:$0xf]
                  %767 = vst [vmem:[%s541 + $0x1c0] sm:$0xf] %v766
                  %v768 = vld [vmem:[%s540 + $0x384] sm:$0xf]
                  %769 = vst [vmem:[%s541 + $0x1c4] sm:$0xf] %v768
                  %v770 = vld [vmem:[%s540 + $0x390] sm:$0xf]
                  %771 = vst [vmem:[%s541 + $0x1c8] sm:$0xf] %v770
                  %v772 = vld [vmem:[%s540 + $0x394] sm:$0xf]
                  %773 = vst [vmem:[%s541 + $0x1cc] sm:$0xf] %v772
                  %v774 = vld [vmem:[%s540 + $0x3a0] sm:$0xf]
                  %775 = vst [vmem:[%s541 + $0x1d0] sm:$0xf] %v774
                  %v776 = vld [vmem:[%s540 + $0x3a4] sm:$0xf]
                  %777 = vst [vmem:[%s541 + $0x1d4] sm:$0xf] %v776
                  %v778 = vld [vmem:[%s540 + $0x3b0] sm:$0xf]
                  %779 = vst [vmem:[%s541 + $0x1d8] sm:$0xf] %v778
                  %v780 = vld [vmem:[%s540 + $0x3b4] sm:$0xf]
                  %781 = vst [vmem:[%s541 + $0x1dc] sm:$0xf] %v780
                  %v782 = vld [vmem:[%s540 + $0x3c0] sm:$0xf]
                  %783 = vst [vmem:[%s541 + $0x1e0] sm:$0xf] %v782
                  %v784 = vld [vmem:[%s540 + $0x3c4] sm:$0xf]
                  %785 = vst [vmem:[%s541 + $0x1e4] sm:$0xf] %v784
                  %v786 = vld [vmem:[%s540 + $0x3d0] sm:$0xf]
                  %787 = vst [vmem:[%s541 + $0x1e8] sm:$0xf] %v786
                  %v788 = vld [vmem:[%s540 + $0x3d4] sm:$0xf]
                  %789 = vst [vmem:[%s541 + $0x1ec] sm:$0xf] %v788
                  %v790 = vld [vmem:[%s540 + $0x3e0] sm:$0xf]
                  %791 = vst [vmem:[%s541 + $0x1f0] sm:$0xf] %v790
                  %v792 = vld [vmem:[%s540 + $0x3e4] sm:$0xf]
                  %793 = vst [vmem:[%s541 + $0x1f4] sm:$0xf] %v792
                  %v794 = vld [vmem:[%s540 + $0x3f0] sm:$0xf]
                  %795 = vst [vmem:[%s541 + $0x1f8] sm:$0xf] %v794
                  %v796 = vld [vmem:[%s540 + $0x3f4] sm:$0xf]
                  %797 = vst [vmem:[%s541 + $0x1fc] sm:$0xf] %v796
                $region79: #{tpu_custom_call.1} parent=66 // loop_footer
                  %s539 = sadd.s32 1, %s535
                $region80: #{tpu_custom_call.1} parent=66 // loop_footer_branch
                  %534 = sbr.rel target = $region76
                $region81: #{tpu_custom_call.1} parent=66 // loop_exit
                  _
              $region67: #{tpu_custom_call.1} parent=51 // pred_fallthru
                _
            $region52: #{tpu_custom_call.1} parent=47 // pred_fallthru
              _
            // Predicated region
            $region53: #{tpu_custom_call.1} parent=47 // pred_check
              _
            $region54: #{tpu_custom_call.1} parent=47 // pred_check_branch
              %257 = sbr.rel (0) target = $region56
            $region55: #{tpu_custom_call.1} parent=47 // pred_region
              loop: start=0, step=1, limit=1
              $region57: #{tpu_custom_call.1} parent=55 // loop_pre_header
                _
              $region58: #{tpu_custom_call.1} parent=55 // loop_header
                %s260 = sphi 0, %s264
                %p261 = scmp.ge.s32.totalorder %s260, 1
                %s265 = sphi %s251, %s251
                %s266 = sphi %s248, %s248
              $region59: #{tpu_custom_call.1} parent=55 // loop_header_branch
                %263 = sbr.rel (%p261) target = $region63
              $region60: #{tpu_custom_call.1} parent=55 // loop_body
                %v267 = vld [vmem:[%s265] sm:$0xf]
                %268 = vst [vmem:[%s266] sm:$0xf] %v267
                %v269 = vld [vmem:[%s265 + $0x4] sm:$0xf]
                %270 = vst [vmem:[%s266 + $0x4] sm:$0xf] %v269
                %v271 = vld [vmem:[%s265 + $0x10] sm:$0xf]
                %272 = vst [vmem:[%s266 + $0x8] sm:$0xf] %v271
                %v273 = vld [vmem:[%s265 + $0x14] sm:$0xf]
                %274 = vst [vmem:[%s266 + $0xc] sm:$0xf] %v273
                %v275 = vld [vmem:[%s265 + $0x20] sm:$0xf]
                %276 = vst [vmem:[%s266 + $0x10] sm:$0xf] %v275
                %v277 = vld [vmem:[%s265 + $0x24] sm:$0xf]
                %278 = vst [vmem:[%s266 + $0x14] sm:$0xf] %v277
                %v279 = vld [vmem:[%s265 + $0x30] sm:$0xf]
                %280 = vst [vmem:[%s266 + $0x18] sm:$0xf] %v279
                %v281 = vld [vmem:[%s265 + $0x34] sm:$0xf]
                %282 = vst [vmem:[%s266 + $0x1c] sm:$0xf] %v281
                %v283 = vld [vmem:[%s265 + $0x40] sm:$0xf]
                %284 = vst [vmem:[%s266 + $0x20] sm:$0xf] %v283
                %v285 = vld [vmem:[%s265 + $0x44] sm:$0xf]
                %286 = vst [vmem:[%s266 + $0x24] sm:$0xf] %v285
                %v287 = vld [vmem:[%s265 + $0x50] sm:$0xf]
                %288 = vst [vmem:[%s266 + $0x28] sm:$0xf] %v287
                %v289 = vld [vmem:[%s265 + $0x54] sm:$0xf]
                %290 = vst [vmem:[%s266 + $0x2c] sm:$0xf] %v289
                %v291 = vld [vmem:[%s265 + $0x60] sm:$0xf]
                %292 = vst [vmem:[%s266 + $0x30] sm:$0xf] %v291
                %v293 = vld [vmem:[%s265 + $0x64] sm:$0xf]
                %294 = vst [vmem:[%s266 + $0x34] sm:$0xf] %v293
                %v295 = vld [vmem:[%s265 + $0x70] sm:$0xf]
                %296 = vst [vmem:[%s266 + $0x38] sm:$0xf] %v295
                %v297 = vld [vmem:[%s265 + $0x74] sm:$0xf]
                %298 = vst [vmem:[%s266 + $0x3c] sm:$0xf] %v297
                %v299 = vld [vmem:[%s265 + $0x80] sm:$0xf]
                %300 = vst [vmem:[%s266 + $0x40] sm:$0xf] %v299
                %v301 = vld [vmem:[%s265 + $0x84] sm:$0xf]
                %302 = vst [vmem:[%s266 + $0x44] sm:$0xf] %v301
                %v303 = vld [vmem:[%s265 + $0x90] sm:$0xf]
                %304 = vst [vmem:[%s266 + $0x48] sm:$0xf] %v303
                %v305 = vld [vmem:[%s265 + $0x94] sm:$0xf]
                %306 = vst [vmem:[%s266 + $0x4c] sm:$0xf] %v305
                %v307 = vld [vmem:[%s265 + $0xa0] sm:$0xf]
                %308 = vst [vmem:[%s266 + $0x50] sm:$0xf] %v307
                %v309 = vld [vmem:[%s265 + $0xa4] sm:$0xf]
                %310 = vst [vmem:[%s266 + $0x54] sm:$0xf] %v309
                %v311 = vld [vmem:[%s265 + $0xb0] sm:$0xf]
                %312 = vst [vmem:[%s266 + $0x58] sm:$0xf] %v311
                %v313 = vld [vmem:[%s265 + $0xb4] sm:$0xf]
                %314 = vst [vmem:[%s266 + $0x5c] sm:$0xf] %v313
                %v315 = vld [vmem:[%s265 + $0xc0] sm:$0xf]
                %316 = vst [vmem:[%s266 + $0x60] sm:$0xf] %v315
                %v317 = vld [vmem:[%s265 + $0xc4] sm:$0xf]
                %318 = vst [vmem:[%s266 + $0x64] sm:$0xf] %v317
                %v319 = vld [vmem:[%s265 + $0xd0] sm:$0xf]
                %320 = vst [vmem:[%s266 + $0x68] sm:$0xf] %v319
                %v321 = vld [vmem:[%s265 + $0xd4] sm:$0xf]
                %322 = vst [vmem:[%s266 + $0x6c] sm:$0xf] %v321
                %v323 = vld [vmem:[%s265 + $0xe0] sm:$0xf]
                %324 = vst [vmem:[%s266 + $0x70] sm:$0xf] %v323
                %v325 = vld [vmem:[%s265 + $0xe4] sm:$0xf]
                %326 = vst [vmem:[%s266 + $0x74] sm:$0xf] %v325
                %v327 = vld [vmem:[%s265 + $0xf0] sm:$0xf]
                %328 = vst [vmem:[%s266 + $0x78] sm:$0xf] %v327
                %v329 = vld [vmem:[%s265 + $0xf4] sm:$0xf]
                %330 = vst [vmem:[%s266 + $0x7c] sm:$0xf] %v329
                %v331 = vld [vmem:[%s265 + $0x100] sm:$0xf]
                %332 = vst [vmem:[%s266 + $0x80] sm:$0xf] %v331
                %v333 = vld [vmem:[%s265 + $0x104] sm:$0xf]
                %334 = vst [vmem:[%s266 + $0x84] sm:$0xf] %v333
                %v335 = vld [vmem:[%s265 + $0x110] sm:$0xf]
                %336 = vst [vmem:[%s266 + $0x88] sm:$0xf] %v335
                %v337 = vld [vmem:[%s265 + $0x114] sm:$0xf]
                %338 = vst [vmem:[%s266 + $0x8c] sm:$0xf] %v337
                %v339 = vld [vmem:[%s265 + $0x120] sm:$0xf]
                %340 = vst [vmem:[%s266 + $0x90] sm:$0xf] %v339
                %v341 = vld [vmem:[%s265 + $0x124] sm:$0xf]
                %342 = vst [vmem:[%s266 + $0x94] sm:$0xf] %v341
                %v343 = vld [vmem:[%s265 + $0x130] sm:$0xf]
                %344 = vst [vmem:[%s266 + $0x98] sm:$0xf] %v343
                %v345 = vld [vmem:[%s265 + $0x134] sm:$0xf]
                %346 = vst [vmem:[%s266 + $0x9c] sm:$0xf] %v345
                %v347 = vld [vmem:[%s265 + $0x140] sm:$0xf]
                %348 = vst [vmem:[%s266 + $0xa0] sm:$0xf] %v347
                %v349 = vld [vmem:[%s265 + $0x144] sm:$0xf]
                %350 = vst [vmem:[%s266 + $0xa4] sm:$0xf] %v349
                %v351 = vld [vmem:[%s265 + $0x150] sm:$0xf]
                %352 = vst [vmem:[%s266 + $0xa8] sm:$0xf] %v351
                %v353 = vld [vmem:[%s265 + $0x154] sm:$0xf]
                %354 = vst [vmem:[%s266 + $0xac] sm:$0xf] %v353
                %v355 = vld [vmem:[%s265 + $0x160] sm:$0xf]
                %356 = vst [vmem:[%s266 + $0xb0] sm:$0xf] %v355
                %v357 = vld [vmem:[%s265 + $0x164] sm:$0xf]
                %358 = vst [vmem:[%s266 + $0xb4] sm:$0xf] %v357
                %v359 = vld [vmem:[%s265 + $0x170] sm:$0xf]
                %360 = vst [vmem:[%s266 + $0xb8] sm:$0xf] %v359
                %v361 = vld [vmem:[%s265 + $0x174] sm:$0xf]
                %362 = vst [vmem:[%s266 + $0xbc] sm:$0xf] %v361
                %v363 = vld [vmem:[%s265 + $0x180] sm:$0xf]
                %364 = vst [vmem:[%s266 + $0xc0] sm:$0xf] %v363
                %v365 = vld [vmem:[%s265 + $0x184] sm:$0xf]
                %366 = vst [vmem:[%s266 + $0xc4] sm:$0xf] %v365
                %v367 = vld [vmem:[%s265 + $0x190] sm:$0xf]
                %368 = vst [vmem:[%s266 + $0xc8] sm:$0xf] %v367
                %v369 = vld [vmem:[%s265 + $0x194] sm:$0xf]
                %370 = vst [vmem:[%s266 + $0xcc] sm:$0xf] %v369
                %v371 = vld [vmem:[%s265 + $0x1a0] sm:$0xf]
                %372 = vst [vmem:[%s266 + $0xd0] sm:$0xf] %v371
                %v373 = vld [vmem:[%s265 + $0x1a4] sm:$0xf]
                %374 = vst [vmem:[%s266 + $0xd4] sm:$0xf] %v373
                %v375 = vld [vmem:[%s265 + $0x1b0] sm:$0xf]
                %376 = vst [vmem:[%s266 + $0xd8] sm:$0xf] %v375
                %v377 = vld [vmem:[%s265 + $0x1b4] sm:$0xf]
                %378 = vst [vmem:[%s266 + $0xdc] sm:$0xf] %v377
                %v379 = vld [vmem:[%s265 + $0x1c0] sm:$0xf]
                %380 = vst [vmem:[%s266 + $0xe0] sm:$0xf] %v379
                %v381 = vld [vmem:[%s265 + $0x1c4] sm:$0xf]
                %382 = vst [vmem:[%s266 + $0xe4] sm:$0xf] %v381
                %v383 = vld [vmem:[%s265 + $0x1d0] sm:$0xf]
                %384 = vst [vmem:[%s266 + $0xe8] sm:$0xf] %v383
                %v385 = vld [vmem:[%s265 + $0x1d4] sm:$0xf]
                %386 = vst [vmem:[%s266 + $0xec] sm:$0xf] %v385
                %v387 = vld [vmem:[%s265 + $0x1e0] sm:$0xf]
                %388 = vst [vmem:[%s266 + $0xf0] sm:$0xf] %v387
                %v389 = vld [vmem:[%s265 + $0x1e4] sm:$0xf]
                %390 = vst [vmem:[%s266 + $0xf4] sm:$0xf] %v389
                %v391 = vld [vmem:[%s265 + $0x1f0] sm:$0xf]
                %392 = vst [vmem:[%s266 + $0xf8] sm:$0xf] %v391
                %v393 = vld [vmem:[%s265 + $0x1f4] sm:$0xf]
                %394 = vst [vmem:[%s266 + $0xfc] sm:$0xf] %v393
                %v395 = vld [vmem:[%s265 + $0x200] sm:$0xf]
                %396 = vst [vmem:[%s266 + $0x100] sm:$0xf] %v395
                %v397 = vld [vmem:[%s265 + $0x204] sm:$0xf]
                %398 = vst [vmem:[%s266 + $0x104] sm:$0xf] %v397
                %v399 = vld [vmem:[%s265 + $0x210] sm:$0xf]
                %400 = vst [vmem:[%s266 + $0x108] sm:$0xf] %v399
                %v401 = vld [vmem:[%s265 + $0x214] sm:$0xf]
                %402 = vst [vmem:[%s266 + $0x10c] sm:$0xf] %v401
                %v403 = vld [vmem:[%s265 + $0x220] sm:$0xf]
                %404 = vst [vmem:[%s266 + $0x110] sm:$0xf] %v403
                %v405 = vld [vmem:[%s265 + $0x224] sm:$0xf]
                %406 = vst [vmem:[%s266 + $0x114] sm:$0xf] %v405
                %v407 = vld [vmem:[%s265 + $0x230] sm:$0xf]
                %408 = vst [vmem:[%s266 + $0x118] sm:$0xf] %v407
                %v409 = vld [vmem:[%s265 + $0x234] sm:$0xf]
                %410 = vst [vmem:[%s266 + $0x11c] sm:$0xf] %v409
                %v411 = vld [vmem:[%s265 + $0x240] sm:$0xf]
                %412 = vst [vmem:[%s266 + $0x120] sm:$0xf] %v411
                %v413 = vld [vmem:[%s265 + $0x244] sm:$0xf]
                %414 = vst [vmem:[%s266 + $0x124] sm:$0xf] %v413
                %v415 = vld [vmem:[%s265 + $0x250] sm:$0xf]
                %416 = vst [vmem:[%s266 + $0x128] sm:$0xf] %v415
                %v417 = vld [vmem:[%s265 + $0x254] sm:$0xf]
                %418 = vst [vmem:[%s266 + $0x12c] sm:$0xf] %v417
                %v419 = vld [vmem:[%s265 + $0x260] sm:$0xf]
                %420 = vst [vmem:[%s266 + $0x130] sm:$0xf] %v419
                %v421 = vld [vmem:[%s265 + $0x264] sm:$0xf]
                %422 = vst [vmem:[%s266 + $0x134] sm:$0xf] %v421
                %v423 = vld [vmem:[%s265 + $0x270] sm:$0xf]
                %424 = vst [vmem:[%s266 + $0x138] sm:$0xf] %v423
                %v425 = vld [vmem:[%s265 + $0x274] sm:$0xf]
                %426 = vst [vmem:[%s266 + $0x13c] sm:$0xf] %v425
                %v427 = vld [vmem:[%s265 + $0x280] sm:$0xf]
                %428 = vst [vmem:[%s266 + $0x140] sm:$0xf] %v427
                %v429 = vld [vmem:[%s265 + $0x284] sm:$0xf]
                %430 = vst [vmem:[%s266 + $0x144] sm:$0xf] %v429
                %v431 = vld [vmem:[%s265 + $0x290] sm:$0xf]
                %432 = vst [vmem:[%s266 + $0x148] sm:$0xf] %v431
                %v433 = vld [vmem:[%s265 + $0x294] sm:$0xf]
                %434 = vst [vmem:[%s266 + $0x14c] sm:$0xf] %v433
                %v435 = vld [vmem:[%s265 + $0x2a0] sm:$0xf]
                %436 = vst [vmem:[%s266 + $0x150] sm:$0xf] %v435
                %v437 = vld [vmem:[%s265 + $0x2a4] sm:$0xf]
                %438 = vst [vmem:[%s266 + $0x154] sm:$0xf] %v437
                %v439 = vld [vmem:[%s265 + $0x2b0] sm:$0xf]
                %440 = vst [vmem:[%s266 + $0x158] sm:$0xf] %v439
                %v441 = vld [vmem:[%s265 + $0x2b4] sm:$0xf]
                %442 = vst [vmem:[%s266 + $0x15c] sm:$0xf] %v441
                %v443 = vld [vmem:[%s265 + $0x2c0] sm:$0xf]
                %444 = vst [vmem:[%s266 + $0x160] sm:$0xf] %v443
                %v445 = vld [vmem:[%s265 + $0x2c4] sm:$0xf]
                %446 = vst [vmem:[%s266 + $0x164] sm:$0xf] %v445
                %v447 = vld [vmem:[%s265 + $0x2d0] sm:$0xf]
                %448 = vst [vmem:[%s266 + $0x168] sm:$0xf] %v447
                %v449 = vld [vmem:[%s265 + $0x2d4] sm:$0xf]
                %450 = vst [vmem:[%s266 + $0x16c] sm:$0xf] %v449
                %v451 = vld [vmem:[%s265 + $0x2e0] sm:$0xf]
                %452 = vst [vmem:[%s266 + $0x170] sm:$0xf] %v451
                %v453 = vld [vmem:[%s265 + $0x2e4] sm:$0xf]
                %454 = vst [vmem:[%s266 + $0x174] sm:$0xf] %v453
                %v455 = vld [vmem:[%s265 + $0x2f0] sm:$0xf]
                %456 = vst [vmem:[%s266 + $0x178] sm:$0xf] %v455
                %v457 = vld [vmem:[%s265 + $0x2f4] sm:$0xf]
                %458 = vst [vmem:[%s266 + $0x17c] sm:$0xf] %v457
                %v459 = vld [vmem:[%s265 + $0x300] sm:$0xf]
                %460 = vst [vmem:[%s266 + $0x180] sm:$0xf] %v459
                %v461 = vld [vmem:[%s265 + $0x304] sm:$0xf]
                %462 = vst [vmem:[%s266 + $0x184] sm:$0xf] %v461
                %v463 = vld [vmem:[%s265 + $0x310] sm:$0xf]
                %464 = vst [vmem:[%s266 + $0x188] sm:$0xf] %v463
                %v465 = vld [vmem:[%s265 + $0x314] sm:$0xf]
                %466 = vst [vmem:[%s266 + $0x18c] sm:$0xf] %v465
                %v467 = vld [vmem:[%s265 + $0x320] sm:$0xf]
                %468 = vst [vmem:[%s266 + $0x190] sm:$0xf] %v467
                %v469 = vld [vmem:[%s265 + $0x324] sm:$0xf]
                %470 = vst [vmem:[%s266 + $0x194] sm:$0xf] %v469
                %v471 = vld [vmem:[%s265 + $0x330] sm:$0xf]
                %472 = vst [vmem:[%s266 + $0x198] sm:$0xf] %v471
                %v473 = vld [vmem:[%s265 + $0x334] sm:$0xf]
                %474 = vst [vmem:[%s266 + $0x19c] sm:$0xf] %v473
                %v475 = vld [vmem:[%s265 + $0x340] sm:$0xf]
                %476 = vst [vmem:[%s266 + $0x1a0] sm:$0xf] %v475
                %v477 = vld [vmem:[%s265 + $0x344] sm:$0xf]
                %478 = vst [vmem:[%s266 + $0x1a4] sm:$0xf] %v477
                %v479 = vld [vmem:[%s265 + $0x350] sm:$0xf]
                %480 = vst [vmem:[%s266 + $0x1a8] sm:$0xf] %v479
                %v481 = vld [vmem:[%s265 + $0x354] sm:$0xf]
                %482 = vst [vmem:[%s266 + $0x1ac] sm:$0xf] %v481
                %v483 = vld [vmem:[%s265 + $0x360] sm:$0xf]
                %484 = vst [vmem:[%s266 + $0x1b0] sm:$0xf] %v483
                %v485 = vld [vmem:[%s265 + $0x364] sm:$0xf]
                %486 = vst [vmem:[%s266 + $0x1b4] sm:$0xf] %v485
                %v487 = vld [vmem:[%s265 + $0x370] sm:$0xf]
                %488 = vst [vmem:[%s266 + $0x1b8] sm:$0xf] %v487
                %v489 = vld [vmem:[%s265 + $0x374] sm:$0xf]
                %490 = vst [vmem:[%s266 + $0x1bc] sm:$0xf] %v489
                %v491 = vld [vmem:[%s265 + $0x380] sm:$0xf]
                %492 = vst [vmem:[%s266 + $0x1c0] sm:$0xf] %v491
                %v493 = vld [vmem:[%s265 + $0x384] sm:$0xf]
                %494 = vst [vmem:[%s266 + $0x1c4] sm:$0xf] %v493
                %v495 = vld [vmem:[%s265 + $0x390] sm:$0xf]
                %496 = vst [vmem:[%s266 + $0x1c8] sm:$0xf] %v495
                %v497 = vld [vmem:[%s265 + $0x394] sm:$0xf]
                %498 = vst [vmem:[%s266 + $0x1cc] sm:$0xf] %v497
                %v499 = vld [vmem:[%s265 + $0x3a0] sm:$0xf]
                %500 = vst [vmem:[%s266 + $0x1d0] sm:$0xf] %v499
                %v501 = vld [vmem:[%s265 + $0x3a4] sm:$0xf]
                %502 = vst [vmem:[%s266 + $0x1d4] sm:$0xf] %v501
                %v503 = vld [vmem:[%s265 + $0x3b0] sm:$0xf]
                %504 = vst [vmem:[%s266 + $0x1d8] sm:$0xf] %v503
                %v505 = vld [vmem:[%s265 + $0x3b4] sm:$0xf]
                %506 = vst [vmem:[%s266 + $0x1dc] sm:$0xf] %v505
                %v507 = vld [vmem:[%s265 + $0x3c0] sm:$0xf]
                %508 = vst [vmem:[%s266 + $0x1e0] sm:$0xf] %v507
                %v509 = vld [vmem:[%s265 + $0x3c4] sm:$0xf]
                %510 = vst [vmem:[%s266 + $0x1e4] sm:$0xf] %v509
                %v511 = vld [vmem:[%s265 + $0x3d0] sm:$0xf]
                %512 = vst [vmem:[%s266 + $0x1e8] sm:$0xf] %v511
                %v513 = vld [vmem:[%s265 + $0x3d4] sm:$0xf]
                %514 = vst [vmem:[%s266 + $0x1ec] sm:$0xf] %v513
                %v515 = vld [vmem:[%s265 + $0x3e0] sm:$0xf]
                %516 = vst [vmem:[%s266 + $0x1f0] sm:$0xf] %v515
                %v517 = vld [vmem:[%s265 + $0x3e4] sm:$0xf]
                %518 = vst [vmem:[%s266 + $0x1f4] sm:$0xf] %v517
                %v519 = vld [vmem:[%s265 + $0x3f0] sm:$0xf]
                %520 = vst [vmem:[%s266 + $0x1f8] sm:$0xf] %v519
                %v521 = vld [vmem:[%s265 + $0x3f4] sm:$0xf]
                %522 = vst [vmem:[%s266 + $0x1fc] sm:$0xf] %v521
              $region61: #{tpu_custom_call.1} parent=55 // loop_footer
                %s264 = sadd.s32 1, %s260
              $region62: #{tpu_custom_call.1} parent=55 // loop_footer_branch
                %259 = sbr.rel target = $region58
              $region63: #{tpu_custom_call.1} parent=55 // loop_exit
                _
            $region56: #{tpu_custom_call.1} parent=47 // pred_fallthru
              _
          $region48: #{tpu_custom_call.1} parent=43 // pred_fallthru
            _
          %798 = vnop
        $region44: #{tpu_custom_call.1} parent=39 // pred_fallthru
          _
      $region40: #{tpu_custom_call.1} parent=5 // pred_fallthru
        _
      %p799 = scmp.le.s32.totalorder 1, %s17
      %p800 = scmp.lt.s32.totalorder %s17, 3
      %p801 = pnand %p799, %p800
      %p802 = pneg %p801
      // Predicated region
      $region82: #{tpu_custom_call.1} parent=5 // pred_check
        _
      $region83: #{tpu_custom_call.1} parent=5 // pred_check_branch
        %804 = sbr.rel (%p801) target = $region85
      $region84: #{tpu_custom_call.1} parent=5 // pred_region
        %s805 = ssub.s32 %s17, 1
        %s806 = sand.u32 %s30, 1
        %s807 = sand.u32 %s30, 1
        %s808 = smul.addr %s807, 512
        %s809 = scalar_lea.vmem [#allocation2], %s808
        // Predicated region
        $region86: #{tpu_custom_call.1} parent=84 // pred_check
          %p810 = pneg %p43
        $region87: #{tpu_custom_call.1} parent=84 // pred_check_branch
          %812 = sbr.rel (%p810) target = $region89
        $region88: #{tpu_custom_call.1} parent=84 // pred_region
          _
        $region89: #{tpu_custom_call.1} parent=84 // pred_fallthru
          _
        // Predicated region
        $region90: #{tpu_custom_call.1} parent=84 // pred_check
          %p813 = pneg %p106
        $region91: #{tpu_custom_call.1} parent=84 // pred_check_branch
          %815 = sbr.rel (%p813) target = $region93
        $region92: #{tpu_custom_call.1} parent=84 // pred_region
          %816 = dma.done [#allocation4], 24576
        $region93: #{tpu_custom_call.1} parent=84 // pred_fallthru
          _
        %s817 = sand.u32 %s30, 1
        %s818 = sand.u32 %s30, 1
        %s819 = smul.addr %s818, 512
        %s820 = scalar_lea.vmem [#allocation2], %s819
        %p821 = pneg %p43
        %p822 = pneg %p40
        %p823 = pneg %p64
        %p824 = pneg %p61
        %p825 = pneg %p85
        %p826 = pneg %p82
        %p827 = pneg %p106
        %p828 = pneg %p103
        %p829 = pneg %p127
        %p830 = pneg %p124
        %p831 = pneg %p148
        %p832 = pneg %p145
        %p833 = pneg %p169
        %p834 = pneg %p166
        %p835 = pneg %p195
        %p836 = pneg %p192
        %s837 = sand.u32 %s182, 1
        %s838 = scalar_lea.sflag [#allocation5], %s837
        %s839 = sand.u32 %s182, 1
        %s840 = smul.addr %s839, 16
        %s841 = scalar_lea.vmem [#allocation6], %s840
        %s842 = smul.u32 2, %s22
        %s843 = smul.u32 2, %s22
        %v845 = vld [vmem:[%s809] sm:$0xf]
        %v846 = vld [vmem:[%s809 + $0x4] sm:$0xf]
        %v847 = vld [vmem:[%s809 + $0x8] sm:$0xf]
        %v848 = vld [vmem:[%s809 + $0xc] sm:$0xf]
        %v849 = vld [vmem:[%s809 + $0x10] sm:$0xf]
        %v850 = vld [vmem:[%s809 + $0x14] sm:$0xf]
        %v851 = vld [vmem:[%s809 + $0x18] sm:$0xf]
        %v852 = vld [vmem:[%s809 + $0x1c] sm:$0xf]
        %v853 = vld [vmem:[%s809 + $0x20] sm:$0xf]
        %v854 = vld [vmem:[%s809 + $0x24] sm:$0xf]
        %v855 = vld [vmem:[%s809 + $0x28] sm:$0xf]
        %v856 = vld [vmem:[%s809 + $0x2c] sm:$0xf]
        %v857 = vld [vmem:[%s809 + $0x30] sm:$0xf]
        %v858 = vld [vmem:[%s809 + $0x34] sm:$0xf]
        %v859 = vld [vmem:[%s809 + $0x40] sm:$0xf]
        %v860 = vld [vmem:[%s809 + $0x44] sm:$0xf]
        %v861 = vld [vmem:[%s809 + $0x48] sm:$0xf]
        %v862 = vld [vmem:[%s809 + $0x4c] sm:$0xf]
        %v863 = vld [vmem:[%s809 + $0x50] sm:$0xf]
        %v864 = vld [vmem:[%s809 + $0x54] sm:$0xf]
        %v865 = vld [vmem:[%s809 + $0x58] sm:$0xf]
        %v866 = vld [vmem:[%s809 + $0x5c] sm:$0xf]
        %v867 = vld [vmem:[%s809 + $0x60] sm:$0xf]
        %v868 = vld [vmem:[%s809 + $0x64] sm:$0xf]
        %v869 = vld [vmem:[%s809 + $0x68] sm:$0xf]
        %v870 = vld [vmem:[%s809 + $0x6c] sm:$0xf]
        %v871 = vld [vmem:[%s809 + $0x70] sm:$0xf]
        %v872 = vld [vmem:[%s809 + $0x74] sm:$0xf]
        %v873 = vld [vmem:[%s809 + $0x80] sm:$0xf]
        %v874 = vld [vmem:[%s809 + $0x84] sm:$0xf]
        %v875 = vld [vmem:[%s809 + $0x88] sm:$0xf]
        %v876 = vld [vmem:[%s809 + $0x8c] sm:$0xf]
        %v877 = vld [vmem:[%s809 + $0x90] sm:$0xf]
        %v878 = vld [vmem:[%s809 + $0x94] sm:$0xf]
        %v879 = vld [vmem:[%s809 + $0x98] sm:$0xf]
        %v880 = vld [vmem:[%s809 + $0x9c] sm:$0xf]
        %v881 = vld [vmem:[%s809 + $0xa0] sm:$0xf]
        %v882 = vld [vmem:[%s809 + $0xa4] sm:$0xf]
        %v883 = vld [vmem:[%s809 + $0xa8] sm:$0xf]
        %v884 = vld [vmem:[%s809 + $0xac] sm:$0xf]
        %v885 = vld [vmem:[%s809 + $0xb0] sm:$0xf]
        %v886 = vld [vmem:[%s809 + $0xb4] sm:$0xf]
        %v887 = vld [vmem:[%s809 + $0xc0] sm:$0xf]
        %v888 = vld [vmem:[%s809 + $0xc4] sm:$0xf]
        %v889 = vld [vmem:[%s809 + $0xc8] sm:$0xf]
        %v890 = vld [vmem:[%s809 + $0xcc] sm:$0xf]
        %v891 = vld [vmem:[%s809 + $0xd0] sm:$0xf]
        %v892 = vld [vmem:[%s809 + $0xd4] sm:$0xf]
        %v893 = vld [vmem:[%s809 + $0xd8] sm:$0xf]
        %v894 = vld [vmem:[%s809 + $0xdc] sm:$0xf]
        %v895 = vld [vmem:[%s809 + $0xe0] sm:$0xf]
        %v896 = vld [vmem:[%s809 + $0xe4] sm:$0xf]
        %v897 = vld [vmem:[%s809 + $0xe8] sm:$0xf]
        %v898 = vld [vmem:[%s809 + $0xec] sm:$0xf]
        %v899 = vld [vmem:[%s809 + $0xf0] sm:$0xf]
        %v900 = vld [vmem:[%s809 + $0xf4] sm:$0xf]
        %v901 = vld [vmem:[%s809 + $0x100] sm:$0xf]
        %v902 = vld [vmem:[%s809 + $0x104] sm:$0xf]
        %v903 = vld [vmem:[%s809 + $0x108] sm:$0xf]
        %v904 = vld [vmem:[%s809 + $0x10c] sm:$0xf]
        %v905 = vld [vmem:[%s809 + $0x110] sm:$0xf]
        %v906 = vld [vmem:[%s809 + $0x114] sm:$0xf]
        %v907 = vld [vmem:[%s809 + $0x118] sm:$0xf]
        %v908 = vld [vmem:[%s809 + $0x11c] sm:$0xf]
        %v909 = vld [vmem:[%s809 + $0x120] sm:$0xf]
        %v910 = vld [vmem:[%s809 + $0x124] sm:$0xf]
        %v911 = vld [vmem:[%s809 + $0x128] sm:$0xf]
        %v912 = vld [vmem:[%s809 + $0x12c] sm:$0xf]
        %v913 = vld [vmem:[%s809 + $0x130] sm:$0xf]
        %v914 = vld [vmem:[%s809 + $0x134] sm:$0xf]
        %v915 = vld [vmem:[%s809 + $0x140] sm:$0xf]
        %v916 = vld [vmem:[%s809 + $0x144] sm:$0xf]
        %v917 = vld [vmem:[%s809 + $0x148] sm:$0xf]
        %v918 = vld [vmem:[%s809 + $0x14c] sm:$0xf]
        %v919 = vld [vmem:[%s809 + $0x150] sm:$0xf]
        %v920 = vld [vmem:[%s809 + $0x154] sm:$0xf]
        %v921 = vld [vmem:[%s809 + $0x158] sm:$0xf]
        %v922 = vld [vmem:[%s809 + $0x15c] sm:$0xf]
        %v923 = vld [vmem:[%s809 + $0x160] sm:$0xf]
        %v924 = vld [vmem:[%s809 + $0x164] sm:$0xf]
        %v925 = vld [vmem:[%s809 + $0x168] sm:$0xf]
        %v926 = vld [vmem:[%s809 + $0x16c] sm:$0xf]
        %v927 = vld [vmem:[%s809 + $0x170] sm:$0xf]
        %v928 = vld [vmem:[%s809 + $0x174] sm:$0xf]
        %v929 = vld [vmem:[%s809 + $0x180] sm:$0xf]
        %v930 = vld [vmem:[%s809 + $0x184] sm:$0xf]
        %v931 = vld [vmem:[%s809 + $0x188] sm:$0xf]
        %v932 = vld [vmem:[%s809 + $0x18c] sm:$0xf]
        %v933 = vld [vmem:[%s809 + $0x190] sm:$0xf]
        %v934 = vld [vmem:[%s809 + $0x194] sm:$0xf]
        %v935 = vld [vmem:[%s809 + $0x198] sm:$0xf]
        %v936 = vld [vmem:[%s809 + $0x19c] sm:$0xf]
        %v937 = vld [vmem:[%s809 + $0x1a0] sm:$0xf]
        %v938 = vld [vmem:[%s809 + $0x1a4] sm:$0xf]
        %v939 = vld [vmem:[%s809 + $0x1a8] sm:$0xf]
        %v940 = vld [vmem:[%s809 + $0x1ac] sm:$0xf]
        %v941 = vld [vmem:[%s809 + $0x1b0] sm:$0xf]
        %v942 = vld [vmem:[%s809 + $0x1b4] sm:$0xf]
        %v943 = vunpack.c.l.bf16 %v845
        %v944 = vunpack.c.l.bf16 %v846
        %v945 = vunpack.c.l.bf16 %v847
        %v946 = vunpack.c.l.bf16 %v848
        %v947 = vunpack.c.l.bf16 %v849
        %v948 = vunpack.c.l.bf16 %v850
        %v949 = vunpack.c.l.bf16 %v851
        %v950 = vunpack.c.l.bf16 %v852
        %v951 = vunpack.c.l.bf16 %v853
        %v952 = vunpack.c.l.bf16 %v854
        %v953 = vunpack.c.l.bf16 %v855
        %v954 = vunpack.c.l.bf16 %v856
        %v955 = vunpack.c.l.bf16 %v857
        %v956 = vunpack.c.l.bf16 %v858
        %v957 = vunpack.c.l.bf16 %v859
        %v958 = vunpack.c.l.bf16 %v860
        %v959 = vunpack.c.l.bf16 %v861
        %v960 = vunpack.c.l.bf16 %v862
        %v961 = vunpack.c.l.bf16 %v863
        %v962 = vunpack.c.l.bf16 %v864
        %v963 = vunpack.c.l.bf16 %v865
        %v964 = vunpack.c.l.bf16 %v866
        %v965 = vunpack.c.l.bf16 %v867
        %v966 = vunpack.c.l.bf16 %v868
        %v967 = vunpack.c.l.bf16 %v869
        %v968 = vunpack.c.l.bf16 %v870
        %v969 = vunpack.c.l.bf16 %v871
        %v970 = vunpack.c.l.bf16 %v872
        %v971 = vunpack.c.l.bf16 %v873
        %v972 = vunpack.c.l.bf16 %v874
        %v973 = vunpack.c.l.bf16 %v875
        %v974 = vunpack.c.l.bf16 %v876
        %v975 = vunpack.c.l.bf16 %v877
        %v976 = vunpack.c.l.bf16 %v878
        %v977 = vunpack.c.l.bf16 %v879
        %v978 = vunpack.c.l.bf16 %v880
        %v979 = vunpack.c.l.bf16 %v881
        %v980 = vunpack.c.l.bf16 %v882
        %v981 = vunpack.c.l.bf16 %v883
        %v982 = vunpack.c.l.bf16 %v884
        %v983 = vunpack.c.l.bf16 %v885
        %v984 = vunpack.c.l.bf16 %v886
        %v985 = vunpack.c.l.bf16 %v887
        %v986 = vunpack.c.l.bf16 %v888
        %v987 = vunpack.c.l.bf16 %v889
        %v988 = vunpack.c.l.bf16 %v890
        %v989 = vunpack.c.l.bf16 %v891
        %v990 = vunpack.c.l.bf16 %v892
        %v991 = vunpack.c.l.bf16 %v893
        %v992 = vunpack.c.l.bf16 %v894
        %v993 = vunpack.c.l.bf16 %v895
        %v994 = vunpack.c.l.bf16 %v896
        %v995 = vunpack.c.l.bf16 %v897
        %v996 = vunpack.c.l.bf16 %v898
        %v997 = vunpack.c.l.bf16 %v899
        %v998 = vunpack.c.l.bf16 %v900
        %v999 = vunpack.c.l.bf16 %v901
        %v1000 = vunpack.c.l.bf16 %v902
        %v1001 = vunpack.c.l.bf16 %v903
        %v1002 = vunpack.c.l.bf16 %v904
        %v1003 = vunpack.c.l.bf16 %v905
        %v1004 = vunpack.c.l.bf16 %v906
        %v1005 = vunpack.c.l.bf16 %v907
        %v1006 = vunpack.c.l.bf16 %v908
        %v1007 = vunpack.c.l.bf16 %v909
        %v1008 = vunpack.c.l.bf16 %v910
        %v1009 = vunpack.c.l.bf16 %v911
        %v1010 = vunpack.c.l.bf16 %v912
        %v1011 = vunpack.c.l.bf16 %v913
        %v1012 = vunpack.c.l.bf16 %v914
        %v1013 = vunpack.c.l.bf16 %v915
        %v1014 = vunpack.c.l.bf16 %v916
        %v1015 = vunpack.c.l.bf16 %v917
        %v1016 = vunpack.c.l.bf16 %v918
        %v1017 = vunpack.c.l.bf16 %v919
        %v1018 = vunpack.c.l.bf16 %v920
        %v1019 = vunpack.c.l.bf16 %v921
        %v1020 = vunpack.c.l.bf16 %v922
        %v1021 = vunpack.c.l.bf16 %v923
        %v1022 = vunpack.c.l.bf16 %v924
        %v1023 = vunpack.c.l.bf16 %v925
        %v1024 = vunpack.c.l.bf16 %v926
        %v1025 = vunpack.c.l.bf16 %v927
        %v1026 = vunpack.c.l.bf16 %v928
        %v1027 = vunpack.c.l.bf16 %v929
        %v1028 = vunpack.c.l.bf16 %v930
        %v1029 = vunpack.c.l.bf16 %v931
        %v1030 = vunpack.c.l.bf16 %v932
        %v1031 = vunpack.c.l.bf16 %v933
        %v1032 = vunpack.c.l.bf16 %v934
        %v1033 = vunpack.c.l.bf16 %v935
        %v1034 = vunpack.c.l.bf16 %v936
        %v1035 = vunpack.c.l.bf16 %v937
        %v1036 = vunpack.c.l.bf16 %v938
        %v1037 = vunpack.c.l.bf16 %v939
        %v1038 = vunpack.c.l.bf16 %v940
        %v1039 = vunpack.c.l.bf16 %v941
        %v1040 = vunpack.c.l.bf16 %v942
        %v1041 = vmax.f32 %v943, 0.0
        %v1042 = vmax.f32 %v944, 0.0
        %v1043 = vmax.f32 %v945, 0.0
        %v1044 = vmax.f32 %v946, 0.0
        %v1045 = vmax.f32 %v947, 0.0
        %v1046 = vmax.f32 %v948, 0.0
        %v1047 = vmax.f32 %v949, 0.0
        %v1048 = vmax.f32 %v950, 0.0
        %v1049 = vmax.f32 %v951, 0.0
        %v1050 = vmax.f32 %v952, 0.0
        %v1051 = vmax.f32 %v953, 0.0
        %v1052 = vmax.f32 %v954, 0.0
        %v1053 = vmax.f32 %v955, 0.0
        %v1054 = vmax.f32 %v956, 0.0
        %v1055 = vmax.f32 %v957, 0.0
        %v1056 = vmax.f32 %v958, 0.0
        %v1057 = vmax.f32 %v959, 0.0
        %v1058 = vmax.f32 %v960, 0.0
        %v1059 = vmax.f32 %v961, 0.0
        %v1060 = vmax.f32 %v962, 0.0
        %v1061 = vmax.f32 %v963, 0.0
        %v1062 = vmax.f32 %v964, 0.0
        %v1063 = vmax.f32 %v965, 0.0
        %v1064 = vmax.f32 %v966, 0.0
        %v1065 = vmax.f32 %v967, 0.0
        %v1066 = vmax.f32 %v968, 0.0
        %v1067 = vmax.f32 %v969, 0.0
        %v1068 = vmax.f32 %v970, 0.0
        %v1069 = vmax.f32 %v971, 0.0
        %v1070 = vmax.f32 %v972, 0.0
        %v1071 = vmax.f32 %v973, 0.0
        %v1072 = vmax.f32 %v974, 0.0
        %v1073 = vmax.f32 %v975, 0.0
        %v1074 = vmax.f32 %v976, 0.0
        %v1075 = vmax.f32 %v977, 0.0
        %v1076 = vmax.f32 %v978, 0.0
        %v1077 = vmax.f32 %v979, 0.0
        %v1078 = vmax.f32 %v980, 0.0
        %v1079 = vmax.f32 %v981, 0.0
        %v1080 = vmax.f32 %v982, 0.0
        %v1081 = vmax.f32 %v983, 0.0
        %v1082 = vmax.f32 %v984, 0.0
        %v1083 = vmax.f32 %v985, 0.0
        %v1084 = vmax.f32 %v986, 0.0
        %v1085 = vmax.f32 %v987, 0.0
        %v1086 = vmax.f32 %v988, 0.0
        %v1087 = vmax.f32 %v989, 0.0
        %v1088 = vmax.f32 %v990, 0.0
        %v1089 = vmax.f32 %v991, 0.0
        %v1090 = vmax.f32 %v992, 0.0
        %v1091 = vmax.f32 %v993, 0.0
        %v1092 = vmax.f32 %v994, 0.0
        %v1093 = vmax.f32 %v995, 0.0
        %v1094 = vmax.f32 %v996, 0.0
        %v1095 = vmax.f32 %v997, 0.0
        %v1096 = vmax.f32 %v998, 0.0
        %v1097 = vmax.f32 %v999, 0.0
        %v1098 = vmax.f32 %v1000, 0.0
        %v1099 = vmax.f32 %v1001, 0.0
        %v1100 = vmax.f32 %v1002, 0.0
        %v1101 = vmax.f32 %v1003, 0.0
        %v1102 = vmax.f32 %v1004, 0.0
        %v1103 = vmax.f32 %v1005, 0.0
        %v1104 = vmax.f32 %v1006, 0.0
        %v1105 = vmax.f32 %v1007, 0.0
        %v1106 = vmax.f32 %v1008, 0.0
        %v1107 = vmax.f32 %v1009, 0.0
        %v1108 = vmax.f32 %v1010, 0.0
        %v1109 = vmax.f32 %v1011, 0.0
        %v1110 = vmax.f32 %v1012, 0.0
        %v1111 = vmax.f32 %v1013, 0.0
        %v1112 = vmax.f32 %v1014, 0.0
        %v1113 = vmax.f32 %v1015, 0.0
        %v1114 = vmax.f32 %v1016, 0.0
        %v1115 = vmax.f32 %v1017, 0.0
        %v1116 = vmax.f32 %v1018, 0.0
        %v1117 = vmax.f32 %v1019, 0.0
        %v1118 = vmax.f32 %v1020, 0.0
        %v1119 = vmax.f32 %v1021, 0.0
        %v1120 = vmax.f32 %v1022, 0.0
        %v1121 = vmax.f32 %v1023, 0.0
        %v1122 = vmax.f32 %v1024, 0.0
        %v1123 = vmax.f32 %v1025, 0.0
        %v1124 = vmax.f32 %v1026, 0.0
        %v1125 = vmax.f32 %v1027, 0.0
        %v1126 = vmax.f32 %v1028, 0.0
        %v1127 = vmax.f32 %v1029, 0.0
        %v1128 = vmax.f32 %v1030, 0.0
        %v1129 = vmax.f32 %v1031, 0.0
        %v1130 = vmax.f32 %v1032, 0.0
        %v1131 = vmax.f32 %v1033, 0.0
        %v1132 = vmax.f32 %v1034, 0.0
        %v1133 = vmax.f32 %v1035, 0.0
        %v1134 = vmax.f32 %v1036, 0.0
        %v1135 = vmax.f32 %v1037, 0.0
        %v1136 = vmax.f32 %v1038, 0.0
        %v1137 = vmax.f32 %v1039, 0.0
        %v1138 = vmax.f32 %v1040, 0.0
        %v1139 = vadd.f32 %v1041, %v1043
        %v1140 = vadd.f32 %v1042, %v1044
        %v1141 = vadd.f32 %v1055, %v1057
        %v1142 = vadd.f32 %v1056, %v1058
        %v1143 = vadd.f32 %v1069, %v1071
        %v1144 = vadd.f32 %v1070, %v1072
        %v1145 = vadd.f32 %v1083, %v1085
        %v1146 = vadd.f32 %v1084, %v1086
        %v1147 = vadd.f32 %v1097, %v1099
        %v1148 = vadd.f32 %v1098, %v1100
        %v1149 = vadd.f32 %v1111, %v1113
        %v1150 = vadd.f32 %v1112, %v1114
        %v1151 = vadd.f32 %v1125, %v1127
        %v1152 = vadd.f32 %v1126, %v1128
        %v1153 = vadd.f32 %v1139, %v1045
        %v1154 = vadd.f32 %v1140, %v1046
        %v1155 = vadd.f32 %v1141, %v1059
        %v1156 = vadd.f32 %v1142, %v1060
        %v1157 = vadd.f32 %v1143, %v1073
        %v1158 = vadd.f32 %v1144, %v1074
        %v1159 = vadd.f32 %v1145, %v1087
        %v1160 = vadd.f32 %v1146, %v1088
        %v1161 = vadd.f32 %v1147, %v1101
        %v1162 = vadd.f32 %v1148, %v1102
        %v1163 = vadd.f32 %v1149, %v1115
        %v1164 = vadd.f32 %v1150, %v1116
        %v1165 = vadd.f32 %v1151, %v1129
        %v1166 = vadd.f32 %v1152, %v1130
        %v1167 = vadd.f32 %v1153, %v1047
        %v1168 = vadd.f32 %v1154, %v1048
        %v1169 = vadd.f32 %v1155, %v1061
        %v1170 = vadd.f32 %v1156, %v1062
        %v1171 = vadd.f32 %v1157, %v1075
        %v1172 = vadd.f32 %v1158, %v1076
        %v1173 = vadd.f32 %v1159, %v1089
        %v1174 = vadd.f32 %v1160, %v1090
        %v1175 = vadd.f32 %v1161, %v1103
        %v1176 = vadd.f32 %v1162, %v1104
        %v1177 = vadd.f32 %v1163, %v1117
        %v1178 = vadd.f32 %v1164, %v1118
        %v1179 = vadd.f32 %v1165, %v1131
        %v1180 = vadd.f32 %v1166, %v1132
        %v1181 = vadd.f32 %v1167, %v1049
        %v1182 = vadd.f32 %v1168, %v1050
        %v1183 = vadd.f32 %v1169, %v1063
        %v1184 = vadd.f32 %v1170, %v1064
        %v1185 = vadd.f32 %v1171, %v1077
        %v1186 = vadd.f32 %v1172, %v1078
        %v1187 = vadd.f32 %v1173, %v1091
        %v1188 = vadd.f32 %v1174, %v1092
        %v1189 = vadd.f32 %v1175, %v1105
        %v1190 = vadd.f32 %v1176, %v1106
        %v1191 = vadd.f32 %v1177, %v1119
        %v1192 = vadd.f32 %v1178, %v1120
        %v1193 = vadd.f32 %v1179, %v1133
        %v1194 = vadd.f32 %v1180, %v1134
        %v1195 = vadd.f32 %v1045, %v1047
        %v1196 = vadd.f32 %v1046, %v1048
        %v1197 = vadd.f32 %v1059, %v1061
        %v1198 = vadd.f32 %v1060, %v1062
        %v1199 = vadd.f32 %v1073, %v1075
        %v1200 = vadd.f32 %v1074, %v1076
        %v1201 = vadd.f32 %v1087, %v1089
        %v1202 = vadd.f32 %v1088, %v1090
        %v1203 = vadd.f32 %v1101, %v1103
        %v1204 = vadd.f32 %v1102, %v1104
        %v1205 = vadd.f32 %v1115, %v1117
        %v1206 = vadd.f32 %v1116, %v1118
        %v1207 = vadd.f32 %v1129, %v1131
        %v1208 = vadd.f32 %v1130, %v1132
        %v1209 = vadd.f32 %v1195, %v1049
        %v1210 = vadd.f32 %v1196, %v1050
        %v1211 = vadd.f32 %v1197, %v1063
        %v1212 = vadd.f32 %v1198, %v1064
        %v1213 = vadd.f32 %v1199, %v1077
        %v1214 = vadd.f32 %v1200, %v1078
        %v1215 = vadd.f32 %v1201, %v1091
        %v1216 = vadd.f32 %v1202, %v1092
        %v1217 = vadd.f32 %v1203, %v1105
        %v1218 = vadd.f32 %v1204, %v1106
        %v1219 = vadd.f32 %v1205, %v1119
        %v1220 = vadd.f32 %v1206, %v1120
        %v1221 = vadd.f32 %v1207, %v1133
        %v1222 = vadd.f32 %v1208, %v1134
        %v1223 = vadd.f32 %v1209, %v1051
        %v1224 = vadd.f32 %v1210, %v1052
        %v1225 = vadd.f32 %v1211, %v1065
        %v1226 = vadd.f32 %v1212, %v1066
        %v1227 = vadd.f32 %v1213, %v1079
        %v1228 = vadd.f32 %v1214, %v1080
        %v1229 = vadd.f32 %v1215, %v1093
        %v1230 = vadd.f32 %v1216, %v1094
        %v1231 = vadd.f32 %v1217, %v1107
        %v1232 = vadd.f32 %v1218, %v1108
        %v1233 = vadd.f32 %v1219, %v1121
        %v1234 = vadd.f32 %v1220, %v1122
        %v1235 = vadd.f32 %v1221, %v1135
        %v1236 = vadd.f32 %v1222, %v1136
        %v1237 = vadd.f32 %v1223, %v1053
        %v1238 = vadd.f32 %v1224, %v1054
        %v1239 = vadd.f32 %v1225, %v1067
        %v1240 = vadd.f32 %v1226, %v1068
        %v1241 = vadd.f32 %v1227, %v1081
        %v1242 = vadd.f32 %v1228, %v1082
        %v1243 = vadd.f32 %v1229, %v1095
        %v1244 = vadd.f32 %v1230, %v1096
        %v1245 = vadd.f32 %v1231, %v1109
        %v1246 = vadd.f32 %v1232, %v1110
        %v1247 = vadd.f32 %v1233, %v1123
        %v1248 = vadd.f32 %v1234, %v1124
        %v1249 = vadd.f32 %v1235, %v1137
        %v1250 = vadd.f32 %v1236, %v1138
        %v1251 = vld [vmem:[%s1] sm:$0xf]
        %v1252 = vadd.f32 %v1181, %v1183
        %v1253 = vadd.f32 %v1182, %v1184
        %v1254 = vadd.f32 %v1252, %v1185
        %v1255 = vadd.f32 %v1253, %v1186
        %v1256 = vadd.f32 %v1254, %v1187
        %v1257 = vadd.f32 %v1255, %v1188
        %v1258 = vadd.f32 %v1256, %v1189
        %v1259 = vadd.f32 %v1257, %v1190
        %v1260 = vpack.c.bf16 %v1259, %v1258
        %vm1261 = vcmask 64512
        %v1263 = vsel %vm1261, %v1260, 0
        %vm1265 = vcmask 1043456
        %v1267 = vsel %vm1265, %v1251, 0
        %1269 = vmatprep.subr.bf16.mxu0 0
        %1270 = vmatpush1.bf16.msra.mxu0 %v1267
        %1271 = vmatprep.subr.bf16.mxu0 0
        %1272 = vmatpush1.bf16.msra.mxu0 0
        %1273 = vmatprep.subr.bf16.mxu0 0
        %1274 = vmatpush1.bf16.msra.mxu0 0
        %1275 = vmatprep.subr.bf16.mxu0 0
        %1276 = vmatpush1.bf16.msra.mxu0 0
        %1277 = vmatprep.subr.bf16.mxu0 0
        %1278 = vmatpush1.bf16.msra.mxu0 0
        %1279 = vmatprep.subr.bf16.mxu0 0
        %1280 = vmatpush1.bf16.msra.mxu0 0
        %1281 = vmatprep.subr.bf16.mxu0 0
        %1282 = vmatpush1.bf16.msra.mxu0 0
        %1283 = vmatprep.subr.bf16.mxu0 0
        %1284 = vmatpush1.bf16.msra.mxu0 0
        %1285 = vmatprep.subr.bf16.mxu0 0
        %1286 = vmatpush1.bf16.msra.mxu0 0
        %1287 = vmatprep.subr.bf16.mxu0 0
        %1288 = vmatpush1.bf16.msra.mxu0 0
        %1289 = vmatprep.subr.bf16.mxu0 0
        %1290 = vmatpush1.bf16.msra.mxu0 0
        %1291 = vmatprep.subr.bf16.mxu0 0
        %1292 = vmatpush1.bf16.msra.mxu0 0
        %1293 = vmatprep.subr.bf16.mxu0 0
        %1294 = vmatpush1.bf16.msra.mxu0 0
        %1295 = vmatprep.subr.bf16.mxu0 0
        %1296 = vmatpush1.bf16.msra.mxu0 0
        %1297 = vmatprep.subr.bf16.mxu0 0
        %1298 = vmatpush1.bf16.msra.mxu0 0
        %1299 = vmatprep.subr.bf16.mxu0 0
        %1300 = vmatpush1.bf16.msra.mxu0 0
        %1301 = vmatprep.mubr.bf16.mxu0 0
        %1302 = vmatmul.mubr.bf16.gmra.mrb[0].mxu0 %v1263
        %v1303 = vpop.f32.mrb[0].mxu0
        %v1304 = vadd.f32 0.0, %v1303
        %v1305 = vpop.f32.mrb[0].mxu0
        %v1306 = vpop.f32.mrb[0].mxu0
        %v1307 = vadd.f32 0.0, %v1306
        %v1308 = vpop.f32.mrb[0].mxu0
        %1309 = vdwg.mxu0
        %v1310 = vadd.f32 %v1237, %v1239
        %v1311 = vadd.f32 %v1238, %v1240
        %v1312 = vadd.f32 %v1310, %v1241
        %v1313 = vadd.f32 %v1311, %v1242
        %v1314 = vadd.f32 %v1312, %v1243
        %v1315 = vadd.f32 %v1313, %v1244
        %v1316 = vadd.f32 %v1314, %v1245
        %v1317 = vadd.f32 %v1315, %v1246
        %v1318 = vpack.c.bf16 %v1317, %v1316
        %v1320 = vsel %vm1261, %v1318, 0
        %1322 = vmatprep.subr.bf16.mxu0 0
        %1323 = vmatpush1.bf16.msra.mxu0 %v1267
        %1324 = vmatprep.subr.bf16.mxu0 0
        %1325 = vmatpush1.bf16.msra.mxu0 0
        %1326 = vmatprep.subr.bf16.mxu0 0
        %1327 = vmatpush1.bf16.msra.mxu0 0
        %1328 = vmatprep.subr.bf16.mxu0 0
        %1329 = vmatpush1.bf16.msra.mxu0 0
        %1330 = vmatprep.subr.bf16.mxu0 0
        %1331 = vmatpush1.bf16.msra.mxu0 0
        %1332 = vmatprep.subr.bf16.mxu0 0
        %1333 = vmatpush1.bf16.msra.mxu0 0
        %1334 = vmatprep.subr.bf16.mxu0 0
        %1335 = vmatpush1.bf16.msra.mxu0 0
        %1336 = vmatprep.subr.bf16.mxu0 0
        %1337 = vmatpush1.bf16.msra.mxu0 0
        %1338 = vmatprep.subr.bf16.mxu0 0
        %1339 = vmatpush1.bf16.msra.mxu0 0
        %1340 = vmatprep.subr.bf16.mxu0 0
        %1341 = vmatpush1.bf16.msra.mxu0 0
        %1342 = vmatprep.subr.bf16.mxu0 0
        %1343 = vmatpush1.bf16.msra.mxu0 0
        %1344 = vmatprep.subr.bf16.mxu0 0
        %1345 = vmatpush1.bf16.msra.mxu0 0
        %1346 = vmatprep.subr.bf16.mxu0 0
        %1347 = vmatpush1.bf16.msra.mxu0 0
        %1348 = vmatprep.subr.bf16.mxu0 0
        %1349 = vmatpush1.bf16.msra.mxu0 0
        %1350 = vmatprep.subr.bf16.mxu0 0
        %1351 = vmatpush1.bf16.msra.mxu0 0
        %1352 = vmatprep.subr.bf16.mxu0 0
        %1353 = vmatpush1.bf16.msra.mxu0 0
        %1354 = vmatprep.mubr.bf16.mxu0 0
        %1355 = vmatmul.mubr.bf16.gmra.mrb[0].mxu0 %v1320
        %v1356 = vpop.f32.mrb[0].mxu0
        %v1357 = vadd.f32 0.0, %v1356
        %v1358 = vpop.f32.mrb[0].mxu0
        %v1359 = vpop.f32.mrb[0].mxu0
        %v1360 = vadd.f32 0.0, %v1359
        %v1361 = vpop.f32.mrb[0].mxu0
        %1362 = vdwg.mxu0
        %v1363 = vadd.f32 %v1185, %v1187
        %v1364 = vadd.f32 %v1186, %v1188
        %v1365 = vadd.f32 %v1363, %v1189
        %v1366 = vadd.f32 %v1364, %v1190
        %v1367 = vadd.f32 %v1365, %v1191
        %v1368 = vadd.f32 %v1366, %v1192
        %v1369 = vadd.f32 %v1367, %v1193
        %v1370 = vadd.f32 %v1368, %v1194
        %v1371 = vpack.c.bf16 %v1370, %v1369
        %v1373 = vsel %vm1261, %v1371, 0
        %1375 = vmatprep.subr.bf16.mxu0 0
        %1376 = vmatpush1.bf16.msra.mxu0 %v1267
        %1377 = vmatprep.subr.bf16.mxu0 0
        %1378 = vmatpush1.bf16.msra.mxu0 0
        %1379 = vmatprep.subr.bf16.mxu0 0
        %1380 = vmatpush1.bf16.msra.mxu0 0
        %1381 = vmatprep.subr.bf16.mxu0 0
        %1382 = vmatpush1.bf16.msra.mxu0 0
        %1383 = vmatprep.subr.bf16.mxu0 0
        %1384 = vmatpush1.bf16.msra.mxu0 0
        %1385 = vmatprep.subr.bf16.mxu0 0
        %1386 = vmatpush1.bf16.msra.mxu0 0
        %1387 = vmatprep.subr.bf16.mxu0 0
        %1388 = vmatpush1.bf16.msra.mxu0 0
        %1389 = vmatprep.subr.bf16.mxu0 0
        %1390 = vmatpush1.bf16.msra.mxu0 0
        %1391 = vmatprep.subr.bf16.mxu0 0
        %1392 = vmatpush1.bf16.msra.mxu0 0
        %1393 = vmatprep.subr.bf16.mxu0 0
        %1394 = vmatpush1.bf16.msra.mxu0 0
        %1395 = vmatprep.subr.bf16.mxu0 0
        %1396 = vmatpush1.bf16.msra.mxu0 0
        %1397 = vmatprep.subr.bf16.mxu0 0
        %1398 = vmatpush1.bf16.msra.mxu0 0
        %1399 = vmatprep.subr.bf16.mxu0 0
        %1400 = vmatpush1.bf16.msra.mxu0 0
        %1401 = vmatprep.subr.bf16.mxu0 0
        %1402 = vmatpush1.bf16.msra.mxu0 0
        %1403 = vmatprep.subr.bf16.mxu0 0
        %1404 = vmatpush1.bf16.msra.mxu0 0
        %1405 = vmatprep.subr.bf16.mxu0 0
        %1406 = vmatpush1.bf16.msra.mxu0 0
        %1407 = vmatprep.mubr.bf16.mxu0 0
        %1408 = vmatmul.mubr.bf16.gmra.mrb[0].mxu0 %v1373
        %v1409 = vpop.f32.mrb[0].mxu0
        %v1410 = vadd.f32 0.0, %v1409
        %v1411 = vpop.f32.mrb[0].mxu0
        %v1412 = vpop.f32.mrb[0].mxu0
        %v1413 = vadd.f32 0.0, %v1412
        %v1414 = vpop.f32.mrb[0].mxu0
        %1415 = vdwg.mxu0
        %v1416 = vadd.f32 %v1241, %v1243
        %v1417 = vadd.f32 %v1242, %v1244
        %v1418 = vadd.f32 %v1416, %v1245
        %v1419 = vadd.f32 %v1417, %v1246
        %v1420 = vadd.f32 %v1418, %v1247
        %v1421 = vadd.f32 %v1419, %v1248
        %v1422 = vadd.f32 %v1420, %v1249
        %v1423 = vadd.f32 %v1421, %v1250
        %v1424 = vpack.c.bf16 %v1423, %v1422
        %v1426 = vsel %vm1261, %v1424, 0
        %1428 = vmatprep.subr.bf16.mxu0 0
        %1429 = vmatpush1.bf16.msra.mxu0 %v1267
        %1430 = vmatprep.subr.bf16.mxu0 0
        %1431 = vmatpush1.bf16.msra.mxu0 0
        %1432 = vmatprep.subr.bf16.mxu0 0
        %1433 = vmatpush1.bf16.msra.mxu0 0
        %1434 = vmatprep.subr.bf16.mxu0 0
        %1435 = vmatpush1.bf16.msra.mxu0 0
        %1436 = vmatprep.subr.bf16.mxu0 0
        %1437 = vmatpush1.bf16.msra.mxu0 0
        %1438 = vmatprep.subr.bf16.mxu0 0
        %1439 = vmatpush1.bf16.msra.mxu0 0
        %1440 = vmatprep.subr.bf16.mxu0 0
        %1441 = vmatpush1.bf16.msra.mxu0 0
        %1442 = vmatprep.subr.bf16.mxu0 0
        %1443 = vmatpush1.bf16.msra.mxu0 0
        %1444 = vmatprep.subr.bf16.mxu0 0
        %1445 = vmatpush1.bf16.msra.mxu0 0
        %1446 = vmatprep.subr.bf16.mxu0 0
        %1447 = vmatpush1.bf16.msra.mxu0 0
        %1448 = vmatprep.subr.bf16.mxu0 0
        %1449 = vmatpush1.bf16.msra.mxu0 0
        %1450 = vmatprep.subr.bf16.mxu0 0
        %1451 = vmatpush1.bf16.msra.mxu0 0
        %1452 = vmatprep.subr.bf16.mxu0 0
        %1453 = vmatpush1.bf16.msra.mxu0 0
        %1454 = vmatprep.subr.bf16.mxu0 0
        %1455 = vmatpush1.bf16.msra.mxu0 0
        %1456 = vmatprep.subr.bf16.mxu0 0
        %1457 = vmatpush1.bf16.msra.mxu0 0
        %1458 = vmatprep.subr.bf16.mxu0 0
        %1459 = vmatpush1.bf16.msra.mxu0 0
        %1460 = vmatprep.mubr.bf16.mxu0 0
        %1461 = vmatmul.mubr.bf16.gmra.mrb[0].mxu0 %v1426
        %v1462 = vpop.f32.mrb[0].mxu0
        %v1463 = vadd.f32 0.0, %v1462
        %v1464 = vpop.f32.mrb[0].mxu0
        %v1465 = vpop.f32.mrb[0].mxu0
        %v1466 = vadd.f32 0.0, %v1465
        %v1467 = vpop.f32.mrb[0].mxu0
        %1468 = vdwg.mxu0
        %v1469 = vld [vmem:[%s2] sm:$0xf]
        %v1471 = vlaneseq
        %v1472 = vshrl.u32 %v1471, 7
        %v1473 = vsub.s32 0, %v1472
        %v1474 = vrot.slane %v1469, %v1473
        %v1475 = vlaneseq
        %v1476 = vshrl.u32 %v1475, 7
        %v1477 = vsub.s32 1, %v1476
        %v1478 = vrot.slane %v1469, %v1477
        %v1479 = vlaneseq
        %v1480 = vshrl.u32 %v1479, 7
        %v1481 = vsub.s32 2, %v1480
        %v1482 = vrot.slane %v1469, %v1481
        %v1483 = vlaneseq
        %v1484 = vshrl.u32 %v1483, 7
        %v1485 = vsub.s32 3, %v1484
        %v1486 = vrot.slane %v1469, %v1485
        %v1491 = vadd.f32 %v1304, %v1474
        %v1492 = vadd.f32 %v1357, %v1478
        %v1493 = vadd.f32 %v1410, %v1482
        %v1494 = vadd.f32 %v1463, %v1486
        %v1495 = vadd.f32 %v1307, %v1474
        %v1496 = vadd.f32 %v1360, %v1478
        %v1497 = vadd.f32 %v1413, %v1482
        %v1498 = vadd.f32 %v1466, %v1486
        %v1499 = vmax.f32 %v1491, 0.0
        %v1500 = vmax.f32 %v1492, 0.0
        %v1501 = vmax.f32 %v1493, 0.0
        %v1502 = vmax.f32 %v1494, 0.0
        %v1503 = vmax.f32 %v1495, 0.0
        %v1504 = vmax.f32 %v1496, 0.0
        %v1505 = vmax.f32 %v1497, 0.0
        %v1506 = vmax.f32 %v1498, 0.0
        %v1507 = vpack.c.bf16 %v1503, %v1499
        %v1508 = vpack.c.bf16 %v1504, %v1500
        %v1509 = vpack.c.bf16 %v1505, %v1501
        %v1510 = vpack.c.bf16 %v1506, %v1502
        %v1511 = vld [vmem:[#allocation3] sm:$0xff]
        %v1512 = vld [vmem:[#allocation3 + $0x8] sm:$0xff]
        %v1513 = vld [vmem:[#allocation3 + $0x10] sm:$0xff]
        %v1514 = vld [vmem:[#allocation3 + $0x18] sm:$0xff]
        %v1515 = vld [vmem:[#allocation3 + $0x20] sm:$0xff]
        %v1516 = vld [vmem:[#allocation3 + $0x28] sm:$0xff]
        %v1517 = vld [vmem:[#allocation3 + $0x30] sm:$0xff]
        %v1518 = vld [vmem:[#allocation3 + $0x38] sm:$0xff]
        %v1519 = vld [vmem:[#allocation3 + $0x40] sm:$0xff]
        %v1520 = vld [vmem:[#allocation3 + $0x48] sm:$0xff]
        %v1521 = vld [vmem:[#allocation3 + $0x50] sm:$0xff]
        %v1522 = vld [vmem:[#allocation3 + $0x58] sm:$0xff]
        %v1523 = vld [vmem:[#allocation3 + $0x60] sm:$0xff]
        %v1524 = vld [vmem:[#allocation3 + $0x68] sm:$0xff]
        %v1525 = vld [vmem:[#allocation3 + $0x70] sm:$0xff]
        %v1526 = vld [vmem:[#allocation3 + $0x78] sm:$0xff]
        %v1527 = vld [vmem:[#allocation3 + $0x80] sm:$0xff]
        %v1528 = vld [vmem:[#allocation3 + $0x88] sm:$0xff]
        %v1529 = vld [vmem:[#allocation3 + $0x90] sm:$0xff]
        %v1530 = vld [vmem:[#allocation3 + $0x98] sm:$0xff]
        %v1531 = vld [vmem:[#allocation3 + $0xa0] sm:$0xff]
        %v1532 = vld [vmem:[#allocation3 + $0xa8] sm:$0xff]
        %v1533 = vld [vmem:[#allocation3 + $0xb0] sm:$0xff]
        %v1534 = vld [vmem:[#allocation3 + $0xb8] sm:$0xff]
        %v1535 = vld [vmem:[#allocation3 + $0xc0] sm:$0xff]
        %v1536 = vld [vmem:[#allocation3 + $0xc8] sm:$0xff]
        %v1537 = vld [vmem:[#allocation3 + $0xd0] sm:$0xff]
        %v1538 = vld [vmem:[#allocation3 + $0xd8] sm:$0xff]
        %v1539 = vld [vmem:[#allocation3 + $0xe0] sm:$0xff]
        %v1540 = vld [vmem:[#allocation3 + $0xe8] sm:$0xff]
        %v1541 = vld [vmem:[#allocation3 + $0xf0] sm:$0xff]
        %v1542 = vld [vmem:[#allocation3 + $0xf8] sm:$0xff]
        %v1543 = vld [vmem:[#allocation3 + $0x100] sm:$0xff]
        %v1544 = vld [vmem:[#allocation3 + $0x108] sm:$0xff]
        %v1545 = vld [vmem:[#allocation3 + $0x110] sm:$0xff]
        %v1546 = vld [vmem:[#allocation3 + $0x118] sm:$0xff]
        %v1547 = vld [vmem:[#allocation3 + $0x120] sm:$0xff]
        %v1548 = vld [vmem:[#allocation3 + $0x128] sm:$0xff]
        %v1549 = vld [vmem:[#allocation3 + $0x130] sm:$0xff]
        %v1550 = vld [vmem:[#allocation3 + $0x138] sm:$0xff]
        %v1551 = vld [vmem:[#allocation3 + $0x140] sm:$0xff]
        %v1552 = vld [vmem:[#allocation3 + $0x148] sm:$0xff]
        %v1553 = vld [vmem:[#allocation3 + $0x150] sm:$0xff]
        %v1554 = vld [vmem:[#allocation3 + $0x158] sm:$0xff]
        %v1555 = vld [vmem:[#allocation3 + $0x160] sm:$0xff]
        %v1556 = vld [vmem:[#allocation3 + $0x168] sm:$0xff]
        %v1557 = vld [vmem:[#allocation3 + $0x170] sm:$0xff]
        %v1558 = vld [vmem:[#allocation3 + $0x178] sm:$0xff]
        %v1559 = vld [vmem:[#allocation3 + $0x180] sm:$0xff]
        %v1560 = vld [vmem:[#allocation3 + $0x188] sm:$0xff]
        %v1561 = vld [vmem:[#allocation3 + $0x190] sm:$0xff]
        %v1562 = vld [vmem:[#allocation3 + $0x198] sm:$0xff]
        %v1563 = vld [vmem:[#allocation3 + $0x1a0] sm:$0xff]
        %v1564 = vld [vmem:[#allocation3 + $0x1a8] sm:$0xff]
        %v1565 = vld [vmem:[#allocation3 + $0x1b0] sm:$0xff]
        %v1566 = vld [vmem:[#allocation3 + $0x1b8] sm:$0xff]
        %v1567 = vld [vmem:[#allocation3 + $0x1c0] sm:$0xff]
        %v1568 = vld [vmem:[#allocation3 + $0x1c8] sm:$0xff]
        %v1569 = vld [vmem:[#allocation3 + $0x1d0] sm:$0xff]
        %v1570 = vld [vmem:[#allocation3 + $0x1d8] sm:$0xff]
        %v1571 = vld [vmem:[#allocation3 + $0x1e0] sm:$0xff]
        %v1572 = vld [vmem:[#allocation3 + $0x1e8] sm:$0xff]
        %v1573 = vld [vmem:[#allocation3 + $0x1f0] sm:$0xff]
        %v1574 = vld [vmem:[#allocation3 + $0x1f8] sm:$0xff]
        %v1575 = vld [vmem:[#allocation3 + $0x200] sm:$0xff]
        %v1576 = vld [vmem:[#allocation3 + $0x208] sm:$0xff]
        %v1577 = vld [vmem:[#allocation3 + $0x210] sm:$0xff]
        %v1578 = vld [vmem:[#allocation3 + $0x218] sm:$0xff]
        %v1579 = vld [vmem:[#allocation3 + $0x220] sm:$0xff]
        %v1580 = vld [vmem:[#allocation3 + $0x228] sm:$0xff]
        %v1581 = vld [vmem:[#allocation3 + $0x230] sm:$0xff]
        %v1582 = vld [vmem:[#allocation3 + $0x238] sm:$0xff]
        %v1583 = vld [vmem:[#allocation3 + $0x240] sm:$0xff]
        %v1584 = vld [vmem:[#allocation3 + $0x248] sm:$0xff]
        %v1585 = vld [vmem:[#allocation3 + $0x250] sm:$0xff]
        %v1586 = vld [vmem:[#allocation3 + $0x258] sm:$0xff]
        %v1587 = vld [vmem:[#allocation3 + $0x260] sm:$0xff]
        %v1588 = vld [vmem:[#allocation3 + $0x268] sm:$0xff]
        %v1589 = vld [vmem:[#allocation3 + $0x270] sm:$0xff]
        %v1590 = vld [vmem:[#allocation3 + $0x278] sm:$0xff]
        %v1591 = vld [vmem:[#allocation3 + $0x280] sm:$0xff]
        %v1592 = vld [vmem:[#allocation3 + $0x288] sm:$0xff]
        %v1593 = vld [vmem:[#allocation3 + $0x290] sm:$0xff]
        %v1594 = vld [vmem:[#allocation3 + $0x298] sm:$0xff]
        %v1595 = vld [vmem:[#allocation3 + $0x2a0] sm:$0xff]
        %v1596 = vld [vmem:[#allocation3 + $0x2a8] sm:$0xff]
        %v1597 = vld [vmem:[#allocation3 + $0x2b0] sm:$0xff]
        %v1598 = vld [vmem:[#allocation3 + $0x2b8] sm:$0xff]
        %v1599 = vld [vmem:[#allocation3 + $0x2c0] sm:$0xff]
        %v1600 = vld [vmem:[#allocation3 + $0x2c8] sm:$0xff]
        %v1601 = vld [vmem:[#allocation3 + $0x2d0] sm:$0xff]
        %v1602 = vld [vmem:[#allocation3 + $0x2d8] sm:$0xff]
        %v1603 = vld [vmem:[#allocation3 + $0x2e0] sm:$0xff]
        %v1604 = vld [vmem:[#allocation3 + $0x2e8] sm:$0xff]
        %v1605 = vld [vmem:[#allocation3 + $0x2f0] sm:$0xff]
        %v1606 = vld [vmem:[#allocation3 + $0x2f8] sm:$0xff]
        %v1607 = vld [vmem:[#allocation3 + $0x300] sm:$0xff]
        %v1608 = vld [vmem:[#allocation3 + $0x308] sm:$0xff]
        %v1609 = vld [vmem:[#allocation3 + $0x310] sm:$0xff]
        %v1610 = vld [vmem:[#allocation3 + $0x318] sm:$0xff]
        %v1611 = vld [vmem:[#allocation3 + $0x320] sm:$0xff]
        %v1612 = vld [vmem:[#allocation3 + $0x328] sm:$0xff]
        %v1613 = vld [vmem:[#allocation3 + $0x330] sm:$0xff]
        %v1614 = vld [vmem:[#allocation3 + $0x338] sm:$0xff]
        %v1615 = vld [vmem:[#allocation3 + $0x340] sm:$0xff]
        %v1616 = vld [vmem:[#allocation3 + $0x348] sm:$0xff]
        %v1617 = vld [vmem:[#allocation3 + $0x350] sm:$0xff]
        %v1618 = vld [vmem:[#allocation3 + $0x358] sm:$0xff]
        %v1619 = vld [vmem:[#allocation3 + $0x360] sm:$0xff]
        %v1620 = vld [vmem:[#allocation3 + $0x368] sm:$0xff]
        %v1621 = vld [vmem:[#allocation3 + $0x370] sm:$0xff]
        %v1622 = vld [vmem:[#allocation3 + $0x378] sm:$0xff]
        %v1623 = vld [vmem:[#allocation3 + $0x380] sm:$0xff]
        %v1624 = vld [vmem:[#allocation3 + $0x388] sm:$0xff]
        %v1625 = vld [vmem:[#allocation3 + $0x390] sm:$0xff]
        %v1626 = vld [vmem:[#allocation3 + $0x398] sm:$0xff]
        %v1627 = vld [vmem:[#allocation3 + $0x3a0] sm:$0xff]
        %v1628 = vld [vmem:[#allocation3 + $0x3a8] sm:$0xff]
        %v1629 = vld [vmem:[#allocation3 + $0x3b0] sm:$0xff]
        %v1630 = vld [vmem:[#allocation3 + $0x3b8] sm:$0xff]
        %v1631 = vld [vmem:[#allocation3 + $0x3c0] sm:$0xff]
        %v1632 = vld [vmem:[#allocation3 + $0x3c8] sm:$0xff]
        %v1633 = vld [vmem:[#allocation3 + $0x3d0] sm:$0xff]
        %v1634 = vld [vmem:[#allocation3 + $0x3d8] sm:$0xff]
        %v1635 = vld [vmem:[#allocation3 + $0x3e0] sm:$0xff]
        %v1636 = vld [vmem:[#allocation3 + $0x3e8] sm:$0xff]
        %v1637 = vld [vmem:[#allocation3 + $0x3f0] sm:$0xff]
        %v1638 = vld [vmem:[#allocation3 + $0x3f8] sm:$0xff]
        %v1639 = vld [vmem:[#allocation3 + $0x400] sm:$0xff]
        %v1640 = vld [vmem:[#allocation3 + $0x408] sm:$0xff]
        %v1641 = vld [vmem:[#allocation3 + $0x410] sm:$0xff]
        %v1642 = vld [vmem:[#allocation3 + $0x418] sm:$0xff]
        %v1643 = vld [vmem:[#allocation3 + $0x420] sm:$0xff]
        %v1644 = vld [vmem:[#allocation3 + $0x428] sm:$0xff]
        %v1645 = vld [vmem:[#allocation3 + $0x430] sm:$0xff]
        %v1646 = vld [vmem:[#allocation3 + $0x438] sm:$0xff]
        %v1647 = vld [vmem:[#allocation3 + $0x440] sm:$0xff]
        %v1648 = vld [vmem:[#allocation3 + $0x448] sm:$0xff]
        %v1649 = vld [vmem:[#allocation3 + $0x450] sm:$0xff]
        %v1650 = vld [vmem:[#allocation3 + $0x458] sm:$0xff]
        %v1651 = vld [vmem:[#allocation3 + $0x460] sm:$0xff]
        %v1652 = vld [vmem:[#allocation3 + $0x468] sm:$0xff]
        %v1653 = vld [vmem:[#allocation3 + $0x470] sm:$0xff]
        %v1654 = vld [vmem:[#allocation3 + $0x478] sm:$0xff]
        %v1655 = vld [vmem:[#allocation3 + $0x480] sm:$0xff]
        %v1656 = vld [vmem:[#allocation3 + $0x488] sm:$0xff]
        %v1657 = vld [vmem:[#allocation3 + $0x490] sm:$0xff]
        %v1658 = vld [vmem:[#allocation3 + $0x498] sm:$0xff]
        %v1659 = vld [vmem:[#allocation3 + $0x4a0] sm:$0xff]
        %v1660 = vld [vmem:[#allocation3 + $0x4a8] sm:$0xff]
        %v1661 = vld [vmem:[#allocation3 + $0x4b0] sm:$0xff]
        %v1662 = vld [vmem:[#allocation3 + $0x4b8] sm:$0xff]
        %v1663 = vld [vmem:[#allocation3 + $0x4c0] sm:$0xff]
        %v1664 = vld [vmem:[#allocation3 + $0x4c8] sm:$0xff]
        %v1665 = vld [vmem:[#allocation3 + $0x4d0] sm:$0xff]
        %v1666 = vld [vmem:[#allocation3 + $0x4d8] sm:$0xff]
        %v1667 = vld [vmem:[#allocation3 + $0x4e0] sm:$0xff]
        %v1668 = vld [vmem:[#allocation3 + $0x4e8] sm:$0xff]
        %v1669 = vld [vmem:[#allocation3 + $0x4f0] sm:$0xff]
        %v1670 = vld [vmem:[#allocation3 + $0x4f8] sm:$0xff]
        %v1671 = vld [vmem:[#allocation3 + $0x500] sm:$0xff]
        %v1672 = vld [vmem:[#allocation3 + $0x508] sm:$0xff]
        %v1673 = vld [vmem:[#allocation3 + $0x510] sm:$0xff]
        %v1674 = vld [vmem:[#allocation3 + $0x518] sm:$0xff]
        %v1675 = vld [vmem:[#allocation3 + $0x520] sm:$0xff]
        %v1676 = vld [vmem:[#allocation3 + $0x528] sm:$0xff]
        %v1677 = vld [vmem:[#allocation3 + $0x530] sm:$0xff]
        %v1678 = vld [vmem:[#allocation3 + $0x538] sm:$0xff]
        %v1679 = vld [vmem:[#allocation3 + $0x540] sm:$0xff]
        %v1680 = vld [vmem:[#allocation3 + $0x548] sm:$0xff]
        %v1681 = vld [vmem:[#allocation3 + $0x550] sm:$0xff]
        %v1682 = vld [vmem:[#allocation3 + $0x558] sm:$0xff]
        %v1683 = vld [vmem:[#allocation3 + $0x560] sm:$0xff]
        %v1684 = vld [vmem:[#allocation3 + $0x568] sm:$0xff]
        %v1685 = vld [vmem:[#allocation3 + $0x570] sm:$0xff]
        %v1686 = vld [vmem:[#allocation3 + $0x578] sm:$0xff]
        %v1687 = vld [vmem:[#allocation3 + $0x580] sm:$0xff]
        %v1688 = vld [vmem:[#allocation3 + $0x588] sm:$0xff]
        %v1689 = vld [vmem:[#allocation3 + $0x590] sm:$0xff]
        %v1690 = vld [vmem:[#allocation3 + $0x598] sm:$0xff]
        %v1691 = vld [vmem:[#allocation3 + $0x5a0] sm:$0xff]
        %v1692 = vld [vmem:[#allocation3 + $0x5a8] sm:$0xff]
        %v1693 = vld [vmem:[#allocation3 + $0x5b0] sm:$0xff]
        %v1694 = vld [vmem:[#allocation3 + $0x5b8] sm:$0xff]
        %v1695 = vld [vmem:[#allocation3 + $0x5c0] sm:$0xff]
        %v1696 = vld [vmem:[#allocation3 + $0x5c8] sm:$0xff]
        %v1697 = vld [vmem:[#allocation3 + $0x5d0] sm:$0xff]
        %v1698 = vld [vmem:[#allocation3 + $0x5d8] sm:$0xff]
        %v1699 = vld [vmem:[#allocation3 + $0x5e0] sm:$0xff]
        %v1700 = vld [vmem:[#allocation3 + $0x5e8] sm:$0xff]
        %v1701 = vld [vmem:[#allocation3 + $0x5f0] sm:$0xff]
        %v1702 = vld [vmem:[#allocation3 + $0x5f8] sm:$0xff]
        %v1703 = vld [vmem:[%s4] sm:$0x3f]
        %v1705 = vlaneseq
        %v1706 = vshrl.u32 %v1705, 7
        %v1707 = vsub.s32 0, %v1706
        %v1708 = vrot.slane %v1703, %v1707
        %v1709 = vlaneseq
        %v1710 = vshrl.u32 %v1709, 7
        %v1711 = vsub.s32 1, %v1710
        %v1712 = vrot.slane %v1703, %v1711
        %v1713 = vlaneseq
        %v1714 = vshrl.u32 %v1713, 7
        %v1715 = vsub.s32 2, %v1714
        %v1716 = vrot.slane %v1703, %v1715
        %v1717 = vlaneseq
        %v1718 = vshrl.u32 %v1717, 7
        %v1719 = vsub.s32 3, %v1718
        %v1720 = vrot.slane %v1703, %v1719
        %v1721 = vlaneseq
        %v1722 = vshrl.u32 %v1721, 7
        %v1723 = vsub.s32 4, %v1722
        %v1724 = vrot.slane %v1703, %v1723
        %v1725 = vlaneseq
        %v1726 = vshrl.u32 %v1725, 7
        %v1727 = vsub.s32 5, %v1726
        %v1728 = vrot.slane %v1703, %v1727
        %v1927 = vunpack.c.l.b16 %v1511
        %v1928 = vunpack.c.h.b16 %v1511
        %v1929 = vunpack.c.l.b16 %v1512
        %v1930 = vunpack.c.h.b16 %v1512
        %v1931 = vunpack.c.l.b16 %v1513
        %v1932 = vunpack.c.h.b16 %v1513
        %v1933 = vunpack.c.l.b16 %v1514
        %v1934 = vunpack.c.h.b16 %v1514
        %v1935 = vunpack.c.l.b16 %v1515
        %v1936 = vunpack.c.h.b16 %v1515
        %v1937 = vunpack.c.l.b16 %v1516
        %v1938 = vunpack.c.h.b16 %v1516
        %v1939 = vunpack.c.l.b16 %v1517
        %v1940 = vunpack.c.h.b16 %v1517
        %v1941 = vunpack.c.l.b16 %v1518
        %v1942 = vunpack.c.h.b16 %v1518
        %v1943 = vunpack.c.l.b16 %v1519
        %v1944 = vunpack.c.h.b16 %v1519
        %v1945 = vunpack.c.l.b16 %v1520
        %v1946 = vunpack.c.h.b16 %v1520
        %v1947 = vunpack.c.l.b16 %v1521
        %v1948 = vunpack.c.h.b16 %v1521
        %v1949 = vunpack.c.l.b16 %v1522
        %v1950 = vunpack.c.h.b16 %v1522
        %v1951 = vunpack.c.l.b16 %v1523
        %v1952 = vunpack.c.h.b16 %v1523
        %v1953 = vunpack.c.l.b16 %v1524
        %v1954 = vunpack.c.h.b16 %v1524
        %v1955 = vunpack.c.l.b16 %v1525
        %v1956 = vunpack.c.h.b16 %v1525
        %v1957 = vunpack.c.l.b16 %v1526
        %v1958 = vunpack.c.h.b16 %v1526
        %v1959 = vunpack.c.l.b16 %v1527
        %v1960 = vunpack.c.h.b16 %v1527
        %v1961 = vunpack.c.l.b16 %v1528
        %v1962 = vunpack.c.h.b16 %v1528
        %v1963 = vunpack.c.l.b16 %v1529
        %v1964 = vunpack.c.h.b16 %v1529
        %v1965 = vunpack.c.l.b16 %v1530
        %v1966 = vunpack.c.h.b16 %v1530
        %v1967 = vunpack.c.l.b16 %v1531
        %v1968 = vunpack.c.h.b16 %v1531
        %v1969 = vunpack.c.l.b16 %v1532
        %v1970 = vunpack.c.h.b16 %v1532
        %v1971 = vunpack.c.l.b16 %v1533
        %v1972 = vunpack.c.h.b16 %v1533
        %v1973 = vunpack.c.l.b16 %v1534
        %v1974 = vunpack.c.h.b16 %v1534
        %v1975 = vunpack.c.l.b16 %v1535
        %v1976 = vunpack.c.h.b16 %v1535
        %v1977 = vunpack.c.l.b16 %v1536
        %v1978 = vunpack.c.h.b16 %v1536
        %v1979 = vunpack.c.l.b16 %v1537
        %v1980 = vunpack.c.h.b16 %v1537
        %v1981 = vunpack.c.l.b16 %v1538
        %v1982 = vunpack.c.h.b16 %v1538
        %v1983 = vunpack.c.l.b16 %v1539
        %v1984 = vunpack.c.h.b16 %v1539
        %v1985 = vunpack.c.l.b16 %v1540
        %v1986 = vunpack.c.h.b16 %v1540
        %v1987 = vunpack.c.l.b16 %v1541
        %v1988 = vunpack.c.h.b16 %v1541
        %v1989 = vunpack.c.l.b16 %v1542
        %v1990 = vunpack.c.h.b16 %v1542
        %v1991 = vunpack.c.l.b16 %v1543
        %v1992 = vunpack.c.h.b16 %v1543
        %v1993 = vunpack.c.l.b16 %v1544
        %v1994 = vunpack.c.h.b16 %v1544
        %v1995 = vunpack.c.l.b16 %v1545
        %v1996 = vunpack.c.h.b16 %v1545
        %v1997 = vunpack.c.l.b16 %v1546
        %v1998 = vunpack.c.h.b16 %v1546
        %v1999 = vunpack.c.l.b16 %v1547
        %v2000 = vunpack.c.h.b16 %v1547
        %v2001 = vunpack.c.l.b16 %v1548
        %v2002 = vunpack.c.h.b16 %v1548
        %v2003 = vunpack.c.l.b16 %v1549
        %v2004 = vunpack.c.h.b16 %v1549
        %v2005 = vunpack.c.l.b16 %v1550
        %v2006 = vunpack.c.h.b16 %v1550
        %v2007 = vunpack.c.l.b16 %v1551
        %v2008 = vunpack.c.h.b16 %v1551
        %v2009 = vunpack.c.l.b16 %v1552
        %v2010 = vunpack.c.h.b16 %v1552
        %v2011 = vunpack.c.l.b16 %v1553
        %v2012 = vunpack.c.h.b16 %v1553
        %v2013 = vunpack.c.l.b16 %v1554
        %v2014 = vunpack.c.h.b16 %v1554
        %v2015 = vunpack.c.l.b16 %v1555
        %v2016 = vunpack.c.h.b16 %v1555
        %v2017 = vunpack.c.l.b16 %v1556
        %v2018 = vunpack.c.h.b16 %v1556
        %v2019 = vunpack.c.l.b16 %v1557
        %v2020 = vunpack.c.h.b16 %v1557
        %v2021 = vunpack.c.l.b16 %v1558
        %v2022 = vunpack.c.h.b16 %v1558
        %v2023 = vunpack.c.l.b16 %v1559
        %v2024 = vunpack.c.h.b16 %v1559
        %v2025 = vunpack.c.l.b16 %v1560
        %v2026 = vunpack.c.h.b16 %v1560
        %v2027 = vunpack.c.l.b16 %v1561
        %v2028 = vunpack.c.h.b16 %v1561
        %v2029 = vunpack.c.l.b16 %v1562
        %v2030 = vunpack.c.h.b16 %v1562
        %v2031 = vunpack.c.l.b16 %v1563
        %v2032 = vunpack.c.h.b16 %v1563
        %v2033 = vunpack.c.l.b16 %v1564
        %v2034 = vunpack.c.h.b16 %v1564
        %v2035 = vunpack.c.l.b16 %v1565
        %v2036 = vunpack.c.h.b16 %v1565
        %v2037 = vunpack.c.l.b16 %v1566
        %v2038 = vunpack.c.h.b16 %v1566
        %v2039 = vunpack.c.l.b16 %v1567
        %v2040 = vunpack.c.h.b16 %v1567
        %v2041 = vunpack.c.l.b16 %v1568
        %v2042 = vunpack.c.h.b16 %v1568
        %v2043 = vunpack.c.l.b16 %v1569
        %v2044 = vunpack.c.h.b16 %v1569
        %v2045 = vunpack.c.l.b16 %v1570
        %v2046 = vunpack.c.h.b16 %v1570
        %v2047 = vunpack.c.l.b16 %v1571
        %v2048 = vunpack.c.h.b16 %v1571
        %v2049 = vunpack.c.l.b16 %v1572
        %v2050 = vunpack.c.h.b16 %v1572
        %v2051 = vunpack.c.l.b16 %v1573
        %v2052 = vunpack.c.h.b16 %v1573
        %v2053 = vunpack.c.l.b16 %v1574
        %v2054 = vunpack.c.h.b16 %v1574
        %v2055 = vunpack.c.l.b16 %v1575
        %v2056 = vunpack.c.h.b16 %v1575
        %v2057 = vunpack.c.l.b16 %v1576
        %v2058 = vunpack.c.h.b16 %v1576
        %v2059 = vunpack.c.l.b16 %v1577
        %v2060 = vunpack.c.h.b16 %v1577
        %v2061 = vunpack.c.l.b16 %v1578
        %v2062 = vunpack.c.h.b16 %v1578
        %v2063 = vunpack.c.l.b16 %v1579
        %v2064 = vunpack.c.h.b16 %v1579
        %v2065 = vunpack.c.l.b16 %v1580
        %v2066 = vunpack.c.h.b16 %v1580
        %v2067 = vunpack.c.l.b16 %v1581
        %v2068 = vunpack.c.h.b16 %v1581
        %v2069 = vunpack.c.l.b16 %v1582
        %v2070 = vunpack.c.h.b16 %v1582
        %v2071 = vunpack.c.l.b16 %v1583
        %v2072 = vunpack.c.h.b16 %v1583
        %v2073 = vunpack.c.l.b16 %v1584
        %v2074 = vunpack.c.h.b16 %v1584
        %v2075 = vunpack.c.l.b16 %v1585
        %v2076 = vunpack.c.h.b16 %v1585
        %v2077 = vunpack.c.l.b16 %v1586
        %v2078 = vunpack.c.h.b16 %v1586
        %v2079 = vunpack.c.l.b16 %v1587
        %v2080 = vunpack.c.h.b16 %v1587
        %v2081 = vunpack.c.l.b16 %v1588
        %v2082 = vunpack.c.h.b16 %v1588
        %v2083 = vunpack.c.l.b16 %v1589
        %v2084 = vunpack.c.h.b16 %v1589
        %v2085 = vunpack.c.l.b16 %v1590
        %v2086 = vunpack.c.h.b16 %v1590
        %v2087 = vunpack.c.l.b16 %v1591
        %v2088 = vunpack.c.h.b16 %v1591
        %v2089 = vunpack.c.l.b16 %v1592
        %v2090 = vunpack.c.h.b16 %v1592
        %v2091 = vunpack.c.l.b16 %v1593
        %v2092 = vunpack.c.h.b16 %v1593
        %v2093 = vunpack.c.l.b16 %v1594
        %v2094 = vunpack.c.h.b16 %v1594
        %v2095 = vunpack.c.l.b16 %v1595
        %v2096 = vunpack.c.h.b16 %v1595
        %v2097 = vunpack.c.l.b16 %v1596
        %v2098 = vunpack.c.h.b16 %v1596
        %v2099 = vunpack.c.l.b16 %v1597
        %v2100 = vunpack.c.h.b16 %v1597
        %v2101 = vunpack.c.l.b16 %v1598
        %v2102 = vunpack.c.h.b16 %v1598
        %v2103 = vunpack.c.l.b16 %v1599
        %v2104 = vunpack.c.h.b16 %v1599
        %v2105 = vunpack.c.l.b16 %v1600
        %v2106 = vunpack.c.h.b16 %v1600
        %v2107 = vunpack.c.l.b16 %v1601
        %v2108 = vunpack.c.h.b16 %v1601
        %v2109 = vunpack.c.l.b16 %v1602
        %v2110 = vunpack.c.h.b16 %v1602
        %v2111 = vunpack.c.l.b16 %v1603
        %v2112 = vunpack.c.h.b16 %v1603
        %v2113 = vunpack.c.l.b16 %v1604
        %v2114 = vunpack.c.h.b16 %v1604
        %v2115 = vunpack.c.l.b16 %v1605
        %v2116 = vunpack.c.h.b16 %v1605
        %v2117 = vunpack.c.l.b16 %v1606
        %v2118 = vunpack.c.h.b16 %v1606
        %v2119 = vunpack.c.l.b16 %v1607
        %v2120 = vunpack.c.h.b16 %v1607
        %v2121 = vunpack.c.l.b16 %v1608
        %v2122 = vunpack.c.h.b16 %v1608
        %v2123 = vunpack.c.l.b16 %v1609
        %v2124 = vunpack.c.h.b16 %v1609
        %v2125 = vunpack.c.l.b16 %v1610
        %v2126 = vunpack.c.h.b16 %v1610
        %v2127 = vunpack.c.l.b16 %v1611
        %v2128 = vunpack.c.h.b16 %v1611
        %v2129 = vunpack.c.l.b16 %v1612
        %v2130 = vunpack.c.h.b16 %v1612
        %v2131 = vunpack.c.l.b16 %v1613
        %v2132 = vunpack.c.h.b16 %v1613
        %v2133 = vunpack.c.l.b16 %v1614
        %v2134 = vunpack.c.h.b16 %v1614
        %v2135 = vunpack.c.l.b16 %v1615
        %v2136 = vunpack.c.h.b16 %v1615
        %v2137 = vunpack.c.l.b16 %v1616
        %v2138 = vunpack.c.h.b16 %v1616
        %v2139 = vunpack.c.l.b16 %v1617
        %v2140 = vunpack.c.h.b16 %v1617
        %v2141 = vunpack.c.l.b16 %v1618
        %v2142 = vunpack.c.h.b16 %v1618
        %v2143 = vunpack.c.l.b16 %v1619
        %v2144 = vunpack.c.h.b16 %v1619
        %v2145 = vunpack.c.l.b16 %v1620
        %v2146 = vunpack.c.h.b16 %v1620
        %v2147 = vunpack.c.l.b16 %v1621
        %v2148 = vunpack.c.h.b16 %v1621
        %v2149 = vunpack.c.l.b16 %v1622
        %v2150 = vunpack.c.h.b16 %v1622
        %v2151 = vunpack.c.l.b16 %v1623
        %v2152 = vunpack.c.h.b16 %v1623
        %v2153 = vunpack.c.l.b16 %v1624
        %v2154 = vunpack.c.h.b16 %v1624
        %v2155 = vunpack.c.l.b16 %v1625
        %v2156 = vunpack.c.h.b16 %v1625
        %v2157 = vunpack.c.l.b16 %v1626
        %v2158 = vunpack.c.h.b16 %v1626
        %v2159 = vunpack.c.l.b16 %v1627
        %v2160 = vunpack.c.h.b16 %v1627
        %v2161 = vunpack.c.l.b16 %v1628
        %v2162 = vunpack.c.h.b16 %v1628
        %v2163 = vunpack.c.l.b16 %v1629
        %v2164 = vunpack.c.h.b16 %v1629
        %v2165 = vunpack.c.l.b16 %v1630
        %v2166 = vunpack.c.h.b16 %v1630
        %v2167 = vunpack.c.l.b16 %v1631
        %v2168 = vunpack.c.h.b16 %v1631
        %v2169 = vunpack.c.l.b16 %v1632
        %v2170 = vunpack.c.h.b16 %v1632
        %v2171 = vunpack.c.l.b16 %v1633
        %v2172 = vunpack.c.h.b16 %v1633
        %v2173 = vunpack.c.l.b16 %v1634
        %v2174 = vunpack.c.h.b16 %v1634
        %v2175 = vunpack.c.l.b16 %v1635
        %v2176 = vunpack.c.h.b16 %v1635
        %v2177 = vunpack.c.l.b16 %v1636
        %v2178 = vunpack.c.h.b16 %v1636
        %v2179 = vunpack.c.l.b16 %v1637
        %v2180 = vunpack.c.h.b16 %v1637
        %v2181 = vunpack.c.l.b16 %v1638
        %v2182 = vunpack.c.h.b16 %v1638
        %v2183 = vunpack.c.l.b16 %v1639
        %v2184 = vunpack.c.h.b16 %v1639
        %v2185 = vunpack.c.l.b16 %v1640
        %v2186 = vunpack.c.h.b16 %v1640
        %v2187 = vunpack.c.l.b16 %v1641
        %v2188 = vunpack.c.h.b16 %v1641
        %v2189 = vunpack.c.l.b16 %v1642
        %v2190 = vunpack.c.h.b16 %v1642
        %v2191 = vunpack.c.l.b16 %v1643
        %v2192 = vunpack.c.h.b16 %v1643
        %v2193 = vunpack.c.l.b16 %v1644
        %v2194 = vunpack.c.h.b16 %v1644
        %v2195 = vunpack.c.l.b16 %v1645
        %v2196 = vunpack.c.h.b16 %v1645
        %v2197 = vunpack.c.l.b16 %v1646
        %v2198 = vunpack.c.h.b16 %v1646
        %v2199 = vunpack.c.l.b16 %v1647
        %v2200 = vunpack.c.h.b16 %v1647
        %v2201 = vunpack.c.l.b16 %v1648
        %v2202 = vunpack.c.h.b16 %v1648
        %v2203 = vunpack.c.l.b16 %v1649
        %v2204 = vunpack.c.h.b16 %v1649
        %v2205 = vunpack.c.l.b16 %v1650
        %v2206 = vunpack.c.h.b16 %v1650
        %v2207 = vunpack.c.l.b16 %v1651
        %v2208 = vunpack.c.h.b16 %v1651
        %v2209 = vunpack.c.l.b16 %v1652
        %v2210 = vunpack.c.h.b16 %v1652
        %v2211 = vunpack.c.l.b16 %v1653
        %v2212 = vunpack.c.h.b16 %v1653
        %v2213 = vunpack.c.l.b16 %v1654
        %v2214 = vunpack.c.h.b16 %v1654
        %v2215 = vunpack.c.l.b16 %v1655
        %v2216 = vunpack.c.h.b16 %v1655
        %v2217 = vunpack.c.l.b16 %v1656
        %v2218 = vunpack.c.h.b16 %v1656
        %v2219 = vunpack.c.l.b16 %v1657
        %v2220 = vunpack.c.h.b16 %v1657
        %v2221 = vunpack.c.l.b16 %v1658
        %v2222 = vunpack.c.h.b16 %v1658
        %v2223 = vunpack.c.l.b16 %v1659
        %v2224 = vunpack.c.h.b16 %v1659
        %v2225 = vunpack.c.l.b16 %v1660
        %v2226 = vunpack.c.h.b16 %v1660
        %v2227 = vunpack.c.l.b16 %v1661
        %v2228 = vunpack.c.h.b16 %v1661
        %v2229 = vunpack.c.l.b16 %v1662
        %v2230 = vunpack.c.h.b16 %v1662
        %v2231 = vunpack.c.l.b16 %v1663
        %v2232 = vunpack.c.h.b16 %v1663
        %v2233 = vunpack.c.l.b16 %v1664
        %v2234 = vunpack.c.h.b16 %v1664
        %v2235 = vunpack.c.l.b16 %v1665
        %v2236 = vunpack.c.h.b16 %v1665
        %v2237 = vunpack.c.l.b16 %v1666
        %v2238 = vunpack.c.h.b16 %v1666
        %v2239 = vunpack.c.l.b16 %v1667
        %v2240 = vunpack.c.h.b16 %v1667
        %v2241 = vunpack.c.l.b16 %v1668
        %v2242 = vunpack.c.h.b16 %v1668
        %v2243 = vunpack.c.l.b16 %v1669
        %v2244 = vunpack.c.h.b16 %v1669
        %v2245 = vunpack.c.l.b16 %v1670
        %v2246 = vunpack.c.h.b16 %v1670
        %v2247 = vunpack.c.l.b16 %v1671
        %v2248 = vunpack.c.h.b16 %v1671
        %v2249 = vunpack.c.l.b16 %v1672
        %v2250 = vunpack.c.h.b16 %v1672
        %v2251 = vunpack.c.l.b16 %v1673
        %v2252 = vunpack.c.h.b16 %v1673
        %v2253 = vunpack.c.l.b16 %v1674
        %v2254 = vunpack.c.h.b16 %v1674
        %v2255 = vunpack.c.l.b16 %v1675
        %v2256 = vunpack.c.h.b16 %v1675
        %v2257 = vunpack.c.l.b16 %v1676
        %v2258 = vunpack.c.h.b16 %v1676
        %v2259 = vunpack.c.l.b16 %v1677
        %v2260 = vunpack.c.h.b16 %v1677
        %v2261 = vunpack.c.l.b16 %v1678
        %v2262 = vunpack.c.h.b16 %v1678
        %v2263 = vunpack.c.l.b16 %v1679
        %v2264 = vunpack.c.h.b16 %v1679
        %v2265 = vunpack.c.l.b16 %v1680
        %v2266 = vunpack.c.h.b16 %v1680
        %v2267 = vunpack.c.l.b16 %v1681
        %v2268 = vunpack.c.h.b16 %v1681
        %v2269 = vunpack.c.l.b16 %v1682
        %v2270 = vunpack.c.h.b16 %v1682
        %v2271 = vunpack.c.l.b16 %v1683
        %v2272 = vunpack.c.h.b16 %v1683
        %v2273 = vunpack.c.l.b16 %v1684
        %v2274 = vunpack.c.h.b16 %v1684
        %v2275 = vunpack.c.l.b16 %v1685
        %v2276 = vunpack.c.h.b16 %v1685
        %v2277 = vunpack.c.l.b16 %v1686
        %v2278 = vunpack.c.h.b16 %v1686
        %v2279 = vunpack.c.l.b16 %v1687
        %v2280 = vunpack.c.h.b16 %v1687
        %v2281 = vunpack.c.l.b16 %v1688
        %v2282 = vunpack.c.h.b16 %v1688
        %v2283 = vunpack.c.l.b16 %v1689
        %v2284 = vunpack.c.h.b16 %v1689
        %v2285 = vunpack.c.l.b16 %v1690
        %v2286 = vunpack.c.h.b16 %v1690
        %v2287 = vunpack.c.l.b16 %v1691
        %v2288 = vunpack.c.h.b16 %v1691
        %v2289 = vunpack.c.l.b16 %v1692
        %v2290 = vunpack.c.h.b16 %v1692
        %v2291 = vunpack.c.l.b16 %v1693
        %v2292 = vunpack.c.h.b16 %v1693
        %v2293 = vunpack.c.l.b16 %v1694
        %v2294 = vunpack.c.h.b16 %v1694
        %v2295 = vunpack.c.l.b16 %v1695
        %v2296 = vunpack.c.h.b16 %v1695
        %v2297 = vunpack.c.l.b16 %v1696
        %v2298 = vunpack.c.h.b16 %v1696
        %v2299 = vunpack.c.l.b16 %v1697
        %v2300 = vunpack.c.h.b16 %v1697
        %v2301 = vunpack.c.l.b16 %v1698
        %v2302 = vunpack.c.h.b16 %v1698
        %v2303 = vunpack.c.l.b16 %v1699
        %v2304 = vunpack.c.h.b16 %v1699
        %v2305 = vunpack.c.l.b16 %v1700
        %v2306 = vunpack.c.h.b16 %v1700
        %v2307 = vunpack.c.l.b16 %v1701
        %v2308 = vunpack.c.h.b16 %v1701
        %v2309 = vunpack.c.l.b16 %v1702
        %v2310 = vunpack.c.h.b16 %v1702
        %v2311 = vpack.c.b16 %v1933, %v1927
        %v2312 = vpack.c.b16 %v1934, %v1928
        %v2313 = vpack.c.b16 %v1935, %v1929
        %v2314 = vpack.c.b16 %v1936, %v1930
        %v2315 = vpack.c.b16 %v1937, %v1931
        %v2316 = vpack.c.b16 %v1938, %v1932
        %v2317 = vpack.c.b16 %v1945, %v1939
        %v2318 = vpack.c.b16 %v1946, %v1940
        %v2319 = vpack.c.b16 %v1947, %v1941
        %v2320 = vpack.c.b16 %v1948, %v1942
        %v2321 = vpack.c.b16 %v1949, %v1943
        %v2322 = vpack.c.b16 %v1950, %v1944
        %v2323 = vpack.c.b16 %v1957, %v1951
        %v2324 = vpack.c.b16 %v1958, %v1952
        %v2325 = vpack.c.b16 %v1959, %v1953
        %v2326 = vpack.c.b16 %v1960, %v1954
        %v2327 = vpack.c.b16 %v1961, %v1955
        %v2328 = vpack.c.b16 %v1962, %v1956
        %v2329 = vpack.c.b16 %v1969, %v1963
        %v2330 = vpack.c.b16 %v1970, %v1964
        %v2331 = vpack.c.b16 %v1971, %v1965
        %v2332 = vpack.c.b16 %v1972, %v1966
        %v2333 = vpack.c.b16 %v1973, %v1967
        %v2334 = vpack.c.b16 %v1974, %v1968
        %v2335 = vpack.c.b16 %v1981, %v1975
        %v2336 = vpack.c.b16 %v1982, %v1976
        %v2337 = vpack.c.b16 %v1983, %v1977
        %v2338 = vpack.c.b16 %v1984, %v1978
        %v2339 = vpack.c.b16 %v1985, %v1979
        %v2340 = vpack.c.b16 %v1986, %v1980
        %v2341 = vpack.c.b16 %v1993, %v1987
        %v2342 = vpack.c.b16 %v1994, %v1988
        %v2343 = vpack.c.b16 %v1995, %v1989
        %v2344 = vpack.c.b16 %v1996, %v1990
        %v2345 = vpack.c.b16 %v1997, %v1991
        %v2346 = vpack.c.b16 %v1998, %v1992
        %v2347 = vpack.c.b16 %v2005, %v1999
        %v2348 = vpack.c.b16 %v2006, %v2000
        %v2349 = vpack.c.b16 %v2007, %v2001
        %v2350 = vpack.c.b16 %v2008, %v2002
        %v2351 = vpack.c.b16 %v2009, %v2003
        %v2352 = vpack.c.b16 %v2010, %v2004
        %v2353 = vpack.c.b16 %v2017, %v2011
        %v2354 = vpack.c.b16 %v2018, %v2012
        %v2355 = vpack.c.b16 %v2019, %v2013
        %v2356 = vpack.c.b16 %v2020, %v2014
        %v2357 = vpack.c.b16 %v2021, %v2015
        %v2358 = vpack.c.b16 %v2022, %v2016
        %v2359 = vpack.c.b16 %v2029, %v2023
        %v2360 = vpack.c.b16 %v2030, %v2024
        %v2361 = vpack.c.b16 %v2031, %v2025
        %v2362 = vpack.c.b16 %v2032, %v2026
        %v2363 = vpack.c.b16 %v2033, %v2027
        %v2364 = vpack.c.b16 %v2034, %v2028
        %v2365 = vpack.c.b16 %v2041, %v2035
        %v2366 = vpack.c.b16 %v2042, %v2036
        %v2367 = vpack.c.b16 %v2043, %v2037
        %v2368 = vpack.c.b16 %v2044, %v2038
        %v2369 = vpack.c.b16 %v2045, %v2039
        %v2370 = vpack.c.b16 %v2046, %v2040
        %v2371 = vpack.c.b16 %v2053, %v2047
        %v2372 = vpack.c.b16 %v2054, %v2048
        %v2373 = vpack.c.b16 %v2055, %v2049
        %v2374 = vpack.c.b16 %v2056, %v2050
        %v2375 = vpack.c.b16 %v2057, %v2051
        %v2376 = vpack.c.b16 %v2058, %v2052
        %v2377 = vpack.c.b16 %v2065, %v2059
        %v2378 = vpack.c.b16 %v2066, %v2060
        %v2379 = vpack.c.b16 %v2067, %v2061
        %v2380 = vpack.c.b16 %v2068, %v2062
        %v2381 = vpack.c.b16 %v2069, %v2063
        %v2382 = vpack.c.b16 %v2070, %v2064
        %v2383 = vpack.c.b16 %v2077, %v2071
        %v2384 = vpack.c.b16 %v2078, %v2072
        %v2385 = vpack.c.b16 %v2079, %v2073
        %v2386 = vpack.c.b16 %v2080, %v2074
        %v2387 = vpack.c.b16 %v2081, %v2075
        %v2388 = vpack.c.b16 %v2082, %v2076
        %v2389 = vpack.c.b16 %v2089, %v2083
        %v2390 = vpack.c.b16 %v2090, %v2084
        %v2391 = vpack.c.b16 %v2091, %v2085
        %v2392 = vpack.c.b16 %v2092, %v2086
        %v2393 = vpack.c.b16 %v2093, %v2087
        %v2394 = vpack.c.b16 %v2094, %v2088
        %v2395 = vpack.c.b16 %v2101, %v2095
        %v2396 = vpack.c.b16 %v2102, %v2096
        %v2397 = vpack.c.b16 %v2103, %v2097
        %v2398 = vpack.c.b16 %v2104, %v2098
        %v2399 = vpack.c.b16 %v2105, %v2099
        %v2400 = vpack.c.b16 %v2106, %v2100
        %v2401 = vpack.c.b16 %v2113, %v2107
        %v2402 = vpack.c.b16 %v2114, %v2108
        %v2403 = vpack.c.b16 %v2115, %v2109
        %v2404 = vpack.c.b16 %v2116, %v2110
        %v2405 = vpack.c.b16 %v2117, %v2111
        %v2406 = vpack.c.b16 %v2118, %v2112
        %v2407 = vpack.c.b16 %v2125, %v2119
        %v2408 = vpack.c.b16 %v2126, %v2120
        %v2409 = vpack.c.b16 %v2127, %v2121
        %v2410 = vpack.c.b16 %v2128, %v2122
        %v2411 = vpack.c.b16 %v2129, %v2123
        %v2412 = vpack.c.b16 %v2130, %v2124
        %v2413 = vpack.c.b16 %v2137, %v2131
        %v2414 = vpack.c.b16 %v2138, %v2132
        %v2415 = vpack.c.b16 %v2139, %v2133
        %v2416 = vpack.c.b16 %v2140, %v2134
        %v2417 = vpack.c.b16 %v2141, %v2135
        %v2418 = vpack.c.b16 %v2142, %v2136
        %v2419 = vpack.c.b16 %v2149, %v2143
        %v2420 = vpack.c.b16 %v2150, %v2144
        %v2421 = vpack.c.b16 %v2151, %v2145
        %v2422 = vpack.c.b16 %v2152, %v2146
        %v2423 = vpack.c.b16 %v2153, %v2147
        %v2424 = vpack.c.b16 %v2154, %v2148
        %v2425 = vpack.c.b16 %v2161, %v2155
        %v2426 = vpack.c.b16 %v2162, %v2156
        %v2427 = vpack.c.b16 %v2163, %v2157
        %v2428 = vpack.c.b16 %v2164, %v2158
        %v2429 = vpack.c.b16 %v2165, %v2159
        %v2430 = vpack.c.b16 %v2166, %v2160
        %v2431 = vpack.c.b16 %v2173, %v2167
        %v2432 = vpack.c.b16 %v2174, %v2168
        %v2433 = vpack.c.b16 %v2175, %v2169
        %v2434 = vpack.c.b16 %v2176, %v2170
        %v2435 = vpack.c.b16 %v2177, %v2171
        %v2436 = vpack.c.b16 %v2178, %v2172
        %v2437 = vpack.c.b16 %v2185, %v2179
        %v2438 = vpack.c.b16 %v2186, %v2180
        %v2439 = vpack.c.b16 %v2187, %v2181
        %v2440 = vpack.c.b16 %v2188, %v2182
        %v2441 = vpack.c.b16 %v2189, %v2183
        %v2442 = vpack.c.b16 %v2190, %v2184
        %v2443 = vpack.c.b16 %v2197, %v2191
        %v2444 = vpack.c.b16 %v2198, %v2192
        %v2445 = vpack.c.b16 %v2199, %v2193
        %v2446 = vpack.c.b16 %v2200, %v2194
        %v2447 = vpack.c.b16 %v2201, %v2195
        %v2448 = vpack.c.b16 %v2202, %v2196
        %v2449 = vpack.c.b16 %v2209, %v2203
        %v2450 = vpack.c.b16 %v2210, %v2204
        %v2451 = vpack.c.b16 %v2211, %v2205
        %v2452 = vpack.c.b16 %v2212, %v2206
        %v2453 = vpack.c.b16 %v2213, %v2207
        %v2454 = vpack.c.b16 %v2214, %v2208
        %v2455 = vpack.c.b16 %v2221, %v2215
        %v2456 = vpack.c.b16 %v2222, %v2216
        %v2457 = vpack.c.b16 %v2223, %v2217
        %v2458 = vpack.c.b16 %v2224, %v2218
        %v2459 = vpack.c.b16 %v2225, %v2219
        %v2460 = vpack.c.b16 %v2226, %v2220
        %v2461 = vpack.c.b16 %v2233, %v2227
        %v2462 = vpack.c.b16 %v2234, %v2228
        %v2463 = vpack.c.b16 %v2235, %v2229
        %v2464 = vpack.c.b16 %v2236, %v2230
        %v2465 = vpack.c.b16 %v2237, %v2231
        %v2466 = vpack.c.b16 %v2238, %v2232
        %v2467 = vpack.c.b16 %v2245, %v2239
        %v2468 = vpack.c.b16 %v2246, %v2240
        %v2469 = vpack.c.b16 %v2247, %v2241
        %v2470 = vpack.c.b16 %v2248, %v2242
        %v2471 = vpack.c.b16 %v2249, %v2243
        %v2472 = vpack.c.b16 %v2250, %v2244
        %v2473 = vpack.c.b16 %v2257, %v2251
        %v2474 = vpack.c.b16 %v2258, %v2252
        %v2475 = vpack.c.b16 %v2259, %v2253
        %v2476 = vpack.c.b16 %v2260, %v2254
        %v2477 = vpack.c.b16 %v2261, %v2255
        %v2478 = vpack.c.b16 %v2262, %v2256
        %v2479 = vpack.c.b16 %v2269, %v2263
        %v2480 = vpack.c.b16 %v2270, %v2264
        %v2481 = vpack.c.b16 %v2271, %v2265
        %v2482 = vpack.c.b16 %v2272, %v2266
        %v2483 = vpack.c.b16 %v2273, %v2267
        %v2484 = vpack.c.b16 %v2274, %v2268
        %v2485 = vpack.c.b16 %v2281, %v2275
        %v2486 = vpack.c.b16 %v2282, %v2276
        %v2487 = vpack.c.b16 %v2283, %v2277
        %v2488 = vpack.c.b16 %v2284, %v2278
        %v2489 = vpack.c.b16 %v2285, %v2279
        %v2490 = vpack.c.b16 %v2286, %v2280
        %v2491 = vpack.c.b16 %v2293, %v2287
        %v2492 = vpack.c.b16 %v2294, %v2288
        %v2493 = vpack.c.b16 %v2295, %v2289
        %v2494 = vpack.c.b16 %v2296, %v2290
        %v2495 = vpack.c.b16 %v2297, %v2291
        %v2496 = vpack.c.b16 %v2298, %v2292
        %v2497 = vpack.c.b16 %v2305, %v2299
        %v2498 = vpack.c.b16 %v2306, %v2300
        %v2499 = vpack.c.b16 %v2307, %v2301
        %v2500 = vpack.c.b16 %v2308, %v2302
        %v2501 = vpack.c.b16 %v2309, %v2303
        %v2502 = vpack.c.b16 %v2310, %v2304
        %2695 = vmatprep.subr.bf16.mxu0 %v2312
        %2696 = vmatpush1.bf16.msra.mxu0 %v2311
        %2697 = vmatprep.subr.bf16.mxu0 %v2318
        %2698 = vmatpush1.bf16.msra.mxu0 %v2317
        %2699 = vmatprep.subr.bf16.mxu0 %v2324
        %2700 = vmatpush1.bf16.msra.mxu0 %v2323
        %2701 = vmatprep.subr.bf16.mxu0 %v2330
        %2702 = vmatpush1.bf16.msra.mxu0 %v2329
        %2703 = vmatprep.subr.bf16.mxu0 %v2336
        %2704 = vmatpush1.bf16.msra.mxu0 %v2335
        %2705 = vmatprep.subr.bf16.mxu0 %v2342
        %2706 = vmatpush1.bf16.msra.mxu0 %v2341
        %2707 = vmatprep.subr.bf16.mxu0 %v2348
        %2708 = vmatpush1.bf16.msra.mxu0 %v2347
        %2709 = vmatprep.subr.bf16.mxu0 %v2354
        %2710 = vmatpush1.bf16.msra.mxu0 %v2353
        %2711 = vmatprep.subr.bf16.mxu0 %v2360
        %2712 = vmatpush1.bf16.msra.mxu0 %v2359
        %2713 = vmatprep.subr.bf16.mxu0 %v2366
        %2714 = vmatpush1.bf16.msra.mxu0 %v2365
        %2715 = vmatprep.subr.bf16.mxu0 %v2372
        %2716 = vmatpush1.bf16.msra.mxu0 %v2371
        %2717 = vmatprep.subr.bf16.mxu0 %v2378
        %2718 = vmatpush1.bf16.msra.mxu0 %v2377
        %2719 = vmatprep.subr.bf16.mxu0 %v2384
        %2720 = vmatpush1.bf16.msra.mxu0 %v2383
        %2721 = vmatprep.subr.bf16.mxu0 %v2390
        %2722 = vmatpush1.bf16.msra.mxu0 %v2389
        %2723 = vmatprep.subr.bf16.mxu0 %v2396
        %2724 = vmatpush1.bf16.msra.mxu0 %v2395
        %2725 = vmatprep.subr.bf16.mxu0 %v2402
        %2726 = vmatpush1.bf16.msra.mxu0 %v2401
        %2727 = vmatprep.mubr.bf16.mxu0 %v1508
        %2728 = vmatmul.mubr.bf16.gmra.mrb[0].mxu0 %v1507
        %v2729 = vpop.f32.mrb[0].mxu0
        %v2730 = vadd.f32 %v1708, %v2729
        %v2731 = vpop.f32.mrb[0].mxu0
        %v2732 = vadd.f32 %v1712, %v2731
        %v2733 = vpop.f32.mrb[0].mxu0
        %v2734 = vadd.f32 %v1708, %v2733
        %v2735 = vpop.f32.mrb[0].mxu0
        %v2736 = vadd.f32 %v1712, %v2735
        %2737 = vdwg.mxu0
        %2738 = vmatprep.subr.bf16.mxu0 %v2408
        %2739 = vmatpush1.bf16.msra.mxu0 %v2407
        %2740 = vmatprep.subr.bf16.mxu0 %v2414
        %2741 = vmatpush1.bf16.msra.mxu0 %v2413
        %2742 = vmatprep.subr.bf16.mxu0 %v2420
        %2743 = vmatpush1.bf16.msra.mxu0 %v2419
        %2744 = vmatprep.subr.bf16.mxu0 %v2426
        %2745 = vmatpush1.bf16.msra.mxu0 %v2425
        %2746 = vmatprep.subr.bf16.mxu0 %v2432
        %2747 = vmatpush1.bf16.msra.mxu0 %v2431
        %2748 = vmatprep.subr.bf16.mxu0 %v2438
        %2749 = vmatpush1.bf16.msra.mxu0 %v2437
        %2750 = vmatprep.subr.bf16.mxu0 %v2444
        %2751 = vmatpush1.bf16.msra.mxu0 %v2443
        %2752 = vmatprep.subr.bf16.mxu0 %v2450
        %2753 = vmatpush1.bf16.msra.mxu0 %v2449
        %2754 = vmatprep.subr.bf16.mxu0 %v2456
        %2755 = vmatpush1.bf16.msra.mxu0 %v2455
        %2756 = vmatprep.subr.bf16.mxu0 %v2462
        %2757 = vmatpush1.bf16.msra.mxu0 %v2461
        %2758 = vmatprep.subr.bf16.mxu0 %v2468
        %2759 = vmatpush1.bf16.msra.mxu0 %v2467
        %2760 = vmatprep.subr.bf16.mxu0 %v2474
        %2761 = vmatpush1.bf16.msra.mxu0 %v2473
        %2762 = vmatprep.subr.bf16.mxu0 %v2480
        %2763 = vmatpush1.bf16.msra.mxu0 %v2479
        %2764 = vmatprep.subr.bf16.mxu0 %v2486
        %2765 = vmatpush1.bf16.msra.mxu0 %v2485
        %2766 = vmatprep.subr.bf16.mxu0 %v2492
        %2767 = vmatpush1.bf16.msra.mxu0 %v2491
        %2768 = vmatprep.subr.bf16.mxu0 %v2498
        %2769 = vmatpush1.bf16.msra.mxu0 %v2497
        %2770 = vmatprep.mubr.bf16.mxu0 %v1510
        %2771 = vmatmul.mubr.bf16.gmra.mrb[0].mxu0 %v1509
        %v2772 = vpop.f32.mrb[0].mxu0
        %v2773 = vadd.f32 %v2730, %v2772
        %v2774 = vpop.f32.mrb[0].mxu0
        %v2775 = vadd.f32 %v2732, %v2774
        %v2776 = vpop.f32.mrb[0].mxu0
        %v2777 = vadd.f32 %v2734, %v2776
        %v2778 = vpop.f32.mrb[0].mxu0
        %v2779 = vadd.f32 %v2736, %v2778
        %2780 = vdwg.mxu0
        %2781 = vmatprep.subr.bf16.mxu0 %v2314
        %2782 = vmatpush1.bf16.msra.mxu0 %v2313
        %2783 = vmatprep.subr.bf16.mxu0 %v2320
        %2784 = vmatpush1.bf16.msra.mxu0 %v2319
        %2785 = vmatprep.subr.bf16.mxu0 %v2326
        %2786 = vmatpush1.bf16.msra.mxu0 %v2325
        %2787 = vmatprep.subr.bf16.mxu0 %v2332
        %2788 = vmatpush1.bf16.msra.mxu0 %v2331
        %2789 = vmatprep.subr.bf16.mxu0 %v2338
        %2790 = vmatpush1.bf16.msra.mxu0 %v2337
        %2791 = vmatprep.subr.bf16.mxu0 %v2344
        %2792 = vmatpush1.bf16.msra.mxu0 %v2343
        %2793 = vmatprep.subr.bf16.mxu0 %v2350
        %2794 = vmatpush1.bf16.msra.mxu0 %v2349
        %2795 = vmatprep.subr.bf16.mxu0 %v2356
        %2796 = vmatpush1.bf16.msra.mxu0 %v2355
        %2797 = vmatprep.subr.bf16.mxu0 %v2362
        %2798 = vmatpush1.bf16.msra.mxu0 %v2361
        %2799 = vmatprep.subr.bf16.mxu0 %v2368
        %2800 = vmatpush1.bf16.msra.mxu0 %v2367
        %2801 = vmatprep.subr.bf16.mxu0 %v2374
        %2802 = vmatpush1.bf16.msra.mxu0 %v2373
        %2803 = vmatprep.subr.bf16.mxu0 %v2380
        %2804 = vmatpush1.bf16.msra.mxu0 %v2379
        %2805 = vmatprep.subr.bf16.mxu0 %v2386
        %2806 = vmatpush1.bf16.msra.mxu0 %v2385
        %2807 = vmatprep.subr.bf16.mxu0 %v2392
        %2808 = vmatpush1.bf16.msra.mxu0 %v2391
        %2809 = vmatprep.subr.bf16.mxu0 %v2398
        %2810 = vmatpush1.bf16.msra.mxu0 %v2397
        %2811 = vmatprep.subr.bf16.mxu0 %v2404
        %2812 = vmatpush1.bf16.msra.mxu0 %v2403
        %2813 = vmatprep.mubr.bf16.mxu0 %v1508
        %2814 = vmatmul.mubr.bf16.gmra.mrb[0].mxu0 %v1507
        %v2815 = vpop.f32.mrb[0].mxu0
        %v2816 = vadd.f32 %v1716, %v2815
        %v2817 = vpop.f32.mrb[0].mxu0
        %v2818 = vadd.f32 %v1720, %v2817
        %v2819 = vpop.f32.mrb[0].mxu0
        %v2820 = vadd.f32 %v1716, %v2819
        %v2821 = vpop.f32.mrb[0].mxu0
        %v2822 = vadd.f32 %v1720, %v2821
        %2823 = vdwg.mxu0
        %2824 = vmatprep.subr.bf16.mxu0 %v2410
        %2825 = vmatpush1.bf16.msra.mxu0 %v2409
        %2826 = vmatprep.subr.bf16.mxu0 %v2416
        %2827 = vmatpush1.bf16.msra.mxu0 %v2415
        %2828 = vmatprep.subr.bf16.mxu0 %v2422
        %2829 = vmatpush1.bf16.msra.mxu0 %v2421
        %2830 = vmatprep.subr.bf16.mxu0 %v2428
        %2831 = vmatpush1.bf16.msra.mxu0 %v2427
        %2832 = vmatprep.subr.bf16.mxu0 %v2434
        %2833 = vmatpush1.bf16.msra.mxu0 %v2433
        %2834 = vmatprep.subr.bf16.mxu0 %v2440
        %2835 = vmatpush1.bf16.msra.mxu0 %v2439
        %2836 = vmatprep.subr.bf16.mxu0 %v2446
        %2837 = vmatpush1.bf16.msra.mxu0 %v2445
        %2838 = vmatprep.subr.bf16.mxu0 %v2452
        %2839 = vmatpush1.bf16.msra.mxu0 %v2451
        %2840 = vmatprep.subr.bf16.mxu0 %v2458
        %2841 = vmatpush1.bf16.msra.mxu0 %v2457
        %2842 = vmatprep.subr.bf16.mxu0 %v2464
        %2843 = vmatpush1.bf16.msra.mxu0 %v2463
        %2844 = vmatprep.subr.bf16.mxu0 %v2470
        %2845 = vmatpush1.bf16.msra.mxu0 %v2469
        %2846 = vmatprep.subr.bf16.mxu0 %v2476
        %2847 = vmatpush1.bf16.msra.mxu0 %v2475
        %2848 = vmatprep.subr.bf16.mxu0 %v2482
        %2849 = vmatpush1.bf16.msra.mxu0 %v2481
        %2850 = vmatprep.subr.bf16.mxu0 %v2488
        %2851 = vmatpush1.bf16.msra.mxu0 %v2487
        %2852 = vmatprep.subr.bf16.mxu0 %v2494
        %2853 = vmatpush1.bf16.msra.mxu0 %v2493
        %2854 = vmatprep.subr.bf16.mxu0 %v2500
        %2855 = vmatpush1.bf16.msra.mxu0 %v2499
        %2856 = vmatprep.mubr.bf16.mxu0 %v1510
        %2857 = vmatmul.mubr.bf16.gmra.mrb[0].mxu0 %v1509
        %v2858 = vpop.f32.mrb[0].mxu0
        %v2859 = vadd.f32 %v2816, %v2858
        %v2860 = vpop.f32.mrb[0].mxu0
        %v2861 = vadd.f32 %v2818, %v2860
        %v2862 = vpop.f32.mrb[0].mxu0
        %v2863 = vadd.f32 %v2820, %v2862
        %v2864 = vpop.f32.mrb[0].mxu0
        %v2865 = vadd.f32 %v2822, %v2864
        %2866 = vdwg.mxu0
        %2867 = vmatprep.subr.bf16.mxu0 %v2316
        %2868 = vmatpush1.bf16.msra.mxu0 %v2315
        %2869 = vmatprep.subr.bf16.mxu0 %v2322
        %2870 = vmatpush1.bf16.msra.mxu0 %v2321
        %2871 = vmatprep.subr.bf16.mxu0 %v2328
        %2872 = vmatpush1.bf16.msra.mxu0 %v2327
        %2873 = vmatprep.subr.bf16.mxu0 %v2334
        %2874 = vmatpush1.bf16.msra.mxu0 %v2333
        %2875 = vmatprep.subr.bf16.mxu0 %v2340
        %2876 = vmatpush1.bf16.msra.mxu0 %v2339
        %2877 = vmatprep.subr.bf16.mxu0 %v2346
        %2878 = vmatpush1.bf16.msra.mxu0 %v2345
        %2879 = vmatprep.subr.bf16.mxu0 %v2352
        %2880 = vmatpush1.bf16.msra.mxu0 %v2351
        %2881 = vmatprep.subr.bf16.mxu0 %v2358
        %2882 = vmatpush1.bf16.msra.mxu0 %v2357
        %2883 = vmatprep.subr.bf16.mxu0 %v2364
        %2884 = vmatpush1.bf16.msra.mxu0 %v2363
        %2885 = vmatprep.subr.bf16.mxu0 %v2370
        %2886 = vmatpush1.bf16.msra.mxu0 %v2369
        %2887 = vmatprep.subr.bf16.mxu0 %v2376
        %2888 = vmatpush1.bf16.msra.mxu0 %v2375
        %2889 = vmatprep.subr.bf16.mxu0 %v2382
        %2890 = vmatpush1.bf16.msra.mxu0 %v2381
        %2891 = vmatprep.subr.bf16.mxu0 %v2388
        %2892 = vmatpush1.bf16.msra.mxu0 %v2387
        %2893 = vmatprep.subr.bf16.mxu0 %v2394
        %2894 = vmatpush1.bf16.msra.mxu0 %v2393
        %2895 = vmatprep.subr.bf16.mxu0 %v2400
        %2896 = vmatpush1.bf16.msra.mxu0 %v2399
        %2897 = vmatprep.subr.bf16.mxu0 %v2406
        %2898 = vmatpush1.bf16.msra.mxu0 %v2405
        %2899 = vmatprep.mubr.bf16.mxu0 %v1508
        %2900 = vmatmul.mubr.bf16.gmra.mrb[0].mxu0 %v1507
        %v2901 = vpop.f32.mrb[0].mxu0
        %v2902 = vadd.f32 %v1724, %v2901
        %v2903 = vpop.f32.mrb[0].mxu0
        %v2904 = vadd.f32 %v1728, %v2903
        %v2905 = vpop.f32.mrb[0].mxu0
        %v2906 = vadd.f32 %v1724, %v2905
        %v2907 = vpop.f32.mrb[0].mxu0
        %v2908 = vadd.f32 %v1728, %v2907
        %2909 = vdwg.mxu0
        %2910 = vmatprep.subr.bf16.mxu0 %v2412
        %2911 = vmatpush1.bf16.msra.mxu0 %v2411
        %2912 = vmatprep.subr.bf16.mxu0 %v2418
        %2913 = vmatpush1.bf16.msra.mxu0 %v2417
        %2914 = vmatprep.subr.bf16.mxu0 %v2424
        %2915 = vmatpush1.bf16.msra.mxu0 %v2423
        %2916 = vmatprep.subr.bf16.mxu0 %v2430
        %2917 = vmatpush1.bf16.msra.mxu0 %v2429
        %2918 = vmatprep.subr.bf16.mxu0 %v2436
        %2919 = vmatpush1.bf16.msra.mxu0 %v2435
        %2920 = vmatprep.subr.bf16.mxu0 %v2442
        %2921 = vmatpush1.bf16.msra.mxu0 %v2441
        %2922 = vmatprep.subr.bf16.mxu0 %v2448
        %2923 = vmatpush1.bf16.msra.mxu0 %v2447
        %2924 = vmatprep.subr.bf16.mxu0 %v2454
        %2925 = vmatpush1.bf16.msra.mxu0 %v2453
        %2926 = vmatprep.subr.bf16.mxu0 %v2460
        %2927 = vmatpush1.bf16.msra.mxu0 %v2459
        %2928 = vmatprep.subr.bf16.mxu0 %v2466
        %2929 = vmatpush1.bf16.msra.mxu0 %v2465
        %2930 = vmatprep.subr.bf16.mxu0 %v2472
        %2931 = vmatpush1.bf16.msra.mxu0 %v2471
        %2932 = vmatprep.subr.bf16.mxu0 %v2478
        %2933 = vmatpush1.bf16.msra.mxu0 %v2477
        %2934 = vmatprep.subr.bf16.mxu0 %v2484
        %2935 = vmatpush1.bf16.msra.mxu0 %v2483
        %2936 = vmatprep.subr.bf16.mxu0 %v2490
        %2937 = vmatpush1.bf16.msra.mxu0 %v2489
        %2938 = vmatprep.subr.bf16.mxu0 %v2496
        %2939 = vmatpush1.bf16.msra.mxu0 %v2495
        %2940 = vmatprep.subr.bf16.mxu0 %v2502
        %2941 = vmatpush1.bf16.msra.mxu0 %v2501
        %2942 = vmatprep.mubr.bf16.mxu0 %v1510
        %2943 = vmatmul.mubr.bf16.gmra.mrb[0].mxu0 %v1509
        %v2944 = vpop.f32.mrb[0].mxu0
        %v2945 = vadd.f32 %v2902, %v2944
        %v2946 = vpop.f32.mrb[0].mxu0
        %v2947 = vadd.f32 %v2904, %v2946
        %v2948 = vpop.f32.mrb[0].mxu0
        %v2949 = vadd.f32 %v2906, %v2948
        %v2950 = vpop.f32.mrb[0].mxu0
        %v2951 = vadd.f32 %v2908, %v2950
        %2952 = vdwg.mxu0
        %v2953 = vmax.f32 %v2773, 0.0
        %v2954 = vmax.f32 %v2775, 0.0
        %v2955 = vmax.f32 %v2859, 0.0
        %v2956 = vmax.f32 %v2861, 0.0
        %v2957 = vmax.f32 %v2945, 0.0
        %v2958 = vmax.f32 %v2947, 0.0
        %v2959 = vmax.f32 %v2777, 0.0
        %v2960 = vmax.f32 %v2779, 0.0
        %v2961 = vmax.f32 %v2863, 0.0
        %v2962 = vmax.f32 %v2865, 0.0
        %v2963 = vmax.f32 %v2949, 0.0
        %v2964 = vmax.f32 %v2951, 0.0
        %v2965 = vpack.c.bf16 %v2959, %v2953
        %v2966 = vpack.c.bf16 %v2960, %v2954
        %v2967 = vpack.c.bf16 %v2961, %v2955
        %v2968 = vpack.c.bf16 %v2962, %v2956
        %v2969 = vpack.c.bf16 %v2963, %v2957
        %v2970 = vpack.c.bf16 %v2964, %v2958
        %v2971 = vld [vmem:[%s5] sm:$0xf]
        %v2972 = vld [vmem:[%s5 + $0x4] sm:$0xf]
        %v2973 = vld [vmem:[%s5 + $0x8] sm:$0xf]
        %v2974 = vld [vmem:[%s5 + $0xc] sm:$0xf]
        %v2975 = vld [vmem:[%s5 + $0x10] sm:$0xf]
        %v2976 = vld [vmem:[%s5 + $0x14] sm:$0xf]
        %v2977 = vld [vmem:[%s5 + $0x18] sm:$0xf]
        %v2978 = vld [vmem:[%s5 + $0x1c] sm:$0xf]
        %v2979 = vld [vmem:[%s5 + $0x20] sm:$0xf]
        %v2980 = vld [vmem:[%s5 + $0x24] sm:$0xf]
        %v2981 = vld [vmem:[%s5 + $0x28] sm:$0xf]
        %v2982 = vld [vmem:[%s5 + $0x2c] sm:$0xf]
        %v2983 = vld [vmem:[%s5 + $0x30] sm:$0xf]
        %v2984 = vld [vmem:[%s5 + $0x34] sm:$0xf]
        %v2985 = vld [vmem:[%s5 + $0x38] sm:$0xf]
        %v2986 = vld [vmem:[%s5 + $0x3c] sm:$0xf]
        %v2987 = vld [vmem:[%s5 + $0x40] sm:$0xf]
        %v2988 = vld [vmem:[%s5 + $0x44] sm:$0xf]
        %v2989 = vld [vmem:[%s5 + $0x48] sm:$0xf]
        %v2990 = vld [vmem:[%s5 + $0x4c] sm:$0xf]
        %v2991 = vld [vmem:[%s5 + $0x50] sm:$0xf]
        %v2992 = vld [vmem:[%s5 + $0x54] sm:$0xf]
        %v2993 = vld [vmem:[%s5 + $0x58] sm:$0xf]
        %v2994 = vld [vmem:[%s5 + $0x5c] sm:$0xf]
        %v2995 = vld [vmem:[%s5 + $0x60] sm:$0xf]
        %v2996 = vld [vmem:[%s5 + $0x64] sm:$0xf]
        %v2997 = vld [vmem:[%s5 + $0x68] sm:$0xf]
        %v2998 = vld [vmem:[%s5 + $0x6c] sm:$0xf]
        %v2999 = vld [vmem:[%s5 + $0x70] sm:$0xf]
        %v3000 = vld [vmem:[%s5 + $0x74] sm:$0xf]
        %v3001 = vld [vmem:[%s5 + $0x78] sm:$0xf]
        %v3002 = vld [vmem:[%s5 + $0x7c] sm:$0xf]
        %v3003 = vld [vmem:[%s5 + $0x80] sm:$0xf]
        %v3004 = vld [vmem:[%s5 + $0x84] sm:$0xf]
        %v3005 = vld [vmem:[%s5 + $0x88] sm:$0xf]
        %v3006 = vld [vmem:[%s5 + $0x8c] sm:$0xf]
        %v3007 = vld [vmem:[%s5 + $0x90] sm:$0xf]
        %v3008 = vld [vmem:[%s5 + $0x94] sm:$0xf]
        %v3009 = vld [vmem:[%s5 + $0x98] sm:$0xf]
        %v3010 = vld [vmem:[%s5 + $0x9c] sm:$0xf]
        %v3011 = vld [vmem:[%s5 + $0xa0] sm:$0xf]
        %v3012 = vld [vmem:[%s5 + $0xa4] sm:$0xf]
        %v3013 = vld [vmem:[%s5 + $0xa8] sm:$0xf]
        %v3014 = vld [vmem:[%s5 + $0xac] sm:$0xf]
        %v3015 = vld [vmem:[%s5 + $0xb0] sm:$0xf]
        %v3016 = vld [vmem:[%s5 + $0xb4] sm:$0xf]
        %v3017 = vld [vmem:[%s5 + $0xb8] sm:$0xf]
        %v3018 = vld [vmem:[%s5 + $0xbc] sm:$0xf]
        %v3019 = vld [vmem:[%s5 + $0xc0] sm:$0xf]
        %v3020 = vld [vmem:[%s5 + $0xc4] sm:$0xf]
        %v3021 = vld [vmem:[%s5 + $0xc8] sm:$0xf]
        %v3022 = vld [vmem:[%s5 + $0xcc] sm:$0xf]
        %v3023 = vld [vmem:[%s5 + $0xd0] sm:$0xf]
        %v3024 = vld [vmem:[%s5 + $0xd4] sm:$0xf]
        %v3025 = vld [vmem:[%s5 + $0xd8] sm:$0xf]
        %v3026 = vld [vmem:[%s5 + $0xdc] sm:$0xf]
        %v3027 = vld [vmem:[%s5 + $0xe0] sm:$0xf]
        %v3028 = vld [vmem:[%s5 + $0xe4] sm:$0xf]
        %v3029 = vld [vmem:[%s5 + $0xe8] sm:$0xf]
        %v3030 = vld [vmem:[%s5 + $0xec] sm:$0xf]
        %v3031 = vld [vmem:[%s5 + $0xf0] sm:$0xf]
        %v3032 = vld [vmem:[%s5 + $0xf4] sm:$0xf]
        %v3033 = vld [vmem:[%s5 + $0xf8] sm:$0xf]
        %v3034 = vld [vmem:[%s5 + $0xfc] sm:$0xf]
        %v3035 = vld [vmem:[%s5 + $0x100] sm:$0xf]
        %v3036 = vld [vmem:[%s5 + $0x104] sm:$0xf]
        %v3037 = vld [vmem:[%s5 + $0x108] sm:$0xf]
        %v3038 = vld [vmem:[%s5 + $0x10c] sm:$0xf]
        %v3039 = vld [vmem:[%s5 + $0x110] sm:$0xf]
        %v3040 = vld [vmem:[%s5 + $0x114] sm:$0xf]
        %v3041 = vld [vmem:[%s5 + $0x118] sm:$0xf]
        %v3042 = vld [vmem:[%s5 + $0x11c] sm:$0xf]
        %v3043 = vld [vmem:[%s5 + $0x120] sm:$0xf]
        %v3044 = vld [vmem:[%s5 + $0x124] sm:$0xf]
        %v3045 = vld [vmem:[%s5 + $0x128] sm:$0xf]
        %v3046 = vld [vmem:[%s5 + $0x12c] sm:$0xf]
        %v3047 = vld [vmem:[%s5 + $0x130] sm:$0xf]
        %v3048 = vld [vmem:[%s5 + $0x134] sm:$0xf]
        %v3049 = vld [vmem:[%s5 + $0x138] sm:$0xf]
        %v3050 = vld [vmem:[%s5 + $0x13c] sm:$0xf]
        %v3051 = vld [vmem:[%s5 + $0x140] sm:$0xf]
        %v3052 = vld [vmem:[%s5 + $0x144] sm:$0xf]
        %v3053 = vld [vmem:[%s5 + $0x148] sm:$0xf]
        %v3054 = vld [vmem:[%s5 + $0x14c] sm:$0xf]
        %v3055 = vld [vmem:[%s5 + $0x150] sm:$0xf]
        %v3056 = vld [vmem:[%s5 + $0x154] sm:$0xf]
        %v3057 = vld [vmem:[%s5 + $0x158] sm:$0xf]
        %v3058 = vld [vmem:[%s5 + $0x15c] sm:$0xf]
        %v3059 = vld [vmem:[%s5 + $0x160] sm:$0xf]
        %v3060 = vld [vmem:[%s5 + $0x164] sm:$0xf]
        %v3061 = vld [vmem:[%s5 + $0x168] sm:$0xf]
        %v3062 = vld [vmem:[%s5 + $0x16c] sm:$0xf]
        %v3063 = vld [vmem:[%s5 + $0x170] sm:$0xf]
        %v3064 = vld [vmem:[%s5 + $0x174] sm:$0xf]
        %v3065 = vld [vmem:[%s5 + $0x178] sm:$0xf]
        %v3066 = vld [vmem:[%s5 + $0x17c] sm:$0xf]
        %v3067 = vld [vmem:[%s6] sm:$0x1]
        %v3069 = vlaneseq
        %v3070 = vshrl.u32 %v3069, 7
        %v3071 = vsub.s32 0, %v3070
        %v3072 = vrot.slane %v3067, %v3071
        %v3170 = vunpack.c.l.b16 %v2971
        %v3171 = vunpack.c.l.b16 %v2972
        %v3172 = vunpack.c.l.b16 %v2973
        %v3173 = vunpack.c.l.b16 %v2974
        %v3174 = vunpack.c.l.b16 %v2975
        %v3175 = vunpack.c.l.b16 %v2976
        %v3176 = vunpack.c.l.b16 %v2977
        %v3177 = vunpack.c.l.b16 %v2978
        %v3178 = vunpack.c.l.b16 %v2979
        %v3179 = vunpack.c.l.b16 %v2980
        %v3180 = vunpack.c.l.b16 %v2981
        %v3181 = vunpack.c.l.b16 %v2982
        %v3182 = vunpack.c.l.b16 %v2983
        %v3183 = vunpack.c.l.b16 %v2984
        %v3184 = vunpack.c.l.b16 %v2985
        %v3185 = vunpack.c.l.b16 %v2986
        %v3186 = vunpack.c.l.b16 %v2987
        %v3187 = vunpack.c.l.b16 %v2988
        %v3188 = vunpack.c.l.b16 %v2989
        %v3189 = vunpack.c.l.b16 %v2990
        %v3190 = vunpack.c.l.b16 %v2991
        %v3191 = vunpack.c.l.b16 %v2992
        %v3192 = vunpack.c.l.b16 %v2993
        %v3193 = vunpack.c.l.b16 %v2994
        %v3194 = vunpack.c.l.b16 %v2995
        %v3195 = vunpack.c.l.b16 %v2996
        %v3196 = vunpack.c.l.b16 %v2997
        %v3197 = vunpack.c.l.b16 %v2998
        %v3198 = vunpack.c.l.b16 %v2999
        %v3199 = vunpack.c.l.b16 %v3000
        %v3200 = vunpack.c.l.b16 %v3001
        %v3201 = vunpack.c.l.b16 %v3002
        %v3202 = vunpack.c.l.b16 %v3003
        %v3203 = vunpack.c.l.b16 %v3004
        %v3204 = vunpack.c.l.b16 %v3005
        %v3205 = vunpack.c.l.b16 %v3006
        %v3206 = vunpack.c.l.b16 %v3007
        %v3207 = vunpack.c.l.b16 %v3008
        %v3208 = vunpack.c.l.b16 %v3009
        %v3209 = vunpack.c.l.b16 %v3010
        %v3210 = vunpack.c.l.b16 %v3011
        %v3211 = vunpack.c.l.b16 %v3012
        %v3212 = vunpack.c.l.b16 %v3013
        %v3213 = vunpack.c.l.b16 %v3014
        %v3214 = vunpack.c.l.b16 %v3015
        %v3215 = vunpack.c.l.b16 %v3016
        %v3216 = vunpack.c.l.b16 %v3017
        %v3217 = vunpack.c.l.b16 %v3018
        %v3218 = vunpack.c.l.b16 %v3019
        %v3219 = vunpack.c.l.b16 %v3020
        %v3220 = vunpack.c.l.b16 %v3021
        %v3221 = vunpack.c.l.b16 %v3022
        %v3222 = vunpack.c.l.b16 %v3023
        %v3223 = vunpack.c.l.b16 %v3024
        %v3224 = vunpack.c.l.b16 %v3025
        %v3225 = vunpack.c.l.b16 %v3026
        %v3226 = vunpack.c.l.b16 %v3027
        %v3227 = vunpack.c.l.b16 %v3028
        %v3228 = vunpack.c.l.b16 %v3029
        %v3229 = vunpack.c.l.b16 %v3030
        %v3230 = vunpack.c.l.b16 %v3031
        %v3231 = vunpack.c.l.b16 %v3032
        %v3232 = vunpack.c.l.b16 %v3033
        %v3233 = vunpack.c.l.b16 %v3034
        %v3234 = vunpack.c.l.b16 %v3035
        %v3235 = vunpack.c.l.b16 %v3036
        %v3236 = vunpack.c.l.b16 %v3037
        %v3237 = vunpack.c.l.b16 %v3038
        %v3238 = vunpack.c.l.b16 %v3039
        %v3239 = vunpack.c.l.b16 %v3040
        %v3240 = vunpack.c.l.b16 %v3041
        %v3241 = vunpack.c.l.b16 %v3042
        %v3242 = vunpack.c.l.b16 %v3043
        %v3243 = vunpack.c.l.b16 %v3044
        %v3244 = vunpack.c.l.b16 %v3045
        %v3245 = vunpack.c.l.b16 %v3046
        %v3246 = vunpack.c.l.b16 %v3047
        %v3247 = vunpack.c.l.b16 %v3048
        %v3248 = vunpack.c.l.b16 %v3049
        %v3249 = vunpack.c.l.b16 %v3050
        %v3250 = vunpack.c.l.b16 %v3051
        %v3251 = vunpack.c.l.b16 %v3052
        %v3252 = vunpack.c.l.b16 %v3053
        %v3253 = vunpack.c.l.b16 %v3054
        %v3254 = vunpack.c.l.b16 %v3055
        %v3255 = vunpack.c.l.b16 %v3056
        %v3256 = vunpack.c.l.b16 %v3057
        %v3257 = vunpack.c.l.b16 %v3058
        %v3258 = vunpack.c.l.b16 %v3059
        %v3259 = vunpack.c.l.b16 %v3060
        %v3260 = vunpack.c.l.b16 %v3061
        %v3261 = vunpack.c.l.b16 %v3062
        %v3262 = vunpack.c.l.b16 %v3063
        %v3263 = vunpack.c.l.b16 %v3064
        %v3264 = vunpack.c.l.b16 %v3065
        %v3265 = vunpack.c.l.b16 %v3066
        %v3266 = vpack.c.b16 %v3171, %v3170
        %v3267 = vpack.c.b16 %v3173, %v3172
        %v3268 = vpack.c.b16 %v3175, %v3174
        %v3269 = vpack.c.b16 %v3177, %v3176
        %v3270 = vpack.c.b16 %v3179, %v3178
        %v3271 = vpack.c.b16 %v3181, %v3180
        %v3272 = vpack.c.b16 %v3183, %v3182
        %v3273 = vpack.c.b16 %v3185, %v3184
        %v3274 = vpack.c.b16 %v3187, %v3186
        %v3275 = vpack.c.b16 %v3189, %v3188
        %v3276 = vpack.c.b16 %v3191, %v3190
        %v3277 = vpack.c.b16 %v3193, %v3192
        %v3278 = vpack.c.b16 %v3195, %v3194
        %v3279 = vpack.c.b16 %v3197, %v3196
        %v3280 = vpack.c.b16 %v3199, %v3198
        %v3281 = vpack.c.b16 %v3201, %v3200
        %v3282 = vpack.c.b16 %v3203, %v3202
        %v3283 = vpack.c.b16 %v3205, %v3204
        %v3284 = vpack.c.b16 %v3207, %v3206
        %v3285 = vpack.c.b16 %v3209, %v3208
        %v3286 = vpack.c.b16 %v3211, %v3210
        %v3287 = vpack.c.b16 %v3213, %v3212
        %v3288 = vpack.c.b16 %v3215, %v3214
        %v3289 = vpack.c.b16 %v3217, %v3216
        %v3290 = vpack.c.b16 %v3219, %v3218
        %v3291 = vpack.c.b16 %v3221, %v3220
        %v3292 = vpack.c.b16 %v3223, %v3222
        %v3293 = vpack.c.b16 %v3225, %v3224
        %v3294 = vpack.c.b16 %v3227, %v3226
        %v3295 = vpack.c.b16 %v3229, %v3228
        %v3296 = vpack.c.b16 %v3231, %v3230
        %v3297 = vpack.c.b16 %v3233, %v3232
        %v3298 = vpack.c.b16 %v3235, %v3234
        %v3299 = vpack.c.b16 %v3237, %v3236
        %v3300 = vpack.c.b16 %v3239, %v3238
        %v3301 = vpack.c.b16 %v3241, %v3240
        %v3302 = vpack.c.b16 %v3243, %v3242
        %v3303 = vpack.c.b16 %v3245, %v3244
        %v3304 = vpack.c.b16 %v3247, %v3246
        %v3305 = vpack.c.b16 %v3249, %v3248
        %v3306 = vpack.c.b16 %v3251, %v3250
        %v3307 = vpack.c.b16 %v3253, %v3252
        %v3308 = vpack.c.b16 %v3255, %v3254
        %v3309 = vpack.c.b16 %v3257, %v3256
        %v3310 = vpack.c.b16 %v3259, %v3258
        %v3311 = vpack.c.b16 %v3261, %v3260
        %v3312 = vpack.c.b16 %v3263, %v3262
        %v3313 = vpack.c.b16 %v3265, %v3264
        %3362 = vmatprep.subr.bf16.mxu0 0
        %3363 = vmatpush1.bf16.msra.mxu0 %v3266
        %3364 = vmatprep.subr.bf16.mxu0 0
        %3365 = vmatpush1.bf16.msra.mxu0 %v3267
        %3366 = vmatprep.subr.bf16.mxu0 0
        %3367 = vmatpush1.bf16.msra.mxu0 %v3268
        %3368 = vmatprep.subr.bf16.mxu0 0
        %3369 = vmatpush1.bf16.msra.mxu0 %v3269
        %3370 = vmatprep.subr.bf16.mxu0 0
        %3371 = vmatpush1.bf16.msra.mxu0 %v3270
        %3372 = vmatprep.subr.bf16.mxu0 0
        %3373 = vmatpush1.bf16.msra.mxu0 %v3271
        %3374 = vmatprep.subr.bf16.mxu0 0
        %3375 = vmatpush1.bf16.msra.mxu0 %v3272
        %3376 = vmatprep.subr.bf16.mxu0 0
        %3377 = vmatpush1.bf16.msra.mxu0 %v3273
        %3378 = vmatprep.subr.bf16.mxu0 0
        %3379 = vmatpush1.bf16.msra.mxu0 %v3274
        %3380 = vmatprep.subr.bf16.mxu0 0
        %3381 = vmatpush1.bf16.msra.mxu0 %v3275
        %3382 = vmatprep.subr.bf16.mxu0 0
        %3383 = vmatpush1.bf16.msra.mxu0 %v3276
        %3384 = vmatprep.subr.bf16.mxu0 0
        %3385 = vmatpush1.bf16.msra.mxu0 %v3277
        %3386 = vmatprep.subr.bf16.mxu0 0
        %3387 = vmatpush1.bf16.msra.mxu0 %v3278
        %3388 = vmatprep.subr.bf16.mxu0 0
        %3389 = vmatpush1.bf16.msra.mxu0 %v3279
        %3390 = vmatprep.subr.bf16.mxu0 0
        %3391 = vmatpush1.bf16.msra.mxu0 %v3280
        %3392 = vmatprep.subr.bf16.mxu0 0
        %3393 = vmatpush1.bf16.msra.mxu0 %v3281
        %3394 = vmatprep.mubr.bf16.mxu0 %v2966
        %3395 = vmatmul.mubr.bf16.gmra.mrb[0].mxu0 %v2965
        %v3396 = vpop.f32.mrb[0].mxu0
        %v3397 = vadd.f32 %v3072, %v3396
        %v3398 = vpop.f32.mrb[0].mxu0
        %v3399 = vpop.f32.mrb[0].mxu0
        %v3400 = vadd.f32 %v3072, %v3399
        %v3401 = vpop.f32.mrb[0].mxu0
        %3402 = vdwg.mxu0
        %3403 = vmatprep.subr.bf16.mxu0 0
        %3404 = vmatpush1.bf16.msra.mxu0 %v3282
        %3405 = vmatprep.subr.bf16.mxu0 0
        %3406 = vmatpush1.bf16.msra.mxu0 %v3283
        %3407 = vmatprep.subr.bf16.mxu0 0
        %3408 = vmatpush1.bf16.msra.mxu0 %v3284
        %3409 = vmatprep.subr.bf16.mxu0 0
        %3410 = vmatpush1.bf16.msra.mxu0 %v3285
        %3411 = vmatprep.subr.bf16.mxu0 0
        %3412 = vmatpush1.bf16.msra.mxu0 %v3286
        %3413 = vmatprep.subr.bf16.mxu0 0
        %3414 = vmatpush1.bf16.msra.mxu0 %v3287
        %3415 = vmatprep.subr.bf16.mxu0 0
        %3416 = vmatpush1.bf16.msra.mxu0 %v3288
        %3417 = vmatprep.subr.bf16.mxu0 0
        %3418 = vmatpush1.bf16.msra.mxu0 %v3289
        %3419 = vmatprep.subr.bf16.mxu0 0
        %3420 = vmatpush1.bf16.msra.mxu0 %v3290
        %3421 = vmatprep.subr.bf16.mxu0 0
        %3422 = vmatpush1.bf16.msra.mxu0 %v3291
        %3423 = vmatprep.subr.bf16.mxu0 0
        %3424 = vmatpush1.bf16.msra.mxu0 %v3292
        %3425 = vmatprep.subr.bf16.mxu0 0
        %3426 = vmatpush1.bf16.msra.mxu0 %v3293
        %3427 = vmatprep.subr.bf16.mxu0 0
        %3428 = vmatpush1.bf16.msra.mxu0 %v3294
        %3429 = vmatprep.subr.bf16.mxu0 0
        %3430 = vmatpush1.bf16.msra.mxu0 %v3295
        %3431 = vmatprep.subr.bf16.mxu0 0
        %3432 = vmatpush1.bf16.msra.mxu0 %v3296
        %3433 = vmatprep.subr.bf16.mxu0 0
        %3434 = vmatpush1.bf16.msra.mxu0 %v3297
        %3435 = vmatprep.mubr.bf16.mxu0 %v2968
        %3436 = vmatmul.mubr.bf16.gmra.mrb[0].mxu0 %v2967
        %v3437 = vpop.f32.mrb[0].mxu0
        %v3438 = vadd.f32 %v3397, %v3437
        %v3439 = vpop.f32.mrb[0].mxu0
        %v3440 = vpop.f32.mrb[0].mxu0
        %v3441 = vadd.f32 %v3400, %v3440
        %v3442 = vpop.f32.mrb[0].mxu0
        %3443 = vdwg.mxu0
        %3444 = vmatprep.subr.bf16.mxu0 0
        %3445 = vmatpush1.bf16.msra.mxu0 %v3298
        %3446 = vmatprep.subr.bf16.mxu0 0
        %3447 = vmatpush1.bf16.msra.mxu0 %v3299
        %3448 = vmatprep.subr.bf16.mxu0 0
        %3449 = vmatpush1.bf16.msra.mxu0 %v3300
        %3450 = vmatprep.subr.bf16.mxu0 0
        %3451 = vmatpush1.bf16.msra.mxu0 %v3301
        %3452 = vmatprep.subr.bf16.mxu0 0
        %3453 = vmatpush1.bf16.msra.mxu0 %v3302
        %3454 = vmatprep.subr.bf16.mxu0 0
        %3455 = vmatpush1.bf16.msra.mxu0 %v3303
        %3456 = vmatprep.subr.bf16.mxu0 0
        %3457 = vmatpush1.bf16.msra.mxu0 %v3304
        %3458 = vmatprep.subr.bf16.mxu0 0
        %3459 = vmatpush1.bf16.msra.mxu0 %v3305
        %3460 = vmatprep.subr.bf16.mxu0 0
        %3461 = vmatpush1.bf16.msra.mxu0 %v3306
        %3462 = vmatprep.subr.bf16.mxu0 0
        %3463 = vmatpush1.bf16.msra.mxu0 %v3307
        %3464 = vmatprep.subr.bf16.mxu0 0
        %3465 = vmatpush1.bf16.msra.mxu0 %v3308
        %3466 = vmatprep.subr.bf16.mxu0 0
        %3467 = vmatpush1.bf16.msra.mxu0 %v3309
        %3468 = vmatprep.subr.bf16.mxu0 0
        %3469 = vmatpush1.bf16.msra.mxu0 %v3310
        %3470 = vmatprep.subr.bf16.mxu0 0
        %3471 = vmatpush1.bf16.msra.mxu0 %v3311
        %3472 = vmatprep.subr.bf16.mxu0 0
        %3473 = vmatpush1.bf16.msra.mxu0 %v3312
        %3474 = vmatprep.subr.bf16.mxu0 0
        %3475 = vmatpush1.bf16.msra.mxu0 %v3313
        %3476 = vmatprep.mubr.bf16.mxu0 %v2970
        %3477 = vmatmul.mubr.bf16.gmra.mrb[0].mxu0 %v2969
        %v3478 = vpop.f32.mrb[0].mxu0
        %v3479 = vadd.f32 %v3438, %v3478
        %v3480 = vpop.f32.mrb[0].mxu0
        %v3481 = vpop.f32.mrb[0].mxu0
        %v3482 = vadd.f32 %v3441, %v3481
        %v3483 = vpop.f32.mrb[0].mxu0
        %3484 = vdwg.mxu0
        %3485 = vst [vmem:[%s841] sm:$0xff] %v3479
        %3486 = vst [vmem:[%s841 + $0x8] sm:$0xff] %v3482
        %s3487 = sand.u32 %s182, 1
        %s3488 = scalar_lea.sflag [#allocation5], %s3487
        %s3489 = sand.u32 %s182, 1
        %s3490 = smul.addr %s3489, 16
        %s3491 = scalar_lea.vmem [#allocation6], %s3490
        // Predicated region
        $region94: #{tpu_custom_call.1} parent=84 // pred_check
          %p3492 = pneg %p192
        $region95: #{tpu_custom_call.1} parent=84 // pred_check_branch
          %3494 = sbr.rel (%p3492) target = $region97
        $region96: #{tpu_custom_call.1} parent=84 // pred_region
          %s3495 = smul.u32 2, %s22
          %s3497 = ssub.s32 256, 256
          %3498 = vsyncadd %s3488, %s3497
          %s3499 = smul.addr %s3495, 128
          %s3500 = scalar_lea.hbm %s7, %s3499
          %s3501 = sshll.u32 %s3491, 4
          %s3502 = int_to_ptr.vmem [resolvable:$true] %s3501
          %3507 = dma.vmem_to_hbm [thread:$0]  %s3502, 256, %s3500, %s3488, 128, 128, 8
        $region97: #{tpu_custom_call.1} parent=84 // pred_fallthru
          _
      $region85: #{tpu_custom_call.1} parent=5 // pred_fallthru
        _
      %p3508 = scmp.le.s32.totalorder 2, %s17
      // Predicated region
      $region98: #{tpu_custom_call.1} parent=5 // pred_check
        %p3509 = pneg %p3508
      $region99: #{tpu_custom_call.1} parent=5 // pred_check_branch
        %3511 = sbr.rel (%p3509) target = $region101
      $region100: #{tpu_custom_call.1} parent=5 // pred_region
        %s3512 = ssub.s32 %s17, 2
        // Predicated region
        $region102: #{tpu_custom_call.1} parent=100 // pred_check
          %p3513 = pneg %p198
        $region103: #{tpu_custom_call.1} parent=100 // pred_check_branch
          %3515 = sbr.rel (%p3513) target = $region105
        $region104: #{tpu_custom_call.1} parent=100 // pred_region
          %s3516 = sand.u32 %s183, 1
          %s3517 = scalar_lea.sflag [#allocation5], %s3516
          %s3518 = sand.u32 %s183, 1
          %s3519 = smul.addr %s3518, 16
          %s3520 = scalar_lea.vmem [#allocation6], %s3519
          %3521 = dma.done %s3517, 256
        $region105: #{tpu_custom_call.1} parent=100 // pred_fallthru
          _
      $region101: #{tpu_custom_call.1} parent=5 // pred_fallthru
        _
    $region6: #{tpu_custom_call.1} parent=1 // loop_footer
      %s21 = sadd.s32 1, %s17
    $region7: #{tpu_custom_call.1} parent=1 // loop_footer_branch
      %16 = sbr.rel target = $region3
    $region8: #{tpu_custom_call.1} parent=1 // loop_exit
      _
    %3522 = vsyncpa [#allocation4], 1
    %s3523 = scalar_lea.sflag [#allocation4], 1
    %3524 = vsyncpa %s3523, 1
    %3525 = vsyncpa [#allocation5], 1
    %s3526 = scalar_lea.sflag [#allocation5], 1
    %3527 = vsyncpa %s3526, 1

// kernel: tpu_custom_call.1
$region0: #{tpu_custom_call.1}
  #allocation0 [shape = 'u32[]', space=smem, size = 0x4, offset = 0x4, fixed_abs, tag = 'smem constant byte address 0x4 - core index']
  #allocation1 [shape = 'u32[144,128]{1,0:T(1,128)}', space=vmem, size = 0x12000, scoped, tag = 'internal scratch']
  %s0 = inlined_call_operand.vmem [shape: bf16[8,8,32,8], index: 0, kind: input, shape index: {}]
  %s1 = inlined_call_operand.vmem [shape: bf16[8,128], index: 1, kind: input, shape index: {}]
  %s2 = inlined_call_operand.vmem [shape: f32[1,512], index: 2, kind: input, shape index: {}]
  %s3 = inlined_call_operand.hbm [shape: bf16[512,768], index: 3, kind: input, shape index: {}]
  %s4 = inlined_call_operand.vmem [shape: f32[1,768], index: 4, kind: input, shape index: {}]
  %s5 = inlined_call_operand.vmem [shape: bf16[768,128], index: 5, kind: input, shape index: {}]
  %s6 = inlined_call_operand.vmem [shape: f32[1,128], index: 6, kind: input, shape index: {}]
  %s7 = inlined_call_operand.hbm [shape: f32[32,128], index: 7, kind: output, shape index: {}]
  %s8 = sld [smem:[#allocation0]]
  $region106: #{tpu_custom_call.1} parent=0
    _
  %s10 = ssub.s32 1, %s8
  %s11 = scalar_select 0, %s10, %s8
  $region1: #{tpu_custom_call.1} parent=0
    #allocation2 [shape = 'u8[524288]{0}', space=vmem, size = 0x80000, scoped, tag = 'input window, operand 0']
    #allocation3 [shape = 'u8[786432]{0}', space=vmem, size = 0xc0000, scoped, tag = 'input window, operand 3, single buffered']
    #allocation4 [shape = 's32[2]{0}', space=sflag, size = 0x8, scoped, tag = 'scoped memory for tpu_custom_call.1']
    #allocation5 [shape = 's32[2]{0}', space=sflag, size = 0x8, scoped, tag = 'scoped memory for tpu_custom_call.1']
    #allocation6 [shape = 'u8[16384]{0}', space=vmem, size = 0x4000, scoped, tag = 'output window, operand 0']
    %12 = vsyncpa [#allocation4], 0
    %13 = vsyncpa [#allocation5], 0
    %s14 = scalar_lea.sflag [#allocation5], 1
    %15 = vsyncpa %s14, 0
    loop: start=0, step=1, limit=4
    $region2: #{tpu_custom_call.1} parent=1 // loop_pre_header
      _
    $region3: #{tpu_custom_call.1} parent=1 // loop_header
      %s17 = sphi 0, %s21
      %p18 = scmp.ge.s32.totalorder %s17, 4
      %s27 = sphi 0, %s29
      %s30 = sphi 0, %s27
      %s31 = sphi 0, %s30
      %s47 = sphi 0, %s31
      %s51 = sphi 0, %s51
      %s53 = sphi 0, %s51
      %s54 = sphi 0, %s53
      %s68 = sphi 0, %s54
      %s72 = sphi 0, %s72
      %s74 = sphi 0, %s72
      %s75 = sphi 0, %s74
      %s89 = sphi 0, %s75
      %s93 = sphi 0, %s93
      %s95 = sphi 0, %s93
      %s96 = sphi 0, %s95
      %s110 = sphi 0, %s96
      %s114 = sphi 0, %s114
      %s116 = sphi 0, %s114
      %s117 = sphi 0, %s116
      %s131 = sphi 0, %s117
      %s135 = sphi 0, %s135
      %s137 = sphi 0, %s135
      %s138 = sphi 0, %s137
      %s152 = sphi 0, %s138
      %s156 = sphi 0, %s156
      %s158 = sphi 0, %s156
      %s159 = sphi 0, %s158
      %s173 = sphi 0, %s159
      %s179 = sphi 0, %s181
      %s182 = sphi 0, %s179
      %s183 = sphi 0, %s182
      %s199 = sphi 0, %s183
    $region4: #{tpu_custom_call.1} parent=1 // loop_header_branch
      %20 = sbr.rel (%p18) target = $region8
    $region5: #{tpu_custom_call.1} parent=1 // loop_body
      %s22 = ssub.s32 %s17, 1
      %s23 = ssub.s32 %s17, 2
      %s24 = sadd.s32 %s17, 1
      %s25 = ssub.s32 %s17, %s24
      %p26 = scmp.eq.s32.totalorder %s25, 0
      %s28 = sadd.s32 %s27, 1
      %s29 = scalar_select %p26, %s27, %s28
      %p32 = pneg %p26
      %p33 = scmp.eq.s32.totalorder %s17, 1
      %p34 = por %p32, %p33
      %p35 = scmp.ne.s32.totalorder %s27, %s30
      %p36 = scmp.eq.s32.totalorder %s17, 0
      %p37 = por %p35, %p36
      %p38 = scmp.ne.s32.totalorder %s27, %s30
      %p39 = scmp.eq.s32.totalorder %s22, 1
      %p40 = por %p38, %p39
      %p41 = scmp.ne.s32.totalorder %s30, %s31
      %p42 = scmp.eq.s32.totalorder %s22, 0
      %p43 = por %p41, %p42
      %p44 = scmp.ne.s32.totalorder %s30, %s31
      %p45 = scmp.eq.s32.totalorder %s23, 1
      %p46 = por %p44, %p45
      %p48 = scmp.ne.s32.totalorder %s31, %s47
      %p49 = scmp.eq.s32.totalorder %s23, 0
      %p50 = por %p48, %p49
      %s52 = sadd.s32 %s51, 1
      %p55 = scmp.eq.s32.totalorder %s17, 1
      %p56 = scmp.ne.s32.totalorder %s51, %s53
      %p57 = scmp.eq.s32.totalorder %s17, 0
      %p58 = por %p56, %p57
      %p59 = scmp.ne.s32.totalorder %s51, %s53
      %p60 = scmp.eq.s32.totalorder %s22, 1
      %p61 = por %p59, %p60
      %p62 = scmp.ne.s32.totalorder %s53, %s54
      %p63 = scmp.eq.s32.totalorder %s22, 0
      %p64 = por %p62, %p63
      %p65 = scmp.ne.s32.totalorder %s53, %s54
      %p66 = scmp.eq.s32.totalorder %s23, 1
      %p67 = por %p65, %p66
      %p69 = scmp.ne.s32.totalorder %s54, %s68
      %p70 = scmp.eq.s32.totalorder %s23, 0
      %p71 = por %p69, %p70
      %s73 = sadd.s32 %s72, 1
      %p76 = scmp.eq.s32.totalorder %s17, 1
      %p77 = scmp.ne.s32.totalorder %s72, %s74
      %p78 = scmp.eq.s32.totalorder %s17, 0
      %p79 = por %p77, %p78
      %p80 = scmp.ne.s32.totalorder %s72, %s74
      %p81 = scmp.eq.s32.totalorder %s22, 1
      %p82 = por %p80, %p81
      %p83 = scmp.ne.s32.totalorder %s74, %s75
      %p84 = scmp.eq.s32.totalorder %s22, 0
      %p85 = por %p83, %p84
      %p86 = scmp.ne.s32.totalorder %s74, %s75
      %p87 = scmp.eq.s32.totalorder %s23, 1
      %p88 = por %p86, %p87
      %p90 = scmp.ne.s32.totalorder %s75, %s89
      %p91 = scmp.eq.s32.totalorder %s23, 0
      %p92 = por %p90, %p91
      %s94 = sadd.s32 %s93, 1
      %p97 = scmp.eq.s32.totalorder %s17, 1
      %p98 = scmp.ne.s32.totalorder %s93, %s95
      %p99 = scmp.eq.s32.totalorder %s17, 0
      %p100 = por %p98, %p99
      %p101 = scmp.ne.s32.totalorder %s93, %s95
      %p102 = scmp.eq.s32.totalorder %s22, 1
      %p103 = por %p101, %p102
      %p104 = scmp.ne.s32.totalorder %s95, %s96
      %p105 = scmp.eq.s32.totalorder %s22, 0
      %p106 = por %p104, %p105
      %p107 = scmp.ne.s32.totalorder %s95, %s96
      %p108 = scmp.eq.s32.totalorder %s23, 1
      %p109 = por %p107, %p108
      %p111 = scmp.ne.s32.totalorder %s96, %s110
      %p112 = scmp.eq.s32.totalorder %s23, 0
      %p113 = por %p111, %p112
      %s115 = sadd.s32 %s114, 1
      %p118 = scmp.eq.s32.totalorder %s17, 1
      %p119 = scmp.ne.s32.totalorder %s114, %s116
      %p120 = scmp.eq.s32.totalorder %s17, 0
      %p121 = por %p119, %p120
      %p122 = scmp.ne.s32.totalorder %s114, %s116
      %p123 = scmp.eq.s32.totalorder %s22, 1
      %p124 = por %p122, %p123
      %p125 = scmp.ne.s32.totalorder %s116, %s117
      %p126 = scmp.eq.s32.totalorder %s22, 0
      %p127 = por %p125, %p126
      %p128 = scmp.ne.s32.totalorder %s116, %s117
      %p129 = scmp.eq.s32.totalorder %s23, 1
      %p130 = por %p128, %p129
      %p132 = scmp.ne.s32.totalorder %s117, %s131
      %p133 = scmp.eq.s32.totalorder %s23, 0
      %p134 = por %p132, %p133
      %s136 = sadd.s32 %s135, 1
      %p139 = scmp.eq.s32.totalorder %s17, 1
      %p140 = scmp.ne.s32.totalorder %s135, %s137
      %p141 = scmp.eq.s32.totalorder %s17, 0
      %p142 = por %p140, %p141
      %p143 = scmp.ne.s32.totalorder %s135, %s137
      %p144 = scmp.eq.s32.totalorder %s22, 1
      %p145 = por %p143, %p144
      %p146 = scmp.ne.s32.totalorder %s137, %s138
      %p147 = scmp.eq.s32.totalorder %s22, 0
      %p148 = por %p146, %p147
      %p149 = scmp.ne.s32.totalorder %s137, %s138
      %p150 = scmp.eq.s32.totalorder %s23, 1
      %p151 = por %p149, %p150
      %p153 = scmp.ne.s32.totalorder %s138, %s152
      %p154 = scmp.eq.s32.totalorder %s23, 0
      %p155 = por %p153, %p154
      %s157 = sadd.s32 %s156, 1
      %p160 = scmp.eq.s32.totalorder %s17, 1
      %p161 = scmp.ne.s32.totalorder %s156, %s158
      %p162 = scmp.eq.s32.totalorder %s17, 0
      %p163 = por %p161, %p162
      %p164 = scmp.ne.s32.totalorder %s156, %s158
      %p165 = scmp.eq.s32.totalorder %s22, 1
      %p166 = por %p164, %p165
      %p167 = scmp.ne.s32.totalorder %s158, %s159
      %p168 = scmp.eq.s32.totalorder %s22, 0
      %p169 = por %p167, %p168
      %p170 = scmp.ne.s32.totalorder %s158, %s159
      %p171 = scmp.eq.s32.totalorder %s23, 1
      %p172 = por %p170, %p171
      %p174 = scmp.ne.s32.totalorder %s159, %s173
      %p175 = scmp.eq.s32.totalorder %s23, 0
      %p176 = por %p174, %p175
      %s177 = ssub.s32 %s17, %s24
      %p178 = scmp.eq.s32.totalorder %s177, 0
      %s180 = sadd.s32 %s179, 1
      %s181 = scalar_select %p178, %s179, %s180
      %p184 = pneg %p178
      %p185 = scmp.eq.s32.totalorder %s17, 1
      %p186 = por %p184, %p185
      %p187 = scmp.ne.s32.totalorder %s179, %s182
      %p188 = scmp.eq.s32.totalorder %s17, 0
      %p189 = por %p187, %p188
      %p190 = scmp.ne.s32.totalorder %s179, %s182
      %p191 = scmp.eq.s32.totalorder %s22, 1
      %p192 = por %p190, %p191
      %p193 = scmp.ne.s32.totalorder %s182, %s183
      %p194 = scmp.eq.s32.totalorder %s22, 0
      %p195 = por %p193, %p194
      %p196 = scmp.ne.s32.totalorder %s182, %s183
      %p197 = scmp.eq.s32.totalorder %s23, 1
      %p198 = por %p196, %p197
      %p200 = scmp.ne.s32.totalorder %s183, %s199
      %p201 = scmp.eq.s32.totalorder %s23, 0
      %p202 = por %p200, %p201
      %p203 = scmp.le.s32.totalorder 1, %s17
      %p204 = scmp.lt.s32.totalorder %s17, 3
      %p205 = pnand %p203, %p204
      %p206 = pneg %p205
      // Predicated region
      $region9: #{tpu_custom_call.1} parent=5 // pred_check
        _
      $region10: #{tpu_custom_call.1} parent=5 // pred_check_branch
        %208 = sbr.rel (%p205) target = $region12
      $region11: #{tpu_custom_call.1} parent=5 // pred_region
        %s209 = ssub.s32 %s17, 1
        // Predicated region
        $region13: #{tpu_custom_call.1} parent=11 // pred_check
          %p210 = pneg %p64
        $region14: #{tpu_custom_call.1} parent=11 // pred_check_branch
          %212 = sbr.rel (%p210) target = $region16
        $region15: #{tpu_custom_call.1} parent=11 // pred_region
          _
        $region16: #{tpu_custom_call.1} parent=11 // pred_fallthru
          _
        // Predicated region
        $region17: #{tpu_custom_call.1} parent=11 // pred_check
          %p213 = pneg %p85
        $region18: #{tpu_custom_call.1} parent=11 // pred_check_branch
          %215 = sbr.rel (%p213) target = $region20
        $region19: #{tpu_custom_call.1} parent=11 // pred_region
          _
        $region20: #{tpu_custom_call.1} parent=11 // pred_fallthru
          _
        // Predicated region
        $region21: #{tpu_custom_call.1} parent=11 // pred_check
          %p216 = pneg %p106
        $region22: #{tpu_custom_call.1} parent=11 // pred_check_branch
          %218 = sbr.rel (%p216) target = $region24
        $region23: #{tpu_custom_call.1} parent=11 // pred_region
          %s220 = ssub.s32 24576, 24576
          %221 = vsyncadd [#allocation4], %s220
          %s222 = sshll.u32 [#allocation3], 4
          %s223 = int_to_ptr.vmem [resolvable:$true] %s222
          %228 = dma.hbm_to_vmem [thread:$0]  %s3, 24576, %s223, [#allocation4], 384, 384, 24
        $region24: #{tpu_custom_call.1} parent=11 // pred_fallthru
          _
        // Predicated region
        $region25: #{tpu_custom_call.1} parent=11 // pred_check
          %p229 = pneg %p127
        $region26: #{tpu_custom_call.1} parent=11 // pred_check_branch
          %231 = sbr.rel (%p229) target = $region28
        $region27: #{tpu_custom_call.1} parent=11 // pred_region
          _
        $region28: #{tpu_custom_call.1} parent=11 // pred_fallthru
          _
        // Predicated region
        $region29: #{tpu_custom_call.1} parent=11 // pred_check
          %p232 = pneg %p148
        $region30: #{tpu_custom_call.1} parent=11 // pred_check_branch
          %234 = sbr.rel (%p232) target = $region32
        $region31: #{tpu_custom_call.1} parent=11 // pred_region
          _
        $region32: #{tpu_custom_call.1} parent=11 // pred_fallthru
          _
        // Predicated region
        $region33: #{tpu_custom_call.1} parent=11 // pred_check
          %p235 = pneg %p169
        $region34: #{tpu_custom_call.1} parent=11 // pred_check_branch
          %237 = sbr.rel (%p235) target = $region36
        $region35: #{tpu_custom_call.1} parent=11 // pred_region
          _
        $region36: #{tpu_custom_call.1} parent=11 // pred_fallthru
          _
      $region12: #{tpu_custom_call.1} parent=5 // pred_fallthru
        _
      %p238 = scmp.lt.s32.totalorder %s17, 2
      // Predicated region
      $region37: #{tpu_custom_call.1} parent=5 // pred_check
        %p239 = pneg %p238
      $region38: #{tpu_custom_call.1} parent=5 // pred_check_branch
        %241 = sbr.rel (%p239) target = $region40
      $region39: #{tpu_custom_call.1} parent=5 // pred_region
        // Predicated region
        $region41: #{tpu_custom_call.1} parent=39 // pred_check
          %p242 = pneg %p37
        $region42: #{tpu_custom_call.1} parent=39 // pred_check_branch
          %244 = sbr.rel (%p242) target = $region44
        $region43: #{tpu_custom_call.1} parent=39 // pred_region
          %s245 = sand.u32 %s27, 1
          %s246 = sand.u32 %s27, 1
          %s247 = smul.addr %s246, 512
          %s248 = scalar_lea.vmem [#allocation2], %s247
          %s249 = smul.u32 2, %s17
          %s250 = smul.addr %s249, 4
          %s251 = scalar_lea.vmem %s0, %s250
          // Predicated region
          $region45: #{tpu_custom_call.1} parent=43 // pred_check
            _
          $region46: #{tpu_custom_call.1} parent=43 // pred_check_branch
            %253 = sbr.rel (0) target = $region48
          $region47: #{tpu_custom_call.1} parent=43 // pred_region
            // Predicated region
            $region49: #{tpu_custom_call.1} parent=47 // pred_check
              _
            $region50: #{tpu_custom_call.1} parent=47 // pred_check_branch
              %255 = sbr.rel target = $region52
            $region51: #{tpu_custom_call.1} parent=47 // pred_region
              // Predicated region
              $region64: #{tpu_custom_call.1} parent=51 // pred_check
                _
              $region65: #{tpu_custom_call.1} parent=51 // pred_check_branch
                %524 = sbr.rel (0) target = $region67
              $region66: #{tpu_custom_call.1} parent=51 // pred_region
                loop: start=0, step=1, limit=1
                $region68: #{tpu_custom_call.1} parent=66 // loop_pre_header
                  _
                $region69: #{tpu_custom_call.1} parent=66 // loop_header
                  %s526 = sphi 0, %s530
                  %p527 = scmp.ge.s32.totalorder %s526, 1
                  %s531 = sphi %s251, %s251
                  %s532 = sphi %s248, %s248
                $region70: #{tpu_custom_call.1} parent=66 // loop_header_branch
                  %529 = sbr.rel (%p527) target = $region74
                $region71: #{tpu_custom_call.1} parent=66 // loop_body
                  _
                $region72: #{tpu_custom_call.1} parent=66 // loop_footer
                  %s530 = sadd.s32 1, %s526
                $region73: #{tpu_custom_call.1} parent=66 // loop_footer_branch
                  %525 = sbr.rel target = $region69
                $region74: #{tpu_custom_call.1} parent=66 // loop_exit
                  _
                loop: start=0, step=1, limit=1
                $region75: #{tpu_custom_call.1} parent=66 // loop_pre_header
                  _
                $region76: #{tpu_custom_call.1} parent=66 // loop_header
                  %s535 = sphi 0, %s539
                  %p536 = scmp.ge.s32.totalorder %s535, 1
                  %s540 = sphi %s251, %s251
                  %s541 = sphi %s248, %s248
                $region77: #{tpu_custom_call.1} parent=66 // loop_header_branch
                  %538 = sbr.rel (%p536) target = $region81
                $region78: #{tpu_custom_call.1} parent=66 // loop_body
                  %v542 = vld [vmem:[%s540] sm:$0xf]
                  %543 = vst [vmem:[%s541] sm:$0xf] %v542
                  %v544 = vld [vmem:[%s540 + $0x4] sm:$0xf]
                  %545 = vst [vmem:[%s541 + $0x4] sm:$0xf] %v544
                  %v546 = vld [vmem:[%s540 + $0x10] sm:$0xf]
                  %547 = vst [vmem:[%s541 + $0x8] sm:$0xf] %v546
                  %v548 = vld [vmem:[%s540 + $0x14] sm:$0xf]
                  %549 = vst [vmem:[%s541 + $0xc] sm:$0xf] %v548
                  %v550 = vld [vmem:[%s540 + $0x20] sm:$0xf]
                  %551 = vst [vmem:[%s541 + $0x10] sm:$0xf] %v550
                  %v552 = vld [vmem:[%s540 + $0x24] sm:$0xf]
                  %553 = vst [vmem:[%s541 + $0x14] sm:$0xf] %v552
                  %v554 = vld [vmem:[%s540 + $0x30] sm:$0xf]
                  %555 = vst [vmem:[%s541 + $0x18] sm:$0xf] %v554
                  %v556 = vld [vmem:[%s540 + $0x34] sm:$0xf]
                  %557 = vst [vmem:[%s541 + $0x1c] sm:$0xf] %v556
                  %v558 = vld [vmem:[%s540 + $0x40] sm:$0xf]
                  %559 = vst [vmem:[%s541 + $0x20] sm:$0xf] %v558
                  %v560 = vld [vmem:[%s540 + $0x44] sm:$0xf]
                  %561 = vst [vmem:[%s541 + $0x24] sm:$0xf] %v560
                  %v562 = vld [vmem:[%s540 + $0x50] sm:$0xf]
                  %563 = vst [vmem:[%s541 + $0x28] sm:$0xf] %v562
                  %v564 = vld [vmem:[%s540 + $0x54] sm:$0xf]
                  %565 = vst [vmem:[%s541 + $0x2c] sm:$0xf] %v564
                  %v566 = vld [vmem:[%s540 + $0x60] sm:$0xf]
                  %567 = vst [vmem:[%s541 + $0x30] sm:$0xf] %v566
                  %v568 = vld [vmem:[%s540 + $0x64] sm:$0xf]
                  %569 = vst [vmem:[%s541 + $0x34] sm:$0xf] %v568
                  %v570 = vld [vmem:[%s540 + $0x70] sm:$0xf]
                  %571 = vst [vmem:[%s541 + $0x38] sm:$0xf] %v570
                  %v572 = vld [vmem:[%s540 + $0x74] sm:$0xf]
                  %573 = vst [vmem:[%s541 + $0x3c] sm:$0xf] %v572
                  %v574 = vld [vmem:[%s540 + $0x80] sm:$0xf]
                  %575 = vst [vmem:[%s541 + $0x40] sm:$0xf] %v574
                  %v576 = vld [vmem:[%s540 + $0x84] sm:$0xf]
                  %577 = vst [vmem:[%s541 + $0x44] sm:$0xf] %v576
                  %v578 = vld [vmem:[%s540 + $0x90] sm:$0xf]
                  %579 = vst [vmem:[%s541 + $0x48] sm:$0xf] %v578
                  %v580 = vld [vmem:[%s540 + $0x94] sm:$0xf]
                  %581 = vst [vmem:[%s541 + $0x4c] sm:$0xf] %v580
                  %v582 = vld [vmem:[%s540 + $0xa0] sm:$0xf]
                  %583 = vst [vmem:[%s541 + $0x50] sm:$0xf] %v582
                  %v584 = vld [vmem:[%s540 + $0xa4] sm:$0xf]
                  %585 = vst [vmem:[%s541 + $0x54] sm:$0xf] %v584
                  %v586 = vld [vmem:[%s540 + $0xb0] sm:$0xf]
                  %587 = vst [vmem:[%s541 + $0x58] sm:$0xf] %v586
                  %v588 = vld [vmem:[%s540 + $0xb4] sm:$0xf]
                  %589 = vst [vmem:[%s541 + $0x5c] sm:$0xf] %v588
                  %v590 = vld [vmem:[%s540 + $0xc0] sm:$0xf]
                  %591 = vst [vmem:[%s541 + $0x60] sm:$0xf] %v590
                  %v592 = vld [vmem:[%s540 + $0xc4] sm:$0xf]
                  %593 = vst [vmem:[%s541 + $0x64] sm:$0xf] %v592
                  %v594 = vld [vmem:[%s540 + $0xd0] sm:$0xf]
                  %595 = vst [vmem:[%s541 + $0x68] sm:$0xf] %v594
                  %v596 = vld [vmem:[%s540 + $0xd4] sm:$0xf]
                  %597 = vst [vmem:[%s541 + $0x6c] sm:$0xf] %v596
                  %v598 = vld [vmem:[%s540 + $0xe0] sm:$0xf]
                  %599 = vst [vmem:[%s541 + $0x70] sm:$0xf] %v598
                  %v600 = vld [vmem:[%s540 + $0xe4] sm:$0xf]
                  %601 = vst [vmem:[%s541 + $0x74] sm:$0xf] %v600
                  %v602 = vld [vmem:[%s540 + $0xf0] sm:$0xf]
                  %603 = vst [vmem:[%s541 + $0x78] sm:$0xf] %v602
                  %v604 = vld [vmem:[%s540 + $0xf4] sm:$0xf]
                  %605 = vst [vmem:[%s541 + $0x7c] sm:$0xf] %v604
                  %v606 = vld [vmem:[%s540 + $0x100] sm:$0xf]
                  %607 = vst [vmem:[%s541 + $0x80] sm:$0xf] %v606
                  %v608 = vld [vmem:[%s540 + $0x104] sm:$0xf]
                  %609 = vst [vmem:[%s541 + $0x84] sm:$0xf] %v608
                  %v610 = vld [vmem:[%s540 + $0x110] sm:$0xf]
                  %611 = vst [vmem:[%s541 + $0x88] sm:$0xf] %v610
                  %v612 = vld [vmem:[%s540 + $0x114] sm:$0xf]
                  %613 = vst [vmem:[%s541 + $0x8c] sm:$0xf] %v612
                  %v614 = vld [vmem:[%s540 + $0x120] sm:$0xf]
                  %615 = vst [vmem:[%s541 + $0x90] sm:$0xf] %v614
                  %v616 = vld [vmem:[%s540 + $0x124] sm:$0xf]
                  %617 = vst [vmem:[%s541 + $0x94] sm:$0xf] %v616
                  %v618 = vld [vmem:[%s540 + $0x130] sm:$0xf]
                  %619 = vst [vmem:[%s541 + $0x98] sm:$0xf] %v618
                  %v620 = vld [vmem:[%s540 + $0x134] sm:$0xf]
                  %621 = vst [vmem:[%s541 + $0x9c] sm:$0xf] %v620
                  %v622 = vld [vmem:[%s540 + $0x140] sm:$0xf]
                  %623 = vst [vmem:[%s541 + $0xa0] sm:$0xf] %v622
                  %v624 = vld [vmem:[%s540 + $0x144] sm:$0xf]
                  %625 = vst [vmem:[%s541 + $0xa4] sm:$0xf] %v624
                  %v626 = vld [vmem:[%s540 + $0x150] sm:$0xf]
                  %627 = vst [vmem:[%s541 + $0xa8] sm:$0xf] %v626
                  %v628 = vld [vmem:[%s540 + $0x154] sm:$0xf]
                  %629 = vst [vmem:[%s541 + $0xac] sm:$0xf] %v628
                  %v630 = vld [vmem:[%s540 + $0x160] sm:$0xf]
                  %631 = vst [vmem:[%s541 + $0xb0] sm:$0xf] %v630
                  %v632 = vld [vmem:[%s540 + $0x164] sm:$0xf]
                  %633 = vst [vmem:[%s541 + $0xb4] sm:$0xf] %v632
                  %v634 = vld [vmem:[%s540 + $0x170] sm:$0xf]
                  %635 = vst [vmem:[%s541 + $0xb8] sm:$0xf] %v634
                  %v636 = vld [vmem:[%s540 + $0x174] sm:$0xf]
                  %637 = vst [vmem:[%s541 + $0xbc] sm:$0xf] %v636
                  %v638 = vld [vmem:[%s540 + $0x180] sm:$0xf]
                  %639 = vst [vmem:[%s541 + $0xc0] sm:$0xf] %v638
                  %v640 = vld [vmem:[%s540 + $0x184] sm:$0xf]
                  %641 = vst [vmem:[%s541 + $0xc4] sm:$0xf] %v640
                  %v642 = vld [vmem:[%s540 + $0x190] sm:$0xf]
                  %643 = vst [vmem:[%s541 + $0xc8] sm:$0xf] %v642
                  %v644 = vld [vmem:[%s540 + $0x194] sm:$0xf]
                  %645 = vst [vmem:[%s541 + $0xcc] sm:$0xf] %v644
                  %v646 = vld [vmem:[%s540 + $0x1a0] sm:$0xf]
                  %647 = vst [vmem:[%s541 + $0xd0] sm:$0xf] %v646
                  %v648 = vld [vmem:[%s540 + $0x1a4] sm:$0xf]
                  %649 = vst [vmem:[%s541 + $0xd4] sm:$0xf] %v648
                  %v650 = vld [vmem:[%s540 + $0x1b0] sm:$0xf]
                  %651 = vst [vmem:[%s541 + $0xd8] sm:$0xf] %v650
                  %v652 = vld [vmem:[%s540 + $0x1b4] sm:$0xf]
                  %653 = vst [vmem:[%s541 + $0xdc] sm:$0xf] %v652
                  %v654 = vld [vmem:[%s540 + $0x1c0] sm:$0xf]
                  %655 = vst [vmem:[%s541 + $0xe0] sm:$0xf] %v654
                  %v656 = vld [vmem:[%s540 + $0x1c4] sm:$0xf]
                  %657 = vst [vmem:[%s541 + $0xe4] sm:$0xf] %v656
                  %v658 = vld [vmem:[%s540 + $0x1d0] sm:$0xf]
                  %659 = vst [vmem:[%s541 + $0xe8] sm:$0xf] %v658
                  %v660 = vld [vmem:[%s540 + $0x1d4] sm:$0xf]
                  %661 = vst [vmem:[%s541 + $0xec] sm:$0xf] %v660
                  %v662 = vld [vmem:[%s540 + $0x1e0] sm:$0xf]
                  %663 = vst [vmem:[%s541 + $0xf0] sm:$0xf] %v662
                  %v664 = vld [vmem:[%s540 + $0x1e4] sm:$0xf]
                  %665 = vst [vmem:[%s541 + $0xf4] sm:$0xf] %v664
                  %v666 = vld [vmem:[%s540 + $0x1f0] sm:$0xf]
                  %667 = vst [vmem:[%s541 + $0xf8] sm:$0xf] %v666
                  %v668 = vld [vmem:[%s540 + $0x1f4] sm:$0xf]
                  %669 = vst [vmem:[%s541 + $0xfc] sm:$0xf] %v668
                  %v670 = vld [vmem:[%s540 + $0x200] sm:$0xf]
                  %671 = vst [vmem:[%s541 + $0x100] sm:$0xf] %v670
                  %v672 = vld [vmem:[%s540 + $0x204] sm:$0xf]
                  %673 = vst [vmem:[%s541 + $0x104] sm:$0xf] %v672
                  %v674 = vld [vmem:[%s540 + $0x210] sm:$0xf]
                  %675 = vst [vmem:[%s541 + $0x108] sm:$0xf] %v674
                  %v676 = vld [vmem:[%s540 + $0x214] sm:$0xf]
                  %677 = vst [vmem:[%s541 + $0x10c] sm:$0xf] %v676
                  %v678 = vld [vmem:[%s540 + $0x220] sm:$0xf]
                  %679 = vst [vmem:[%s541 + $0x110] sm:$0xf] %v678
                  %v680 = vld [vmem:[%s540 + $0x224] sm:$0xf]
                  %681 = vst [vmem:[%s541 + $0x114] sm:$0xf] %v680
                  %v682 = vld [vmem:[%s540 + $0x230] sm:$0xf]
                  %683 = vst [vmem:[%s541 + $0x118] sm:$0xf] %v682
                  %v684 = vld [vmem:[%s540 + $0x234] sm:$0xf]
                  %685 = vst [vmem:[%s541 + $0x11c] sm:$0xf] %v684
                  %v686 = vld [vmem:[%s540 + $0x240] sm:$0xf]
                  %687 = vst [vmem:[%s541 + $0x120] sm:$0xf] %v686
                  %v688 = vld [vmem:[%s540 + $0x244] sm:$0xf]
                  %689 = vst [vmem:[%s541 + $0x124] sm:$0xf] %v688
                  %v690 = vld [vmem:[%s540 + $0x250] sm:$0xf]
                  %691 = vst [vmem:[%s541 + $0x128] sm:$0xf] %v690
                  %v692 = vld [vmem:[%s540 + $0x254] sm:$0xf]
                  %693 = vst [vmem:[%s541 + $0x12c] sm:$0xf] %v692
                  %v694 = vld [vmem:[%s540 + $0x260] sm:$0xf]
                  %695 = vst [vmem:[%s541 + $0x130] sm:$0xf] %v694
                  %v696 = vld [vmem:[%s540 + $0x264] sm:$0xf]
                  %697 = vst [vmem:[%s541 + $0x134] sm:$0xf] %v696
                  %v698 = vld [vmem:[%s540 + $0x270] sm:$0xf]
                  %699 = vst [vmem:[%s541 + $0x138] sm:$0xf] %v698
                  %v700 = vld [vmem:[%s540 + $0x274] sm:$0xf]
                  %701 = vst [vmem:[%s541 + $0x13c] sm:$0xf] %v700
                  %v702 = vld [vmem:[%s540 + $0x280] sm:$0xf]
                  %703 = vst [vmem:[%s541 + $0x140] sm:$0xf] %v702
                  %v704 = vld [vmem:[%s540 + $0x284] sm:$0xf]
                  %705 = vst [vmem:[%s541 + $0x144] sm:$0xf] %v704
                  %v706 = vld [vmem:[%s540 + $0x290] sm:$0xf]
                  %707 = vst [vmem:[%s541 + $0x148] sm:$0xf] %v706
                  %v708 = vld [vmem:[%s540 + $0x294] sm:$0xf]
                  %709 = vst [vmem:[%s541 + $0x14c] sm:$0xf] %v708
                  %v710 = vld [vmem:[%s540 + $0x2a0] sm:$0xf]
                  %711 = vst [vmem:[%s541 + $0x150] sm:$0xf] %v710
                  %v712 = vld [vmem:[%s540 + $0x2a4] sm:$0xf]
                  %713 = vst [vmem:[%s541 + $0x154] sm:$0xf] %v712
                  %v714 = vld [vmem:[%s540 + $0x2b0] sm:$0xf]
                  %715 = vst [vmem:[%s541 + $0x158] sm:$0xf] %v714
                  %v716 = vld [vmem:[%s540 + $0x2b4] sm:$0xf]
                  %717 = vst [vmem:[%s541 + $0x15c] sm:$0xf] %v716
                  %v718 = vld [vmem:[%s540 + $0x2c0] sm:$0xf]
                  %719 = vst [vmem:[%s541 + $0x160] sm:$0xf] %v718
                  %v720 = vld [vmem:[%s540 + $0x2c4] sm:$0xf]
                  %721 = vst [vmem:[%s541 + $0x164] sm:$0xf] %v720
                  %v722 = vld [vmem:[%s540 + $0x2d0] sm:$0xf]
                  %723 = vst [vmem:[%s541 + $0x168] sm:$0xf] %v722
                  %v724 = vld [vmem:[%s540 + $0x2d4] sm:$0xf]
                  %725 = vst [vmem:[%s541 + $0x16c] sm:$0xf] %v724
                  %v726 = vld [vmem:[%s540 + $0x2e0] sm:$0xf]
                  %727 = vst [vmem:[%s541 + $0x170] sm:$0xf] %v726
                  %v728 = vld [vmem:[%s540 + $0x2e4] sm:$0xf]
                  %729 = vst [vmem:[%s541 + $0x174] sm:$0xf] %v728
                  %v730 = vld [vmem:[%s540 + $0x2f0] sm:$0xf]
                  %731 = vst [vmem:[%s541 + $0x178] sm:$0xf] %v730
                  %v732 = vld [vmem:[%s540 + $0x2f4] sm:$0xf]
                  %733 = vst [vmem:[%s541 + $0x17c] sm:$0xf] %v732
                  %v734 = vld [vmem:[%s540 + $0x300] sm:$0xf]
                  %735 = vst [vmem:[%s541 + $0x180] sm:$0xf] %v734
                  %v736 = vld [vmem:[%s540 + $0x304] sm:$0xf]
                  %737 = vst [vmem:[%s541 + $0x184] sm:$0xf] %v736
                  %v738 = vld [vmem:[%s540 + $0x310] sm:$0xf]
                  %739 = vst [vmem:[%s541 + $0x188] sm:$0xf] %v738
                  %v740 = vld [vmem:[%s540 + $0x314] sm:$0xf]
                  %741 = vst [vmem:[%s541 + $0x18c] sm:$0xf] %v740
                  %v742 = vld [vmem:[%s540 + $0x320] sm:$0xf]
                  %743 = vst [vmem:[%s541 + $0x190] sm:$0xf] %v742
                  %v744 = vld [vmem:[%s540 + $0x324] sm:$0xf]
                  %745 = vst [vmem:[%s541 + $0x194] sm:$0xf] %v744
                  %v746 = vld [vmem:[%s540 + $0x330] sm:$0xf]
                  %747 = vst [vmem:[%s541 + $0x198] sm:$0xf] %v746
                  %v748 = vld [vmem:[%s540 + $0x334] sm:$0xf]
                  %749 = vst [vmem:[%s541 + $0x19c] sm:$0xf] %v748
                  %v750 = vld [vmem:[%s540 + $0x340] sm:$0xf]
                  %751 = vst [vmem:[%s541 + $0x1a0] sm:$0xf] %v750
                  %v752 = vld [vmem:[%s540 + $0x344] sm:$0xf]
                  %753 = vst [vmem:[%s541 + $0x1a4] sm:$0xf] %v752
                  %v754 = vld [vmem:[%s540 + $0x350] sm:$0xf]
                  %755 = vst [vmem:[%s541 + $0x1a8] sm:$0xf] %v754
                  %v756 = vld [vmem:[%s540 + $0x354] sm:$0xf]
                  %757 = vst [vmem:[%s541 + $0x1ac] sm:$0xf] %v756
                  %v758 = vld [vmem:[%s540 + $0x360] sm:$0xf]
                  %759 = vst [vmem:[%s541 + $0x1b0] sm:$0xf] %v758
                  %v760 = vld [vmem:[%s540 + $0x364] sm:$0xf]
                  %761 = vst [vmem:[%s541 + $0x1b4] sm:$0xf] %v760
                  %v762 = vld [vmem:[%s540 + $0x370] sm:$0xf]
                  %763 = vst [vmem:[%s541 + $0x1b8] sm:$0xf] %v762
                  %v764 = vld [vmem:[%s540 + $0x374] sm:$0xf]
                  %765 = vst [vmem:[%s541 + $0x1bc] sm:$0xf] %v764
                  %v766 = vld [vmem:[%s540 + $0x380] sm:$0xf]
                  %767 = vst [vmem:[%s541 + $0x1c0] sm:$0xf] %v766
                  %v768 = vld [vmem:[%s540 + $0x384] sm:$0xf]
                  %769 = vst [vmem:[%s541 + $0x1c4] sm:$0xf] %v768
                  %v770 = vld [vmem:[%s540 + $0x390] sm:$0xf]
                  %771 = vst [vmem:[%s541 + $0x1c8] sm:$0xf] %v770
                  %v772 = vld [vmem:[%s540 + $0x394] sm:$0xf]
                  %773 = vst [vmem:[%s541 + $0x1cc] sm:$0xf] %v772
                  %v774 = vld [vmem:[%s540 + $0x3a0] sm:$0xf]
                  %775 = vst [vmem:[%s541 + $0x1d0] sm:$0xf] %v774
                  %v776 = vld [vmem:[%s540 + $0x3a4] sm:$0xf]
                  %777 = vst [vmem:[%s541 + $0x1d4] sm:$0xf] %v776
                  %v778 = vld [vmem:[%s540 + $0x3b0] sm:$0xf]
                  %779 = vst [vmem:[%s541 + $0x1d8] sm:$0xf] %v778
                  %v780 = vld [vmem:[%s540 + $0x3b4] sm:$0xf]
                  %781 = vst [vmem:[%s541 + $0x1dc] sm:$0xf] %v780
                  %v782 = vld [vmem:[%s540 + $0x3c0] sm:$0xf]
                  %783 = vst [vmem:[%s541 + $0x1e0] sm:$0xf] %v782
                  %v784 = vld [vmem:[%s540 + $0x3c4] sm:$0xf]
                  %785 = vst [vmem:[%s541 + $0x1e4] sm:$0xf] %v784
                  %v786 = vld [vmem:[%s540 + $0x3d0] sm:$0xf]
                  %787 = vst [vmem:[%s541 + $0x1e8] sm:$0xf] %v786
                  %v788 = vld [vmem:[%s540 + $0x3d4] sm:$0xf]
                  %789 = vst [vmem:[%s541 + $0x1ec] sm:$0xf] %v788
                  %v790 = vld [vmem:[%s540 + $0x3e0] sm:$0xf]
                  %791 = vst [vmem:[%s541 + $0x1f0] sm:$0xf] %v790
                  %v792 = vld [vmem:[%s540 + $0x3e4] sm:$0xf]
                  %793 = vst [vmem:[%s541 + $0x1f4] sm:$0xf] %v792
                  %v794 = vld [vmem:[%s540 + $0x3f0] sm:$0xf]
                  %795 = vst [vmem:[%s541 + $0x1f8] sm:$0xf] %v794
                  %v796 = vld [vmem:[%s540 + $0x3f4] sm:$0xf]
                  %797 = vst [vmem:[%s541 + $0x1fc] sm:$0xf] %v796
                $region79: #{tpu_custom_call.1} parent=66 // loop_footer
                  %s539 = sadd.s32 1, %s535
                $region80: #{tpu_custom_call.1} parent=66 // loop_footer_branch
                  %534 = sbr.rel target = $region76
                $region81: #{tpu_custom_call.1} parent=66 // loop_exit
                  _
              $region67: #{tpu_custom_call.1} parent=51 // pred_fallthru
                _
            $region52: #{tpu_custom_call.1} parent=47 // pred_fallthru
              _
            // Predicated region
            $region53: #{tpu_custom_call.1} parent=47 // pred_check
              _
            $region54: #{tpu_custom_call.1} parent=47 // pred_check_branch
              %257 = sbr.rel (0) target = $region56
            $region55: #{tpu_custom_call.1} parent=47 // pred_region
              loop: start=0, step=1, limit=1
              $region57: #{tpu_custom_call.1} parent=55 // loop_pre_header
                _
              $region58: #{tpu_custom_call.1} parent=55 // loop_header
                %s260 = sphi 0, %s264
                %p261 = scmp.ge.s32.totalorder %s260, 1
                %s265 = sphi %s251, %s251
                %s266 = sphi %s248, %s248
              $region59: #{tpu_custom_call.1} parent=55 // loop_header_branch
                %263 = sbr.rel (%p261) target = $region63
              $region60: #{tpu_custom_call.1} parent=55 // loop_body
                %v267 = vld [vmem:[%s265] sm:$0xf]
                %268 = vst [vmem:[%s266] sm:$0xf] %v267
                %v269 = vld [vmem:[%s265 + $0x4] sm:$0xf]
                %270 = vst [vmem:[%s266 + $0x4] sm:$0xf] %v269
                %v271 = vld [vmem:[%s265 + $0x10] sm:$0xf]
                %272 = vst [vmem:[%s266 + $0x8] sm:$0xf] %v271
                %v273 = vld [vmem:[%s265 + $0x14] sm:$0xf]
                %274 = vst [vmem:[%s266 + $0xc] sm:$0xf] %v273
                %v275 = vld [vmem:[%s265 + $0x20] sm:$0xf]
                %276 = vst [vmem:[%s266 + $0x10] sm:$0xf] %v275
                %v277 = vld [vmem:[%s265 + $0x24] sm:$0xf]
                %278 = vst [vmem:[%s266 + $0x14] sm:$0xf] %v277
                %v279 = vld [vmem:[%s265 + $0x30] sm:$0xf]
                %280 = vst [vmem:[%s266 + $0x18] sm:$0xf] %v279
                %v281 = vld [vmem:[%s265 + $0x34] sm:$0xf]
                %282 = vst [vmem:[%s266 + $0x1c] sm:$0xf] %v281
                %v283 = vld [vmem:[%s265 + $0x40] sm:$0xf]
                %284 = vst [vmem:[%s266 + $0x20] sm:$0xf] %v283
                %v285 = vld [vmem:[%s265 + $0x44] sm:$0xf]
                %286 = vst [vmem:[%s266 + $0x24] sm:$0xf] %v285
                %v287 = vld [vmem:[%s265 + $0x50] sm:$0xf]
                %288 = vst [vmem:[%s266 + $0x28] sm:$0xf] %v287
                %v289 = vld [vmem:[%s265 + $0x54] sm:$0xf]
                %290 = vst [vmem:[%s266 + $0x2c] sm:$0xf] %v289
                %v291 = vld [vmem:[%s265 + $0x60] sm:$0xf]
                %292 = vst [vmem:[%s266 + $0x30] sm:$0xf] %v291
                %v293 = vld [vmem:[%s265 + $0x64] sm:$0xf]
                %294 = vst [vmem:[%s266 + $0x34] sm:$0xf] %v293
                %v295 = vld [vmem:[%s265 + $0x70] sm:$0xf]
                %296 = vst [vmem:[%s266 + $0x38] sm:$0xf] %v295
                %v297 = vld [vmem:[%s265 + $0x74] sm:$0xf]
                %298 = vst [vmem:[%s266 + $0x3c] sm:$0xf] %v297
                %v299 = vld [vmem:[%s265 + $0x80] sm:$0xf]
                %300 = vst [vmem:[%s266 + $0x40] sm:$0xf] %v299
                %v301 = vld [vmem:[%s265 + $0x84] sm:$0xf]
                %302 = vst [vmem:[%s266 + $0x44] sm:$0xf] %v301
                %v303 = vld [vmem:[%s265 + $0x90] sm:$0xf]
                %304 = vst [vmem:[%s266 + $0x48] sm:$0xf] %v303
                %v305 = vld [vmem:[%s265 + $0x94] sm:$0xf]
                %306 = vst [vmem:[%s266 + $0x4c] sm:$0xf] %v305
                %v307 = vld [vmem:[%s265 + $0xa0] sm:$0xf]
                %308 = vst [vmem:[%s266 + $0x50] sm:$0xf] %v307
                %v309 = vld [vmem:[%s265 + $0xa4] sm:$0xf]
                %310 = vst [vmem:[%s266 + $0x54] sm:$0xf] %v309
                %v311 = vld [vmem:[%s265 + $0xb0] sm:$0xf]
                %312 = vst [vmem:[%s266 + $0x58] sm:$0xf] %v311
                %v313 = vld [vmem:[%s265 + $0xb4] sm:$0xf]
                %314 = vst [vmem:[%s266 + $0x5c] sm:$0xf] %v313
                %v315 = vld [vmem:[%s265 + $0xc0] sm:$0xf]
                %316 = vst [vmem:[%s266 + $0x60] sm:$0xf] %v315
                %v317 = vld [vmem:[%s265 + $0xc4] sm:$0xf]
                %318 = vst [vmem:[%s266 + $0x64] sm:$0xf] %v317
                %v319 = vld [vmem:[%s265 + $0xd0] sm:$0xf]
                %320 = vst [vmem:[%s266 + $0x68] sm:$0xf] %v319
                %v321 = vld [vmem:[%s265 + $0xd4] sm:$0xf]
                %322 = vst [vmem:[%s266 + $0x6c] sm:$0xf] %v321
                %v323 = vld [vmem:[%s265 + $0xe0] sm:$0xf]
                %324 = vst [vmem:[%s266 + $0x70] sm:$0xf] %v323
                %v325 = vld [vmem:[%s265 + $0xe4] sm:$0xf]
                %326 = vst [vmem:[%s266 + $0x74] sm:$0xf] %v325
                %v327 = vld [vmem:[%s265 + $0xf0] sm:$0xf]
                %328 = vst [vmem:[%s266 + $0x78] sm:$0xf] %v327
                %v329 = vld [vmem:[%s265 + $0xf4] sm:$0xf]
                %330 = vst [vmem:[%s266 + $0x7c] sm:$0xf] %v329
                %v331 = vld [vmem:[%s265 + $0x100] sm:$0xf]
                %332 = vst [vmem:[%s266 + $0x80] sm:$0xf] %v331
                %v333 = vld [vmem:[%s265 + $0x104] sm:$0xf]
                %334 = vst [vmem:[%s266 + $0x84] sm:$0xf] %v333
                %v335 = vld [vmem:[%s265 + $0x110] sm:$0xf]
                %336 = vst [vmem:[%s266 + $0x88] sm:$0xf] %v335
                %v337 = vld [vmem:[%s265 + $0x114] sm:$0xf]
                %338 = vst [vmem:[%s266 + $0x8c] sm:$0xf] %v337
                %v339 = vld [vmem:[%s265 + $0x120] sm:$0xf]
                %340 = vst [vmem:[%s266 + $0x90] sm:$0xf] %v339
                %v341 = vld [vmem:[%s265 + $0x124] sm:$0xf]
                %342 = vst [vmem:[%s266 + $0x94] sm:$0xf] %v341
                %v343 = vld [vmem:[%s265 + $0x130] sm:$0xf]
                %344 = vst [vmem:[%s266 + $0x98] sm:$0xf] %v343
                %v345 = vld [vmem:[%s265 + $0x134] sm:$0xf]
                %346 = vst [vmem:[%s266 + $0x9c] sm:$0xf] %v345
                %v347 = vld [vmem:[%s265 + $0x140] sm:$0xf]
                %348 = vst [vmem:[%s266 + $0xa0] sm:$0xf] %v347
                %v349 = vld [vmem:[%s265 + $0x144] sm:$0xf]
                %350 = vst [vmem:[%s266 + $0xa4] sm:$0xf] %v349
                %v351 = vld [vmem:[%s265 + $0x150] sm:$0xf]
                %352 = vst [vmem:[%s266 + $0xa8] sm:$0xf] %v351
                %v353 = vld [vmem:[%s265 + $0x154] sm:$0xf]
                %354 = vst [vmem:[%s266 + $0xac] sm:$0xf] %v353
                %v355 = vld [vmem:[%s265 + $0x160] sm:$0xf]
                %356 = vst [vmem:[%s266 + $0xb0] sm:$0xf] %v355
                %v357 = vld [vmem:[%s265 + $0x164] sm:$0xf]
                %358 = vst [vmem:[%s266 + $0xb4] sm:$0xf] %v357
                %v359 = vld [vmem:[%s265 + $0x170] sm:$0xf]
                %360 = vst [vmem:[%s266 + $0xb8] sm:$0xf] %v359
                %v361 = vld [vmem:[%s265 + $0x174] sm:$0xf]
                %362 = vst [vmem:[%s266 + $0xbc] sm:$0xf] %v361
                %v363 = vld [vmem:[%s265 + $0x180] sm:$0xf]
                %364 = vst [vmem:[%s266 + $0xc0] sm:$0xf] %v363
                %v365 = vld [vmem:[%s265 + $0x184] sm:$0xf]
                %366 = vst [vmem:[%s266 + $0xc4] sm:$0xf] %v365
                %v367 = vld [vmem:[%s265 + $0x190] sm:$0xf]
                %368 = vst [vmem:[%s266 + $0xc8] sm:$0xf] %v367
                %v369 = vld [vmem:[%s265 + $0x194] sm:$0xf]
                %370 = vst [vmem:[%s266 + $0xcc] sm:$0xf] %v369
                %v371 = vld [vmem:[%s265 + $0x1a0] sm:$0xf]
                %372 = vst [vmem:[%s266 + $0xd0] sm:$0xf] %v371
                %v373 = vld [vmem:[%s265 + $0x1a4] sm:$0xf]
                %374 = vst [vmem:[%s266 + $0xd4] sm:$0xf] %v373
                %v375 = vld [vmem:[%s265 + $0x1b0] sm:$0xf]
                %376 = vst [vmem:[%s266 + $0xd8] sm:$0xf] %v375
                %v377 = vld [vmem:[%s265 + $0x1b4] sm:$0xf]
                %378 = vst [vmem:[%s266 + $0xdc] sm:$0xf] %v377
                %v379 = vld [vmem:[%s265 + $0x1c0] sm:$0xf]
                %380 = vst [vmem:[%s266 + $0xe0] sm:$0xf] %v379
                %v381 = vld [vmem:[%s265 + $0x1c4] sm:$0xf]
                %382 = vst [vmem:[%s266 + $0xe4] sm:$0xf] %v381
                %v383 = vld [vmem:[%s265 + $0x1d0] sm:$0xf]
                %384 = vst [vmem:[%s266 + $0xe8] sm:$0xf] %v383
                %v385 = vld [vmem:[%s265 + $0x1d4] sm:$0xf]
                %386 = vst [vmem:[%s266 + $0xec] sm:$0xf] %v385
                %v387 = vld [vmem:[%s265 + $0x1e0] sm:$0xf]
                %388 = vst [vmem:[%s266 + $0xf0] sm:$0xf] %v387
                %v389 = vld [vmem:[%s265 + $0x1e4] sm:$0xf]
                %390 = vst [vmem:[%s266 + $0xf4] sm:$0xf] %v389
                %v391 = vld [vmem:[%s265 + $0x1f0] sm:$0xf]
                %392 = vst [vmem:[%s266 + $0xf8] sm:$0xf] %v391
                %v393 = vld [vmem:[%s265 + $0x1f4] sm:$0xf]
                %394 = vst [vmem:[%s266 + $0xfc] sm:$0xf] %v393
                %v395 = vld [vmem:[%s265 + $0x200] sm:$0xf]
                %396 = vst [vmem:[%s266 + $0x100] sm:$0xf] %v395
                %v397 = vld [vmem:[%s265 + $0x204] sm:$0xf]
                %398 = vst [vmem:[%s266 + $0x104] sm:$0xf] %v397
                %v399 = vld [vmem:[%s265 + $0x210] sm:$0xf]
                %400 = vst [vmem:[%s266 + $0x108] sm:$0xf] %v399
                %v401 = vld [vmem:[%s265 + $0x214] sm:$0xf]
                %402 = vst [vmem:[%s266 + $0x10c] sm:$0xf] %v401
                %v403 = vld [vmem:[%s265 + $0x220] sm:$0xf]
                %404 = vst [vmem:[%s266 + $0x110] sm:$0xf] %v403
                %v405 = vld [vmem:[%s265 + $0x224] sm:$0xf]
                %406 = vst [vmem:[%s266 + $0x114] sm:$0xf] %v405
                %v407 = vld [vmem:[%s265 + $0x230] sm:$0xf]
                %408 = vst [vmem:[%s266 + $0x118] sm:$0xf] %v407
                %v409 = vld [vmem:[%s265 + $0x234] sm:$0xf]
                %410 = vst [vmem:[%s266 + $0x11c] sm:$0xf] %v409
                %v411 = vld [vmem:[%s265 + $0x240] sm:$0xf]
                %412 = vst [vmem:[%s266 + $0x120] sm:$0xf] %v411
                %v413 = vld [vmem:[%s265 + $0x244] sm:$0xf]
                %414 = vst [vmem:[%s266 + $0x124] sm:$0xf] %v413
                %v415 = vld [vmem:[%s265 + $0x250] sm:$0xf]
                %416 = vst [vmem:[%s266 + $0x128] sm:$0xf] %v415
                %v417 = vld [vmem:[%s265 + $0x254] sm:$0xf]
                %418 = vst [vmem:[%s266 + $0x12c] sm:$0xf] %v417
                %v419 = vld [vmem:[%s265 + $0x260] sm:$0xf]
                %420 = vst [vmem:[%s266 + $0x130] sm:$0xf] %v419
                %v421 = vld [vmem:[%s265 + $0x264] sm:$0xf]
                %422 = vst [vmem:[%s266 + $0x134] sm:$0xf] %v421
                %v423 = vld [vmem:[%s265 + $0x270] sm:$0xf]
                %424 = vst [vmem:[%s266 + $0x138] sm:$0xf] %v423
                %v425 = vld [vmem:[%s265 + $0x274] sm:$0xf]
                %426 = vst [vmem:[%s266 + $0x13c] sm:$0xf] %v425
                %v427 = vld [vmem:[%s265 + $0x280] sm:$0xf]
                %428 = vst [vmem:[%s266 + $0x140] sm:$0xf] %v427
                %v429 = vld [vmem:[%s265 + $0x284] sm:$0xf]
                %430 = vst [vmem:[%s266 + $0x144] sm:$0xf] %v429
                %v431 = vld [vmem:[%s265 + $0x290] sm:$0xf]
                %432 = vst [vmem:[%s266 + $0x148] sm:$0xf] %v431
                %v433 = vld [vmem:[%s265 + $0x294] sm:$0xf]
                %434 = vst [vmem:[%s266 + $0x14c] sm:$0xf] %v433
                %v435 = vld [vmem:[%s265 + $0x2a0] sm:$0xf]
                %436 = vst [vmem:[%s266 + $0x150] sm:$0xf] %v435
                %v437 = vld [vmem:[%s265 + $0x2a4] sm:$0xf]
                %438 = vst [vmem:[%s266 + $0x154] sm:$0xf] %v437
                %v439 = vld [vmem:[%s265 + $0x2b0] sm:$0xf]
                %440 = vst [vmem:[%s266 + $0x158] sm:$0xf] %v439
                %v441 = vld [vmem:[%s265 + $0x2b4] sm:$0xf]
                %442 = vst [vmem:[%s266 + $0x15c] sm:$0xf] %v441
                %v443 = vld [vmem:[%s265 + $0x2c0] sm:$0xf]
                %444 = vst [vmem:[%s266 + $0x160] sm:$0xf] %v443
                %v445 = vld [vmem:[%s265 + $0x2c4] sm:$0xf]
                %446 = vst [vmem:[%s266 + $0x164] sm:$0xf] %v445
                %v447 = vld [vmem:[%s265 + $0x2d0] sm:$0xf]
                %448 = vst [vmem:[%s266 + $0x168] sm:$0xf] %v447
                %v449 = vld [vmem:[%s265 + $0x2d4] sm:$0xf]
                %450 = vst [vmem:[%s266 + $0x16c] sm:$0xf] %v449
                %v451 = vld [vmem:[%s265 + $0x2e0] sm:$0xf]
                %452 = vst [vmem:[%s266 + $0x170] sm:$0xf] %v451
                %v453 = vld [vmem:[%s265 + $0x2e4] sm:$0xf]
                %454 = vst [vmem:[%s266 + $0x174] sm:$0xf] %v453
                %v455 = vld [vmem:[%s265 + $0x2f0] sm:$0xf]
                %456 = vst [vmem:[%s266 + $0x178] sm:$0xf] %v455
                %v457 = vld [vmem:[%s265 + $0x2f4] sm:$0xf]
                %458 = vst [vmem:[%s266 + $0x17c] sm:$0xf] %v457
                %v459 = vld [vmem:[%s265 + $0x300] sm:$0xf]
                %460 = vst [vmem:[%s266 + $0x180] sm:$0xf] %v459
                %v461 = vld [vmem:[%s265 + $0x304] sm:$0xf]
                %462 = vst [vmem:[%s266 + $0x184] sm:$0xf] %v461
                %v463 = vld [vmem:[%s265 + $0x310] sm:$0xf]
                %464 = vst [vmem:[%s266 + $0x188] sm:$0xf] %v463
                %v465 = vld [vmem:[%s265 + $0x314] sm:$0xf]
                %466 = vst [vmem:[%s266 + $0x18c] sm:$0xf] %v465
                %v467 = vld [vmem:[%s265 + $0x320] sm:$0xf]
                %468 = vst [vmem:[%s266 + $0x190] sm:$0xf] %v467
                %v469 = vld [vmem:[%s265 + $0x324] sm:$0xf]
                %470 = vst [vmem:[%s266 + $0x194] sm:$0xf] %v469
                %v471 = vld [vmem:[%s265 + $0x330] sm:$0xf]
                %472 = vst [vmem:[%s266 + $0x198] sm:$0xf] %v471
                %v473 = vld [vmem:[%s265 + $0x334] sm:$0xf]
                %474 = vst [vmem:[%s266 + $0x19c] sm:$0xf] %v473
                %v475 = vld [vmem:[%s265 + $0x340] sm:$0xf]
                %476 = vst [vmem:[%s266 + $0x1a0] sm:$0xf] %v475
                %v477 = vld [vmem:[%s265 + $0x344] sm:$0xf]
                %478 = vst [vmem:[%s266 + $0x1a4] sm:$0xf] %v477
                %v479 = vld [vmem:[%s265 + $0x350] sm:$0xf]
                %480 = vst [vmem:[%s266 + $0x1a8] sm:$0xf] %v479
                %v481 = vld [vmem:[%s265 + $0x354] sm:$0xf]
                %482 = vst [vmem:[%s266 + $0x1ac] sm:$0xf] %v481
                %v483 = vld [vmem:[%s265 + $0x360] sm:$0xf]
                %484 = vst [vmem:[%s266 + $0x1b0] sm:$0xf] %v483
                %v485 = vld [vmem:[%s265 + $0x364] sm:$0xf]
                %486 = vst [vmem:[%s266 + $0x1b4] sm:$0xf] %v485
                %v487 = vld [vmem:[%s265 + $0x370] sm:$0xf]
                %488 = vst [vmem:[%s266 + $0x1b8] sm:$0xf] %v487
                %v489 = vld [vmem:[%s265 + $0x374] sm:$0xf]
                %490 = vst [vmem:[%s266 + $0x1bc] sm:$0xf] %v489
                %v491 = vld [vmem:[%s265 + $0x380] sm:$0xf]
                %492 = vst [vmem:[%s266 + $0x1c0] sm:$0xf] %v491
                %v493 = vld [vmem:[%s265 + $0x384] sm:$0xf]
                %494 = vst [vmem:[%s266 + $0x1c4] sm:$0xf] %v493
                %v495 = vld [vmem:[%s265 + $0x390] sm:$0xf]
                %496 = vst [vmem:[%s266 + $0x1c8] sm:$0xf] %v495
                %v497 = vld [vmem:[%s265 + $0x394] sm:$0xf]
                %498 = vst [vmem:[%s266 + $0x1cc] sm:$0xf] %v497
                %v499 = vld [vmem:[%s265 + $0x3a0] sm:$0xf]
                %500 = vst [vmem:[%s266 + $0x1d0] sm:$0xf] %v499
                %v501 = vld [vmem:[%s265 + $0x3a4] sm:$0xf]
                %502 = vst [vmem:[%s266 + $0x1d4] sm:$0xf] %v501
                %v503 = vld [vmem:[%s265 + $0x3b0] sm:$0xf]
                %504 = vst [vmem:[%s266 + $0x1d8] sm:$0xf] %v503
                %v505 = vld [vmem:[%s265 + $0x3b4] sm:$0xf]
                %506 = vst [vmem:[%s266 + $0x1dc] sm:$0xf] %v505
                %v507 = vld [vmem:[%s265 + $0x3c0] sm:$0xf]
                %508 = vst [vmem:[%s266 + $0x1e0] sm:$0xf] %v507
                %v509 = vld [vmem:[%s265 + $0x3c4] sm:$0xf]
                %510 = vst [vmem:[%s266 + $0x1e4] sm:$0xf] %v509
                %v511 = vld [vmem:[%s265 + $0x3d0] sm:$0xf]
                %512 = vst [vmem:[%s266 + $0x1e8] sm:$0xf] %v511
                %v513 = vld [vmem:[%s265 + $0x3d4] sm:$0xf]
                %514 = vst [vmem:[%s266 + $0x1ec] sm:$0xf] %v513
                %v515 = vld [vmem:[%s265 + $0x3e0] sm:$0xf]
                %516 = vst [vmem:[%s266 + $0x1f0] sm:$0xf] %v515
                %v517 = vld [vmem:[%s265 + $0x3e4] sm:$0xf]
                %518 = vst [vmem:[%s266 + $0x1f4] sm:$0xf] %v517
                %v519 = vld [vmem:[%s265 + $0x3f0] sm:$0xf]
                %520 = vst [vmem:[%s266 + $0x1f8] sm:$0xf] %v519
                %v521 = vld [vmem:[%s265 + $0x3f4] sm:$0xf]
                %522 = vst [vmem:[%s266 + $0x1fc] sm:$0xf] %v521
              $region61: #{tpu_custom_call.1} parent=55 // loop_footer
                %s264 = sadd.s32 1, %s260
              $region62: #{tpu_custom_call.1} parent=55 // loop_footer_branch
                %259 = sbr.rel target = $region58
              $region63: #{tpu_custom_call.1} parent=55 // loop_exit
                _
            $region56: #{tpu_custom_call.1} parent=47 // pred_fallthru
              _
          $region48: #{tpu_custom_call.1} parent=43 // pred_fallthru
            _
          %798 = vnop
        $region44: #{tpu_custom_call.1} parent=39 // pred_fallthru
          _
      $region40: #{tpu_custom_call.1} parent=5 // pred_fallthru
        _
      %p799 = scmp.le.s32.totalorder 1, %s17
      %p800 = scmp.lt.s32.totalorder %s17, 3
      %p801 = pnand %p799, %p800
      %p802 = pneg %p801
      // Predicated region
      $region82: #{tpu_custom_call.1} parent=5 // pred_check
        _
      $region83: #{tpu_custom_call.1} parent=5 // pred_check_branch
        %804 = sbr.rel (%p801) target = $region85
      $region84: #{tpu_custom_call.1} parent=5 // pred_region
        %s805 = ssub.s32 %s17, 1
        %s806 = sand.u32 %s30, 1
        %s807 = sand.u32 %s30, 1
        %s808 = smul.addr %s807, 512
        %s809 = scalar_lea.vmem [#allocation2], %s808
        // Predicated region
        $region86: #{tpu_custom_call.1} parent=84 // pred_check
          %p810 = pneg %p43
        $region87: #{tpu_custom_call.1} parent=84 // pred_check_branch
          %812 = sbr.rel (%p810) target = $region89
        $region88: #{tpu_custom_call.1} parent=84 // pred_region
          _
        $region89: #{tpu_custom_call.1} parent=84 // pred_fallthru
          _
        // Predicated region
        $region90: #{tpu_custom_call.1} parent=84 // pred_check
          %p813 = pneg %p106
        $region91: #{tpu_custom_call.1} parent=84 // pred_check_branch
          %815 = sbr.rel (%p813) target = $region93
        $region92: #{tpu_custom_call.1} parent=84 // pred_region
          %816 = dma.done [#allocation4], 24576
        $region93: #{tpu_custom_call.1} parent=84 // pred_fallthru
          _
        %s817 = sand.u32 %s30, 1
        %s818 = sand.u32 %s30, 1
        %s819 = smul.addr %s818, 512
        %s820 = scalar_lea.vmem [#allocation2], %s819
        %p821 = pneg %p43
        %p822 = pneg %p40
        %p823 = pneg %p64
        %p824 = pneg %p61
        %p825 = pneg %p85
        %p826 = pneg %p82
        %p827 = pneg %p106
        %p828 = pneg %p103
        %p829 = pneg %p127
        %p830 = pneg %p124
        %p831 = pneg %p148
        %p832 = pneg %p145
        %p833 = pneg %p169
        %p834 = pneg %p166
        %p835 = pneg %p195
        %p836 = pneg %p192
        %s837 = sand.u32 %s182, 1
        %s838 = scalar_lea.sflag [#allocation5], %s837
        %s839 = sand.u32 %s182, 1
        %s840 = smul.addr %s839, 16
        %s841 = scalar_lea.vmem [#allocation6], %s840
        %s842 = smul.u32 2, %s22
        %s843 = smul.u32 2, %s22
        %v845 = vld [vmem:[%s809] sm:$0xf]
        %v846 = vld [vmem:[%s809 + $0x4] sm:$0xf]
        %v847 = vld [vmem:[%s809 + $0x8] sm:$0xf]
        %v848 = vld [vmem:[%s809 + $0xc] sm:$0xf]
        %v849 = vld [vmem:[%s809 + $0x10] sm:$0xf]
        %v850 = vld [vmem:[%s809 + $0x14] sm:$0xf]
        %v851 = vld [vmem:[%s809 + $0x18] sm:$0xf]
        %v852 = vld [vmem:[%s809 + $0x1c] sm:$0xf]
        %v853 = vld [vmem:[%s809 + $0x20] sm:$0xf]
        %v854 = vld [vmem:[%s809 + $0x24] sm:$0xf]
        %v855 = vld [vmem:[%s809 + $0x28] sm:$0xf]
        %v856 = vld [vmem:[%s809 + $0x2c] sm:$0xf]
        %v857 = vld [vmem:[%s809 + $0x30] sm:$0xf]
        %v858 = vld [vmem:[%s809 + $0x34] sm:$0xf]
        %v859 = vld [vmem:[%s809 + $0x40] sm:$0xf]
        %v860 = vld [vmem:[%s809 + $0x44] sm:$0xf]
        %v861 = vld [vmem:[%s809 + $0x48] sm:$0xf]
        %v862 = vld [vmem:[%s809 + $0x4c] sm:$0xf]
        %v863 = vld [vmem:[%s809 + $0x50] sm:$0xf]
        %v864 = vld [vmem:[%s809 + $0x54] sm:$0xf]
        %v865 = vld [vmem:[%s809 + $0x58] sm:$0xf]
        %v866 = vld [vmem:[%s809 + $0x5c] sm:$0xf]
        %v867 = vld [vmem:[%s809 + $0x60] sm:$0xf]
        %v868 = vld [vmem:[%s809 + $0x64] sm:$0xf]
        %v869 = vld [vmem:[%s809 + $0x68] sm:$0xf]
        %v870 = vld [vmem:[%s809 + $0x6c] sm:$0xf]
        %v871 = vld [vmem:[%s809 + $0x70] sm:$0xf]
        %v872 = vld [vmem:[%s809 + $0x74] sm:$0xf]
        %v873 = vld [vmem:[%s809 + $0x80] sm:$0xf]
        %v874 = vld [vmem:[%s809 + $0x84] sm:$0xf]
        %v875 = vld [vmem:[%s809 + $0x88] sm:$0xf]
        %v876 = vld [vmem:[%s809 + $0x8c] sm:$0xf]
        %v877 = vld [vmem:[%s809 + $0x90] sm:$0xf]
        %v878 = vld [vmem:[%s809 + $0x94] sm:$0xf]
        %v879 = vld [vmem:[%s809 + $0x98] sm:$0xf]
        %v880 = vld [vmem:[%s809 + $0x9c] sm:$0xf]
        %v881 = vld [vmem:[%s809 + $0xa0] sm:$0xf]
        %v882 = vld [vmem:[%s809 + $0xa4] sm:$0xf]
        %v883 = vld [vmem:[%s809 + $0xa8] sm:$0xf]
        %v884 = vld [vmem:[%s809 + $0xac] sm:$0xf]
        %v885 = vld [vmem:[%s809 + $0xb0] sm:$0xf]
        %v886 = vld [vmem:[%s809 + $0xb4] sm:$0xf]
        %v887 = vld [vmem:[%s809 + $0xc0] sm:$0xf]
        %v888 = vld [vmem:[%s809 + $0xc4] sm:$0xf]
        %v889 = vld [vmem:[%s809 + $0xc8] sm:$0xf]
        %v890 = vld [vmem:[%s809 + $0xcc] sm:$0xf]
        %v891 = vld [vmem:[%s809 + $0xd0] sm:$0xf]
        %v892 = vld [vmem:[%s809 + $0xd4] sm:$0xf]
        %v893 = vld [vmem:[%s809 + $0xd8] sm:$0xf]
        %v894 = vld [vmem:[%s809 + $0xdc] sm:$0xf]
        %v895 = vld [vmem:[%s809 + $0xe0] sm:$0xf]
        %v896 = vld [vmem:[%s809 + $0xe4] sm:$0xf]
        %v897 = vld [vmem:[%s809 + $0xe8] sm:$0xf]
        %v898 = vld [vmem:[%s809 + $0xec] sm:$0xf]
        %v899 = vld [vmem:[%s809 + $0xf0] sm:$0xf]
        %v900 = vld [vmem:[%s809 + $0xf4] sm:$0xf]
        %v901 = vld [vmem:[%s809 + $0x100] sm:$0xf]
        %v902 = vld [vmem:[%s809 + $0x104] sm:$0xf]
        %v903 = vld [vmem:[%s809 + $0x108] sm:$0xf]
        %v904 = vld [vmem:[%s809 + $0x10c] sm:$0xf]
        %v905 = vld [vmem:[%s809 + $0x110] sm:$0xf]
        %v906 = vld [vmem:[%s809 + $0x114] sm:$0xf]
        %v907 = vld [vmem:[%s809 + $0x118] sm:$0xf]
        %v908 = vld [vmem:[%s809 + $0x11c] sm:$0xf]
        %v909 = vld [vmem:[%s809 + $0x120] sm:$0xf]
        %v910 = vld [vmem:[%s809 + $0x124] sm:$0xf]
        %v911 = vld [vmem:[%s809 + $0x128] sm:$0xf]
        %v912 = vld [vmem:[%s809 + $0x12c] sm:$0xf]
        %v913 = vld [vmem:[%s809 + $0x130] sm:$0xf]
        %v914 = vld [vmem:[%s809 + $0x134] sm:$0xf]
        %v915 = vld [vmem:[%s809 + $0x140] sm:$0xf]
        %v916 = vld [vmem:[%s809 + $0x144] sm:$0xf]
        %v917 = vld [vmem:[%s809 + $0x148] sm:$0xf]
        %v918 = vld [vmem:[%s809 + $0x14c] sm:$0xf]
        %v919 = vld [vmem:[%s809 + $0x150] sm:$0xf]
        %v920 = vld [vmem:[%s809 + $0x154] sm:$0xf]
        %v921 = vld [vmem:[%s809 + $0x158] sm:$0xf]
        %v922 = vld [vmem:[%s809 + $0x15c] sm:$0xf]
        %v923 = vld [vmem:[%s809 + $0x160] sm:$0xf]
        %v924 = vld [vmem:[%s809 + $0x164] sm:$0xf]
        %v925 = vld [vmem:[%s809 + $0x168] sm:$0xf]
        %v926 = vld [vmem:[%s809 + $0x16c] sm:$0xf]
        %v927 = vld [vmem:[%s809 + $0x170] sm:$0xf]
        %v928 = vld [vmem:[%s809 + $0x174] sm:$0xf]
        %v929 = vld [vmem:[%s809 + $0x180] sm:$0xf]
        %v930 = vld [vmem:[%s809 + $0x184] sm:$0xf]
        %v931 = vld [vmem:[%s809 + $0x188] sm:$0xf]
        %v932 = vld [vmem:[%s809 + $0x18c] sm:$0xf]
        %v933 = vld [vmem:[%s809 + $0x190] sm:$0xf]
        %v934 = vld [vmem:[%s809 + $0x194] sm:$0xf]
        %v935 = vld [vmem:[%s809 + $0x198] sm:$0xf]
        %v936 = vld [vmem:[%s809 + $0x19c] sm:$0xf]
        %v937 = vld [vmem:[%s809 + $0x1a0] sm:$0xf]
        %v938 = vld [vmem:[%s809 + $0x1a4] sm:$0xf]
        %v939 = vld [vmem:[%s809 + $0x1a8] sm:$0xf]
        %v940 = vld [vmem:[%s809 + $0x1ac] sm:$0xf]
        %v941 = vld [vmem:[%s809 + $0x1b0] sm:$0xf]
        %v942 = vld [vmem:[%s809 + $0x1b4] sm:$0xf]
        %v943 = vunpack.c.l.bf16 %v845
        %v944 = vunpack.c.l.bf16 %v846
        %v945 = vunpack.c.l.bf16 %v847
        %v946 = vunpack.c.l.bf16 %v848
        %v947 = vunpack.c.l.bf16 %v849
        %v948 = vunpack.c.l.bf16 %v850
        %v949 = vunpack.c.l.bf16 %v851
        %v950 = vunpack.c.l.bf16 %v852
        %v951 = vunpack.c.l.bf16 %v853
        %v952 = vunpack.c.l.bf16 %v854
        %v953 = vunpack.c.l.bf16 %v855
        %v954 = vunpack.c.l.bf16 %v856
        %v955 = vunpack.c.l.bf16 %v857
        %v956 = vunpack.c.l.bf16 %v858
        %v957 = vunpack.c.l.bf16 %v859
        %v958 = vunpack.c.l.bf16 %v860
        %v959 = vunpack.c.l.bf16 %v861
        %v960 = vunpack.c.l.bf16 %v862
        %v961 = vunpack.c.l.bf16 %v863
        %v962 = vunpack.c.l.bf16 %v864
        %v963 = vunpack.c.l.bf16 %v865
        %v964 = vunpack.c.l.bf16 %v866
        %v965 = vunpack.c.l.bf16 %v867
        %v966 = vunpack.c.l.bf16 %v868
        %v967 = vunpack.c.l.bf16 %v869
        %v968 = vunpack.c.l.bf16 %v870
        %v969 = vunpack.c.l.bf16 %v871
        %v970 = vunpack.c.l.bf16 %v872
        %v971 = vunpack.c.l.bf16 %v873
        %v972 = vunpack.c.l.bf16 %v874
        %v973 = vunpack.c.l.bf16 %v875
        %v974 = vunpack.c.l.bf16 %v876
        %v975 = vunpack.c.l.bf16 %v877
        %v976 = vunpack.c.l.bf16 %v878
        %v977 = vunpack.c.l.bf16 %v879
        %v978 = vunpack.c.l.bf16 %v880
        %v979 = vunpack.c.l.bf16 %v881
        %v980 = vunpack.c.l.bf16 %v882
        %v981 = vunpack.c.l.bf16 %v883
        %v982 = vunpack.c.l.bf16 %v884
        %v983 = vunpack.c.l.bf16 %v885
        %v984 = vunpack.c.l.bf16 %v886
        %v985 = vunpack.c.l.bf16 %v887
        %v986 = vunpack.c.l.bf16 %v888
        %v987 = vunpack.c.l.bf16 %v889
        %v988 = vunpack.c.l.bf16 %v890
        %v989 = vunpack.c.l.bf16 %v891
        %v990 = vunpack.c.l.bf16 %v892
        %v991 = vunpack.c.l.bf16 %v893
        %v992 = vunpack.c.l.bf16 %v894
        %v993 = vunpack.c.l.bf16 %v895
        %v994 = vunpack.c.l.bf16 %v896
        %v995 = vunpack.c.l.bf16 %v897
        %v996 = vunpack.c.l.bf16 %v898
        %v997 = vunpack.c.l.bf16 %v899
        %v998 = vunpack.c.l.bf16 %v900
        %v999 = vunpack.c.l.bf16 %v901
        %v1000 = vunpack.c.l.bf16 %v902
        %v1001 = vunpack.c.l.bf16 %v903
        %v1002 = vunpack.c.l.bf16 %v904
        %v1003 = vunpack.c.l.bf16 %v905
        %v1004 = vunpack.c.l.bf16 %v906
        %v1005 = vunpack.c.l.bf16 %v907
        %v1006 = vunpack.c.l.bf16 %v908
        %v1007 = vunpack.c.l.bf16 %v909
        %v1008 = vunpack.c.l.bf16 %v910
        %v1009 = vunpack.c.l.bf16 %v911
        %v1010 = vunpack.c.l.bf16 %v912
        %v1011 = vunpack.c.l.bf16 %v913
        %v1012 = vunpack.c.l.bf16 %v914
        %v1013 = vunpack.c.l.bf16 %v915
        %v1014 = vunpack.c.l.bf16 %v916
        %v1015 = vunpack.c.l.bf16 %v917
        %v1016 = vunpack.c.l.bf16 %v918
        %v1017 = vunpack.c.l.bf16 %v919
        %v1018 = vunpack.c.l.bf16 %v920
        %v1019 = vunpack.c.l.bf16 %v921
        %v1020 = vunpack.c.l.bf16 %v922
        %v1021 = vunpack.c.l.bf16 %v923
        %v1022 = vunpack.c.l.bf16 %v924
        %v1023 = vunpack.c.l.bf16 %v925
        %v1024 = vunpack.c.l.bf16 %v926
        %v1025 = vunpack.c.l.bf16 %v927
        %v1026 = vunpack.c.l.bf16 %v928
        %v1027 = vunpack.c.l.bf16 %v929
        %v1028 = vunpack.c.l.bf16 %v930
        %v1029 = vunpack.c.l.bf16 %v931
        %v1030 = vunpack.c.l.bf16 %v932
        %v1031 = vunpack.c.l.bf16 %v933
        %v1032 = vunpack.c.l.bf16 %v934
        %v1033 = vunpack.c.l.bf16 %v935
        %v1034 = vunpack.c.l.bf16 %v936
        %v1035 = vunpack.c.l.bf16 %v937
        %v1036 = vunpack.c.l.bf16 %v938
        %v1037 = vunpack.c.l.bf16 %v939
        %v1038 = vunpack.c.l.bf16 %v940
        %v1039 = vunpack.c.l.bf16 %v941
        %v1040 = vunpack.c.l.bf16 %v942
        %v1041 = vmax.f32 %v943, 0.0
        %v1042 = vmax.f32 %v944, 0.0
        %v1043 = vmax.f32 %v945, 0.0
        %v1044 = vmax.f32 %v946, 0.0
        %v1045 = vmax.f32 %v947, 0.0
        %v1046 = vmax.f32 %v948, 0.0
        %v1047 = vmax.f32 %v949, 0.0
        %v1048 = vmax.f32 %v950, 0.0
        %v1049 = vmax.f32 %v951, 0.0
        %v1050 = vmax.f32 %v952, 0.0
        %v1051 = vmax.f32 %v953, 0.0
        %v1052 = vmax.f32 %v954, 0.0
        %v1053 = vmax.f32 %v955, 0.0
        %v1054 = vmax.f32 %v956, 0.0
        %v1055 = vmax.f32 %v957, 0.0
        %v1056 = vmax.f32 %v958, 0.0
        %v1057 = vmax.f32 %v959, 0.0
        %v1058 = vmax.f32 %v960, 0.0
        %v1059 = vmax.f32 %v961, 0.0
        %v1060 = vmax.f32 %v962, 0.0
        %v1061 = vmax.f32 %v963, 0.0
        %v1062 = vmax.f32 %v964, 0.0
        %v1063 = vmax.f32 %v965, 0.0
        %v1064 = vmax.f32 %v966, 0.0
        %v1065 = vmax.f32 %v967, 0.0
        %v1066 = vmax.f32 %v968, 0.0
        %v1067 = vmax.f32 %v969, 0.0
        %v1068 = vmax.f32 %v970, 0.0
        %v1069 = vmax.f32 %v971, 0.0
        %v1070 = vmax.f32 %v972, 0.0
        %v1071 = vmax.f32 %v973, 0.0
        %v1072 = vmax.f32 %v974, 0.0
        %v1073 = vmax.f32 %v975, 0.0
        %v1074 = vmax.f32 %v976, 0.0
        %v1075 = vmax.f32 %v977, 0.0
        %v1076 = vmax.f32 %v978, 0.0
        %v1077 = vmax.f32 %v979, 0.0
        %v1078 = vmax.f32 %v980, 0.0
        %v1079 = vmax.f32 %v981, 0.0
        %v1080 = vmax.f32 %v982, 0.0
        %v1081 = vmax.f32 %v983, 0.0
        %v1082 = vmax.f32 %v984, 0.0
        %v1083 = vmax.f32 %v985, 0.0
        %v1084 = vmax.f32 %v986, 0.0
        %v1085 = vmax.f32 %v987, 0.0
        %v1086 = vmax.f32 %v988, 0.0
        %v1087 = vmax.f32 %v989, 0.0
        %v1088 = vmax.f32 %v990, 0.0
        %v1089 = vmax.f32 %v991, 0.0
        %v1090 = vmax.f32 %v992, 0.0
        %v1091 = vmax.f32 %v993, 0.0
        %v1092 = vmax.f32 %v994, 0.0
        %v1093 = vmax.f32 %v995, 0.0
        %v1094 = vmax.f32 %v996, 0.0
        %v1095 = vmax.f32 %v997, 0.0
        %v1096 = vmax.f32 %v998, 0.0
        %v1097 = vmax.f32 %v999, 0.0
        %v1098 = vmax.f32 %v1000, 0.0
        %v1099 = vmax.f32 %v1001, 0.0
        %v1100 = vmax.f32 %v1002, 0.0
        %v1101 = vmax.f32 %v1003, 0.0
        %v1102 = vmax.f32 %v1004, 0.0
        %v1103 = vmax.f32 %v1005, 0.0
        %v1104 = vmax.f32 %v1006, 0.0
        %v1105 = vmax.f32 %v1007, 0.0
        %v1106 = vmax.f32 %v1008, 0.0
        %v1107 = vmax.f32 %v1009, 0.0
        %v1108 = vmax.f32 %v1010, 0.0
        %v1109 = vmax.f32 %v1011, 0.0
        %v1110 = vmax.f32 %v1012, 0.0
        %v1111 = vmax.f32 %v1013, 0.0
        %v1112 = vmax.f32 %v1014, 0.0
        %v1113 = vmax.f32 %v1015, 0.0
        %v1114 = vmax.f32 %v1016, 0.0
        %v1115 = vmax.f32 %v1017, 0.0
        %v1116 = vmax.f32 %v1018, 0.0
        %v1117 = vmax.f32 %v1019, 0.0
        %v1118 = vmax.f32 %v1020, 0.0
        %v1119 = vmax.f32 %v1021, 0.0
        %v1120 = vmax.f32 %v1022, 0.0
        %v1121 = vmax.f32 %v1023, 0.0
        %v1122 = vmax.f32 %v1024, 0.0
        %v1123 = vmax.f32 %v1025, 0.0
        %v1124 = vmax.f32 %v1026, 0.0
        %v1125 = vmax.f32 %v1027, 0.0
        %v1126 = vmax.f32 %v1028, 0.0
        %v1127 = vmax.f32 %v1029, 0.0
        %v1128 = vmax.f32 %v1030, 0.0
        %v1129 = vmax.f32 %v1031, 0.0
        %v1130 = vmax.f32 %v1032, 0.0
        %v1131 = vmax.f32 %v1033, 0.0
        %v1132 = vmax.f32 %v1034, 0.0
        %v1133 = vmax.f32 %v1035, 0.0
        %v1134 = vmax.f32 %v1036, 0.0
        %v1135 = vmax.f32 %v1037, 0.0
        %v1136 = vmax.f32 %v1038, 0.0
        %v1137 = vmax.f32 %v1039, 0.0
        %v1138 = vmax.f32 %v1040, 0.0
        %v1139 = vadd.f32 %v1041, %v1043
        %v1140 = vadd.f32 %v1042, %v1044
        %v1141 = vadd.f32 %v1055, %v1057
        %v1142 = vadd.f32 %v1056, %v1058
        %v1143 = vadd.f32 %v1069, %v1071
        %v1144 = vadd.f32 %v1070, %v1072
        %v1145 = vadd.f32 %v1083, %v1085
        %v1146 = vadd.f32 %v1084, %v1086
        %v1147 = vadd.f32 %v1097, %v1099
        %v1148 = vadd.f32 %v1098, %v1100
        %v1149 = vadd.f32 %v1111, %v1113
        %v1150 = vadd.f32 %v1112, %v1114
        %v1151 = vadd.f32 %v1125, %v1127
        %v1152 = vadd.f32 %v1126, %v1128
        %v1153 = vadd.f32 %v1139, %v1045
        %v1154 = vadd.f32 %v1140, %v1046
        %v1155 = vadd.f32 %v1141, %v1059
        %v1156 = vadd.f32 %v1142, %v1060
        %v1157 = vadd.f32 %v1143, %v1073
        %v1158 = vadd.f32 %v1144, %v1074
        %v1159 = vadd.f32 %v1145, %v1087
        %v1160 = vadd.f32 %v1146, %v1088
        %v1161 = vadd.f32 %v1147, %v1101
        %v1162 = vadd.f32 %v1148, %v1102
        %v1163 = vadd.f32 %v1149, %v1115
        %v1164 = vadd.f32 %v1150, %v1116
        %v1165 = vadd.f32 %v1151, %v1129
        %v1166 = vadd.f32 %v1152, %v1130
        %v1167 = vadd.f32 %v1153, %v1047
        %v1168 = vadd.f32 %v1154, %v1048
        %v1169 = vadd.f32 %v1155, %v1061
        %v1170 = vadd.f32 %v1156, %v1062
        %v1171 = vadd.f32 %v1157, %v1075
        %v1172 = vadd.f32 %v1158, %v1076
        %v1173 = vadd.f32 %v1159, %v1089
        %v1174 = vadd.f32 %v1160, %v1090
        %v1175 = vadd.f32 %v1161, %v1103
        %v1176 = vadd.f32 %v1162, %v1104
        %v1177 = vadd.f32 %v1163, %v1117
        %v1178 = vadd.f32 %v1164, %v1118
        %v1179 = vadd.f32 %v1165, %v1131
        %v1180 = vadd.f32 %v1166, %v1132
        %v1181 = vadd.f32 %v1167, %v1049
        %v1182 = vadd.f32 %v1168, %v1050
        %v1183 = vadd.f32 %v1169, %v1063
        %v1184 = vadd.f32 %v1170, %v1064
        %v1185 = vadd.f32 %v1171, %v1077
        %v1186 = vadd.f32 %v1172, %v1078
        %v1187 = vadd.f32 %v1173, %v1091
        %v1188 = vadd.f32 %v1174, %v1092
        %v1189 = vadd.f32 %v1175, %v1105
        %v1190 = vadd.f32 %v1176, %v1106
        %v1191 = vadd.f32 %v1177, %v1119
        %v1192 = vadd.f32 %v1178, %v1120
        %v1193 = vadd.f32 %v1179, %v1133
        %v1194 = vadd.f32 %v1180, %v1134
        %v1195 = vadd.f32 %v1045, %v1047
        %v1196 = vadd.f32 %v1046, %v1048
        %v1197 = vadd.f32 %v1059, %v1061
        %v1198 = vadd.f32 %v1060, %v1062
        %v1199 = vadd.f32 %v1073, %v1075
        %v1200 = vadd.f32 %v1074, %v1076
        %v1201 = vadd.f32 %v1087, %v1089
        %v1202 = vadd.f32 %v1088, %v1090
        %v1203 = vadd.f32 %v1101, %v1103
        %v1204 = vadd.f32 %v1102, %v1104
        %v1205 = vadd.f32 %v1115, %v1117
        %v1206 = vadd.f32 %v1116, %v1118
        %v1207 = vadd.f32 %v1129, %v1131
        %v1208 = vadd.f32 %v1130, %v1132
        %v1209 = vadd.f32 %v1195, %v1049
        %v1210 = vadd.f32 %v1196, %v1050
        %v1211 = vadd.f32 %v1197, %v1063
        %v1212 = vadd.f32 %v1198, %v1064
        %v1213 = vadd.f32 %v1199, %v1077
        %v1214 = vadd.f32 %v1200, %v1078
        %v1215 = vadd.f32 %v1201, %v1091
        %v1216 = vadd.f32 %v1202, %v1092
        %v1217 = vadd.f32 %v1203, %v1105
        %v1218 = vadd.f32 %v1204, %v1106
        %v1219 = vadd.f32 %v1205, %v1119
        %v1220 = vadd.f32 %v1206, %v1120
        %v1221 = vadd.f32 %v1207, %v1133
        %v1222 = vadd.f32 %v1208, %v1134
        %v1223 = vadd.f32 %v1209, %v1051
        %v1224 = vadd.f32 %v1210, %v1052
        %v1225 = vadd.f32 %v1211, %v1065
        %v1226 = vadd.f32 %v1212, %v1066
        %v1227 = vadd.f32 %v1213, %v1079
        %v1228 = vadd.f32 %v1214, %v1080
        %v1229 = vadd.f32 %v1215, %v1093
        %v1230 = vadd.f32 %v1216, %v1094
        %v1231 = vadd.f32 %v1217, %v1107
        %v1232 = vadd.f32 %v1218, %v1108
        %v1233 = vadd.f32 %v1219, %v1121
        %v1234 = vadd.f32 %v1220, %v1122
        %v1235 = vadd.f32 %v1221, %v1135
        %v1236 = vadd.f32 %v1222, %v1136
        %v1237 = vadd.f32 %v1223, %v1053
        %v1238 = vadd.f32 %v1224, %v1054
        %v1239 = vadd.f32 %v1225, %v1067
        %v1240 = vadd.f32 %v1226, %v1068
        %v1241 = vadd.f32 %v1227, %v1081
        %v1242 = vadd.f32 %v1228, %v1082
        %v1243 = vadd.f32 %v1229, %v1095
        %v1244 = vadd.f32 %v1230, %v1096
        %v1245 = vadd.f32 %v1231, %v1109
        %v1246 = vadd.f32 %v1232, %v1110
        %v1247 = vadd.f32 %v1233, %v1123
        %v1248 = vadd.f32 %v1234, %v1124
        %v1249 = vadd.f32 %v1235, %v1137
        %v1250 = vadd.f32 %v1236, %v1138
        %v1251 = vld [vmem:[%s1] sm:$0xf]
        %v1252 = vadd.f32 %v1181, %v1183
        %v1253 = vadd.f32 %v1182, %v1184
        %v1254 = vadd.f32 %v1252, %v1185
        %v1255 = vadd.f32 %v1253, %v1186
        %v1256 = vadd.f32 %v1254, %v1187
        %v1257 = vadd.f32 %v1255, %v1188
        %v1258 = vadd.f32 %v1256, %v1189
        %v1259 = vadd.f32 %v1257, %v1190
        %v1260 = vpack.c.bf16 %v1259, %v1258
        %vm1261 = vcmask 64512
        %v1263 = vsel %vm1261, %v1260, 0
        %vm1265 = vcmask 1043456
        %v1267 = vsel %vm1265, %v1251, 0
        %1269 = vmatprep.subr.bf16.mxu0 0
        %1270 = vmatpush1.bf16.msra.mxu0 %v1267
        %1271 = vmatprep.subr.bf16.mxu0 0
        %1272 = vmatpush1.bf16.msra.mxu0 0
        %1273 = vmatprep.subr.bf16.mxu0 0
        %1274 = vmatpush1.bf16.msra.mxu0 0
        %1275 = vmatprep.subr.bf16.mxu0 0
        %1276 = vmatpush1.bf16.msra.mxu0 0
        %1277 = vmatprep.subr.bf16.mxu0 0
        %1278 = vmatpush1.bf16.msra.mxu0 0
        %1279 = vmatprep.subr.bf16.mxu0 0
        %1280 = vmatpush1.bf16.msra.mxu0 0
        %1281 = vmatprep.subr.bf16.mxu0 0
        %1282 = vmatpush1.bf16.msra.mxu0 0
        %1283 = vmatprep.subr.bf16.mxu0 0
        %1284 = vmatpush1.bf16.msra.mxu0 0
        %1285 = vmatprep.subr.bf16.mxu0 0
        %1286 = vmatpush1.bf16.msra.mxu0 0
        %1287 = vmatprep.subr.bf16.mxu0 0
        %1288 = vmatpush1.bf16.msra.mxu0 0
        %1289 = vmatprep.subr.bf16.mxu0 0
        %1290 = vmatpush1.bf16.msra.mxu0 0
        %1291 = vmatprep.subr.bf16.mxu0 0
        %1292 = vmatpush1.bf16.msra.mxu0 0
        %1293 = vmatprep.subr.bf16.mxu0 0
        %1294 = vmatpush1.bf16.msra.mxu0 0
        %1295 = vmatprep.subr.bf16.mxu0 0
        %1296 = vmatpush1.bf16.msra.mxu0 0
        %1297 = vmatprep.subr.bf16.mxu0 0
        %1298 = vmatpush1.bf16.msra.mxu0 0
        %1299 = vmatprep.subr.bf16.mxu0 0
        %1300 = vmatpush1.bf16.msra.mxu0 0
        %1301 = vmatprep.mubr.bf16.mxu0 0
        %1302 = vmatmul.mubr.bf16.gmra.mrb[0].mxu0 %v1263
        %v1303 = vpop.f32.mrb[0].mxu0
        %v1304 = vadd.f32 0.0, %v1303
        %v1305 = vpop.f32.mrb[0].mxu0
        %v1306 = vpop.f32.mrb[0].mxu0
        %v1307 = vadd.f32 0.0, %v1306
        %v1308 = vpop.f32.mrb[0].mxu0
        %1309 = vdwg.mxu0
        %v1310 = vadd.f32 %v1237, %v1239
        %v1311 = vadd.f32 %v1238, %v1240
        %v1312 = vadd.f32 %v1310, %v1241
        %v1313 = vadd.f32 %v1311, %v1242
        %v1314 = vadd.f32 %v1312, %v1243
        %v1315 = vadd.f32 %v1313, %v1244
        %v1316 = vadd.f32 %v1314, %v1245
        %v1317 = vadd.f32 %v1315, %v1246
        %v1318 = vpack.c.bf16 %v1317, %v1316
        %v1320 = vsel %vm1261, %v1318, 0
        %1322 = vmatprep.subr.bf16.mxu0 0
        %1323 = vmatpush1.bf16.msra.mxu0 %v1267
        %1324 = vmatprep.subr.bf16.mxu0 0
        %1325 = vmatpush1.bf16.msra.mxu0 0
        %1326 = vmatprep.subr.bf16.mxu0 0
        %1327 = vmatpush1.bf16.msra.mxu0 0
        %1328 = vmatprep.subr.bf16.mxu0 0
        %1329 = vmatpush1.bf16.msra.mxu0 0
        %1330 = vmatprep.subr.bf16.mxu0 0
        %1331 = vmatpush1.bf16.msra.mxu0 0
        %1332 = vmatprep.subr.bf16.mxu0 0
        %1333 = vmatpush1.bf16.msra.mxu0 0
        %1334 = vmatprep.subr.bf16.mxu0 0
        %1335 = vmatpush1.bf16.msra.mxu0 0
        %1336 = vmatprep.subr.bf16.mxu0 0
        %1337 = vmatpush1.bf16.msra.mxu0 0
        %1338 = vmatprep.subr.bf16.mxu0 0
        %1339 = vmatpush1.bf16.msra.mxu0 0
        %1340 = vmatprep.subr.bf16.mxu0 0
        %1341 = vmatpush1.bf16.msra.mxu0 0
        %1342 = vmatprep.subr.bf16.mxu0 0
        %1343 = vmatpush1.bf16.msra.mxu0 0
        %1344 = vmatprep.subr.bf16.mxu0 0
        %1345 = vmatpush1.bf16.msra.mxu0 0
        %1346 = vmatprep.subr.bf16.mxu0 0
        %1347 = vmatpush1.bf16.msra.mxu0 0
        %1348 = vmatprep.subr.bf16.mxu0 0
        %1349 = vmatpush1.bf16.msra.mxu0 0
        %1350 = vmatprep.subr.bf16.mxu0 0
        %1351 = vmatpush1.bf16.msra.mxu0 0
        %1352 = vmatprep.subr.bf16.mxu0 0
        %1353 = vmatpush1.bf16.msra.mxu0 0
        %1354 = vmatprep.mubr.bf16.mxu0 0
        %1355 = vmatmul.mubr.bf16.gmra.mrb[0].mxu0 %v1320
        %v1356 = vpop.f32.mrb[0].mxu0
        %v1357 = vadd.f32 0.0, %v1356
        %v1358 = vpop.f32.mrb[0].mxu0
        %v1359 = vpop.f32.mrb[0].mxu0
        %v1360 = vadd.f32 0.0, %v1359
        %v1361 = vpop.f32.mrb[0].mxu0
        %1362 = vdwg.mxu0
        %v1363 = vadd.f32 %v1185, %v1187
        %v1364 = vadd.f32 %v1186, %v1188
        %v1365 = vadd.f32 %v1363, %v1189
        %v1366 = vadd.f32 %v1364, %v1190
        %v1367 = vadd.f32 %v1365, %v1191
        %v1368 = vadd.f32 %v1366, %v1192
        %v1369 = vadd.f32 %v1367, %v1193
        %v1370 = vadd.f32 %v1368, %v1194
        %v1371 = vpack.c.bf16 %v1370, %v1369
        %v1373 = vsel %vm1261, %v1371, 0
        %1375 = vmatprep.subr.bf16.mxu0 0
        %1376 = vmatpush1.bf16.msra.mxu0 %v1267
        %1377 = vmatprep.subr.bf16.mxu0 0
        %1378 = vmatpush1.bf16.msra.mxu0 0
        %1379 = vmatprep.subr.bf16.mxu0 0
        %1380 = vmatpush1.bf16.msra.mxu0 0
        %1381 = vmatprep.subr.bf16.mxu0 0
        %1382 = vmatpush1.bf16.msra.mxu0 0
        %1383 = vmatprep.subr.bf16.mxu0 0
        %1384 = vmatpush1.bf16.msra.mxu0 0
        %1385 = vmatprep.subr.bf16.mxu0 0
        %1386 = vmatpush1.bf16.msra.mxu0 0
        %1387 = vmatprep.subr.bf16.mxu0 0
        %1388 = vmatpush1.bf16.msra.mxu0 0
        %1389 = vmatprep.subr.bf16.mxu0 0
        %1390 = vmatpush1.bf16.msra.mxu0 0
        %1391 = vmatprep.subr.bf16.mxu0 0
        %1392 = vmatpush1.bf16.msra.mxu0 0
        %1393 = vmatprep.subr.bf16.mxu0 0
        %1394 = vmatpush1.bf16.msra.mxu0 0
        %1395 = vmatprep.subr.bf16.mxu0 0
        %1396 = vmatpush1.bf16.msra.mxu0 0
        %1397 = vmatprep.subr.bf16.mxu0 0
        %1398 = vmatpush1.bf16.msra.mxu0 0
        %1399 = vmatprep.subr.bf16.mxu0 0
        %1400 = vmatpush1.bf16.msra.mxu0 0
        %1401 = vmatprep.subr.bf16.mxu0 0
        %1402 = vmatpush1.bf16.msra.mxu0 0
        %1403 = vmatprep.subr.bf16.mxu0 0
        %1404 = vmatpush1.bf16.msra.mxu0 0
        %1405 = vmatprep.subr.bf16.mxu0 0
        %1406 = vmatpush1.bf16.msra.mxu0 0
        %1407 = vmatprep.mubr.bf16.mxu0 0
        %1408 = vmatmul.mubr.bf16.gmra.mrb[0].mxu0 %v1373
        %v1409 = vpop.f32.mrb[0].mxu0
        %v1410 = vadd.f32 0.0, %v1409
        %v1411 = vpop.f32.mrb[0].mxu0
        %v1412 = vpop.f32.mrb[0].mxu0
        %v1413 = vadd.f32 0.0, %v1412
        %v1414 = vpop.f32.mrb[0].mxu0
        %1415 = vdwg.mxu0
        %v1416 = vadd.f32 %v1241, %v1243
        %v1417 = vadd.f32 %v1242, %v1244
        %v1418 = vadd.f32 %v1416, %v1245
        %v1419 = vadd.f32 %v1417, %v1246
        %v1420 = vadd.f32 %v1418, %v1247
        %v1421 = vadd.f32 %v1419, %v1248
        %v1422 = vadd.f32 %v1420, %v1249
        %v1423 = vadd.f32 %v1421, %v1250
        %v1424 = vpack.c.bf16 %v1423, %v1422
        %v1426 = vsel %vm1261, %v1424, 0
        %1428 = vmatprep.subr.bf16.mxu0 0
        %1429 = vmatpush1.bf16.msra.mxu0 %v1267
        %1430 = vmatprep.subr.bf16.mxu0 0
        %1431 = vmatpush1.bf16.msra.mxu0 0
        %1432 = vmatprep.subr.bf16.mxu0 0
        %1433 = vmatpush1.bf16.msra.mxu0 0
        %1434 = vmatprep.subr.bf16.mxu0 0
        %1435 = vmatpush1.bf16.msra.mxu0 0
        %1436 = vmatprep.subr.bf16.mxu0 0
        %1437 = vmatpush1.bf16.msra.mxu0 0
        %1438 = vmatprep.subr.bf16.mxu0 0
        %1439 = vmatpush1.bf16.msra.mxu0 0
        %1440 = vmatprep.subr.bf16.mxu0 0
        %1441 = vmatpush1.bf16.msra.mxu0 0
        %1442 = vmatprep.subr.bf16.mxu0 0
        %1443 = vmatpush1.bf16.msra.mxu0 0
        %1444 = vmatprep.subr.bf16.mxu0 0
        %1445 = vmatpush1.bf16.msra.mxu0 0
        %1446 = vmatprep.subr.bf16.mxu0 0
        %1447 = vmatpush1.bf16.msra.mxu0 0
        %1448 = vmatprep.subr.bf16.mxu0 0
        %1449 = vmatpush1.bf16.msra.mxu0 0
        %1450 = vmatprep.subr.bf16.mxu0 0
        %1451 = vmatpush1.bf16.msra.mxu0 0
        %1452 = vmatprep.subr.bf16.mxu0 0
        %1453 = vmatpush1.bf16.msra.mxu0 0
        %1454 = vmatprep.subr.bf16.mxu0 0
        %1455 = vmatpush1.bf16.msra.mxu0 0
        %1456 = vmatprep.subr.bf16.mxu0 0
        %1457 = vmatpush1.bf16.msra.mxu0 0
        %1458 = vmatprep.subr.bf16.mxu0 0
        %1459 = vmatpush1.bf16.msra.mxu0 0
        %1460 = vmatprep.mubr.bf16.mxu0 0
        %1461 = vmatmul.mubr.bf16.gmra.mrb[0].mxu0 %v1426
        %v1462 = vpop.f32.mrb[0].mxu0
        %v1463 = vadd.f32 0.0, %v1462
        %v1464 = vpop.f32.mrb[0].mxu0
        %v1465 = vpop.f32.mrb[0].mxu0
        %v1466 = vadd.f32 0.0, %v1465
        %v1467 = vpop.f32.mrb[0].mxu0
        %1468 = vdwg.mxu0
        %v1469 = vld [vmem:[%s2] sm:$0xf]
        %v1471 = vlaneseq
        %v1472 = vshrl.u32 %v1471, 7
        %v1473 = vsub.s32 0, %v1472
        %v1474 = vrot.slane %v1469, %v1473
        %v1475 = vlaneseq
        %v1476 = vshrl.u32 %v1475, 7
        %v1477 = vsub.s32 1, %v1476
        %v1478 = vrot.slane %v1469, %v1477
        %v1479 = vlaneseq
        %v1480 = vshrl.u32 %v1479, 7
        %v1481 = vsub.s32 2, %v1480
        %v1482 = vrot.slane %v1469, %v1481
        %v1483 = vlaneseq
        %v1484 = vshrl.u32 %v1483, 7
        %v1485 = vsub.s32 3, %v1484
        %v1486 = vrot.slane %v1469, %v1485
        %v1491 = vadd.f32 %v1304, %v1474
        %v1492 = vadd.f32 %v1357, %v1478
        %v1493 = vadd.f32 %v1410, %v1482
        %v1494 = vadd.f32 %v1463, %v1486
        %v1495 = vadd.f32 %v1307, %v1474
        %v1496 = vadd.f32 %v1360, %v1478
        %v1497 = vadd.f32 %v1413, %v1482
        %v1498 = vadd.f32 %v1466, %v1486
        %v1499 = vmax.f32 %v1491, 0.0
        %v1500 = vmax.f32 %v1492, 0.0
        %v1501 = vmax.f32 %v1493, 0.0
        %v1502 = vmax.f32 %v1494, 0.0
        %v1503 = vmax.f32 %v1495, 0.0
        %v1504 = vmax.f32 %v1496, 0.0
        %v1505 = vmax.f32 %v1497, 0.0
        %v1506 = vmax.f32 %v1498, 0.0
        %v1507 = vpack.c.bf16 %v1503, %v1499
        %v1508 = vpack.c.bf16 %v1504, %v1500
        %v1509 = vpack.c.bf16 %v1505, %v1501
        %v1510 = vpack.c.bf16 %v1506, %v1502
        %v1511 = vld [vmem:[#allocation3] sm:$0xff]
        %v1512 = vld [vmem:[#allocation3 + $0x8] sm:$0xff]
        %v1513 = vld [vmem:[#allocation3 + $0x10] sm:$0xff]
        %v1514 = vld [vmem:[#allocation3 + $0x18] sm:$0xff]
        %v1515 = vld [vmem:[#allocation3 + $0x20] sm:$0xff]
        %v1516 = vld [vmem:[#allocation3 + $0x28] sm:$0xff]
        %v1517 = vld [vmem:[#allocation3 + $0x30] sm:$0xff]
        %v1518 = vld [vmem:[#allocation3 + $0x38] sm:$0xff]
        %v1519 = vld [vmem:[#allocation3 + $0x40] sm:$0xff]
        %v1520 = vld [vmem:[#allocation3 + $0x48] sm:$0xff]
        %v1521 = vld [vmem:[#allocation3 + $0x50] sm:$0xff]
        %v1522 = vld [vmem:[#allocation3 + $0x58] sm:$0xff]
        %v1523 = vld [vmem:[#allocation3 + $0x60] sm:$0xff]
        %v1524 = vld [vmem:[#allocation3 + $0x68] sm:$0xff]
        %v1525 = vld [vmem:[#allocation3 + $0x70] sm:$0xff]
        %v1526 = vld [vmem:[#allocation3 + $0x78] sm:$0xff]
        %v1527 = vld [vmem:[#allocation3 + $0x80] sm:$0xff]
        %v1528 = vld [vmem:[#allocation3 + $0x88] sm:$0xff]
        %v1529 = vld [vmem:[#allocation3 + $0x90] sm:$0xff]
        %v1530 = vld [vmem:[#allocation3 + $0x98] sm:$0xff]
        %v1531 = vld [vmem:[#allocation3 + $0xa0] sm:$0xff]
        %v1532 = vld [vmem:[#allocation3 + $0xa8] sm:$0xff]
        %v1533 = vld [vmem:[#allocation3 + $0xb0] sm:$0xff]
        %v1534 = vld [vmem:[#allocation3 + $0xb8] sm:$0xff]
        %v1535 = vld [vmem:[#allocation3 + $0xc0] sm:$0xff]
        %v1536 = vld [vmem:[#allocation3 + $0xc8] sm:$0xff]
        %v1537 = vld [vmem:[#allocation3 + $0xd0] sm:$0xff]
        %v1538 = vld [vmem:[#allocation3 + $0xd8] sm:$0xff]
        %v1539 = vld [vmem:[#allocation3 + $0xe0] sm:$0xff]
        %v1540 = vld [vmem:[#allocation3 + $0xe8] sm:$0xff]
        %v1541 = vld [vmem:[#allocation3 + $0xf0] sm:$0xff]
        %v1542 = vld [vmem:[#allocation3 + $0xf8] sm:$0xff]
        %v1543 = vld [vmem:[#allocation3 + $0x100] sm:$0xff]
        %v1544 = vld [vmem:[#allocation3 + $0x108] sm:$0xff]
        %v1545 = vld [vmem:[#allocation3 + $0x110] sm:$0xff]
        %v1546 = vld [vmem:[#allocation3 + $0x118] sm:$0xff]
        %v1547 = vld [vmem:[#allocation3 + $0x120] sm:$0xff]
        %v1548 = vld [vmem:[#allocation3 + $0x128] sm:$0xff]
        %v1549 = vld [vmem:[#allocation3 + $0x130] sm:$0xff]
        %v1550 = vld [vmem:[#allocation3 + $0x138] sm:$0xff]
        %v1551 = vld [vmem:[#allocation3 + $0x140] sm:$0xff]
        %v1552 = vld [vmem:[#allocation3 + $0x148] sm:$0xff]
        %v1553 = vld [vmem:[#allocation3 + $0x150] sm:$0xff]
        %v1554 = vld [vmem:[#allocation3 + $0x158] sm:$0xff]
        %v1555 = vld [vmem:[#allocation3 + $0x160] sm:$0xff]
        %v1556 = vld [vmem:[#allocation3 + $0x168] sm:$0xff]
        %v1557 = vld [vmem:[#allocation3 + $0x170] sm:$0xff]
        %v1558 = vld [vmem:[#allocation3 + $0x178] sm:$0xff]
        %v1559 = vld [vmem:[#allocation3 + $0x180] sm:$0xff]
        %v1560 = vld [vmem:[#allocation3 + $0x188] sm:$0xff]
        %v1561 = vld [vmem:[#allocation3 + $0x190] sm:$0xff]
        %v1562 = vld [vmem:[#allocation3 + $0x198] sm:$0xff]
        %v1563 = vld [vmem:[#allocation3 + $0x1a0] sm:$0xff]
        %v1564 = vld [vmem:[#allocation3 + $0x1a8] sm:$0xff]
        %v1565 = vld [vmem:[#allocation3 + $0x1b0] sm:$0xff]
        %v1566 = vld [vmem:[#allocation3 + $0x1b8] sm:$0xff]
        %v1567 = vld [vmem:[#allocation3 + $0x1c0] sm:$0xff]
        %v1568 = vld [vmem:[#allocation3 + $0x1c8] sm:$0xff]
        %v1569 = vld [vmem:[#allocation3 + $0x1d0] sm:$0xff]
        %v1570 = vld [vmem:[#allocation3 + $0x1d8] sm:$0xff]
        %v1571 = vld [vmem:[#allocation3 + $0x1e0] sm:$0xff]
        %v1572 = vld [vmem:[#allocation3 + $0x1e8] sm:$0xff]
        %v1573 = vld [vmem:[#allocation3 + $0x1f0] sm:$0xff]
        %v1574 = vld [vmem:[#allocation3 + $0x1f8] sm:$0xff]
        %v1575 = vld [vmem:[#allocation3 + $0x200] sm:$0xff]
        %v1576 = vld [vmem:[#allocation3 + $0x208] sm:$0xff]
        %v1577 = vld [vmem:[#allocation3 + $0x210] sm:$0xff]
        %v1578 = vld [vmem:[#allocation3 + $0x218] sm:$0xff]
        %v1579 = vld [vmem:[#allocation3 + $0x220] sm:$0xff]
        %v1580 = vld [vmem:[#allocation3 + $0x228] sm:$0xff]
        %v1581 = vld [vmem:[#allocation3 + $0x230] sm:$0xff]
        %v1582 = vld [vmem:[#allocation3 + $0x238] sm:$0xff]
        %v1583 = vld [vmem:[#allocation3 + $0x240] sm:$0xff]
        %v1584 = vld [vmem:[#allocation3 + $0x248] sm:$0xff]
        %v1585 = vld [vmem:[#allocation3 + $0x250] sm:$0xff]
        %v1586 = vld [vmem:[#allocation3 + $0x258] sm:$0xff]
        %v1587 = vld [vmem:[#allocation3 + $0x260] sm:$0xff]
        %v1588 = vld [vmem:[#allocation3 + $0x268] sm:$0xff]
        %v1589 = vld [vmem:[#allocation3 + $0x270] sm:$0xff]
        %v1590 = vld [vmem:[#allocation3 + $0x278] sm:$0xff]
        %v1591 = vld [vmem:[#allocation3 + $0x280] sm:$0xff]
        %v1592 = vld [vmem:[#allocation3 + $0x288] sm:$0xff]
        %v1593 = vld [vmem:[#allocation3 + $0x290] sm:$0xff]
        %v1594 = vld [vmem:[#allocation3 + $0x298] sm:$0xff]
        %v1595 = vld [vmem:[#allocation3 + $0x2a0] sm:$0xff]
        %v1596 = vld [vmem:[#allocation3 + $0x2a8] sm:$0xff]
        %v1597 = vld [vmem:[#allocation3 + $0x2b0] sm:$0xff]
        %v1598 = vld [vmem:[#allocation3 + $0x2b8] sm:$0xff]
        %v1599 = vld [vmem:[#allocation3 + $0x2c0] sm:$0xff]
        %v1600 = vld [vmem:[#allocation3 + $0x2c8] sm:$0xff]
        %v1601 = vld [vmem:[#allocation3 + $0x2d0] sm:$0xff]
        %v1602 = vld [vmem:[#allocation3 + $0x2d8] sm:$0xff]
        %v1603 = vld [vmem:[#allocation3 + $0x2e0] sm:$0xff]
        %v1604 = vld [vmem:[#allocation3 + $0x2e8] sm:$0xff]
        %v1605 = vld [vmem:[#allocation3 + $0x2f0] sm:$0xff]
        %v1606 = vld [vmem:[#allocation3 + $0x2f8] sm:$0xff]
        %v1607 = vld [vmem:[#allocation3 + $0x300] sm:$0xff]
        %v1608 = vld [vmem:[#allocation3 + $0x308] sm:$0xff]
        %v1609 = vld [vmem:[#allocation3 + $0x310] sm:$0xff]
        %v1610 = vld [vmem:[#allocation3 + $0x318] sm:$0xff]
        %v1611 = vld [vmem:[#allocation3 + $0x320] sm:$0xff]
        %v1612 = vld [vmem:[#allocation3 + $0x328] sm:$0xff]
        %v1613 = vld [vmem:[#allocation3 + $0x330] sm:$0xff]
        %v1614 = vld [vmem:[#allocation3 + $0x338] sm:$0xff]
        %v1615 = vld [vmem:[#allocation3 + $0x340] sm:$0xff]
        %v1616 = vld [vmem:[#allocation3 + $0x348] sm:$0xff]
        %v1617 = vld [vmem:[#allocation3 + $0x350] sm:$0xff]
        %v1618 = vld [vmem:[#allocation3 + $0x358] sm:$0xff]
        %v1619 = vld [vmem:[#allocation3 + $0x360] sm:$0xff]
        %v1620 = vld [vmem:[#allocation3 + $0x368] sm:$0xff]
        %v1621 = vld [vmem:[#allocation3 + $0x370] sm:$0xff]
        %v1622 = vld [vmem:[#allocation3 + $0x378] sm:$0xff]
        %v1623 = vld [vmem:[#allocation3 + $0x380] sm:$0xff]
        %v1624 = vld [vmem:[#allocation3 + $0x388] sm:$0xff]
        %v1625 = vld [vmem:[#allocation3 + $0x390] sm:$0xff]
        %v1626 = vld [vmem:[#allocation3 + $0x398] sm:$0xff]
        %v1627 = vld [vmem:[#allocation3 + $0x3a0] sm:$0xff]
        %v1628 = vld [vmem:[#allocation3 + $0x3a8] sm:$0xff]
        %v1629 = vld [vmem:[#allocation3 + $0x3b0] sm:$0xff]
        %v1630 = vld [vmem:[#allocation3 + $0x3b8] sm:$0xff]
        %v1631 = vld [vmem:[#allocation3 + $0x3c0] sm:$0xff]
        %v1632 = vld [vmem:[#allocation3 + $0x3c8] sm:$0xff]
        %v1633 = vld [vmem:[#allocation3 + $0x3d0] sm:$0xff]
        %v1634 = vld [vmem:[#allocation3 + $0x3d8] sm:$0xff]
        %v1635 = vld [vmem:[#allocation3 + $0x3e0] sm:$0xff]
        %v1636 = vld [vmem:[#allocation3 + $0x3e8] sm:$0xff]
        %v1637 = vld [vmem:[#allocation3 + $0x3f0] sm:$0xff]
        %v1638 = vld [vmem:[#allocation3 + $0x3f8] sm:$0xff]
        %v1639 = vld [vmem:[#allocation3 + $0x400] sm:$0xff]
        %v1640 = vld [vmem:[#allocation3 + $0x408] sm:$0xff]
        %v1641 = vld [vmem:[#allocation3 + $0x410] sm:$0xff]
        %v1642 = vld [vmem:[#allocation3 + $0x418] sm:$0xff]
        %v1643 = vld [vmem:[#allocation3 + $0x420] sm:$0xff]
        %v1644 = vld [vmem:[#allocation3 + $0x428] sm:$0xff]
        %v1645 = vld [vmem:[#allocation3 + $0x430] sm:$0xff]
        %v1646 = vld [vmem:[#allocation3 + $0x438] sm:$0xff]
        %v1647 = vld [vmem:[#allocation3 + $0x440] sm:$0xff]
        %v1648 = vld [vmem:[#allocation3 + $0x448] sm:$0xff]
        %v1649 = vld [vmem:[#allocation3 + $0x450] sm:$0xff]
        %v1650 = vld [vmem:[#allocation3 + $0x458] sm:$0xff]
        %v1651 = vld [vmem:[#allocation3 + $0x460] sm:$0xff]
        %v1652 = vld [vmem:[#allocation3 + $0x468] sm:$0xff]
        %v1653 = vld [vmem:[#allocation3 + $0x470] sm:$0xff]
        %v1654 = vld [vmem:[#allocation3 + $0x478] sm:$0xff]
        %v1655 = vld [vmem:[#allocation3 + $0x480] sm:$0xff]
        %v1656 = vld [vmem:[#allocation3 + $0x488] sm:$0xff]
        %v1657 = vld [vmem:[#allocation3 + $0x490] sm:$0xff]
        %v1658 = vld [vmem:[#allocation3 + $0x498] sm:$0xff]
        %v1659 = vld [vmem:[#allocation3 + $0x4a0] sm:$0xff]
        %v1660 = vld [vmem:[#allocation3 + $0x4a8] sm:$0xff]
        %v1661 = vld [vmem:[#allocation3 + $0x4b0] sm:$0xff]
        %v1662 = vld [vmem:[#allocation3 + $0x4b8] sm:$0xff]
        %v1663 = vld [vmem:[#allocation3 + $0x4c0] sm:$0xff]
        %v1664 = vld [vmem:[#allocation3 + $0x4c8] sm:$0xff]
        %v1665 = vld [vmem:[#allocation3 + $0x4d0] sm:$0xff]
        %v1666 = vld [vmem:[#allocation3 + $0x4d8] sm:$0xff]
        %v1667 = vld [vmem:[#allocation3 + $0x4e0] sm:$0xff]
        %v1668 = vld [vmem:[#allocation3 + $0x4e8] sm:$0xff]
        %v1669 = vld [vmem:[#allocation3 + $0x4f0] sm:$0xff]
        %v1670 = vld [vmem:[#allocation3 + $0x4f8] sm:$0xff]
        %v1671 = vld [vmem:[#allocation3 + $0x500] sm:$0xff]
        %v1672 = vld [vmem:[#allocation3 + $0x508] sm:$0xff]
        %v1673 = vld [vmem:[#allocation3 + $0x510] sm:$0xff]
        %v1674 = vld [vmem:[#allocation3 + $0x518] sm:$0xff]
        %v1675 = vld [vmem:[#allocation3 + $0x520] sm:$0xff]
        %v1676 = vld [vmem:[#allocation3 + $0x528] sm:$0xff]
        %v1677 = vld [vmem:[#allocation3 + $0x530] sm:$0xff]
        %v1678 = vld [vmem:[#allocation3 + $0x538] sm:$0xff]
        %v1679 = vld [vmem:[#allocation3 + $0x540] sm:$0xff]
        %v1680 = vld [vmem:[#allocation3 + $0x548] sm:$0xff]
        %v1681 = vld [vmem:[#allocation3 + $0x550] sm:$0xff]
        %v1682 = vld [vmem:[#allocation3 + $0x558] sm:$0xff]
        %v1683 = vld [vmem:[#allocation3 + $0x560] sm:$0xff]
        %v1684 = vld [vmem:[#allocation3 + $0x568] sm:$0xff]
        %v1685 = vld [vmem:[#allocation3 + $0x570] sm:$0xff]
        %v1686 = vld [vmem:[#allocation3 + $0x578] sm:$0xff]
        %v1687 = vld [vmem:[#allocation3 + $0x580] sm:$0xff]
        %v1688 = vld [vmem:[#allocation3 + $0x588] sm:$0xff]
        %v1689 = vld [vmem:[#allocation3 + $0x590] sm:$0xff]
        %v1690 = vld [vmem:[#allocation3 + $0x598] sm:$0xff]
        %v1691 = vld [vmem:[#allocation3 + $0x5a0] sm:$0xff]
        %v1692 = vld [vmem:[#allocation3 + $0x5a8] sm:$0xff]
        %v1693 = vld [vmem:[#allocation3 + $0x5b0] sm:$0xff]
        %v1694 = vld [vmem:[#allocation3 + $0x5b8] sm:$0xff]
        %v1695 = vld [vmem:[#allocation3 + $0x5c0] sm:$0xff]
        %v1696 = vld [vmem:[#allocation3 + $0x5c8] sm:$0xff]
        %v1697 = vld [vmem:[#allocation3 + $0x5d0] sm:$0xff]
        %v1698 = vld [vmem:[#allocation3 + $0x5d8] sm:$0xff]
        %v1699 = vld [vmem:[#allocation3 + $0x5e0] sm:$0xff]
        %v1700 = vld [vmem:[#allocation3 + $0x5e8] sm:$0xff]
        %v1701 = vld [vmem:[#allocation3 + $0x5f0] sm:$0xff]
        %v1702 = vld [vmem:[#allocation3 + $0x5f8] sm:$0xff]
        %v1703 = vld [vmem:[%s4] sm:$0x3f]
        %v1705 = vlaneseq
        %v1706 = vshrl.u32 %v1705, 7
        %v1707 = vsub.s32 0, %v1706
        %v1708 = vrot.slane %v1703, %v1707
        %v1709 = vlaneseq
        %v1710 = vshrl.u32 %v1709, 7
        %v1711 = vsub.s32 1, %v1710
        %v1712 = vrot.slane %v1703, %v1711
        %v1713 = vlaneseq
        %v1714 = vshrl.u32 %v1713, 7
        %v1715 = vsub.s32 2, %v1714
        %v1716 = vrot.slane %v1703, %v1715
        %v1717 = vlaneseq
        %v1718 = vshrl.u32 %v1717, 7
        %v1719 = vsub.s32 3, %v1718
        %v1720 = vrot.slane %v1703, %v1719
        %v1721 = vlaneseq
        %v1722 = vshrl.u32 %v1721, 7
        %v1723 = vsub.s32 4, %v1722
        %v1724 = vrot.slane %v1703, %v1723
        %v1725 = vlaneseq
        %v1726 = vshrl.u32 %v1725, 7
        %v1727 = vsub.s32 5, %v1726
        %v1728 = vrot.slane %v1703, %v1727
        %v1927 = vunpack.c.l.b16 %v1511
        %v1928 = vunpack.c.h.b16 %v1511
        %v1929 = vunpack.c.l.b16 %v1512
        %v1930 = vunpack.c.h.b16 %v1512
        %v1931 = vunpack.c.l.b16 %v1513
        %v1932 = vunpack.c.h.b16 %v1513
        %v1933 = vunpack.c.l.b16 %v1514
        %v1934 = vunpack.c.h.b16 %v1514
        %v1935 = vunpack.c.l.b16 %v1515
        %v1936 = vunpack.c.h.b16 %v1515
        %v1937 = vunpack.c.l.b16 %v1516
        %v1938 = vunpack.c.h.b16 %v1516
        %v1939 = vunpack.c.l.b16 %v1517
        %v1940 = vunpack.c.h.b16 %v1517
        %v1941 = vunpack.c.l.b16 %v1518
        %v1942 = vunpack.c.h.b16 %v1518
        %v1943 = vunpack.c.l.b16 %v1519
        %v1944 = vunpack.c.h.b16 %v1519
        %v1945 = vunpack.c.l.b16 %v1520
        %v1946 = vunpack.c.h.b16 %v1520
        %v1947 = vunpack.c.l.b16 %v1521
        %v1948 = vunpack.c.h.b16 %v1521
        %v1949 = vunpack.c.l.b16 %v1522
        %v1950 = vunpack.c.h.b16 %v1522
        %v1951 = vunpack.c.l.b16 %v1523
        %v1952 = vunpack.c.h.b16 %v1523
        %v1953 = vunpack.c.l.b16 %v1524
        %v1954 = vunpack.c.h.b16 %v1524
        %v1955 = vunpack.c.l.b16 %v1525
        %v1956 = vunpack.c.h.b16 %v1525
        %v1957 = vunpack.c.l.b16 %v1526
        %v1958 = vunpack.c.h.b16 %v1526
        %v1959 = vunpack.c.l.b16 %v1527
        %v1960 = vunpack.c.h.b16 %v1527
        %v1961 = vunpack.c.l.b16 %v1528
        %v1962 = vunpack.c.h.b16 %v1528
        %v1963 = vunpack.c.l.b16 %v1529
        %v1964 = vunpack.c.h.b16 %v1529
        %v1965 = vunpack.c.l.b16 %v1530
        %v1966 = vunpack.c.h.b16 %v1530
        %v1967 = vunpack.c.l.b16 %v1531
        %v1968 = vunpack.c.h.b16 %v1531
        %v1969 = vunpack.c.l.b16 %v1532
        %v1970 = vunpack.c.h.b16 %v1532
        %v1971 = vunpack.c.l.b16 %v1533
        %v1972 = vunpack.c.h.b16 %v1533
        %v1973 = vunpack.c.l.b16 %v1534
        %v1974 = vunpack.c.h.b16 %v1534
        %v1975 = vunpack.c.l.b16 %v1535
        %v1976 = vunpack.c.h.b16 %v1535
        %v1977 = vunpack.c.l.b16 %v1536
        %v1978 = vunpack.c.h.b16 %v1536
        %v1979 = vunpack.c.l.b16 %v1537
        %v1980 = vunpack.c.h.b16 %v1537
        %v1981 = vunpack.c.l.b16 %v1538
        %v1982 = vunpack.c.h.b16 %v1538
        %v1983 = vunpack.c.l.b16 %v1539
        %v1984 = vunpack.c.h.b16 %v1539
        %v1985 = vunpack.c.l.b16 %v1540
        %v1986 = vunpack.c.h.b16 %v1540
        %v1987 = vunpack.c.l.b16 %v1541
        %v1988 = vunpack.c.h.b16 %v1541
        %v1989 = vunpack.c.l.b16 %v1542
        %v1990 = vunpack.c.h.b16 %v1542
        %v1991 = vunpack.c.l.b16 %v1543
        %v1992 = vunpack.c.h.b16 %v1543
        %v1993 = vunpack.c.l.b16 %v1544
        %v1994 = vunpack.c.h.b16 %v1544
        %v1995 = vunpack.c.l.b16 %v1545
        %v1996 = vunpack.c.h.b16 %v1545
        %v1997 = vunpack.c.l.b16 %v1546
        %v1998 = vunpack.c.h.b16 %v1546
        %v1999 = vunpack.c.l.b16 %v1547
        %v2000 = vunpack.c.h.b16 %v1547
        %v2001 = vunpack.c.l.b16 %v1548
        %v2002 = vunpack.c.h.b16 %v1548
        %v2003 = vunpack.c.l.b16 %v1549
        %v2004 = vunpack.c.h.b16 %v1549
        %v2005 = vunpack.c.l.b16 %v1550
        %v2006 = vunpack.c.h.b16 %v1550
        %v2007 = vunpack.c.l.b16 %v1551
        %v2008 = vunpack.c.h.b16 %v1551
        %v2009 = vunpack.c.l.b16 %v1552
        %v2010 = vunpack.c.h.b16 %v1552
        %v2011 = vunpack.c.l.b16 %v1553
        %v2012 = vunpack.c.h.b16 %v1553
        %v2013 = vunpack.c.l.b16 %v1554
        %v2014 = vunpack.c.h.b16 %v1554
        %v2015 = vunpack.c.l.b16 %v1555
        %v2016 = vunpack.c.h.b16 %v1555
        %v2017 = vunpack.c.l.b16 %v1556
        %v2018 = vunpack.c.h.b16 %v1556
        %v2019 = vunpack.c.l.b16 %v1557
        %v2020 = vunpack.c.h.b16 %v1557
        %v2021 = vunpack.c.l.b16 %v1558
        %v2022 = vunpack.c.h.b16 %v1558
        %v2023 = vunpack.c.l.b16 %v1559
        %v2024 = vunpack.c.h.b16 %v1559
        %v2025 = vunpack.c.l.b16 %v1560
        %v2026 = vunpack.c.h.b16 %v1560
        %v2027 = vunpack.c.l.b16 %v1561
        %v2028 = vunpack.c.h.b16 %v1561
        %v2029 = vunpack.c.l.b16 %v1562
        %v2030 = vunpack.c.h.b16 %v1562
        %v2031 = vunpack.c.l.b16 %v1563
        %v2032 = vunpack.c.h.b16 %v1563
        %v2033 = vunpack.c.l.b16 %v1564
        %v2034 = vunpack.c.h.b16 %v1564
        %v2035 = vunpack.c.l.b16 %v1565
        %v2036 = vunpack.c.h.b16 %v1565
        %v2037 = vunpack.c.l.b16 %v1566
        %v2038 = vunpack.c.h.b16 %v1566
        %v2039 = vunpack.c.l.b16 %v1567
        %v2040 = vunpack.c.h.b16 %v1567
        %v2041 = vunpack.c.l.b16 %v1568
        %v2042 = vunpack.c.h.b16 %v1568
        %v2043 = vunpack.c.l.b16 %v1569
        %v2044 = vunpack.c.h.b16 %v1569
        %v2045 = vunpack.c.l.b16 %v1570
        %v2046 = vunpack.c.h.b16 %v1570
        %v2047 = vunpack.c.l.b16 %v1571
        %v2048 = vunpack.c.h.b16 %v1571
        %v2049 = vunpack.c.l.b16 %v1572
        %v2050 = vunpack.c.h.b16 %v1572
        %v2051 = vunpack.c.l.b16 %v1573
        %v2052 = vunpack.c.h.b16 %v1573
        %v2053 = vunpack.c.l.b16 %v1574
        %v2054 = vunpack.c.h.b16 %v1574
        %v2055 = vunpack.c.l.b16 %v1575
        %v2056 = vunpack.c.h.b16 %v1575
        %v2057 = vunpack.c.l.b16 %v1576
        %v2058 = vunpack.c.h.b16 %v1576
        %v2059 = vunpack.c.l.b16 %v1577
        %v2060 = vunpack.c.h.b16 %v1577
        %v2061 = vunpack.c.l.b16 %v1578
        %v2062 = vunpack.c.h.b16 %v1578
        %v2063 = vunpack.c.l.b16 %v1579
        %v2064 = vunpack.c.h.b16 %v1579
        %v2065 = vunpack.c.l.b16 %v1580
        %v2066 = vunpack.c.h.b16 %v1580
        %v2067 = vunpack.c.l.b16 %v1581
        %v2068 = vunpack.c.h.b16 %v1581
        %v2069 = vunpack.c.l.b16 %v1582
        %v2070 = vunpack.c.h.b16 %v1582
        %v2071 = vunpack.c.l.b16 %v1583
        %v2072 = vunpack.c.h.b16 %v1583
        %v2073 = vunpack.c.l.b16 %v1584
        %v2074 = vunpack.c.h.b16 %v1584
        %v2075 = vunpack.c.l.b16 %v1585
        %v2076 = vunpack.c.h.b16 %v1585
        %v2077 = vunpack.c.l.b16 %v1586
        %v2078 = vunpack.c.h.b16 %v1586
        %v2079 = vunpack.c.l.b16 %v1587
        %v2080 = vunpack.c.h.b16 %v1587
        %v2081 = vunpack.c.l.b16 %v1588
        %v2082 = vunpack.c.h.b16 %v1588
        %v2083 = vunpack.c.l.b16 %v1589
        %v2084 = vunpack.c.h.b16 %v1589
        %v2085 = vunpack.c.l.b16 %v1590
        %v2086 = vunpack.c.h.b16 %v1590
        %v2087 = vunpack.c.l.b16 %v1591
        %v2088 = vunpack.c.h.b16 %v1591
        %v2089 = vunpack.c.l.b16 %v1592
        %v2090 = vunpack.c.h.b16 %v1592
        %v2091 = vunpack.c.l.b16 %v1593
        %v2092 = vunpack.c.h.b16 %v1593
        %v2093 = vunpack.c.l.b16 %v1594
        %v2094 = vunpack.c.h.b16 %v1594
        %v2095 = vunpack.c.l.b16 %v1595
        %v2096 = vunpack.c.h.b16 %v1595
        %v2097 = vunpack.c.l.b16 %v1596
        %v2098 = vunpack.c.h.b16 %v1596
        %v2099 = vunpack.c.l.b16 %v1597
        %v2100 = vunpack.c.h.b16 %v1597
        %v2101 = vunpack.c.l.b16 %v1598
        %v2102 = vunpack.c.h.b16 %v1598
        %v2103 = vunpack.c.l.b16 %v1599
        %v2104 = vunpack.c.h.b16 %v1599
        %v2105 = vunpack.c.l.b16 %v1600
        %v2106 = vunpack.c.h.b16 %v1600
        %v2107 = vunpack.c.l.b16 %v1601
        %v2108 = vunpack.c.h.b16 %v1601
        %v2109 = vunpack.c.l.b16 %v1602
        %v2110 = vunpack.c.h.b16 %v1602
        %v2111 = vunpack.c.l.b16 %v1603
        %v2112 = vunpack.c.h.b16 %v1603
        %v2113 = vunpack.c.l.b16 %v1604
        %v2114 = vunpack.c.h.b16 %v1604
        %v2115 = vunpack.c.l.b16 %v1605
        %v2116 = vunpack.c.h.b16 %v1605
        %v2117 = vunpack.c.l.b16 %v1606
        %v2118 = vunpack.c.h.b16 %v1606
        %v2119 = vunpack.c.l.b16 %v1607
        %v2120 = vunpack.c.h.b16 %v1607
        %v2121 = vunpack.c.l.b16 %v1608
        %v2122 = vunpack.c.h.b16 %v1608
        %v2123 = vunpack.c.l.b16 %v1609
        %v2124 = vunpack.c.h.b16 %v1609
        %v2125 = vunpack.c.l.b16 %v1610
        %v2126 = vunpack.c.h.b16 %v1610
        %v2127 = vunpack.c.l.b16 %v1611
        %v2128 = vunpack.c.h.b16 %v1611
        %v2129 = vunpack.c.l.b16 %v1612
        %v2130 = vunpack.c.h.b16 %v1612
        %v2131 = vunpack.c.l.b16 %v1613
        %v2132 = vunpack.c.h.b16 %v1613
        %v2133 = vunpack.c.l.b16 %v1614
        %v2134 = vunpack.c.h.b16 %v1614
        %v2135 = vunpack.c.l.b16 %v1615
        %v2136 = vunpack.c.h.b16 %v1615
        %v2137 = vunpack.c.l.b16 %v1616
        %v2138 = vunpack.c.h.b16 %v1616
        %v2139 = vunpack.c.l.b16 %v1617
        %v2140 = vunpack.c.h.b16 %v1617
        %v2141 = vunpack.c.l.b16 %v1618
        %v2142 = vunpack.c.h.b16 %v1618
        %v2143 = vunpack.c.l.b16 %v1619
        %v2144 = vunpack.c.h.b16 %v1619
        %v2145 = vunpack.c.l.b16 %v1620
        %v2146 = vunpack.c.h.b16 %v1620
        %v2147 = vunpack.c.l.b16 %v1621
        %v2148 = vunpack.c.h.b16 %v1621
        %v2149 = vunpack.c.l.b16 %v1622
        %v2150 = vunpack.c.h.b16 %v1622
        %v2151 = vunpack.c.l.b16 %v1623
        %v2152 = vunpack.c.h.b16 %v1623
        %v2153 = vunpack.c.l.b16 %v1624
        %v2154 = vunpack.c.h.b16 %v1624
        %v2155 = vunpack.c.l.b16 %v1625
        %v2156 = vunpack.c.h.b16 %v1625
        %v2157 = vunpack.c.l.b16 %v1626
        %v2158 = vunpack.c.h.b16 %v1626
        %v2159 = vunpack.c.l.b16 %v1627
        %v2160 = vunpack.c.h.b16 %v1627
        %v2161 = vunpack.c.l.b16 %v1628
        %v2162 = vunpack.c.h.b16 %v1628
        %v2163 = vunpack.c.l.b16 %v1629
        %v2164 = vunpack.c.h.b16 %v1629
        %v2165 = vunpack.c.l.b16 %v1630
        %v2166 = vunpack.c.h.b16 %v1630
        %v2167 = vunpack.c.l.b16 %v1631
        %v2168 = vunpack.c.h.b16 %v1631
        %v2169 = vunpack.c.l.b16 %v1632
        %v2170 = vunpack.c.h.b16 %v1632
        %v2171 = vunpack.c.l.b16 %v1633
        %v2172 = vunpack.c.h.b16 %v1633
        %v2173 = vunpack.c.l.b16 %v1634
        %v2174 = vunpack.c.h.b16 %v1634
        %v2175 = vunpack.c.l.b16 %v1635
        %v2176 = vunpack.c.h.b16 %v1635
        %v2177 = vunpack.c.l.b16 %v1636
        %v2178 = vunpack.c.h.b16 %v1636
        %v2179 = vunpack.c.l.b16 %v1637
        %v2180 = vunpack.c.h.b16 %v1637
        %v2181 = vunpack.c.l.b16 %v1638
        %v2182 = vunpack.c.h.b16 %v1638
        %v2183 = vunpack.c.l.b16 %v1639
        %v2184 = vunpack.c.h.b16 %v1639
        %v2185 = vunpack.c.l.b16 %v1640
        %v2186 = vunpack.c.h.b16 %v1640
        %v2187 = vunpack.c.l.b16 %v1641
        %v2188 = vunpack.c.h.b16 %v1641
        %v2189 = vunpack.c.l.b16 %v1642
        %v2190 = vunpack.c.h.b16 %v1642
        %v2191 = vunpack.c.l.b16 %v1643
        %v2192 = vunpack.c.h.b16 %v1643
        %v2193 = vunpack.c.l.b16 %v1644
        %v2194 = vunpack.c.h.b16 %v1644
        %v2195 = vunpack.c.l.b16 %v1645
        %v2196 = vunpack.c.h.b16 %v1645
        %v2197 = vunpack.c.l.b16 %v1646
        %v2198 = vunpack.c.h.b16 %v1646
        %v2199 = vunpack.c.l.b16 %v1647
        %v2200 = vunpack.c.h.b16 %v1647
        %v2201 = vunpack.c.l.b16 %v1648
        %v2202 = vunpack.c.h.b16 %v1648
        %v2203 = vunpack.c.l.b16 %v1649
        %v2204 = vunpack.c.h.b16 %v1649
        %v2205 = vunpack.c.l.b16 %v1650
        %v2206 = vunpack.c.h.b16 %v1650
        %v2207 = vunpack.c.l.b16 %v1651
        %v2208 = vunpack.c.h.b16 %v1651
        %v2209 = vunpack.c.l.b16 %v1652
        %v2210 = vunpack.c.h.b16 %v1652
        %v2211 = vunpack.c.l.b16 %v1653
        %v2212 = vunpack.c.h.b16 %v1653
        %v2213 = vunpack.c.l.b16 %v1654
        %v2214 = vunpack.c.h.b16 %v1654
        %v2215 = vunpack.c.l.b16 %v1655
        %v2216 = vunpack.c.h.b16 %v1655
        %v2217 = vunpack.c.l.b16 %v1656
        %v2218 = vunpack.c.h.b16 %v1656
        %v2219 = vunpack.c.l.b16 %v1657
        %v2220 = vunpack.c.h.b16 %v1657
        %v2221 = vunpack.c.l.b16 %v1658
        %v2222 = vunpack.c.h.b16 %v1658
        %v2223 = vunpack.c.l.b16 %v1659
        %v2224 = vunpack.c.h.b16 %v1659
        %v2225 = vunpack.c.l.b16 %v1660
        %v2226 = vunpack.c.h.b16 %v1660
        %v2227 = vunpack.c.l.b16 %v1661
        %v2228 = vunpack.c.h.b16 %v1661
        %v2229 = vunpack.c.l.b16 %v1662
        %v2230 = vunpack.c.h.b16 %v1662
        %v2231 = vunpack.c.l.b16 %v1663
        %v2232 = vunpack.c.h.b16 %v1663
        %v2233 = vunpack.c.l.b16 %v1664
        %v2234 = vunpack.c.h.b16 %v1664
        %v2235 = vunpack.c.l.b16 %v1665
        %v2236 = vunpack.c.h.b16 %v1665
        %v2237 = vunpack.c.l.b16 %v1666
        %v2238 = vunpack.c.h.b16 %v1666
        %v2239 = vunpack.c.l.b16 %v1667
        %v2240 = vunpack.c.h.b16 %v1667
        %v2241 = vunpack.c.l.b16 %v1668
        %v2242 = vunpack.c.h.b16 %v1668
        %v2243 = vunpack.c.l.b16 %v1669
        %v2244 = vunpack.c.h.b16 %v1669
        %v2245 = vunpack.c.l.b16 %v1670
        %v2246 = vunpack.c.h.b16 %v1670
        %v2247 = vunpack.c.l.b16 %v1671
        %v2248 = vunpack.c.h.b16 %v1671
        %v2249 = vunpack.c.l.b16 %v1672
        %v2250 = vunpack.c.h.b16 %v1672
        %v2251 = vunpack.c.l.b16 %v1673
        %v2252 = vunpack.c.h.b16 %v1673
        %v2253 = vunpack.c.l.b16 %v1674
        %v2254 = vunpack.c.h.b16 %v1674
        %v2255 = vunpack.c.l.b16 %v1675
        %v2256 = vunpack.c.h.b16 %v1675
        %v2257 = vunpack.c.l.b16 %v1676
        %v2258 = vunpack.c.h.b16 %v1676
        %v2259 = vunpack.c.l.b16 %v1677
        %v2260 = vunpack.c.h.b16 %v1677
        %v2261 = vunpack.c.l.b16 %v1678
        %v2262 = vunpack.c.h.b16 %v1678
        %v2263 = vunpack.c.l.b16 %v1679
        %v2264 = vunpack.c.h.b16 %v1679
        %v2265 = vunpack.c.l.b16 %v1680
        %v2266 = vunpack.c.h.b16 %v1680
        %v2267 = vunpack.c.l.b16 %v1681
        %v2268 = vunpack.c.h.b16 %v1681
        %v2269 = vunpack.c.l.b16 %v1682
        %v2270 = vunpack.c.h.b16 %v1682
        %v2271 = vunpack.c.l.b16 %v1683
        %v2272 = vunpack.c.h.b16 %v1683
        %v2273 = vunpack.c.l.b16 %v1684
        %v2274 = vunpack.c.h.b16 %v1684
        %v2275 = vunpack.c.l.b16 %v1685
        %v2276 = vunpack.c.h.b16 %v1685
        %v2277 = vunpack.c.l.b16 %v1686
        %v2278 = vunpack.c.h.b16 %v1686
        %v2279 = vunpack.c.l.b16 %v1687
        %v2280 = vunpack.c.h.b16 %v1687
        %v2281 = vunpack.c.l.b16 %v1688
        %v2282 = vunpack.c.h.b16 %v1688
        %v2283 = vunpack.c.l.b16 %v1689
        %v2284 = vunpack.c.h.b16 %v1689
        %v2285 = vunpack.c.l.b16 %v1690
        %v2286 = vunpack.c.h.b16 %v1690
        %v2287 = vunpack.c.l.b16 %v1691
        %v2288 = vunpack.c.h.b16 %v1691
        %v2289 = vunpack.c.l.b16 %v1692
        %v2290 = vunpack.c.h.b16 %v1692
        %v2291 = vunpack.c.l.b16 %v1693
        %v2292 = vunpack.c.h.b16 %v1693
        %v2293 = vunpack.c.l.b16 %v1694
        %v2294 = vunpack.c.h.b16 %v1694
        %v2295 = vunpack.c.l.b16 %v1695
        %v2296 = vunpack.c.h.b16 %v1695
        %v2297 = vunpack.c.l.b16 %v1696
        %v2298 = vunpack.c.h.b16 %v1696
        %v2299 = vunpack.c.l.b16 %v1697
        %v2300 = vunpack.c.h.b16 %v1697
        %v2301 = vunpack.c.l.b16 %v1698
        %v2302 = vunpack.c.h.b16 %v1698
        %v2303 = vunpack.c.l.b16 %v1699
        %v2304 = vunpack.c.h.b16 %v1699
        %v2305 = vunpack.c.l.b16 %v1700
        %v2306 = vunpack.c.h.b16 %v1700
        %v2307 = vunpack.c.l.b16 %v1701
        %v2308 = vunpack.c.h.b16 %v1701
        %v2309 = vunpack.c.l.b16 %v1702
        %v2310 = vunpack.c.h.b16 %v1702
        %v2311 = vpack.c.b16 %v1933, %v1927
        %v2312 = vpack.c.b16 %v1934, %v1928
        %v2313 = vpack.c.b16 %v1935, %v1929
        %v2314 = vpack.c.b16 %v1936, %v1930
        %v2315 = vpack.c.b16 %v1937, %v1931
        %v2316 = vpack.c.b16 %v1938, %v1932
        %v2317 = vpack.c.b16 %v1945, %v1939
        %v2318 = vpack.c.b16 %v1946, %v1940
        %v2319 = vpack.c.b16 %v1947, %v1941
        %v2320 = vpack.c.b16 %v1948, %v1942
        %v2321 = vpack.c.b16 %v1949, %v1943
        %v2322 = vpack.c.b16 %v1950, %v1944
        %v2323 = vpack.c.b16 %v1957, %v1951
        %v2324 = vpack.c.b16 %v1958, %v1952
        %v2325 = vpack.c.b16 %v1959, %v1953
        %v2326 = vpack.c.b16 %v1960, %v1954
        %v2327 = vpack.c.b16 %v1961, %v1955
        %v2328 = vpack.c.b16 %v1962, %v1956
        %v2329 = vpack.c.b16 %v1969, %v1963
        %v2330 = vpack.c.b16 %v1970, %v1964
        %v2331 = vpack.c.b16 %v1971, %v1965
        %v2332 = vpack.c.b16 %v1972, %v1966
        %v2333 = vpack.c.b16 %v1973, %v1967
        %v2334 = vpack.c.b16 %v1974, %v1968
        %v2335 = vpack.c.b16 %v1981, %v1975
        %v2336 = vpack.c.b16 %v1982, %v1976
        %v2337 = vpack.c.b16 %v1983, %v1977
        %v2338 = vpack.c.b16 %v1984, %v1978
        %v2339 = vpack.c.b16 %v1985, %v1979
        %v2340 = vpack.c.b16 %v1986, %v1980
        %v2341 = vpack.c.b16 %v1993, %v1987
        %v2342 = vpack.c.b16 %v1994, %v1988
        %v2343 = vpack.c.b16 %v1995, %v1989
        %v2344 = vpack.c.b16 %v1996, %v1990
        %v2345 = vpack.c.b16 %v1997, %v1991
        %v2346 = vpack.c.b16 %v1998, %v1992
        %v2347 = vpack.c.b16 %v2005, %v1999
        %v2348 = vpack.c.b16 %v2006, %v2000
        %v2349 = vpack.c.b16 %v2007, %v2001
        %v2350 = vpack.c.b16 %v2008, %v2002
        %v2351 = vpack.c.b16 %v2009, %v2003
        %v2352 = vpack.c.b16 %v2010, %v2004
        %v2353 = vpack.c.b16 %v2017, %v2011
        %v2354 = vpack.c.b16 %v2018, %v2012
        %v2355 = vpack.c.b16 %v2019, %v2013
        %v2356 = vpack.c.b16 %v2020, %v2014
        %v2357 = vpack.c.b16 %v2021, %v2015
        %v2358 = vpack.c.b16 %v2022, %v2016
        %v2359 = vpack.c.b16 %v2029, %v2023
        %v2360 = vpack.c.b16 %v2030, %v2024
        %v2361 = vpack.c.b16 %v2031, %v2025
        %v2362 = vpack.c.b16 %v2032, %v2026
        %v2363 = vpack.c.b16 %v2033, %v2027
        %v2364 = vpack.c.b16 %v2034, %v2028
        %v2365 = vpack.c.b16 %v2041, %v2035
        %v2366 = vpack.c.b16 %v2042, %v2036
        %v2367 = vpack.c.b16 %v2043, %v2037
        %v2368 = vpack.c.b16 %v2044, %v2038
        %v2369 = vpack.c.b16 %v2045, %v2039
        %v2370 = vpack.c.b16 %v2046, %v2040
        %v2371 = vpack.c.b16 %v2053, %v2047
        %v2372 = vpack.c.b16 %v2054, %v2048
        %v2373 = vpack.c.b16 %v2055, %v2049
        %v2374 = vpack.c.b16 %v2056, %v2050
        %v2375 = vpack.c.b16 %v2057, %v2051
        %v2376 = vpack.c.b16 %v2058, %v2052
        %v2377 = vpack.c.b16 %v2065, %v2059
        %v2378 = vpack.c.b16 %v2066, %v2060
        %v2379 = vpack.c.b16 %v2067, %v2061
        %v2380 = vpack.c.b16 %v2068, %v2062
        %v2381 = vpack.c.b16 %v2069, %v2063
        %v2382 = vpack.c.b16 %v2070, %v2064
        %v2383 = vpack.c.b16 %v2077, %v2071
        %v2384 = vpack.c.b16 %v2078, %v2072
        %v2385 = vpack.c.b16 %v2079, %v2073
        %v2386 = vpack.c.b16 %v2080, %v2074
        %v2387 = vpack.c.b16 %v2081, %v2075
        %v2388 = vpack.c.b16 %v2082, %v2076
        %v2389 = vpack.c.b16 %v2089, %v2083
        %v2390 = vpack.c.b16 %v2090, %v2084
        %v2391 = vpack.c.b16 %v2091, %v2085
        %v2392 = vpack.c.b16 %v2092, %v2086
        %v2393 = vpack.c.b16 %v2093, %v2087
        %v2394 = vpack.c.b16 %v2094, %v2088
        %v2395 = vpack.c.b16 %v2101, %v2095
        %v2396 = vpack.c.b16 %v2102, %v2096
        %v2397 = vpack.c.b16 %v2103, %v2097
        %v2398 = vpack.c.b16 %v2104, %v2098
        %v2399 = vpack.c.b16 %v2105, %v2099
        %v2400 = vpack.c.b16 %v2106, %v2100
        %v2401 = vpack.c.b16 %v2113, %v2107
        %v2402 = vpack.c.b16 %v2114, %v2108
        %v2403 = vpack.c.b16 %v2115, %v2109
        %v2404 = vpack.c.b16 %v2116, %v2110
        %v2405 = vpack.c.b16 %v2117, %v2111
        %v2406 = vpack.c.b16 %v2118, %v2112
        %v2407 = vpack.c.b16 %v2125, %v2119
        %v2408 = vpack.c.b16 %v2126, %v2120
        %v2409 = vpack.c.b16 %v2127, %v2121
        %v2410 = vpack.c.b16 %v2128, %v2122
        %v2411 = vpack.c.b16 %v2129, %v2123
        %v2412 = vpack.c.b16 %v2130, %v2124
        %v2413 = vpack.c.b16 %v2137, %v2131
        %v2414 = vpack.c.b16 %v2138, %v2132
        %v2415 = vpack.c.b16 %v2139, %v2133
        %v2416 = vpack.c.b16 %v2140, %v2134
        %v2417 = vpack.c.b16 %v2141, %v2135
        %v2418 = vpack.c.b16 %v2142, %v2136
        %v2419 = vpack.c.b16 %v2149, %v2143
        %v2420 = vpack.c.b16 %v2150, %v2144
        %v2421 = vpack.c.b16 %v2151, %v2145
        %v2422 = vpack.c.b16 %v2152, %v2146
        %v2423 = vpack.c.b16 %v2153, %v2147
        %v2424 = vpack.c.b16 %v2154, %v2148
        %v2425 = vpack.c.b16 %v2161, %v2155
        %v2426 = vpack.c.b16 %v2162, %v2156
        %v2427 = vpack.c.b16 %v2163, %v2157
        %v2428 = vpack.c.b16 %v2164, %v2158
        %v2429 = vpack.c.b16 %v2165, %v2159
        %v2430 = vpack.c.b16 %v2166, %v2160
        %v2431 = vpack.c.b16 %v2173, %v2167
        %v2432 = vpack.c.b16 %v2174, %v2168
        %v2433 = vpack.c.b16 %v2175, %v2169
        %v2434 = vpack.c.b16 %v2176, %v2170
        %v2435 = vpack.c.b16 %v2177, %v2171
        %v2436 = vpack.c.b16 %v2178, %v2172
        %v2437 = vpack.c.b16 %v2185, %v2179
        %v2438 = vpack.c.b16 %v2186, %v2180
        %v2439 = vpack.c.b16 %v2187, %v2181
        %v2440 = vpack.c.b16 %v2188, %v2182
        %v2441 = vpack.c.b16 %v2189, %v2183
        %v2442 = vpack.c.b16 %v2190, %v2184
        %v2443 = vpack.c.b16 %v2197, %v2191
        %v2444 = vpack.c.b16 %v2198, %v2192
        %v2445 = vpack.c.b16 %v2199, %v2193
        %v2446 = vpack.c.b16 %v2200, %v2194
        %v2447 = vpack.c.b16 %v2201, %v2195
        %v2448 = vpack.c.b16 %v2202, %v2196
        %v2449 = vpack.c.b16 %v2209, %v2203
        %v2450 = vpack.c.b16 %v2210, %v2204
        %v2451 = vpack.c.b16 %v2211, %v2205
        %v2452 = vpack.c.b16 %v2212, %v2206
        %v2453 = vpack.c.b16 %v2213, %v2207
        %v2454 = vpack.c.b16 %v2214, %v2208
        %v2455 = vpack.c.b16 %v2221, %v2215
        %v2456 = vpack.c.b16 %v2222, %v2216
        %v2457 = vpack.c.b16 %v2223, %v2217
        %v2458 = vpack.c.b16 %v2224, %v2218
        %v2459 = vpack.c.b16 %v2225, %v2219
        %v2460 = vpack.c.b16 %v2226, %v2220
        %v2461 = vpack.c.b16 %v2233, %v2227
        %v2462 = vpack.c.b16 %v2234, %v2228
        %v2463 = vpack.c.b16 %v2235, %v2229
        %v2464 = vpack.c.b16 %v2236, %v2230
        %v2465 = vpack.c.b16 %v2237, %v2231
        %v2466 = vpack.c.b16 %v2238, %v2232
        %v2467 = vpack.c.b16 %v2245, %v2239
        %v2468 = vpack.c.b16 %v2246, %v2240
        %v2469 = vpack.c.b16 %v2247, %v2241
        %v2470 = vpack.c.b16 %v2248, %v2242
        %v2471 = vpack.c.b16 %v2249, %v2243
        %v2472 = vpack.c.b16 %v2250, %v2244
        %v2473 = vpack.c.b16 %v2257, %v2251
        %v2474 = vpack.c.b16 %v2258, %v2252
        %v2475 = vpack.c.b16 %v2259, %v2253
        %v2476 = vpack.c.b16 %v2260, %v2254
        %v2477 = vpack.c.b16 %v2261, %v2255
        %v2478 = vpack.c.b16 %v2262, %v2256
        %v2479 = vpack.c.b16 %v2269, %v2263
        %v2480 = vpack.c.b16 %v2270, %v2264
        %v2481 = vpack.c.b16 %v2271, %v2265
        %v2482 = vpack.c.b16 %v2272, %v2266
        %v2483 = vpack.c.b16 %v2273, %v2267
        %v2484 = vpack.c.b16 %v2274, %v2268
        %v2485 = vpack.c.b16 %v2281, %v2275
        %v2486 = vpack.c.b16 %v2282, %v2276
        %v2487 = vpack.c.b16 %v2283, %v2277
        %v2488 = vpack.c.b16 %v2284, %v2278
        %v2489 = vpack.c.b16 %v2285, %v2279
        %v2490 = vpack.c.b16 %v2286, %v2280
        %v2491 = vpack.c.b16 %v2293, %v2287
        %v2492 = vpack.c.b16 %v2294, %v2288
        %v2493 = vpack.c.b16 %v2295, %v2289
        %v2494 = vpack.c.b16 %v2296, %v2290
        %v2495 = vpack.c.b16 %v2297, %v2291
        %v2496 = vpack.c.b16 %v2298, %v2292
        %v2497 = vpack.c.b16 %v2305, %v2299
        %v2498 = vpack.c.b16 %v2306, %v2300
        %v2499 = vpack.c.b16 %v2307, %v2301
        %v2500 = vpack.c.b16 %v2308, %v2302
        %v2501 = vpack.c.b16 %v2309, %v2303
        %v2502 = vpack.c.b16 %v2310, %v2304
        %2695 = vmatprep.subr.bf16.mxu0 %v2312
        %2696 = vmatpush1.bf16.msra.mxu0 %v2311
        %2697 = vmatprep.subr.bf16.mxu0 %v2318
        %2698 = vmatpush1.bf16.msra.mxu0 %v2317
        %2699 = vmatprep.subr.bf16.mxu0 %v2324
        %2700 = vmatpush1.bf16.msra.mxu0 %v2323
        %2701 = vmatprep.subr.bf16.mxu0 %v2330
        %2702 = vmatpush1.bf16.msra.mxu0 %v2329
        %2703 = vmatprep.subr.bf16.mxu0 %v2336
        %2704 = vmatpush1.bf16.msra.mxu0 %v2335
        %2705 = vmatprep.subr.bf16.mxu0 %v2342
        %2706 = vmatpush1.bf16.msra.mxu0 %v2341
        %2707 = vmatprep.subr.bf16.mxu0 %v2348
        %2708 = vmatpush1.bf16.msra.mxu0 %v2347
        %2709 = vmatprep.subr.bf16.mxu0 %v2354
        %2710 = vmatpush1.bf16.msra.mxu0 %v2353
        %2711 = vmatprep.subr.bf16.mxu0 %v2360
        %2712 = vmatpush1.bf16.msra.mxu0 %v2359
        %2713 = vmatprep.subr.bf16.mxu0 %v2366
        %2714 = vmatpush1.bf16.msra.mxu0 %v2365
        %2715 = vmatprep.subr.bf16.mxu0 %v2372
        %2716 = vmatpush1.bf16.msra.mxu0 %v2371
        %2717 = vmatprep.subr.bf16.mxu0 %v2378
        %2718 = vmatpush1.bf16.msra.mxu0 %v2377
        %2719 = vmatprep.subr.bf16.mxu0 %v2384
        %2720 = vmatpush1.bf16.msra.mxu0 %v2383
        %2721 = vmatprep.subr.bf16.mxu0 %v2390
        %2722 = vmatpush1.bf16.msra.mxu0 %v2389
        %2723 = vmatprep.subr.bf16.mxu0 %v2396
        %2724 = vmatpush1.bf16.msra.mxu0 %v2395
        %2725 = vmatprep.subr.bf16.mxu0 %v2402
        %2726 = vmatpush1.bf16.msra.mxu0 %v2401
        %2727 = vmatprep.mubr.bf16.mxu0 %v1508
        %2728 = vmatmul.mubr.bf16.gmra.mrb[0].mxu0 %v1507
        %v2729 = vpop.f32.mrb[0].mxu0
        %v2730 = vadd.f32 %v1708, %v2729
        %v2731 = vpop.f32.mrb[0].mxu0
        %v2732 = vadd.f32 %v1712, %v2731
        %v2733 = vpop.f32.mrb[0].mxu0
        %v2734 = vadd.f32 %v1708, %v2733
        %v2735 = vpop.f32.mrb[0].mxu0
        %v2736 = vadd.f32 %v1712, %v2735
        %2737 = vdwg.mxu0
        %2738 = vmatprep.subr.bf16.mxu0 %v2408
        %2739 = vmatpush1.bf16.msra.mxu0 %v2407
        %2740 = vmatprep.subr.bf16.mxu0 %v2414
        %2741 = vmatpush1.bf16.msra.mxu0 %v2413
        %2742 = vmatprep.subr.bf16.mxu0 %v2420
        %2743 = vmatpush1.bf16.msra.mxu0 %v2419
        %2744 = vmatprep.subr.bf16.mxu0 %v2426
        %2745 = vmatpush1.bf16.msra.mxu0 %v2425
        %2746 = vmatprep.subr.bf16.mxu0 %v2432
        %2747 = vmatpush1.bf16.msra.mxu0 %v2431
        %2748 = vmatprep.subr.bf16.mxu0 %v2438
        %2749 = vmatpush1.bf16.msra.mxu0 %v2437
        %2750 = vmatprep.subr.bf16.mxu0 %v2444
        %2751 = vmatpush1.bf16.msra.mxu0 %v2443
        %2752 = vmatprep.subr.bf16.mxu0 %v2450
        %2753 = vmatpush1.bf16.msra.mxu0 %v2449
        %2754 = vmatprep.subr.bf16.mxu0 %v2456
        %2755 = vmatpush1.bf16.msra.mxu0 %v2455
        %2756 = vmatprep.subr.bf16.mxu0 %v2462
        %2757 = vmatpush1.bf16.msra.mxu0 %v2461
        %2758 = vmatprep.subr.bf16.mxu0 %v2468
        %2759 = vmatpush1.bf16.msra.mxu0 %v2467
        %2760 = vmatprep.subr.bf16.mxu0 %v2474
        %2761 = vmatpush1.bf16.msra.mxu0 %v2473
        %2762 = vmatprep.subr.bf16.mxu0 %v2480
        %2763 = vmatpush1.bf16.msra.mxu0 %v2479
        %2764 = vmatprep.subr.bf16.mxu0 %v2486
        %2765 = vmatpush1.bf16.msra.mxu0 %v2485
        %2766 = vmatprep.subr.bf16.mxu0 %v2492
        %2767 = vmatpush1.bf16.msra.mxu0 %v2491
        %2768 = vmatprep.subr.bf16.mxu0 %v2498
        %2769 = vmatpush1.bf16.msra.mxu0 %v2497
        %2770 = vmatprep.mubr.bf16.mxu0 %v1510
        %2771 = vmatmul.mubr.bf16.gmra.mrb[0].mxu0 %v1509
        %v2772 = vpop.f32.mrb[0].mxu0
        %v2773 = vadd.f32 %v2730, %v2772
        %v2774 = vpop.f32.mrb[0].mxu0
        %v2775 = vadd.f32 %v2732, %v2774
        %v2776 = vpop.f32.mrb[0].mxu0
        %v2777 = vadd.f32 %v2734, %v2776
        %v2778 = vpop.f32.mrb[0].mxu0
        %v2779 = vadd.f32 %v2736, %v2778
        %2780 = vdwg.mxu0
        %2781 = vmatprep.subr.bf16.mxu0 %v2314
        %2782 = vmatpush1.bf16.msra.mxu0 %v2313
        %2783 = vmatprep.subr.bf16.mxu0 %v2320
        %2784 = vmatpush1.bf16.msra.mxu0 %v2319
        %2785 = vmatprep.subr.bf16.mxu0 %v2326
        %2786 = vmatpush1.bf16.msra.mxu0 %v2325
        %2787 = vmatprep.subr.bf16.mxu0 %v2332
        %2788 = vmatpush1.bf16.msra.mxu0 %v2331
        %2789 = vmatprep.subr.bf16.mxu0 %v2338
        %2790 = vmatpush1.bf16.msra.mxu0 %v2337
        %2791 = vmatprep.subr.bf16.mxu0 %v2344
        %2792 = vmatpush1.bf16.msra.mxu0 %v2343
        %2793 = vmatprep.subr.bf16.mxu0 %v2350
        %2794 = vmatpush1.bf16.msra.mxu0 %v2349
        %2795 = vmatprep.subr.bf16.mxu0 %v2356
        %2796 = vmatpush1.bf16.msra.mxu0 %v2355
        %2797 = vmatprep.subr.bf16.mxu0 %v2362
        %2798 = vmatpush1.bf16.msra.mxu0 %v2361
        %2799 = vmatprep.subr.bf16.mxu0 %v2368
        %2800 = vmatpush1.bf16.msra.mxu0 %v2367
        %2801 = vmatprep.subr.bf16.mxu0 %v2374
        %2802 = vmatpush1.bf16.msra.mxu0 %v2373
        %2803 = vmatprep.subr.bf16.mxu0 %v2380
        %2804 = vmatpush1.bf16.msra.mxu0 %v2379
        %2805 = vmatprep.subr.bf16.mxu0 %v2386
        %2806 = vmatpush1.bf16.msra.mxu0 %v2385
        %2807 = vmatprep.subr.bf16.mxu0 %v2392
        %2808 = vmatpush1.bf16.msra.mxu0 %v2391
        %2809 = vmatprep.subr.bf16.mxu0 %v2398
        %2810 = vmatpush1.bf16.msra.mxu0 %v2397
        %2811 = vmatprep.subr.bf16.mxu0 %v2404
        %2812 = vmatpush1.bf16.msra.mxu0 %v2403
        %2813 = vmatprep.mubr.bf16.mxu0 %v1508
        %2814 = vmatmul.mubr.bf16.gmra.mrb[0].mxu0 %v1507
        %v2815 = vpop.f32.mrb[0].mxu0
        %v2816 = vadd.f32 %v1716, %v2815
        %v2817 = vpop.f32.mrb[0].mxu0
        %v2818 = vadd.f32 %v1720, %v2817
        %v2819 = vpop.f32.mrb[0].mxu0
        %v2820 = vadd.f32 %v1716, %v2819
        %v2821 = vpop.f32.mrb[0].mxu0
        %v2822 = vadd.f32 %v1720, %v2821
        %2823 = vdwg.mxu0
        %2824 = vmatprep.subr.bf16.mxu0 %v2410
        %2825 = vmatpush1.bf16.msra.mxu0 %v2409
        %2826 = vmatprep.subr.bf16.mxu0 %v2416
        %2827 = vmatpush1.bf16.msra.mxu0 %v2415
        %2828 = vmatprep.subr.bf16.mxu0 %v2422
        %2829 = vmatpush1.bf16.msra.mxu0 %v2421
        %2830 = vmatprep.subr.bf16.mxu0 %v2428
        %2831 = vmatpush1.bf16.msra.mxu0 %v2427
        %2832 = vmatprep.subr.bf16.mxu0 %v2434
        %2833 = vmatpush1.bf16.msra.mxu0 %v2433
        %2834 = vmatprep.subr.bf16.mxu0 %v2440
        %2835 = vmatpush1.bf16.msra.mxu0 %v2439
        %2836 = vmatprep.subr.bf16.mxu0 %v2446
        %2837 = vmatpush1.bf16.msra.mxu0 %v2445
        %2838 = vmatprep.subr.bf16.mxu0 %v2452
        %2839 = vmatpush1.bf16.msra.mxu0 %v2451
        %2840 = vmatprep.subr.bf16.mxu0 %v2458
        %2841 = vmatpush1.bf16.msra.mxu0 %v2457
        %2842 = vmatprep.subr.bf16.mxu0 %v2464
        %2843 = vmatpush1.bf16.msra.mxu0 %v2463
        %2844 = vmatprep.subr.bf16.mxu0 %v2470
        %2845 = vmatpush1.bf16.msra.mxu0 %v2469
        %2846 = vmatprep.subr.bf16.mxu0 %v2476
        %2847 = vmatpush1.bf16.msra.mxu0 %v2475
        %2848 = vmatprep.subr.bf16.mxu0 %v2482
        %2849 = vmatpush1.bf16.msra.mxu0 %v2481
        %2850 = vmatprep.subr.bf16.mxu0 %v2488
        %2851 = vmatpush1.bf16.msra.mxu0 %v2487
        %2852 = vmatprep.subr.bf16.mxu0 %v2494
        %2853 = vmatpush1.bf16.msra.mxu0 %v2493
        %2854 = vmatprep.subr.bf16.mxu0 %v2500
        %2855 = vmatpush1.bf16.msra.mxu0 %v2499
        %2856 = vmatprep.mubr.bf16.mxu0 %v1510
        %2857 = vmatmul.mubr.bf16.gmra.mrb[0].mxu0 %v1509
        %v2858 = vpop.f32.mrb[0].mxu0
        %v2859 = vadd.f32 %v2816, %v2858
        %v2860 = vpop.f32.mrb[0].mxu0
        %v2861 = vadd.f32 %v2818, %v2860
        %v2862 = vpop.f32.mrb[0].mxu0
        %v2863 = vadd.f32 %v2820, %v2862
        %v2864 = vpop.f32.mrb[0].mxu0
        %v2865 = vadd.f32 %v2822, %v2864
        %2866 = vdwg.mxu0
        %2867 = vmatprep.subr.bf16.mxu0 %v2316
        %2868 = vmatpush1.bf16.msra.mxu0 %v2315
        %2869 = vmatprep.subr.bf16.mxu0 %v2322
        %2870 = vmatpush1.bf16.msra.mxu0 %v2321
        %2871 = vmatprep.subr.bf16.mxu0 %v2328
        %2872 = vmatpush1.bf16.msra.mxu0 %v2327
        %2873 = vmatprep.subr.bf16.mxu0 %v2334
        %2874 = vmatpush1.bf16.msra.mxu0 %v2333
        %2875 = vmatprep.subr.bf16.mxu0 %v2340
        %2876 = vmatpush1.bf16.msra.mxu0 %v2339
        %2877 = vmatprep.subr.bf16.mxu0 %v2346
        %2878 = vmatpush1.bf16.msra.mxu0 %v2345
        %2879 = vmatprep.subr.bf16.mxu0 %v2352
        %2880 = vmatpush1.bf16.msra.mxu0 %v2351
        %2881 = vmatprep.subr.bf16.mxu0 %v2358
        %2882 = vmatpush1.bf16.msra.mxu0 %v2357
        %2883 = vmatprep.subr.bf16.mxu0 %v2364
        %2884 = vmatpush1.bf16.msra.mxu0 %v2363
        %2885 = vmatprep.subr.bf16.mxu0 %v2370
        %2886 = vmatpush1.bf16.msra.mxu0 %v2369
        %2887 = vmatprep.subr.bf16.mxu0 %v2376
        %2888 = vmatpush1.bf16.msra.mxu0 %v2375
        %2889 = vmatprep.subr.bf16.mxu0 %v2382
        %2890 = vmatpush1.bf16.msra.mxu0 %v2381
        %2891 = vmatprep.subr.bf16.mxu0 %v2388
        %2892 = vmatpush1.bf16.msra.mxu0 %v2387
        %2893 = vmatprep.subr.bf16.mxu0 %v2394
        %2894 = vmatpush1.bf16.msra.mxu0 %v2393
        %2895 = vmatprep.subr.bf16.mxu0 %v2400
        %2896 = vmatpush1.bf16.msra.mxu0 %v2399
        %2897 = vmatprep.subr.bf16.mxu0 %v2406
        %2898 = vmatpush1.bf16.msra.mxu0 %v2405
        %2899 = vmatprep.mubr.bf16.mxu0 %v1508
        %2900 = vmatmul.mubr.bf16.gmra.mrb[0].mxu0 %v1507
        %v2901 = vpop.f32.mrb[0].mxu0
        %v2902 = vadd.f32 %v1724, %v2901
        %v2903 = vpop.f32.mrb[0].mxu0
        %v2904 = vadd.f32 %v1728, %v2903
        %v2905 = vpop.f32.mrb[0].mxu0
        %v2906 = vadd.f32 %v1724, %v2905
        %v2907 = vpop.f32.mrb[0].mxu0
        %v2908 = vadd.f32 %v1728, %v2907
        %2909 = vdwg.mxu0
        %2910 = vmatprep.subr.bf16.mxu0 %v2412
        %2911 = vmatpush1.bf16.msra.mxu0 %v2411
        %2912 = vmatprep.subr.bf16.mxu0 %v2418
        %2913 = vmatpush1.bf16.msra.mxu0 %v2417
        %2914 = vmatprep.subr.bf16.mxu0 %v2424
        %2915 = vmatpush1.bf16.msra.mxu0 %v2423
        %2916 = vmatprep.subr.bf16.mxu0 %v2430
        %2917 = vmatpush1.bf16.msra.mxu0 %v2429
        %2918 = vmatprep.subr.bf16.mxu0 %v2436
        %2919 = vmatpush1.bf16.msra.mxu0 %v2435
        %2920 = vmatprep.subr.bf16.mxu0 %v2442
        %2921 = vmatpush1.bf16.msra.mxu0 %v2441
        %2922 = vmatprep.subr.bf16.mxu0 %v2448
        %2923 = vmatpush1.bf16.msra.mxu0 %v2447
        %2924 = vmatprep.subr.bf16.mxu0 %v2454
        %2925 = vmatpush1.bf16.msra.mxu0 %v2453
        %2926 = vmatprep.subr.bf16.mxu0 %v2460
        %2927 = vmatpush1.bf16.msra.mxu0 %v2459
        %2928 = vmatprep.subr.bf16.mxu0 %v2466
        %2929 = vmatpush1.bf16.msra.mxu0 %v2465
        %2930 = vmatprep.subr.bf16.mxu0 %v2472
        %2931 = vmatpush1.bf16.msra.mxu0 %v2471
        %2932 = vmatprep.subr.bf16.mxu0 %v2478
        %2933 = vmatpush1.bf16.msra.mxu0 %v2477
        %2934 = vmatprep.subr.bf16.mxu0 %v2484
        %2935 = vmatpush1.bf16.msra.mxu0 %v2483
        %2936 = vmatprep.subr.bf16.mxu0 %v2490
        %2937 = vmatpush1.bf16.msra.mxu0 %v2489
        %2938 = vmatprep.subr.bf16.mxu0 %v2496
        %2939 = vmatpush1.bf16.msra.mxu0 %v2495
        %2940 = vmatprep.subr.bf16.mxu0 %v2502
        %2941 = vmatpush1.bf16.msra.mxu0 %v2501
        %2942 = vmatprep.mubr.bf16.mxu0 %v1510
        %2943 = vmatmul.mubr.bf16.gmra.mrb[0].mxu0 %v1509
        %v2944 = vpop.f32.mrb[0].mxu0
        %v2945 = vadd.f32 %v2902, %v2944
        %v2946 = vpop.f32.mrb[0].mxu0
        %v2947 = vadd.f32 %v2904, %v2946
        %v2948 = vpop.f32.mrb[0].mxu0
        %v2949 = vadd.f32 %v2906, %v2948
        %v2950 = vpop.f32.mrb[0].mxu0
        %v2951 = vadd.f32 %v2908, %v2950
        %2952 = vdwg.mxu0
        %v2953 = vmax.f32 %v2773, 0.0
        %v2954 = vmax.f32 %v2775, 0.0
        %v2955 = vmax.f32 %v2859, 0.0
        %v2956 = vmax.f32 %v2861, 0.0
        %v2957 = vmax.f32 %v2945, 0.0
        %v2958 = vmax.f32 %v2947, 0.0
        %v2959 = vmax.f32 %v2777, 0.0
        %v2960 = vmax.f32 %v2779, 0.0
        %v2961 = vmax.f32 %v2863, 0.0
        %v2962 = vmax.f32 %v2865, 0.0
        %v2963 = vmax.f32 %v2949, 0.0
        %v2964 = vmax.f32 %v2951, 0.0
        %v2965 = vpack.c.bf16 %v2959, %v2953
        %v2966 = vpack.c.bf16 %v2960, %v2954
        %v2967 = vpack.c.bf16 %v2961, %v2955
        %v2968 = vpack.c.bf16 %v2962, %v2956
        %v2969 = vpack.c.bf16 %v2963, %v2957
        %v2970 = vpack.c.bf16 %v2964, %v2958
        %v2971 = vld [vmem:[%s5] sm:$0xf]
        %v2972 = vld [vmem:[%s5 + $0x4] sm:$0xf]
        %v2973 = vld [vmem:[%s5 + $0x8] sm:$0xf]
        %v2974 = vld [vmem:[%s5 + $0xc] sm:$0xf]
        %v2975 = vld [vmem:[%s5 + $0x10] sm:$0xf]
        %v2976 = vld [vmem:[%s5 + $0x14] sm:$0xf]
        %v2977 = vld [vmem:[%s5 + $0x18] sm:$0xf]
        %v2978 = vld [vmem:[%s5 + $0x1c] sm:$0xf]
        %v2979 = vld [vmem:[%s5 + $0x20] sm:$0xf]
        %v2980 = vld [vmem:[%s5 + $0x24] sm:$0xf]
        %v2981 = vld [vmem:[%s5 + $0x28] sm:$0xf]
        %v2982 = vld [vmem:[%s5 + $0x2c] sm:$0xf]
        %v2983 = vld [vmem:[%s5 + $0x30] sm:$0xf]
        %v2984 = vld [vmem:[%s5 + $0x34] sm:$0xf]
        %v2985 = vld [vmem:[%s5 + $0x38] sm:$0xf]
        %v2986 = vld [vmem:[%s5 + $0x3c] sm:$0xf]
        %v2987 = vld [vmem:[%s5 + $0x40] sm:$0xf]
        %v2988 = vld [vmem:[%s5 + $0x44] sm:$0xf]
        %v2989 = vld [vmem:[%s5 + $0x48] sm:$0xf]
        %v2990 = vld [vmem:[%s5 + $0x4c] sm:$0xf]
        %v2991 = vld [vmem:[%s5 + $0x50] sm:$0xf]
        %v2992 = vld [vmem:[%s5 + $0x54] sm:$0xf]
        %v2993 = vld [vmem:[%s5 + $0x58] sm:$0xf]
        %v2994 = vld [vmem:[%s5 + $0x5c] sm:$0xf]
        %v2995 = vld [vmem:[%s5 + $0x60] sm:$0xf]
        %v2996 = vld [vmem:[%s5 + $0x64] sm:$0xf]
        %v2997 = vld [vmem:[%s5 + $0x68] sm:$0xf]
        %v2998 = vld [vmem:[%s5 + $0x6c] sm:$0xf]
        %v2999 = vld [vmem:[%s5 + $0x70] sm:$0xf]
        %v3000 = vld [vmem:[%s5 + $0x74] sm:$0xf]
        %v3001 = vld [vmem:[%s5 + $0x78] sm:$0xf]
        %v3002 = vld [vmem:[%s5 + $0x7c] sm:$0xf]
        %v3003 = vld [vmem:[%s5 + $0x80] sm:$0xf]
        %v3004 = vld [vmem:[%s5 + $0x84] sm:$0xf]
        %v3005 = vld [vmem:[%s5 + $0x88] sm:$0xf]
        %v3006 = vld [vmem:[%s5 + $0x8c] sm:$0xf]
        %v3007 = vld [vmem:[%s5 + $0x90] sm:$0xf]
        %v3008 = vld [vmem:[%s5 + $0x94] sm:$0xf]
        %v3009 = vld [vmem:[%s5 + $0x98] sm:$0xf]
        %v3010 = vld [vmem:[%s5 + $0x9c] sm:$0xf]
        %v3011 = vld [vmem:[%s5 + $0xa0] sm:$0xf]
        %v3012 = vld [vmem:[%s5 + $0xa4] sm:$0xf]
        %v3013 = vld [vmem:[%s5 + $0xa8] sm:$0xf]
        %v3014 = vld [vmem:[%s5 + $0xac] sm:$0xf]
        %v3015 = vld [vmem:[%s5 + $0xb0] sm:$0xf]
        %v3016 = vld [vmem:[%s5 + $0xb4] sm:$0xf]
        %v3017 = vld [vmem:[%s5 + $0xb8] sm:$0xf]
        %v3018 = vld [vmem:[%s5 + $0xbc] sm:$0xf]
        %v3019 = vld [vmem:[%s5 + $0xc0] sm:$0xf]
        %v3020 = vld [vmem:[%s5 + $0xc4] sm:$0xf]
        %v3021 = vld [vmem:[%s5 + $0xc8] sm:$0xf]
        %v3022 = vld [vmem:[%s5 + $0xcc] sm:$0xf]
        %v3023 = vld [vmem:[%s5 + $0xd0] sm:$0xf]
        %v3024 = vld [vmem:[%s5 + $0xd4] sm:$0xf]
        %v3025 = vld [vmem:[%s5 + $0xd8] sm:$0xf]
        %v3026 = vld [vmem:[%s5 + $0xdc] sm:$0xf]
        %v3027 = vld [vmem:[%s5 + $0xe0] sm:$0xf]
        %v3028 = vld [vmem:[%s5 + $0xe4] sm:$0xf]
        %v3029 = vld [vmem:[%s5 + $0xe8] sm:$0xf]
        %v3030 = vld [vmem:[%s5 + $0xec] sm:$0xf]
        %v3031 = vld [vmem:[%s5 + $0xf0] sm:$0xf]
        %v3032 = vld [vmem:[%s5 + $0xf4] sm:$0xf]
        %v3033 = vld [vmem:[%s5 + $0xf8] sm:$0xf]
        %v3034 = vld [vmem:[%s5 + $0xfc] sm:$0xf]
        %v3035 = vld [vmem:[%s5 + $0x100] sm:$0xf]
        %v3036 = vld [vmem:[%s5 + $0x104] sm:$0xf]
        %v3037 = vld [vmem:[%s5 + $0x108] sm:$0xf]
        %v3038 = vld [vmem:[%s5 + $0x10c] sm:$0xf]
        %v3039 = vld [vmem:[%s5 + $0x110] sm:$0xf]
        %v3040 = vld [vmem:[%s5 + $0x114] sm:$0xf]
        %v3041 = vld [vmem:[%s5 + $0x118] sm:$0xf]
        %v3042 = vld [vmem:[%s5 + $0x11c] sm:$0xf]
        %v3043 = vld [vmem:[%s5 + $0x120] sm:$0xf]
        %v3044 = vld [vmem:[%s5 + $0x124] sm:$0xf]
        %v3045 = vld [vmem:[%s5 + $0x128] sm:$0xf]
        %v3046 = vld [vmem:[%s5 + $0x12c] sm:$0xf]
        %v3047 = vld [vmem:[%s5 + $0x130] sm:$0xf]
        %v3048 = vld [vmem:[%s5 + $0x134] sm:$0xf]
        %v3049 = vld [vmem:[%s5 + $0x138] sm:$0xf]
        %v3050 = vld [vmem:[%s5 + $0x13c] sm:$0xf]
        %v3051 = vld [vmem:[%s5 + $0x140] sm:$0xf]
        %v3052 = vld [vmem:[%s5 + $0x144] sm:$0xf]
        %v3053 = vld [vmem:[%s5 + $0x148] sm:$0xf]
        %v3054 = vld [vmem:[%s5 + $0x14c] sm:$0xf]
        %v3055 = vld [vmem:[%s5 + $0x150] sm:$0xf]
        %v3056 = vld [vmem:[%s5 + $0x154] sm:$0xf]
        %v3057 = vld [vmem:[%s5 + $0x158] sm:$0xf]
        %v3058 = vld [vmem:[%s5 + $0x15c] sm:$0xf]
        %v3059 = vld [vmem:[%s5 + $0x160] sm:$0xf]
        %v3060 = vld [vmem:[%s5 + $0x164] sm:$0xf]
        %v3061 = vld [vmem:[%s5 + $0x168] sm:$0xf]
        %v3062 = vld [vmem:[%s5 + $0x16c] sm:$0xf]
        %v3063 = vld [vmem:[%s5 + $0x170] sm:$0xf]
        %v3064 = vld [vmem:[%s5 + $0x174] sm:$0xf]
        %v3065 = vld [vmem:[%s5 + $0x178] sm:$0xf]
        %v3066 = vld [vmem:[%s5 + $0x17c] sm:$0xf]
        %v3067 = vld [vmem:[%s6] sm:$0x1]
        %v3069 = vlaneseq
        %v3070 = vshrl.u32 %v3069, 7
        %v3071 = vsub.s32 0, %v3070
        %v3072 = vrot.slane %v3067, %v3071
        %v3170 = vunpack.c.l.b16 %v2971
        %v3171 = vunpack.c.l.b16 %v2972
        %v3172 = vunpack.c.l.b16 %v2973
        %v3173 = vunpack.c.l.b16 %v2974
        %v3174 = vunpack.c.l.b16 %v2975
        %v3175 = vunpack.c.l.b16 %v2976
        %v3176 = vunpack.c.l.b16 %v2977
        %v3177 = vunpack.c.l.b16 %v2978
        %v3178 = vunpack.c.l.b16 %v2979
        %v3179 = vunpack.c.l.b16 %v2980
        %v3180 = vunpack.c.l.b16 %v2981
        %v3181 = vunpack.c.l.b16 %v2982
        %v3182 = vunpack.c.l.b16 %v2983
        %v3183 = vunpack.c.l.b16 %v2984
        %v3184 = vunpack.c.l.b16 %v2985
        %v3185 = vunpack.c.l.b16 %v2986
        %v3186 = vunpack.c.l.b16 %v2987
        %v3187 = vunpack.c.l.b16 %v2988
        %v3188 = vunpack.c.l.b16 %v2989
        %v3189 = vunpack.c.l.b16 %v2990
        %v3190 = vunpack.c.l.b16 %v2991
        %v3191 = vunpack.c.l.b16 %v2992
        %v3192 = vunpack.c.l.b16 %v2993
        %v3193 = vunpack.c.l.b16 %v2994
        %v3194 = vunpack.c.l.b16 %v2995
        %v3195 = vunpack.c.l.b16 %v2996
        %v3196 = vunpack.c.l.b16 %v2997
        %v3197 = vunpack.c.l.b16 %v2998
        %v3198 = vunpack.c.l.b16 %v2999
        %v3199 = vunpack.c.l.b16 %v3000
        %v3200 = vunpack.c.l.b16 %v3001
        %v3201 = vunpack.c.l.b16 %v3002
        %v3202 = vunpack.c.l.b16 %v3003
        %v3203 = vunpack.c.l.b16 %v3004
        %v3204 = vunpack.c.l.b16 %v3005
        %v3205 = vunpack.c.l.b16 %v3006
        %v3206 = vunpack.c.l.b16 %v3007
        %v3207 = vunpack.c.l.b16 %v3008
        %v3208 = vunpack.c.l.b16 %v3009
        %v3209 = vunpack.c.l.b16 %v3010
        %v3210 = vunpack.c.l.b16 %v3011
        %v3211 = vunpack.c.l.b16 %v3012
        %v3212 = vunpack.c.l.b16 %v3013
        %v3213 = vunpack.c.l.b16 %v3014
        %v3214 = vunpack.c.l.b16 %v3015
        %v3215 = vunpack.c.l.b16 %v3016
        %v3216 = vunpack.c.l.b16 %v3017
        %v3217 = vunpack.c.l.b16 %v3018
        %v3218 = vunpack.c.l.b16 %v3019
        %v3219 = vunpack.c.l.b16 %v3020
        %v3220 = vunpack.c.l.b16 %v3021
        %v3221 = vunpack.c.l.b16 %v3022
        %v3222 = vunpack.c.l.b16 %v3023
        %v3223 = vunpack.c.l.b16 %v3024
        %v3224 = vunpack.c.l.b16 %v3025
        %v3225 = vunpack.c.l.b16 %v3026
        %v3226 = vunpack.c.l.b16 %v3027
        %v3227 = vunpack.c.l.b16 %v3028
        %v3228 = vunpack.c.l.b16 %v3029
        %v3229 = vunpack.c.l.b16 %v3030
        %v3230 = vunpack.c.l.b16 %v3031
        %v3231 = vunpack.c.l.b16 %v3032
        %v3232 = vunpack.c.l.b16 %v3033
        %v3233 = vunpack.c.l.b16 %v3034
        %v3234 = vunpack.c.l.b16 %v3035
        %v3235 = vunpack.c.l.b16 %v3036
        %v3236 = vunpack.c.l.b16 %v3037
        %v3237 = vunpack.c.l.b16 %v3038
        %v3238 = vunpack.c.l.b16 %v3039
        %v3239 = vunpack.c.l.b16 %v3040
        %v3240 = vunpack.c.l.b16 %v3041
        %v3241 = vunpack.c.l.b16 %v3042
        %v3242 = vunpack.c.l.b16 %v3043
        %v3243 = vunpack.c.l.b16 %v3044
        %v3244 = vunpack.c.l.b16 %v3045
        %v3245 = vunpack.c.l.b16 %v3046
        %v3246 = vunpack.c.l.b16 %v3047
        %v3247 = vunpack.c.l.b16 %v3048
        %v3248 = vunpack.c.l.b16 %v3049
        %v3249 = vunpack.c.l.b16 %v3050
        %v3250 = vunpack.c.l.b16 %v3051
        %v3251 = vunpack.c.l.b16 %v3052
        %v3252 = vunpack.c.l.b16 %v3053
        %v3253 = vunpack.c.l.b16 %v3054
        %v3254 = vunpack.c.l.b16 %v3055
        %v3255 = vunpack.c.l.b16 %v3056
        %v3256 = vunpack.c.l.b16 %v3057
        %v3257 = vunpack.c.l.b16 %v3058
        %v3258 = vunpack.c.l.b16 %v3059
        %v3259 = vunpack.c.l.b16 %v3060
        %v3260 = vunpack.c.l.b16 %v3061
        %v3261 = vunpack.c.l.b16 %v3062
        %v3262 = vunpack.c.l.b16 %v3063
        %v3263 = vunpack.c.l.b16 %v3064
        %v3264 = vunpack.c.l.b16 %v3065
        %v3265 = vunpack.c.l.b16 %v3066
        %v3266 = vpack.c.b16 %v3171, %v3170
        %v3267 = vpack.c.b16 %v3173, %v3172
        %v3268 = vpack.c.b16 %v3175, %v3174
        %v3269 = vpack.c.b16 %v3177, %v3176
        %v3270 = vpack.c.b16 %v3179, %v3178
        %v3271 = vpack.c.b16 %v3181, %v3180
        %v3272 = vpack.c.b16 %v3183, %v3182
        %v3273 = vpack.c.b16 %v3185, %v3184
        %v3274 = vpack.c.b16 %v3187, %v3186
        %v3275 = vpack.c.b16 %v3189, %v3188
        %v3276 = vpack.c.b16 %v3191, %v3190
        %v3277 = vpack.c.b16 %v3193, %v3192
        %v3278 = vpack.c.b16 %v3195, %v3194
        %v3279 = vpack.c.b16 %v3197, %v3196
        %v3280 = vpack.c.b16 %v3199, %v3198
        %v3281 = vpack.c.b16 %v3201, %v3200
        %v3282 = vpack.c.b16 %v3203, %v3202
        %v3283 = vpack.c.b16 %v3205, %v3204
        %v3284 = vpack.c.b16 %v3207, %v3206
        %v3285 = vpack.c.b16 %v3209, %v3208
        %v3286 = vpack.c.b16 %v3211, %v3210
        %v3287 = vpack.c.b16 %v3213, %v3212
        %v3288 = vpack.c.b16 %v3215, %v3214
        %v3289 = vpack.c.b16 %v3217, %v3216
        %v3290 = vpack.c.b16 %v3219, %v3218
        %v3291 = vpack.c.b16 %v3221, %v3220
        %v3292 = vpack.c.b16 %v3223, %v3222
        %v3293 = vpack.c.b16 %v3225, %v3224
        %v3294 = vpack.c.b16 %v3227, %v3226
        %v3295 = vpack.c.b16 %v3229, %v3228
        %v3296 = vpack.c.b16 %v3231, %v3230
        %v3297 = vpack.c.b16 %v3233, %v3232
        %v3298 = vpack.c.b16 %v3235, %v3234
        %v3299 = vpack.c.b16 %v3237, %v3236
        %v3300 = vpack.c.b16 %v3239, %v3238
        %v3301 = vpack.c.b16 %v3241, %v3240
        %v3302 = vpack.c.b16 %v3243, %v3242
        %v3303 = vpack.c.b16 %v3245, %v3244
        %v3304 = vpack.c.b16 %v3247, %v3246
        %v3305 = vpack.c.b16 %v3249, %v3248
        %v3306 = vpack.c.b16 %v3251, %v3250
        %v3307 = vpack.c.b16 %v3253, %v3252
        %v3308 = vpack.c.b16 %v3255, %v3254
        %v3309 = vpack.c.b16 %v3257, %v3256
        %v3310 = vpack.c.b16 %v3259, %v3258
        %v3311 = vpack.c.b16 %v3261, %v3260
        %v3312 = vpack.c.b16 %v3263, %v3262
        %v3313 = vpack.c.b16 %v3265, %v3264
        %3362 = vmatprep.subr.bf16.mxu0 0
        %3363 = vmatpush1.bf16.msra.mxu0 %v3266
        %3364 = vmatprep.subr.bf16.mxu0 0
        %3365 = vmatpush1.bf16.msra.mxu0 %v3267
        %3366 = vmatprep.subr.bf16.mxu0 0
        %3367 = vmatpush1.bf16.msra.mxu0 %v3268
        %3368 = vmatprep.subr.bf16.mxu0 0
        %3369 = vmatpush1.bf16.msra.mxu0 %v3269
        %3370 = vmatprep.subr.bf16.mxu0 0
        %3371 = vmatpush1.bf16.msra.mxu0 %v3270
        %3372 = vmatprep.subr.bf16.mxu0 0
        %3373 = vmatpush1.bf16.msra.mxu0 %v3271
        %3374 = vmatprep.subr.bf16.mxu0 0
        %3375 = vmatpush1.bf16.msra.mxu0 %v3272
        %3376 = vmatprep.subr.bf16.mxu0 0
        %3377 = vmatpush1.bf16.msra.mxu0 %v3273
        %3378 = vmatprep.subr.bf16.mxu0 0
        %3379 = vmatpush1.bf16.msra.mxu0 %v3274
        %3380 = vmatprep.subr.bf16.mxu0 0
        %3381 = vmatpush1.bf16.msra.mxu0 %v3275
        %3382 = vmatprep.subr.bf16.mxu0 0
        %3383 = vmatpush1.bf16.msra.mxu0 %v3276
        %3384 = vmatprep.subr.bf16.mxu0 0
        %3385 = vmatpush1.bf16.msra.mxu0 %v3277
        %3386 = vmatprep.subr.bf16.mxu0 0
        %3387 = vmatpush1.bf16.msra.mxu0 %v3278
        %3388 = vmatprep.subr.bf16.mxu0 0
        %3389 = vmatpush1.bf16.msra.mxu0 %v3279
        %3390 = vmatprep.subr.bf16.mxu0 0
        %3391 = vmatpush1.bf16.msra.mxu0 %v3280
        %3392 = vmatprep.subr.bf16.mxu0 0
        %3393 = vmatpush1.bf16.msra.mxu0 %v3281
        %3394 = vmatprep.mubr.bf16.mxu0 %v2966
        %3395 = vmatmul.mubr.bf16.gmra.mrb[0].mxu0 %v2965
        %v3396 = vpop.f32.mrb[0].mxu0
        %v3397 = vadd.f32 %v3072, %v3396
        %v3398 = vpop.f32.mrb[0].mxu0
        %v3399 = vpop.f32.mrb[0].mxu0
        %v3400 = vadd.f32 %v3072, %v3399
        %v3401 = vpop.f32.mrb[0].mxu0
        %3402 = vdwg.mxu0
        %3403 = vmatprep.subr.bf16.mxu0 0
        %3404 = vmatpush1.bf16.msra.mxu0 %v3282
        %3405 = vmatprep.subr.bf16.mxu0 0
        %3406 = vmatpush1.bf16.msra.mxu0 %v3283
        %3407 = vmatprep.subr.bf16.mxu0 0
        %3408 = vmatpush1.bf16.msra.mxu0 %v3284
        %3409 = vmatprep.subr.bf16.mxu0 0
        %3410 = vmatpush1.bf16.msra.mxu0 %v3285
        %3411 = vmatprep.subr.bf16.mxu0 0
        %3412 = vmatpush1.bf16.msra.mxu0 %v3286
        %3413 = vmatprep.subr.bf16.mxu0 0
        %3414 = vmatpush1.bf16.msra.mxu0 %v3287
        %3415 = vmatprep.subr.bf16.mxu0 0
        %3416 = vmatpush1.bf16.msra.mxu0 %v3288
        %3417 = vmatprep.subr.bf16.mxu0 0
        %3418 = vmatpush1.bf16.msra.mxu0 %v3289
        %3419 = vmatprep.subr.bf16.mxu0 0
        %3420 = vmatpush1.bf16.msra.mxu0 %v3290
        %3421 = vmatprep.subr.bf16.mxu0 0
        %3422 = vmatpush1.bf16.msra.mxu0 %v3291
        %3423 = vmatprep.subr.bf16.mxu0 0
        %3424 = vmatpush1.bf16.msra.mxu0 %v3292
        %3425 = vmatprep.subr.bf16.mxu0 0
        %3426 = vmatpush1.bf16.msra.mxu0 %v3293
        %3427 = vmatprep.subr.bf16.mxu0 0
        %3428 = vmatpush1.bf16.msra.mxu0 %v3294
        %3429 = vmatprep.subr.bf16.mxu0 0
        %3430 = vmatpush1.bf16.msra.mxu0 %v3295
        %3431 = vmatprep.subr.bf16.mxu0 0
        %3432 = vmatpush1.bf16.msra.mxu0 %v3296
        %3433 = vmatprep.subr.bf16.mxu0 0
        %3434 = vmatpush1.bf16.msra.mxu0 %v3297
        %3435 = vmatprep.mubr.bf16.mxu0 %v2968
        %3436 = vmatmul.mubr.bf16.gmra.mrb[0].mxu0 %v2967
        %v3437 = vpop.f32.mrb[0].mxu0
        %v3438 = vadd.f32 %v3397, %v3437
        %v3439 = vpop.f32.mrb[0].mxu0
        %v3440 = vpop.f32.mrb[0].mxu0
        %v3441 = vadd.f32 %v3400, %v3440
        %v3442 = vpop.f32.mrb[0].mxu0
        %3443 = vdwg.mxu0
        %3444 = vmatprep.subr.bf16.mxu0 0
        %3445 = vmatpush1.bf16.msra.mxu0 %v3298
        %3446 = vmatprep.subr.bf16.mxu0 0
        %3447 = vmatpush1.bf16.msra.mxu0 %v3299
        %3448 = vmatprep.subr.bf16.mxu0 0
        %3449 = vmatpush1.bf16.msra.mxu0 %v3300
        %3450 = vmatprep.subr.bf16.mxu0 0
        %3451 = vmatpush1.bf16.msra.mxu0 %v3301
        %3452 = vmatprep.subr.bf16.mxu0 0
        %3453 = vmatpush1.bf16.msra.mxu0 %v3302
        %3454 = vmatprep.subr.bf16.mxu0 0
        %3455 = vmatpush1.bf16.msra.mxu0 %v3303
        %3456 = vmatprep.subr.bf16.mxu0 0
        %3457 = vmatpush1.bf16.msra.mxu0 %v3304
        %3458 = vmatprep.subr.bf16.mxu0 0
        %3459 = vmatpush1.bf16.msra.mxu0 %v3305
        %3460 = vmatprep.subr.bf16.mxu0 0
        %3461 = vmatpush1.bf16.msra.mxu0 %v3306
        %3462 = vmatprep.subr.bf16.mxu0 0
        %3463 = vmatpush1.bf16.msra.mxu0 %v3307
        %3464 = vmatprep.subr.bf16.mxu0 0
        %3465 = vmatpush1.bf16.msra.mxu0 %v3308
        %3466 = vmatprep.subr.bf16.mxu0 0
        %3467 = vmatpush1.bf16.msra.mxu0 %v3309
        %3468 = vmatprep.subr.bf16.mxu0 0
        %3469 = vmatpush1.bf16.msra.mxu0 %v3310
        %3470 = vmatprep.subr.bf16.mxu0 0
        %3471 = vmatpush1.bf16.msra.mxu0 %v3311
        %3472 = vmatprep.subr.bf16.mxu0 0
        %3473 = vmatpush1.bf16.msra.mxu0 %v3312
        %3474 = vmatprep.subr.bf16.mxu0 0
        %3475 = vmatpush1.bf16.msra.mxu0 %v3313
        %3476 = vmatprep.mubr.bf16.mxu0 %v2970
        %3477 = vmatmul.mubr.bf16.gmra.mrb[0].mxu0 %v2969
        %v3478 = vpop.f32.mrb[0].mxu0
        %v3479 = vadd.f32 %v3438, %v3478
        %v3480 = vpop.f32.mrb[0].mxu0
        %v3481 = vpop.f32.mrb[0].mxu0
        %v3482 = vadd.f32 %v3441, %v3481
        %v3483 = vpop.f32.mrb[0].mxu0
        %3484 = vdwg.mxu0
        %3485 = vst [vmem:[%s841] sm:$0xff] %v3479
        %3486 = vst [vmem:[%s841 + $0x8] sm:$0xff] %v3482
        %s3487 = sand.u32 %s182, 1
        %s3488 = scalar_lea.sflag [#allocation5], %s3487
        %s3489 = sand.u32 %s182, 1
        %s3490 = smul.addr %s3489, 16
        %s3491 = scalar_lea.vmem [#allocation6], %s3490
        // Predicated region
        $region94: #{tpu_custom_call.1} parent=84 // pred_check
          %p3492 = pneg %p192
        $region95: #{tpu_custom_call.1} parent=84 // pred_check_branch
          %3494 = sbr.rel (%p3492) target = $region97
        $region96: #{tpu_custom_call.1} parent=84 // pred_region
          %s3495 = smul.u32 2, %s22
          %s3497 = ssub.s32 256, 256
          %3498 = vsyncadd %s3488, %s3497
          %s3499 = smul.addr %s3495, 128
          %s3500 = scalar_lea.hbm %s7, %s3499
          %s3501 = sshll.u32 %s3491, 4
          %s3502 = int_to_ptr.vmem [resolvable:$true] %s3501
          %3507 = dma.vmem_to_hbm [thread:$0]  %s3502, 256, %s3500, %s3488, 128, 128, 8
        $region97: #{tpu_custom_call.1} parent=84 // pred_fallthru
          _
      $region85: #{tpu_custom_call.1} parent=5 // pred_fallthru
        _
      %p3508 = scmp.le.s32.totalorder 2, %s17
      // Predicated region
      $region98: #{tpu_custom_call.1} parent=5 // pred_check
        %p3509 = pneg %p3508
      $region99: #{tpu_custom_call.1} parent=5 // pred_check_branch
        %3511 = sbr.rel (%p3509) target = $region101
      $region100: #{tpu_custom_call.1} parent=5 // pred_region
        %s3512 = ssub.s32 %s17, 2
        // Predicated region
        $region102: #{tpu_custom_call.1} parent=100 // pred_check
          %p3513 = pneg %p198
        $region103: #{tpu_custom_call.1} parent=100 // pred_check_branch
          %3515 = sbr.rel (%p3513) target = $region105
        $region104: #{tpu_custom_call.1} parent=100 // pred_region
          %s3516 = sand.u32 %s183, 1
          %s3517 = scalar_lea.sflag [#allocation5], %s3516
          %s3518 = sand.u32 %s183, 1
          %s3519 = smul.addr %s3518, 16
          %s3520 = scalar_lea.vmem [#allocation6], %s3519
          %3521 = dma.done %s3517, 256
        $region105: #{tpu_custom_call.1} parent=100 // pred_fallthru
          _
      $region101: #{tpu_custom_call.1} parent=5 // pred_fallthru
        _
    $region6: #{tpu_custom_call.1} parent=1 // loop_footer
      %s21 = sadd.s32 1, %s17
    $region7: #{tpu_custom_call.1} parent=1 // loop_footer_branch
      %16 = sbr.rel target = $region3
    $region8: #{tpu_custom_call.1} parent=1 // loop_exit
      _
    %3522 = vsyncpa [#allocation4], 1
    %s3523 = scalar_lea.sflag [#allocation4], 1
    %3524 = vsyncpa %s3523, 1
    %3525 = vsyncpa [#allocation5], 1
    %s3526 = scalar_lea.sflag [#allocation5], 1
    %3527 = vsyncpa %s3526, 1

</llo_original>
